<compile_context>
chip_gen: v6e
topology: v6e:2x2x1
jax: 0.10.0
libtpu: 0.0.40
codegen_flags: <defaults>
</compile_context>

<pallas_src>
import jax
import jax.numpy as jnp
from jax.experimental import pallas as pl
from jax.experimental.pallas import tpu as pltpu

EPS = 1e-5          # nn.BatchNorm2d default eps
SLOPE = 0.2         # LeakyReLU negative slope
LANE = 128          # TPU lane width
CIN0_PAD = 8        # image channels 3 -> 8 so that K = 4*4*8 = 128 for layer 1
VMEM_LIMIT = 48 * 1024 * 1024   # leave headroom on v7x (64 MiB physical VMEM)


def _leaky(y):
    return jnp.where(y >= 0, y, SLOPE * y)


def _ceil_to(n, m):
    return ((n + m - 1) // m) * m


def _store_channels(cout):
    """Channels persisted to HBM: minimal sublane-friendly padding (8), not 128."""
    return _ceil_to(cout, 8)


# ---------------------------------------------------------------------------
# Pallas kernels
# ---------------------------------------------------------------------------
def _emit_y_and_stats(acc, y_ref, s_ref):
    """Store y (sliced to the unpadded channel count) plus stacked per-tile BN
    partial statistics [sum; sum_sq] with a single store."""
    yc = acc[:, :y_ref.shape[-1]]
    y_ref[...] = yc.astype(y_ref.dtype)
    ssum = jnp.sum(yc, axis=0, keepdims=True)
    ssq = jnp.sum(yc * yc, axis=0, keepdims=True)
    s_ref[...] = jnp.concatenate([ssum, ssq], axis=0)[None]


def gemm_leaky_k1_kernel(p_ref, w_ref, o_ref):
    """Single-K-tile conv-as-GEMM + LeakyReLU (encoder layer 1, no BN)."""
    acc = jnp.dot(p_ref[...], w_ref[...], preferred_element_type=jnp.float32)
    o_ref[...] = _leaky(acc[:, :o_ref.shape[-1]]).astype(o_ref.dtype)


def gemm_stats_k1_kernel(p_ref, w_ref, y_ref, s_ref):
    """Single-K-tile conv-as-GEMM + per-tile partial BN statistics."""
    acc = jnp.dot(p_ref[...], w_ref[...], preferred_element_type=jnp.float32)
    _emit_y_and_stats(acc, y_ref, s_ref)


def gemm_leaky_kernel(p_ref, w_ref, o_ref, acc_ref):
    """General K-tiled conv-as-GEMM + LeakyReLU (f32 VMEM accumulator)."""
    k = pl.program_id(2)

    @pl.when(k == 0)
    def _():
        acc_ref[...] = jnp.zeros_like(acc_ref)

    acc_ref[...] += jnp.dot(p_ref[...], w_ref[...],
                            preferred_element_type=jnp.float32)

    @pl.when(k == pl.num_programs(2) - 1)
    def _():
        o_ref[...] = _leaky(acc_ref[...][:, :o_ref.shape[-1]]).astype(o_ref.dtype)


def gemm_stats_kernel(p_ref, w_ref, y_ref, s_ref, acc_ref):
    """General K-tiled conv-as-GEMM + per-tile partial BN statistics."""
    k = pl.program_id(2)

    @pl.when(k == 0)
    def _():
        acc_ref[...] = jnp.zeros_like(acc_ref)

    acc_ref[...] += jnp.dot(p_ref[...], w_ref[...],
                            preferred_element_type=jnp.float32)

    @pl.when(k == pl.num_programs(2) - 1)
    def _():
        _emit_y_and_stats(acc_ref[...], y_ref, s_ref)


def bn_leaky_kernel(y_ref, sc_ref, sh_ref, o_ref):
    """y * scale + shift, then LeakyReLU (BatchNorm normalize pass) -> bf16."""
    o_ref[...] = _leaky(y_ref[...] * sc_ref[...] + sh_ref[...]).astype(o_ref.dtype)


def bn_leaky_stats_kernel(y_ref, sc_ref, sh_ref, o_ref, s_ref):
    """bn_leaky + partial statistics of the *output* (feeds the outlogits BN)."""
    a = _leaky(y_ref[...] * sc_ref[...] + sh_ref[...])
    o_ref[...] = a.astype(o_ref.dtype)
    ssum = jnp.sum(a, axis=0, keepdims=True)
    ssq = jnp.sum(a * a, axis=0, keepdims=True)
    s_ref[...] = jnp.concatenate([ssum, ssq], axis=0)[None]


def head_kernel(p_ref, sc_ref, sh_ref, w_ref, b_ref, o_ref):
    """outlogits: BN normalize + LeakyReLU + 3x3/s3 conv (as GEMM) + bias + sigmoid."""
    z = _leaky(p_ref[...] * sc_ref[...] + sh_ref[...])            # f32
    y = jnp.dot(z.astype(jnp.bfloat16), w_ref[...],
                preferred_element_type=jnp.float32)
    y = y + b_ref[...]
    o_ref[...] = 1.0 / (1.0 + jnp.exp(-y))


# ---------------------------------------------------------------------------
# Tiling helpers
# ---------------------------------------------------------------------------
def _row_tiling(M, target):
    """(tile_m, padded_M); tile_m is M itself or a multiple of 16 (bf16 pack)."""
    if M <= target:
        return M, M
    t = max(16, (target // 16) * 16)
    for cand in range(t, 15, -16):
        if M % cand == 0:
            return cand, M
    return t, _ceil_to(M, t)          # fall back: zero-pad rows


def _n_tile(n, cap):
    """Largest tile <= cap that is either n itself or a 128-multiple divisor."""
    if n <= cap:
        return n
    best, d = LANE, LANE
    while d <= cap:
        if n % d == 0:
            best = d
        d += LANE
    return best


def _k_tile(K, cap):
    """Full K if it fits, else the largest 128-multiple divisor <= cap."""
    if K <= cap:
        return K
    best, d = None, LANE
    while d <= cap:
        if K % d == 0:
            best = d
        d += LANE
    return best if best is not None else K


# ---------------------------------------------------------------------------
# pallas_call wrappers
# ---------------------------------------------------------------------------
def conv_gemm(patches, w, out_cols, *, with_stats, out_dtype, tile_m=512):
    """Tiled GEMM: patches (M,K) bf16 @ w (K,Np) bf16.  Only the first `out_cols`
    columns are persisted (channel padding is not carried through HBM).
    If with_stats also returns (2, out_cols) = [sum, sum_sq] over rows (f32)."""
    M, K = patches.shape
    Np = w.shape[1]
    tm, Mp = _row_tiling(M, tile_m)
    if Mp != M:
        patches = jnp.pad(patches, ((0, Mp - M), (0, 0)))   # zero rows: no stat bias
    gm = Mp // tm

    tn_cap = 1024
    if gm == 1 and out_cols == Np and Np > LANE:
        tn_cap = min(tn_cap, Np // 2)      # expose >=2 parallel N tiles (v7x 2 TCs)
    tn = _n_tile(Np, tn_cap)
    if out_cols != Np:
        tn = Np                            # single N tile -> kernel slices padding
    tk = _k_tile(K, 2048)
    gn, gk = Np // tn, K // tk
    oc_tile = out_cols if gn == 1 else tn  # when gn > 1, out_cols == Np

    cparams = pltpu.CompilerParams(
        dimension_semantics=("parallel", "parallel")
        + (("arbitrary",) if gk > 1 else ()),
        vmem_limit_bytes=VMEM_LIMIT)

    if gk == 1:
        grid = (gm, gn)
        in_specs = [pl.BlockSpec((tm, K), lambda i, j: (i, 0)),
                    pl.BlockSpec((K, tn), lambda i, j: (0, j))]
        y_spec = pl.BlockSpec((tm, oc_tile), lambda i, j: (i, j))
        s_spec = pl.BlockSpec((1, 2, oc_tile), lambda i, j: (i, 0, j))
        scratch = []
        k_plain, k_stats = gemm_leaky_k1_kernel, gemm_stats_k1_kernel
    else:
        grid = (gm, gn, gk)
        in_specs = [pl.BlockSpec((tm, tk), lambda i, j, k: (i, k)),
                    pl.BlockSpec((tk, tn), lambda i, j, k: (k, j))]
        y_spec = pl.BlockSpec((tm, oc_tile), lambda i, j, k: (i, j))
        s_spec = pl.BlockSpec((1, 2, oc_tile), lambda i, j, k: (i, 0, j))
        scratch = [pltpu.VMEM((tm, tn), jnp.float32)]
        k_plain, k_stats = gemm_leaky_kernel, gemm_stats_kernel

    if with_stats:
        y, part = pl.pallas_call(
            k_stats, grid=grid, in_specs=in_specs,
            out_specs=(y_spec, s_spec),
            out_shape=(jax.ShapeDtypeStruct((Mp, out_cols), out_dtype),
                       jax.ShapeDtypeStruct((gm, 2, out_cols), jnp.float32)),
            scratch_shapes=scratch, compiler_params=cparams,
        )(patches, w)
        if Mp != M:
            y = y[:M]
        return y, jnp.sum(part, axis=0)

    y = pl.pallas_call(
        k_plain, grid=grid, in_specs=in_specs, out_specs=y_spec,
        out_shape=jax.ShapeDtypeStruct((Mp, out_cols), out_dtype),
        scratch_shapes=scratch, compiler_params=cparams,
    )(patches, w)
    return y if Mp == M else y[:M]


def bn_leaky(y, scale, shift, *, with_stats=False, out_dtype=jnp.bfloat16,
             tile_m=1024):
    """Tiled BatchNorm-normalize + LeakyReLU over y (M, C) with (1, C) scale/shift."""
    M, C = y.shape
    tm, Mp = _row_tiling(M, tile_m)
    if with_stats:
        # padded rows would bias the emitted statistics (leaky(shift) != 0)
        assert Mp == M, "bn_leaky(with_stats=True) requires an exact row tiling"
    if Mp != M:
        y = jnp.pad(y, ((0, Mp - M), (0, 0)))
    gm = Mp // tm

    in_specs = [pl.BlockSpec((tm, C), lambda i: (i, 0)),
                pl.BlockSpec((1, C), lambda i: (0, 0)),
                pl.BlockSpec((1, C), lambda i: (0, 0))]
    a_spec = pl.BlockSpec((tm, C), lambda i: (i, 0))
    cparams = pltpu.CompilerParams(dimension_semantics=("parallel",),
                                   vmem_limit_bytes=VMEM_LIMIT)

    if with_stats:
        a, part = pl.pallas_call(
            bn_leaky_stats_kernel, grid=(gm,), in_specs=in_specs,
            out_specs=(a_spec, pl.BlockSpec((1, 2, C), lambda i: (i, 0, 0))),
            out_shape=(jax.ShapeDtypeStruct((Mp, C), out_dtype),
                       jax.ShapeDtypeStruct((gm, 2, C), jnp.float32)),
            compiler_params=cparams,
        )(y, scale, shift)
        return a, jnp.sum(part, axis=0)

    a = pl.pallas_call(
        bn_leaky_kernel, grid=(gm,), in_specs=in_specs, out_specs=a_spec,
        out_shape=jax.ShapeDtypeStruct((Mp, C), out_dtype),
        compiler_params=cparams,
    )(y, scale, shift)
    return a if Mp == M else a[:M]


def head_call(patches, scale_vec, shift_vec, w, bias):
    """Fused outlogits head; the whole feature map is tiny and VMEM-resident."""
    M, Kh = patches.shape
    Np = w.shape[1]
    return pl.pallas_call(
        head_kernel,
        grid=(1,),
        in_specs=[pl.BlockSpec((M, Kh), lambda i: (0, 0)),
                  pl.BlockSpec((1, Kh), lambda i: (0, 0)),
                  pl.BlockSpec((1, Kh), lambda i: (0, 0)),
                  pl.BlockSpec((Kh, Np), lambda i: (0, 0)),
                  pl.BlockSpec((1, Np), lambda i: (0, 0))],
        out_specs=pl.BlockSpec((M, Np), lambda i: (0, 0)),
        out_shape=jax.ShapeDtypeStruct((M, Np), jnp.float32),
        compiler_params=pltpu.CompilerParams(
            dimension_semantics=("arbitrary",),
            vmem_limit_bytes=VMEM_LIMIT),
    )(patches, scale_vec, shift_vec, w, bias)


# ---------------------------------------------------------------------------
# Plain-JAX glue: im2col (data movement only), weight packing, params
# ---------------------------------------------------------------------------
def im2col(x_nhwc, k, stride, pad, out_dtype=jnp.bfloat16):
    """Extract (k, k) patches -> (N*Ho*Wo, k*k*C).  Column order = (kh, kw, c)."""
    x = x_nhwc.astype(out_dtype)
    N, H, W, C = x.shape
    if pad:
        x = jnp.pad(x, ((0, 0), (pad, pad), (pad, pad), (0, 0)))
    Ho = (H + 2 * pad - k) // stride + 1
    Wo = (W + 2 * pad - k) // stride + 1
    slabs = []
    for i in range(k):
        for j in range(k):
            slabs.append(
                x[:, i:i + stride * (Ho - 1) + 1:stride,
                     j:j + stride * (Wo - 1) + 1:stride, :])
    p = jnp.stack(slabs, axis=3)                 # (N, Ho, Wo, k*k, C)
    return p.reshape(N * Ho * Wo, k * k * C), Ho, Wo


def _to_gemm_weight(w_oihw, cin_pad, cout_pad):
    """(Cout, Cin, kH, kW) -> zero-padded bf16 (kH*kW*cin_pad, cout_pad)."""
    cout, cin, kh, kw = w_oihw.shape
    w = jnp.transpose(w_oihw, (2, 3, 1, 0))      # (kh, kw, cin, cout)
    w = jnp.pad(w, ((0, 0), (0, 0), (0, cin_pad - cin), (0, cout_pad - cout)))
    return w.reshape(kh * kw * cin_pad, cout_pad).astype(jnp.bfloat16)


def _pad_cols(v, c):
    return jnp.pad(v, ((0, 0), (0, c - v.shape[1])))


def make_layer_specs(ndf):
    # (cin, cout, kernel, stride, pad, has_bn)
    return [
        (3,        ndf,       4, 2, 1, False),
        (ndf,      ndf * 2,   4, 2, 1, True),
        (ndf * 2,  ndf * 4,   4, 2, 1, True),
        (ndf * 4,  ndf * 8,   4, 2, 1, True),
        (ndf * 8,  ndf * 16,  4, 2, 1, True),
        (ndf * 16, ndf * 32,  4, 2, 1, True),
        (ndf * 32, ndf * 16,  3, 1, 1, True),    # conv3x3
        (ndf * 16, ndf * 8,   3, 1, 1, True),    # conv3x3
    ]


def make_params(key, ndf):
    """Params pytree holds ONLY arrays (no python ints -> safe under jit)."""
    specs = make_layer_specs(ndf)
    params = {"encode": []}
    cin_store = CIN0_PAD
    for (cin, cout, k, s, p, bn) in specs:
        key, kw, kg, kb = jax.random.split(key, 4)
        w = jax.random.normal(kw, (cout, cin, k, k), jnp.float32) * 0.05
        layer = {"w_oihw": w,
                 "wg": _to_gemm_weight(w, cin_store, _ceil_to(cout, LANE))}
        if bn:
            layer["gamma"] = (1.0 + 0.1 * jax.random.normal(kg, (1, cout))).astype(jnp.float32)
            layer["beta"] = (0.1 * jax.random.normal(kb, (1, cout))).astype(jnp.float32)
        params["encode"].append(layer)
        cin_store = _store_channels(cout)

    c_head = ndf * 8
    key, kg, kb, kw, kbias = jax.random.split(key, 5)
    params["out_gamma"] = (1.0 + 0.1 * jax.random.normal(kg, (1, c_head))).astype(jnp.float32)
    params["out_beta"] = (0.1 * jax.random.normal(kb, (1, c_head))).astype(jnp.float32)
    w = jax.random.normal(kw, (1, c_head, 3, 3), jnp.float32) * 0.05
    params["out_w_oihw"] = w
    params["out_wg"] = _to_gemm_weight(w, cin_store, LANE)
    b = (0.1 * jax.random.normal(kbias, (1, 1))).astype(jnp.float32)
    params["out_bias"] = b
    params["out_bias_p"] = _pad_cols(b, LANE)
    return params


# ---------------------------------------------------------------------------
# Forward pass (Pallas)
# ---------------------------------------------------------------------------
def stage2_d_forward(params, image_nchw, ndf):
    specs = make_layer_specs(ndf)
    x = jnp.transpose(image_nchw, (0, 2, 3, 1)).astype(jnp.float32)     # NHWC, f32
    N = x.shape[0]
    x = jnp.pad(x, ((0, 0), (0, 0), (0, 0), (0, CIN0_PAD - x.shape[3])))

    head_stats = None
    n_layers = len(specs)
    for li, (layer, (cin, cout, k, s, p, bn)) in enumerate(zip(params["encode"], specs)):
        cs = _store_channels(cout)                  # static python int
        patches, Ho, Wo = im2col(x, k, s, p, out_dtype=jnp.bfloat16)
        m_true = N * Ho * Wo
        if not bn:
            a = conv_gemm(patches, layer["wg"], cs,
                          with_stats=False, out_dtype=jnp.bfloat16)
        else:
            y, stats = conv_gemm(patches, layer["wg"], cs,
                                 with_stats=True, out_dtype=jnp.float32)
            mean = stats[0:1, :] / m_true
            var = jnp.maximum(stats[1:2, :] / m_true - mean * mean, 0.0)
            scale = _pad_cols(layer["gamma"], cs) * jax.lax.rsqrt(var + EPS)
            shift = _pad_cols(layer["beta"], cs) - mean * scale
            if li == n_layers - 1:
                # last encoder layer also emits the stats the outlogits BN needs;
                # keep its (tiny) activation in f32 so head normalization matches
                a, head_stats = bn_leaky(y, scale, shift, with_stats=True,
                                         out_dtype=jnp.float32, tile_m=m_true)
            else:
                a = bn_leaky(y, scale, shift, out_dtype=jnp.bfloat16)
        x = a.reshape(N, Ho, Wo, cs)

    # ---- outlogits: BN + LeakyReLU + conv(3, stride 3, bias) + flatten + sigmoid
    cs8 = x.shape[3]
    m8 = N * x.shape[1] * x.shape[2]
    mean_h = head_stats[0:1, :] / m8
    var_h = jnp.maximum(head_stats[1:2, :] / m8 - mean_h * mean_h, 0.0)
    scale_h = _pad_cols(params["out_gamma"], cs8) * jax.lax.rsqrt(var_h + EPS)
    shift_h = _pad_cols(params["out_beta"], cs8) - mean_h * scale_h

    patches_h, Ho, Wo = im2col(x, 3, 3, 0, out_dtype=jnp.float32)
    sv = jnp.tile(scale_h, (1, 9))       # patch column order is (kh, kw, c)
    sh = jnp.tile(shift_h, (1, 9))
    out = head_call(patches_h, sv, sh, params["out_wg"], params["out_bias_p"])
    return out[:, 0].reshape(N, Ho * Wo)     # nn.Flatten of (N, 1, Ho, Wo)


# ---------------------------------------------------------------------------
# Pure-JAX reference (mirrors the bf16 MXU operands, f32 accumulation)
# ---------------------------------------------------------------------------
def _ref_conv(x_nhwc, w_oihw, stride, pad):
    w_hwio = jnp.transpose(w_oihw, (2, 3, 1, 0)).astype(jnp.bfloat16)
    return jax.lax.conv_general_dilated(
        x_nhwc.astype(jnp.bfloat16), w_hwio,
        window_strides=(stride, stride),
        padding=[(pad, pad), (pad, pad)],
        dimension_numbers=("NHWC", "HWIO", "NHWC"),
        preferred_element_type=jnp.float32)


def _ref_bn_train(x, gamma, beta):
    mean = jnp.mean(x, axis=(0, 1, 2), keepdims=True)
    var = jnp.mean(jnp.square(x - mean), axis=(0, 1, 2), keepdims=True)
    return (x - mean) * jax.lax.rsqrt(var + EPS) * gamma.reshape(1, 1, 1, -1) \
        + beta.reshape(1, 1, 1, -1)


def stage2_d_reference(params, image_nchw, ndf):
    specs = make_layer_specs(ndf)
    x = jnp.transpose(image_nchw, (0, 2, 3, 1)).astype(jnp.float32)
    for layer, (cin, cout, k, s, p, bn) in zip(params["encode"], specs):
        x = _ref_conv(x, layer["w_oihw"], s, p)
        if bn:
            x = _ref_bn_train(x, layer["gamma"], layer["beta"])
        x = _leaky(x)
    x = _leaky(_ref_bn_train(x, params["out_gamma"], params["out_beta"]))
    x = _ref_conv(x, params["out_w_oihw"], 3, 0) + params["out_bias"].reshape(1, 1, 1, 1)
    x = 1.0 / (1.0 + jnp.exp(-x))
    return x.reshape(x.shape[0], -1)


# ---------------------------------------------------------------------------
if __name__ == "__main__":
    # STAGE-II D expects 6 stride-2 convs then a k=3/s=3 conv: the smallest
    # valid spatial size is 192 (192 -> 96 -> 48 -> 24 -> 12 -> 6 -> 3 -> 1).
    args = {"DF_DIM": 4, "CONDITION_DIM": 8}   # CONDITION_DIM unused by forward()
    ndf = args["DF_DIM"]
    batch, H = 2, 192

    key = jax.random.PRNGKey(0)
    key, kimg, kparams = jax.random.split(key, 3)
    image = jax.random.normal(kimg, (batch, 3, H, H), jnp.float32)   # NCHW input
    params = make_params(kparams, ndf)

    fwd = jax.jit(stage2_d_forward, static_argnames=("ndf",))
    out = jax.block_until_ready(fwd(params, image, ndf=ndf))

    ref = jax.block_until_ready(stage2_d_reference(params, image, ndf))
    assert out.shape == (batch, 1), out.shape
    assert jnp.allclose(out, ref, atol=3e-3, rtol=3e-3), (out, ref)

    print("KERNEL_OK")
</pallas_src>

<mosaic_0001>
module attributes {stable_mosaic.version = 11 : i64} {
  func.func @gemm_leaky_k1_kernel(%arg0: i32, %arg1: i32, %arg2: memref<512x128xbf16, #tpu.memory_space<vmem>>, %arg3: memref<128x128xbf16, #tpu.memory_space<vmem>>, %arg4: memref<512x8xbf16, #tpu.memory_space<vmem>>) attributes {dimension_semantics = [#tpu.dimension_semantics<parallel>, #tpu.dimension_semantics<parallel>], iteration_bounds = array<i64: 36, 1>, scalar_prefetch = 0 : i64, scratch_operands = 0 : i64, tpu.core_type = #tpu.core_type<tc>, window_params = [{transform_indices = @transform_0, window_bounds = array<i64: 512, 128>}, {transform_indices = @transform_1, window_bounds = array<i64: 128, 128>}, {transform_indices = @transform_2, window_bounds = array<i64: 512, 8>}]} {
    %c0 = arith.constant 0 : index
    %c0_0 = arith.constant 0 : index
    %0 = vector.load %arg2[%c0, %c0_0] : memref<512x128xbf16, #tpu.memory_space<vmem>>, vector<512x128xbf16>
    %c0_1 = arith.constant 0 : index
    %c0_2 = arith.constant 0 : index
    %1 = vector.load %arg3[%c0_1, %c0_2] : memref<128x128xbf16, #tpu.memory_space<vmem>>, vector<128x128xbf16>
    %cst = arith.constant dense<0.000000e+00> : vector<512x128xf32>
    %2 = tpu.matmul %0, %1, %cst {dimension_numbers = #tpu.dot_dimension_numbers<[1], [0], [0], [1], [0, 0, 1, 1], [], []>} : vector<512x128xbf16>, vector<128x128xbf16>, vector<512x128xf32> -> vector<512x128xf32>
    %3 = vector.extract_strided_slice %2 {offsets = [0, 0], sizes = [512, 8], strides = [1, 1]} : vector<512x128xf32> to vector<512x8xf32>
    %cst_3 = arith.constant 0.000000e+00 : f32
    %4 = vector.broadcast %cst_3 : f32 to vector<512x8xf32>
    %5 = arith.cmpf oge, %3, %4 : vector<512x8xf32>
    %cst_4 = arith.constant 2.000000e-01 : f32
    %6 = vector.broadcast %cst_4 : f32 to vector<512x8xf32>
    %7 = arith.mulf %6, %3 : vector<512x8xf32>
    %8 = arith.select %5, %3, %7 : vector<512x8xi1>, vector<512x8xf32>
    %9 = arith.truncf %8 : vector<512x8xf32> to vector<512x8xbf16>
    %c0_5 = arith.constant 0 : index
    %c0_6 = arith.constant 0 : index
    %10 = vector.load %arg4[%c0_5, %c0_6] : memref<512x8xbf16, #tpu.memory_space<vmem>>, vector<512x8xbf16>
    tpu.vector_store %arg4[%c0_5, %c0_6], %9 {strides = array<i32>} : memref<512x8xbf16, #tpu.memory_space<vmem>>, vector<512x8xbf16>,
    return
  }
  func.func @transform_0(%arg0: i32, %arg1: i32) -> (i32, i32) {
    %c0_i32 = arith.constant 0 : i32
    %c0_i32_0 = arith.constant 0 : i32
    return %arg0, %c0_i32 : i32, i32
  }
  func.func @transform_1(%arg0: i32, %arg1: i32) -> (i32, i32) {
    %c0_i32 = arith.constant 0 : i32
    %c0_i32_0 = arith.constant 0 : i32
    return %c0_i32, %arg1 : i32, i32
  }
  func.func @transform_2(%arg0: i32, %arg1: i32) -> (i32, i32) {
    %c0_i32 = arith.constant 0 : i32
    return %arg0, %arg1 : i32, i32
  }
}

module attributes {stable_mosaic.version = 11 : i64} {
  func.func @gemm_stats_k1_kernel(%arg0: i32, %arg1: i32, %arg2: memref<512x128xbf16, #tpu.memory_space<vmem>>, %arg3: memref<128x128xbf16, #tpu.memory_space<vmem>>, %arg4: memref<512x8xf32, #tpu.memory_space<vmem>>, %arg5: memref<1x2x8xf32, #tpu.memory_space<vmem>>) attributes {dimension_semantics = [#tpu.dimension_semantics<parallel>, #tpu.dimension_semantics<parallel>], iteration_bounds = array<i64: 9, 1>, scalar_prefetch = 0 : i64, scratch_operands = 0 : i64, tpu.core_type = #tpu.core_type<tc>, window_params = [{transform_indices = @transform_0, window_bounds = array<i64: 512, 128>}, {transform_indices = @transform_1, window_bounds = array<i64: 128, 128>}, {transform_indices = @transform_2, window_bounds = array<i64: 512, 8>}, {transform_indices = @transform_3, window_bounds = array<i64: 1, 2, 8>}]} {
    %c0 = arith.constant 0 : index
    %c0_0 = arith.constant 0 : index
    %0 = vector.load %arg2[%c0, %c0_0] : memref<512x128xbf16, #tpu.memory_space<vmem>>, vector<512x128xbf16>
    %c0_1 = arith.constant 0 : index
    %c0_2 = arith.constant 0 : index
    %1 = vector.load %arg3[%c0_1, %c0_2] : memref<128x128xbf16, #tpu.memory_space<vmem>>, vector<128x128xbf16>
    %cst = arith.constant dense<0.000000e+00> : vector<512x128xf32>
    %2 = tpu.matmul %0, %1, %cst {dimension_numbers = #tpu.dot_dimension_numbers<[1], [0], [0], [1], [0, 0, 1, 1], [], []>} : vector<512x128xbf16>, vector<128x128xbf16>, vector<512x128xf32> -> vector<512x128xf32>
    %3 = vector.extract_strided_slice %2 {offsets = [0, 0], sizes = [512, 8], strides = [1, 1]} : vector<512x128xf32> to vector<512x8xf32>
    %c0_3 = arith.constant 0 : index
    %c0_4 = arith.constant 0 : index
    %4 = vector.load %arg4[%c0_3, %c0_4] : memref<512x8xf32, #tpu.memory_space<vmem>>, vector<512x8xf32>
    tpu.vector_store %arg4[%c0_3, %c0_4], %3 {strides = array<i32>} : memref<512x8xf32, #tpu.memory_space<vmem>>, vector<512x8xf32>,
    %cst_5 = arith.constant dense<0.000000e+00> : vector<8xf32>
    %5 = vector.multi_reduction <add>, %3, %cst_5 [0] : vector<512x8xf32> to vector<8xf32>
    %6 = vector.shape_cast %5 : vector<8xf32> to vector<1x8xf32>
    %7 = arith.mulf %3, %3 : vector<512x8xf32>
    %cst_6 = arith.constant dense<0.000000e+00> : vector<8xf32>
    %8 = vector.multi_reduction <add>, %7, %cst_6 [0] : vector<512x8xf32> to vector<8xf32>
    %9 = vector.shape_cast %8 : vector<8xf32> to vector<1x8xf32>
    %10 = tpu.concatenate %6, %9 in 0 : vector<1x8xf32>, vector<1x8xf32> -> vector<2x8xf32>
    %11 = vector.shape_cast %10 : vector<2x8xf32> to vector<1x2x8xf32>
    %c0_7 = arith.constant 0 : index
    %c0_8 = arith.constant 0 : index
    %c0_9 = arith.constant 0 : index
    %12 = vector.load %arg5[%c0_7, %c0_8, %c0_9] : memref<1x2x8xf32, #tpu.memory_space<vmem>>, vector<1x2x8xf32>
    tpu.vector_store %arg5[%c0_7, %c0_8, %c0_9], %11 {strides = array<i32>} : memref<1x2x8xf32, #tpu.memory_space<vmem>>, vector<1x2x8xf32>,
    return
  }
  func.func @transform_0(%arg0: i32, %arg1: i32) -> (i32, i32) {
    %c0_i32 = arith.constant 0 : i32
    %c0_i32_0 = arith.constant 0 : i32
    return %arg0, %c0_i32 : i32, i32
  }
  func.func @transform_1(%arg0: i32, %arg1: i32) -> (i32, i32) {
    %c0_i32 = arith.constant 0 : i32
    %c0_i32_0 = arith.constant 0 : i32
    return %c0_i32, %arg1 : i32, i32
  }
  func.func @transform_2(%arg0: i32, %arg1: i32) -> (i32, i32) {
    %c0_i32 = arith.constant 0 : i32
    return %arg0, %arg1 : i32, i32
  }
  func.func @transform_3(%arg0: i32, %arg1: i32) -> (i32, i32, i32) {
    %c0_i32 = arith.constant 0 : i32
    %c0_i32_0 = arith.constant 0 : i32
    return %arg0, %c0_i32, %arg1 : i32, i32, i32
  }
}

module attributes {stable_mosaic.version = 11 : i64} {
  func.func @bn_leaky_kernel(%arg0: i32, %arg1: memref<768x8xf32, #tpu.memory_space<vmem>>, %arg2: memref<1x8xf32, #tpu.memory_space<vmem>>, %arg3: memref<1x8xf32, #tpu.memory_space<vmem>>, %arg4: memref<768x8xbf16, #tpu.memory_space<vmem>>) attributes {dimension_semantics = [#tpu.dimension_semantics<parallel>], iteration_bounds = array<i64: 6>, scalar_prefetch = 0 : i64, scratch_operands = 0 : i64, tpu.core_type = #tpu.core_type<tc>, window_params = [{transform_indices = @transform_0, window_bounds = array<i64: 768, 8>}, {pipeline_mode = #tpu.pipeline_mode<synchronous>, transform_indices = @transform_1, window_bounds = array<i64: 1, 8>}, {pipeline_mode = #tpu.pipeline_mode<synchronous>, transform_indices = @transform_2, window_bounds = array<i64: 1, 8>}, {transform_indices = @transform_3, window_bounds = array<i64: 768, 8>}]} {
    %c0 = arith.constant 0 : index
    %c0_0 = arith.constant 0 : index
    %0 = vector.load %arg1[%c0, %c0_0] : memref<768x8xf32, #tpu.memory_space<vmem>>, vector<768x8xf32>
    %c0_1 = arith.constant 0 : index
    %c0_2 = arith.constant 0 : index
    %1 = vector.load %arg2[%c0_1, %c0_2] : memref<1x8xf32, #tpu.memory_space<vmem>>, vector<1x8xf32>
    %2 = vector.broadcast %1 : vector<1x8xf32> to vector<768x8xf32>
    %3 = arith.mulf %0, %2 : vector<768x8xf32>
    %c0_3 = arith.constant 0 : index
    %c0_4 = arith.constant 0 : index
    %4 = vector.load %arg3[%c0_3, %c0_4] : memref<1x8xf32, #tpu.memory_space<vmem>>, vector<1x8xf32>
    %5 = vector.broadcast %4 : vector<1x8xf32> to vector<768x8xf32>
    %6 = arith.addf %3, %5 : vector<768x8xf32>
    %cst = arith.constant 0.000000e+00 : f32
    %7 = vector.broadcast %cst : f32 to vector<768x8xf32>
    %8 = arith.cmpf oge, %6, %7 : vector<768x8xf32>
    %cst_5 = arith.constant 2.000000e-01 : f32
    %9 = vector.broadcast %cst_5 : f32 to vector<768x8xf32>
    %10 = arith.mulf %9, %6 : vector<768x8xf32>
    %11 = arith.select %8, %6, %10 : vector<768x8xi1>, vector<768x8xf32>
    %12 = arith.truncf %11 : vector<768x8xf32> to vector<768x8xbf16>
    %c0_6 = arith.constant 0 : index
    %c0_7 = arith.constant 0 : index
    %13 = vector.load %arg4[%c0_6, %c0_7] : memref<768x8xbf16, #tpu.memory_space<vmem>>, vector<768x8xbf16>
    tpu.vector_store %arg4[%c0_6, %c0_7], %12 {strides = array<i32>} : memref<768x8xbf16, #tpu.memory_space<vmem>>, vector<768x8xbf16>,
    return
  }
  func.func @transform_0(%arg0: i32) -> (i32, i32) {
    %c0_i32 = arith.constant 0 : i32
    %c0_i32_0 = arith.constant 0 : i32
    return %arg0, %c0_i32 : i32, i32
  }
  func.func @transform_1(%arg0: i32) -> (i32, i32) {
    %c0_i32 = arith.constant 0 : i32
    %c0_i32_0 = arith.constant 0 : i32
    %c0_i32_1 = arith.constant 0 : i32
    return %c0_i32, %c0_i32_0 : i32, i32
  }
  func.func @transform_2(%arg0: i32) -> (i32, i32) {
    %c0_i32 = arith.constant 0 : i32
    %c0_i32_0 = arith.constant 0 : i32
    %c0_i32_1 = arith.constant 0 : i32
    return %c0_i32, %c0_i32_0 : i32, i32
  }
  func.func @transform_3(%arg0: i32) -> (i32, i32) {
    %c0_i32 = arith.constant 0 : i32
    %c0_i32_0 = arith.constant 0 : i32
    return %arg0, %c0_i32 : i32, i32
  }
}

module attributes {stable_mosaic.version = 11 : i64} {
  func.func @gemm_stats_k1_kernel(%arg0: i32, %arg1: i32, %arg2: memref<384x128xbf16, #tpu.memory_space<vmem>>, %arg3: memref<128x128xbf16, #tpu.memory_space<vmem>>, %arg4: memref<384x16xf32, #tpu.memory_space<vmem>>, %arg5: memref<1x2x16xf32, #tpu.memory_space<vmem>>) attributes {dimension_semantics = [#tpu.dimension_semantics<parallel>, #tpu.dimension_semantics<parallel>], iteration_bounds = array<i64: 3, 1>, scalar_prefetch = 0 : i64, scratch_operands = 0 : i64, tpu.core_type = #tpu.core_type<tc>, window_params = [{transform_indices = @transform_0, window_bounds = array<i64: 384, 128>}, {transform_indices = @transform_1, window_bounds = array<i64: 128, 128>}, {transform_indices = @transform_2, window_bounds = array<i64: 384, 16>}, {transform_indices = @transform_3, window_bounds = array<i64: 1, 2, 16>}]} {
    %c0 = arith.constant 0 : index
    %c0_0 = arith.constant 0 : index
    %0 = vector.load %arg2[%c0, %c0_0] : memref<384x128xbf16, #tpu.memory_space<vmem>>, vector<384x128xbf16>
    %c0_1 = arith.constant 0 : index
    %c0_2 = arith.constant 0 : index
    %1 = vector.load %arg3[%c0_1, %c0_2] : memref<128x128xbf16, #tpu.memory_space<vmem>>, vector<128x128xbf16>
    %cst = arith.constant dense<0.000000e+00> : vector<384x128xf32>
    %2 = tpu.matmul %0, %1, %cst {dimension_numbers = #tpu.dot_dimension_numbers<[1], [0], [0], [1], [0, 0, 1, 1], [], []>} : vector<384x128xbf16>, vector<128x128xbf16>, vector<384x128xf32> -> vector<384x128xf32>
    %3 = vector.extract_strided_slice %2 {offsets = [0, 0], sizes = [384, 16], strides = [1, 1]} : vector<384x128xf32> to vector<384x16xf32>
    %c0_3 = arith.constant 0 : index
    %c0_4 = arith.constant 0 : index
    %4 = vector.load %arg4[%c0_3, %c0_4] : memref<384x16xf32, #tpu.memory_space<vmem>>, vector<384x16xf32>
    tpu.vector_store %arg4[%c0_3, %c0_4], %3 {strides = array<i32>} : memref<384x16xf32, #tpu.memory_space<vmem>>, vector<384x16xf32>,
    %cst_5 = arith.constant dense<0.000000e+00> : vector<16xf32>
    %5 = vector.multi_reduction <add>, %3, %cst_5 [0] : vector<384x16xf32> to vector<16xf32>
    %6 = vector.shape_cast %5 : vector<16xf32> to vector<1x16xf32>
    %7 = arith.mulf %3, %3 : vector<384x16xf32>
    %cst_6 = arith.constant dense<0.000000e+00> : vector<16xf32>
    %8 = vector.multi_reduction <add>, %7, %cst_6 [0] : vector<384x16xf32> to vector<16xf32>
    %9 = vector.shape_cast %8 : vector<16xf32> to vector<1x16xf32>
    %10 = tpu.concatenate %6, %9 in 0 : vector<1x16xf32>, vector<1x16xf32> -> vector<2x16xf32>
    %11 = vector.shape_cast %10 : vector<2x16xf32> to vector<1x2x16xf32>
    %c0_7 = arith.constant 0 : index
    %c0_8 = arith.constant 0 : index
    %c0_9 = arith.constant 0 : index
    %12 = vector.load %arg5[%c0_7, %c0_8, %c0_9] : memref<1x2x16xf32, #tpu.memory_space<vmem>>, vector<1x2x16xf32>
    tpu.vector_store %arg5[%c0_7, %c0_8, %c0_9], %11 {strides = array<i32>} : memref<1x2x16xf32, #tpu.memory_space<vmem>>, vector<1x2x16xf32>,
    return
  }
  func.func @transform_0(%arg0: i32, %arg1: i32) -> (i32, i32) {
    %c0_i32 = arith.constant 0 : i32
    %c0_i32_0 = arith.constant 0 : i32
    return %arg0, %c0_i32 : i32, i32
  }
  func.func @transform_1(%arg0: i32, %arg1: i32) -> (i32, i32) {
    %c0_i32 = arith.constant 0 : i32
    %c0_i32_0 = arith.constant 0 : i32
    return %c0_i32, %arg1 : i32, i32
  }
  func.func @transform_2(%arg0: i32, %arg1: i32) -> (i32, i32) {
    %c0_i32 = arith.constant 0 : i32
    return %arg0, %arg1 : i32, i32
  }
  func.func @transform_3(%arg0: i32, %arg1: i32) -> (i32, i32, i32) {
    %c0_i32 = arith.constant 0 : i32
    %c0_i32_0 = arith.constant 0 : i32
    return %arg0, %c0_i32, %arg1 : i32, i32, i32
  }
}

module attributes {stable_mosaic.version = 11 : i64} {
  func.func @bn_leaky_kernel(%arg0: i32, %arg1: memref<576x16xf32, #tpu.memory_space<vmem>>, %arg2: memref<1x16xf32, #tpu.memory_space<vmem>>, %arg3: memref<1x16xf32, #tpu.memory_space<vmem>>, %arg4: memref<576x16xbf16, #tpu.memory_space<vmem>>) attributes {dimension_semantics = [#tpu.dimension_semantics<parallel>], iteration_bounds = array<i64: 2>, scalar_prefetch = 0 : i64, scratch_operands = 0 : i64, tpu.core_type = #tpu.core_type<tc>, window_params = [{transform_indices = @transform_0, window_bounds = array<i64: 576, 16>}, {pipeline_mode = #tpu.pipeline_mode<synchronous>, transform_indices = @transform_1, window_bounds = array<i64: 1, 16>}, {pipeline_mode = #tpu.pipeline_mode<synchronous>, transform_indices = @transform_2, window_bounds = array<i64: 1, 16>}, {transform_indices = @transform_3, window_bounds = array<i64: 576, 16>}]} {
    %c0 = arith.constant 0 : index
    %c0_0 = arith.constant 0 : index
    %0 = vector.load %arg1[%c0, %c0_0] : memref<576x16xf32, #tpu.memory_space<vmem>>, vector<576x16xf32>
    %c0_1 = arith.constant 0 : index
    %c0_2 = arith.constant 0 : index
    %1 = vector.load %arg2[%c0_1, %c0_2] : memref<1x16xf32, #tpu.memory_space<vmem>>, vector<1x16xf32>
    %2 = vector.broadcast %1 : vector<1x16xf32> to vector<576x16xf32>
    %3 = arith.mulf %0, %2 : vector<576x16xf32>
    %c0_3 = arith.constant 0 : index
    %c0_4 = arith.constant 0 : index
    %4 = vector.load %arg3[%c0_3, %c0_4] : memref<1x16xf32, #tpu.memory_space<vmem>>, vector<1x16xf32>
    %5 = vector.broadcast %4 : vector<1x16xf32> to vector<576x16xf32>
    %6 = arith.addf %3, %5 : vector<576x16xf32>
    %cst = arith.constant 0.000000e+00 : f32
    %7 = vector.broadcast %cst : f32 to vector<576x16xf32>
    %8 = arith.cmpf oge, %6, %7 : vector<576x16xf32>
    %cst_5 = arith.constant 2.000000e-01 : f32
    %9 = vector.broadcast %cst_5 : f32 to vector<576x16xf32>
    %10 = arith.mulf %9, %6 : vector<576x16xf32>
    %11 = arith.select %8, %6, %10 : vector<576x16xi1>, vector<576x16xf32>
    %12 = arith.truncf %11 : vector<576x16xf32> to vector<576x16xbf16>
    %c0_6 = arith.constant 0 : index
    %c0_7 = arith.constant 0 : index
    %13 = vector.load %arg4[%c0_6, %c0_7] : memref<576x16xbf16, #tpu.memory_space<vmem>>, vector<576x16xbf16>
    tpu.vector_store %arg4[%c0_6, %c0_7], %12 {strides = array<i32>} : memref<576x16xbf16, #tpu.memory_space<vmem>>, vector<576x16xbf16>,
    return
  }
  func.func @transform_0(%arg0: i32) -> (i32, i32) {
    %c0_i32 = arith.constant 0 : i32
    %c0_i32_0 = arith.constant 0 : i32
    return %arg0, %c0_i32 : i32, i32
  }
  func.func @transform_1(%arg0: i32) -> (i32, i32) {
    %c0_i32 = arith.constant 0 : i32
    %c0_i32_0 = arith.constant 0 : i32
    %c0_i32_1 = arith.constant 0 : i32
    return %c0_i32, %c0_i32_0 : i32, i32
  }
  func.func @transform_2(%arg0: i32) -> (i32, i32) {
    %c0_i32 = arith.constant 0 : i32
    %c0_i32_0 = arith.constant 0 : i32
    %c0_i32_1 = arith.constant 0 : i32
    return %c0_i32, %c0_i32_0 : i32, i32
  }
  func.func @transform_3(%arg0: i32) -> (i32, i32) {
    %c0_i32 = arith.constant 0 : i32
    %c0_i32_0 = arith.constant 0 : i32
    return %arg0, %c0_i32 : i32, i32
  }
}

module attributes {stable_mosaic.version = 11 : i64} {
  func.func @gemm_stats_k1_kernel(%arg0: i32, %arg1: i32, %arg2: memref<288x256xbf16, #tpu.memory_space<vmem>>, %arg3: memref<256x128xbf16, #tpu.memory_space<vmem>>, %arg4: memref<288x32xf32, #tpu.memory_space<vmem>>, %arg5: memref<1x2x32xf32, #tpu.memory_space<vmem>>) attributes {dimension_semantics = [#tpu.dimension_semantics<parallel>, #tpu.dimension_semantics<parallel>], iteration_bounds = array<i64: 1, 1>, scalar_prefetch = 0 : i64, scratch_operands = 0 : i64, tpu.core_type = #tpu.core_type<tc>, window_params = [{transform_indices = @transform_0, window_bounds = array<i64: 288, 256>}, {transform_indices = @transform_1, window_bounds = array<i64: 256, 128>}, {transform_indices = @transform_2, window_bounds = array<i64: 288, 32>}, {transform_indices = @transform_3, window_bounds = array<i64: 1, 2, 32>}]} {
    %c0 = arith.constant 0 : index
    %c0_0 = arith.constant 0 : index
    %0 = vector.load %arg2[%c0, %c0_0] : memref<288x256xbf16, #tpu.memory_space<vmem>>, vector<288x256xbf16>
    %c0_1 = arith.constant 0 : index
    %c0_2 = arith.constant 0 : index
    %1 = vector.load %arg3[%c0_1, %c0_2] : memref<256x128xbf16, #tpu.memory_space<vmem>>, vector<256x128xbf16>
    %cst = arith.constant dense<0.000000e+00> : vector<288x128xf32>
    %2 = tpu.matmul %0, %1, %cst {dimension_numbers = #tpu.dot_dimension_numbers<[1], [0], [0], [1], [0, 0, 1, 1], [], []>} : vector<288x256xbf16>, vector<256x128xbf16>, vector<288x128xf32> -> vector<288x128xf32>
    %3 = vector.extract_strided_slice %2 {offsets = [0, 0], sizes = [288, 32], strides = [1, 1]} : vector<288x128xf32> to vector<288x32xf32>
    %c0_3 = arith.constant 0 : index
    %c0_4 = arith.constant 0 : index
    %4 = vector.load %arg4[%c0_3, %c0_4] : memref<288x32xf32, #tpu.memory_space<vmem>>, vector<288x32xf32>
    tpu.vector_store %arg4[%c0_3, %c0_4], %3 {strides = array<i32>} : memref<288x32xf32, #tpu.memory_space<vmem>>, vector<288x32xf32>,
    %cst_5 = arith.constant dense<0.000000e+00> : vector<32xf32>
    %5 = vector.multi_reduction <add>, %3, %cst_5 [0] : vector<288x32xf32> to vector<32xf32>
    %6 = vector.shape_cast %5 : vector<32xf32> to vector<1x32xf32>
    %7 = arith.mulf %3, %3 : vector<288x32xf32>
    %cst_6 = arith.constant dense<0.000000e+00> : vector<32xf32>
    %8 = vector.multi_reduction <add>, %7, %cst_6 [0] : vector<288x32xf32> to vector<32xf32>
    %9 = vector.shape_cast %8 : vector<32xf32> to vector<1x32xf32>
    %10 = tpu.concatenate %6, %9 in 0 : vector<1x32xf32>, vector<1x32xf32> -> vector<2x32xf32>
    %11 = vector.shape_cast %10 : vector<2x32xf32> to vector<1x2x32xf32>
    %c0_7 = arith.constant 0 : index
    %c0_8 = arith.constant 0 : index
    %c0_9 = arith.constant 0 : index
    %12 = vector.load %arg5[%c0_7, %c0_8, %c0_9] : memref<1x2x32xf32, #tpu.memory_space<vmem>>, vector<1x2x32xf32>
    tpu.vector_store %arg5[%c0_7, %c0_8, %c0_9], %11 {strides = array<i32>} : memref<1x2x32xf32, #tpu.memory_space<vmem>>, vector<1x2x32xf32>,
    return
  }
  func.func @transform_0(%arg0: i32, %arg1: i32) -> (i32, i32) {
    %c0_i32 = arith.constant 0 : i32
    %c0_i32_0 = arith.constant 0 : i32
    return %arg0, %c0_i32 : i32, i32
  }
  func.func @transform_1(%arg0: i32, %arg1: i32) -> (i32, i32) {
    %c0_i32 = arith.constant 0 : i32
    %c0_i32_0 = arith.constant 0 : i32
    return %c0_i32, %arg1 : i32, i32
  }
  func.func @transform_2(%arg0: i32, %arg1: i32) -> (i32, i32) {
    %c0_i32 = arith.constant 0 : i32
    return %arg0, %arg1 : i32, i32
  }
  func.func @transform_3(%arg0: i32, %arg1: i32) -> (i32, i32, i32) {
    %c0_i32 = arith.constant 0 : i32
    %c0_i32_0 = arith.constant 0 : i32
    return %arg0, %c0_i32, %arg1 : i32, i32, i32
  }
}

module attributes {stable_mosaic.version = 11 : i64} {
  func.func @bn_leaky_kernel(%arg0: i32, %arg1: memref<288x32xf32, #tpu.memory_space<vmem>>, %arg2: memref<1x32xf32, #tpu.memory_space<vmem>>, %arg3: memref<1x32xf32, #tpu.memory_space<vmem>>, %arg4: memref<288x32xbf16, #tpu.memory_space<vmem>>) attributes {dimension_semantics = [#tpu.dimension_semantics<parallel>], iteration_bounds = array<i64: 1>, scalar_prefetch = 0 : i64, scratch_operands = 0 : i64, tpu.core_type = #tpu.core_type<tc>, window_params = [{transform_indices = @transform_0, window_bounds = array<i64: 288, 32>}, {pipeline_mode = #tpu.pipeline_mode<synchronous>, transform_indices = @transform_1, window_bounds = array<i64: 1, 32>}, {pipeline_mode = #tpu.pipeline_mode<synchronous>, transform_indices = @transform_2, window_bounds = array<i64: 1, 32>}, {transform_indices = @transform_3, window_bounds = array<i64: 288, 32>}]} {
    %c0 = arith.constant 0 : index
    %c0_0 = arith.constant 0 : index
    %0 = vector.load %arg1[%c0, %c0_0] : memref<288x32xf32, #tpu.memory_space<vmem>>, vector<288x32xf32>
    %c0_1 = arith.constant 0 : index
    %c0_2 = arith.constant 0 : index
    %1 = vector.load %arg2[%c0_1, %c0_2] : memref<1x32xf32, #tpu.memory_space<vmem>>, vector<1x32xf32>
    %2 = vector.broadcast %1 : vector<1x32xf32> to vector<288x32xf32>
    %3 = arith.mulf %0, %2 : vector<288x32xf32>
    %c0_3 = arith.constant 0 : index
    %c0_4 = arith.constant 0 : index
    %4 = vector.load %arg3[%c0_3, %c0_4] : memref<1x32xf32, #tpu.memory_space<vmem>>, vector<1x32xf32>
    %5 = vector.broadcast %4 : vector<1x32xf32> to vector<288x32xf32>
    %6 = arith.addf %3, %5 : vector<288x32xf32>
    %cst = arith.constant 0.000000e+00 : f32
    %7 = vector.broadcast %cst : f32 to vector<288x32xf32>
    %8 = arith.cmpf oge, %6, %7 : vector<288x32xf32>
    %cst_5 = arith.constant 2.000000e-01 : f32
    %9 = vector.broadcast %cst_5 : f32 to vector<288x32xf32>
    %10 = arith.mulf %9, %6 : vector<288x32xf32>
    %11 = arith.select %8, %6, %10 : vector<288x32xi1>, vector<288x32xf32>
    %12 = arith.truncf %11 : vector<288x32xf32> to vector<288x32xbf16>
    %c0_6 = arith.constant 0 : index
    %c0_7 = arith.constant 0 : index
    %13 = vector.load %arg4[%c0_6, %c0_7] : memref<288x32xbf16, #tpu.memory_space<vmem>>, vector<288x32xbf16>
    tpu.vector_store %arg4[%c0_6, %c0_7], %12 {strides = array<i32>} : memref<288x32xbf16, #tpu.memory_space<vmem>>, vector<288x32xbf16>,
    return
  }
  func.func @transform_0(%arg0: i32) -> (i32, i32) {
    %c0_i32 = arith.constant 0 : i32
    %c0_i32_0 = arith.constant 0 : i32
    return %arg0, %c0_i32 : i32, i32
  }
  func.func @transform_1(%arg0: i32) -> (i32, i32) {
    %c0_i32 = arith.constant 0 : i32
    %c0_i32_0 = arith.constant 0 : i32
    %c0_i32_1 = arith.constant 0 : i32
    return %c0_i32, %c0_i32_0 : i32, i32
  }
  func.func @transform_2(%arg0: i32) -> (i32, i32) {
    %c0_i32 = arith.constant 0 : i32
    %c0_i32_0 = arith.constant 0 : i32
    %c0_i32_1 = arith.constant 0 : i32
    return %c0_i32, %c0_i32_0 : i32, i32
  }
  func.func @transform_3(%arg0: i32) -> (i32, i32) {
    %c0_i32 = arith.constant 0 : i32
    %c0_i32_0 = arith.constant 0 : i32
    return %arg0, %c0_i32 : i32, i32
  }
}

module attributes {stable_mosaic.version = 11 : i64} {
  func.func @gemm_stats_k1_kernel(%arg0: i32, %arg1: i32, %arg2: memref<72x512xbf16, #tpu.memory_space<vmem>>, %arg3: memref<512x128xbf16, #tpu.memory_space<vmem>>, %arg4: memref<72x64xf32, #tpu.memory_space<vmem>>, %arg5: memref<1x2x64xf32, #tpu.memory_space<vmem>>) attributes {dimension_semantics = [#tpu.dimension_semantics<parallel>, #tpu.dimension_semantics<parallel>], iteration_bounds = array<i64: 1, 1>, scalar_prefetch = 0 : i64, scratch_operands = 0 : i64, tpu.core_type = #tpu.core_type<tc>, window_params = [{transform_indices = @transform_0, window_bounds = array<i64: 72, 512>}, {transform_indices = @transform_1, window_bounds = array<i64: 512, 128>}, {transform_indices = @transform_2, window_bounds = array<i64: 72, 64>}, {transform_indices = @transform_3, window_bounds = array<i64: 1, 2, 64>}]} {
    %c0 = arith.constant 0 : index
    %c0_0 = arith.constant 0 : index
    %0 = vector.load %arg2[%c0, %c0_0] : memref<72x512xbf16, #tpu.memory_space<vmem>>, vector<72x512xbf16>
    %c0_1 = arith.constant 0 : index
    %c0_2 = arith.constant 0 : index
    %1 = vector.load %arg3[%c0_1, %c0_2] : memref<512x128xbf16, #tpu.memory_space<vmem>>, vector<512x128xbf16>
    %cst = arith.constant dense<0.000000e+00> : vector<72x128xf32>
    %2 = tpu.matmul %0, %1, %cst {dimension_numbers = #tpu.dot_dimension_numbers<[1], [0], [0], [1], [0, 0, 1, 1], [], []>} : vector<72x512xbf16>, vector<512x128xbf16>, vector<72x128xf32> -> vector<72x128xf32>
    %3 = vector.extract_strided_slice %2 {offsets = [0, 0], sizes = [72, 64], strides = [1, 1]} : vector<72x128xf32> to vector<72x64xf32>
    %c0_3 = arith.constant 0 : index
    %c0_4 = arith.constant 0 : index
    %4 = vector.load %arg4[%c0_3, %c0_4] : memref<72x64xf32, #tpu.memory_space<vmem>>, vector<72x64xf32>
    tpu.vector_store %arg4[%c0_3, %c0_4], %3 {strides = array<i32>} : memref<72x64xf32, #tpu.memory_space<vmem>>, vector<72x64xf32>,
    %cst_5 = arith.constant dense<0.000000e+00> : vector<64xf32>
    %5 = vector.multi_reduction <add>, %3, %cst_5 [0] : vector<72x64xf32> to vector<64xf32>
    %6 = vector.shape_cast %5 : vector<64xf32> to vector<1x64xf32>
    %7 = arith.mulf %3, %3 : vector<72x64xf32>
    %cst_6 = arith.constant dense<0.000000e+00> : vector<64xf32>
    %8 = vector.multi_reduction <add>, %7, %cst_6 [0] : vector<72x64xf32> to vector<64xf32>
    %9 = vector.shape_cast %8 : vector<64xf32> to vector<1x64xf32>
    %10 = tpu.concatenate %6, %9 in 0 : vector<1x64xf32>, vector<1x64xf32> -> vector<2x64xf32>
    %11 = vector.shape_cast %10 : vector<2x64xf32> to vector<1x2x64xf32>
    %c0_7 = arith.constant 0 : index
    %c0_8 = arith.constant 0 : index
    %c0_9 = arith.constant 0 : index
    %12 = vector.load %arg5[%c0_7, %c0_8, %c0_9] : memref<1x2x64xf32, #tpu.memory_space<vmem>>, vector<1x2x64xf32>
    tpu.vector_store %arg5[%c0_7, %c0_8, %c0_9], %11 {strides = array<i32>} : memref<1x2x64xf32, #tpu.memory_space<vmem>>, vector<1x2x64xf32>,
    return
  }
  func.func @transform_0(%arg0: i32, %arg1: i32) -> (i32, i32) {
    %c0_i32 = arith.constant 0 : i32
    %c0_i32_0 = arith.constant 0 : i32
    return %arg0, %c0_i32 : i32, i32
  }
  func.func @transform_1(%arg0: i32, %arg1: i32) -> (i32, i32) {
    %c0_i32 = arith.constant 0 : i32
    %c0_i32_0 = arith.constant 0 : i32
    return %c0_i32, %arg1 : i32, i32
  }
  func.func @transform_2(%arg0: i32, %arg1: i32) -> (i32, i32) {
    %c0_i32 = arith.constant 0 : i32
    return %arg0, %arg1 : i32, i32
  }
  func.func @transform_3(%arg0: i32, %arg1: i32) -> (i32, i32, i32) {
    %c0_i32 = arith.constant 0 : i32
    %c0_i32_0 = arith.constant 0 : i32
    return %arg0, %c0_i32, %arg1 : i32, i32, i32
  }
}

module attributes {stable_mosaic.version = 11 : i64} {
  func.func @bn_leaky_kernel(%arg0: i32, %arg1: memref<72x64xf32, #tpu.memory_space<vmem>>, %arg2: memref<1x64xf32, #tpu.memory_space<vmem>>, %arg3: memref<1x64xf32, #tpu.memory_space<vmem>>, %arg4: memref<72x64xbf16, #tpu.memory_space<vmem>>) attributes {dimension_semantics = [#tpu.dimension_semantics<parallel>], iteration_bounds = array<i64: 1>, scalar_prefetch = 0 : i64, scratch_operands = 0 : i64, tpu.core_type = #tpu.core_type<tc>, window_params = [{transform_indices = @transform_0, window_bounds = array<i64: 72, 64>}, {pipeline_mode = #tpu.pipeline_mode<synchronous>, transform_indices = @transform_1, window_bounds = array<i64: 1, 64>}, {pipeline_mode = #tpu.pipeline_mode<synchronous>, transform_indices = @transform_2, window_bounds = array<i64: 1, 64>}, {transform_indices = @transform_3, window_bounds = array<i64: 72, 64>}]} {
    %c0 = arith.constant 0 : index
    %c0_0 = arith.constant 0 : index
    %0 = vector.load %arg1[%c0, %c0_0] : memref<72x64xf32, #tpu.memory_space<vmem>>, vector<72x64xf32>
    %c0_1 = arith.constant 0 : index
    %c0_2 = arith.constant 0 : index
    %1 = vector.load %arg2[%c0_1, %c0_2] : memref<1x64xf32, #tpu.memory_space<vmem>>, vector<1x64xf32>
    %2 = vector.broadcast %1 : vector<1x64xf32> to vector<72x64xf32>
    %3 = arith.mulf %0, %2 : vector<72x64xf32>
    %c0_3 = arith.constant 0 : index
    %c0_4 = arith.constant 0 : index
    %4 = vector.load %arg3[%c0_3, %c0_4] : memref<1x64xf32, #tpu.memory_space<vmem>>, vector<1x64xf32>
    %5 = vector.broadcast %4 : vector<1x64xf32> to vector<72x64xf32>
    %6 = arith.addf %3, %5 : vector<72x64xf32>
    %cst = arith.constant 0.000000e+00 : f32
    %7 = vector.broadcast %cst : f32 to vector<72x64xf32>
    %8 = arith.cmpf oge, %6, %7 : vector<72x64xf32>
    %cst_5 = arith.constant 2.000000e-01 : f32
    %9 = vector.broadcast %cst_5 : f32 to vector<72x64xf32>
    %10 = arith.mulf %9, %6 : vector<72x64xf32>
    %11 = arith.select %8, %6, %10 : vector<72x64xi1>, vector<72x64xf32>
    %12 = arith.truncf %11 : vector<72x64xf32> to vector<72x64xbf16>
    %c0_6 = arith.constant 0 : index
    %c0_7 = arith.constant 0 : index
    %13 = vector.load %arg4[%c0_6, %c0_7] : memref<72x64xbf16, #tpu.memory_space<vmem>>, vector<72x64xbf16>
    tpu.vector_store %arg4[%c0_6, %c0_7], %12 {strides = array<i32>} : memref<72x64xbf16, #tpu.memory_space<vmem>>, vector<72x64xbf16>,
    return
  }
  func.func @transform_0(%arg0: i32) -> (i32, i32) {
    %c0_i32 = arith.constant 0 : i32
    %c0_i32_0 = arith.constant 0 : i32
    return %arg0, %c0_i32 : i32, i32
  }
  func.func @transform_1(%arg0: i32) -> (i32, i32) {
    %c0_i32 = arith.constant 0 : i32
    %c0_i32_0 = arith.constant 0 : i32
    %c0_i32_1 = arith.constant 0 : i32
    return %c0_i32, %c0_i32_0 : i32, i32
  }
  func.func @transform_2(%arg0: i32) -> (i32, i32) {
    %c0_i32 = arith.constant 0 : i32
    %c0_i32_0 = arith.constant 0 : i32
    %c0_i32_1 = arith.constant 0 : i32
    return %c0_i32, %c0_i32_0 : i32, i32
  }
  func.func @transform_3(%arg0: i32) -> (i32, i32) {
    %c0_i32 = arith.constant 0 : i32
    %c0_i32_0 = arith.constant 0 : i32
    return %arg0, %c0_i32 : i32, i32
  }
}

module attributes {stable_mosaic.version = 11 : i64} {
  func.func @gemm_stats_k1_kernel(%arg0: i32, %arg1: i32, %arg2: memref<18x1024xbf16, #tpu.memory_space<vmem>>, %arg3: memref<1024x128xbf16, #tpu.memory_space<vmem>>, %arg4: memref<18x128xf32, #tpu.memory_space<vmem>>, %arg5: memref<1x2x128xf32, #tpu.memory_space<vmem>>) attributes {dimension_semantics = [#tpu.dimension_semantics<parallel>, #tpu.dimension_semantics<parallel>], iteration_bounds = array<i64: 1, 1>, scalar_prefetch = 0 : i64, scratch_operands = 0 : i64, tpu.core_type = #tpu.core_type<tc>, window_params = [{transform_indices = @transform_0, window_bounds = array<i64: 18, 1024>}, {transform_indices = @transform_1, window_bounds = array<i64: 1024, 128>}, {transform_indices = @transform_2, window_bounds = array<i64: 18, 128>}, {transform_indices = @transform_3, window_bounds = array<i64: 1, 2, 128>}]} {
    %c0 = arith.constant 0 : index
    %c0_0 = arith.constant 0 : index
    %0 = vector.load %arg2[%c0, %c0_0] : memref<18x1024xbf16, #tpu.memory_space<vmem>>, vector<18x1024xbf16>
    %c0_1 = arith.constant 0 : index
    %c0_2 = arith.constant 0 : index
    %1 = vector.load %arg3[%c0_1, %c0_2] : memref<1024x128xbf16, #tpu.memory_space<vmem>>, vector<1024x128xbf16>
    %cst = arith.constant dense<0.000000e+00> : vector<18x128xf32>
    %2 = tpu.matmul %0, %1, %cst {dimension_numbers = #tpu.dot_dimension_numbers<[1], [0], [0], [1], [0, 0, 1, 1], [], []>} : vector<18x1024xbf16>, vector<1024x128xbf16>, vector<18x128xf32> -> vector<18x128xf32>
    %c0_3 = arith.constant 0 : index
    %c0_4 = arith.constant 0 : index
    %3 = vector.load %arg4[%c0_3, %c0_4] : memref<18x128xf32, #tpu.memory_space<vmem>>, vector<18x128xf32>
    tpu.vector_store %arg4[%c0_3, %c0_4], %2 {strides = array<i32>} : memref<18x128xf32, #tpu.memory_space<vmem>>, vector<18x128xf32>,
    %cst_5 = arith.constant dense<0.000000e+00> : vector<128xf32>
    %4 = vector.multi_reduction <add>, %2, %cst_5 [0] : vector<18x128xf32> to vector<128xf32>
    %5 = vector.shape_cast %4 : vector<128xf32> to vector<1x128xf32>
    %6 = arith.mulf %2, %2 : vector<18x128xf32>
    %cst_6 = arith.constant dense<0.000000e+00> : vector<128xf32>
    %7 = vector.multi_reduction <add>, %6, %cst_6 [0] : vector<18x128xf32> to vector<128xf32>
    %8 = vector.shape_cast %7 : vector<128xf32> to vector<1x128xf32>
    %9 = tpu.concatenate %5, %8 in 0 : vector<1x128xf32>, vector<1x128xf32> -> vector<2x128xf32>
    %10 = vector.shape_cast %9 : vector<2x128xf32> to vector<1x2x128xf32>
    %c0_7 = arith.constant 0 : index
    %c0_8 = arith.constant 0 : index
    %c0_9 = arith.constant 0 : index
    %11 = vector.load %arg5[%c0_7, %c0_8, %c0_9] : memref<1x2x128xf32, #tpu.memory_space<vmem>>, vector<1x2x128xf32>
    tpu.vector_store %arg5[%c0_7, %c0_8, %c0_9], %10 {strides = array<i32>} : memref<1x2x128xf32, #tpu.memory_space<vmem>>, vector<1x2x128xf32>,
    return
  }
  func.func @transform_0(%arg0: i32, %arg1: i32) -> (i32, i32) {
    %c0_i32 = arith.constant 0 : i32
    %c0_i32_0 = arith.constant 0 : i32
    return %arg0, %c0_i32 : i32, i32
  }
  func.func @transform_1(%arg0: i32, %arg1: i32) -> (i32, i32) {
    %c0_i32 = arith.constant 0 : i32
    %c0_i32_0 = arith.constant 0 : i32
    return %c0_i32, %arg1 : i32, i32
  }
  func.func @transform_2(%arg0: i32, %arg1: i32) -> (i32, i32) {
    %c0_i32 = arith.constant 0 : i32
    return %arg0, %arg1 : i32, i32
  }
  func.func @transform_3(%arg0: i32, %arg1: i32) -> (i32, i32, i32) {
    %c0_i32 = arith.constant 0 : i32
    %c0_i32_0 = arith.constant 0 : i32
    return %arg0, %c0_i32, %arg1 : i32, i32, i32
  }
}

module attributes {stable_mosaic.version = 11 : i64} {
  func.func @bn_leaky_kernel(%arg0: i32, %arg1: memref<18x128xf32, #tpu.memory_space<vmem>>, %arg2: memref<1x128xf32, #tpu.memory_space<vmem>>, %arg3: memref<1x128xf32, #tpu.memory_space<vmem>>, %arg4: memref<18x128xbf16, #tpu.memory_space<vmem>>) attributes {dimension_semantics = [#tpu.dimension_semantics<parallel>], iteration_bounds = array<i64: 1>, scalar_prefetch = 0 : i64, scratch_operands = 0 : i64, tpu.core_type = #tpu.core_type<tc>, window_params = [{transform_indices = @transform_0, window_bounds = array<i64: 18, 128>}, {pipeline_mode = #tpu.pipeline_mode<synchronous>, transform_indices = @transform_1, window_bounds = array<i64: 1, 128>}, {pipeline_mode = #tpu.pipeline_mode<synchronous>, transform_indices = @transform_2, window_bounds = array<i64: 1, 128>}, {transform_indices = @transform_3, window_bounds = array<i64: 18, 128>}]} {
    %c0 = arith.constant 0 : index
    %c0_0 = arith.constant 0 : index
    %0 = vector.load %arg1[%c0, %c0_0] : memref<18x128xf32, #tpu.memory_space<vmem>>, vector<18x128xf32>
    %c0_1 = arith.constant 0 : index
    %c0_2 = arith.constant 0 : index
    %1 = vector.load %arg2[%c0_1, %c0_2] : memref<1x128xf32, #tpu.memory_space<vmem>>, vector<1x128xf32>
    %2 = vector.broadcast %1 : vector<1x128xf32> to vector<18x128xf32>
    %3 = arith.mulf %0, %2 : vector<18x128xf32>
    %c0_3 = arith.constant 0 : index
    %c0_4 = arith.constant 0 : index
    %4 = vector.load %arg3[%c0_3, %c0_4] : memref<1x128xf32, #tpu.memory_space<vmem>>, vector<1x128xf32>
    %5 = vector.broadcast %4 : vector<1x128xf32> to vector<18x128xf32>
    %6 = arith.addf %3, %5 : vector<18x128xf32>
    %cst = arith.constant 0.000000e+00 : f32
    %7 = vector.broadcast %cst : f32 to vector<18x128xf32>
    %8 = arith.cmpf oge, %6, %7 : vector<18x128xf32>
    %cst_5 = arith.constant 2.000000e-01 : f32
    %9 = vector.broadcast %cst_5 : f32 to vector<18x128xf32>
    %10 = arith.mulf %9, %6 : vector<18x128xf32>
    %11 = arith.select %8, %6, %10 : vector<18x128xi1>, vector<18x128xf32>
    %12 = arith.truncf %11 : vector<18x128xf32> to vector<18x128xbf16>
    %c0_6 = arith.constant 0 : index
    %c0_7 = arith.constant 0 : index
    %13 = vector.load %arg4[%c0_6, %c0_7] : memref<18x128xbf16, #tpu.memory_space<vmem>>, vector<18x128xbf16>
    tpu.vector_store %arg4[%c0_6, %c0_7], %12 {strides = array<i32>} : memref<18x128xbf16, #tpu.memory_space<vmem>>, vector<18x128xbf16>,
    return
  }
  func.func @transform_0(%arg0: i32) -> (i32, i32) {
    %c0_i32 = arith.constant 0 : i32
    %c0_i32_0 = arith.constant 0 : i32
    return %arg0, %c0_i32 : i32, i32
  }
  func.func @transform_1(%arg0: i32) -> (i32, i32) {
    %c0_i32 = arith.constant 0 : i32
    %c0_i32_0 = arith.constant 0 : i32
    %c0_i32_1 = arith.constant 0 : i32
    return %c0_i32, %c0_i32_0 : i32, i32
  }
  func.func @transform_2(%arg0: i32) -> (i32, i32) {
    %c0_i32 = arith.constant 0 : i32
    %c0_i32_0 = arith.constant 0 : i32
    %c0_i32_1 = arith.constant 0 : i32
    return %c0_i32, %c0_i32_0 : i32, i32
  }
  func.func @transform_3(%arg0: i32) -> (i32, i32) {
    %c0_i32 = arith.constant 0 : i32
    %c0_i32_0 = arith.constant 0 : i32
    return %arg0, %c0_i32 : i32, i32
  }
}

module attributes {stable_mosaic.version = 11 : i64} {
  func.func @bn_leaky_kernel(%arg0: i32, %arg1: memref<18x64xf32, #tpu.memory_space<vmem>>, %arg2: memref<1x64xf32, #tpu.memory_space<vmem>>, %arg3: memref<1x64xf32, #tpu.memory_space<vmem>>, %arg4: memref<18x64xbf16, #tpu.memory_space<vmem>>) attributes {dimension_semantics = [#tpu.dimension_semantics<parallel>], iteration_bounds = array<i64: 1>, scalar_prefetch = 0 : i64, scratch_operands = 0 : i64, tpu.core_type = #tpu.core_type<tc>, window_params = [{transform_indices = @transform_0, window_bounds = array<i64: 18, 64>}, {pipeline_mode = #tpu.pipeline_mode<synchronous>, transform_indices = @transform_1, window_bounds = array<i64: 1, 64>}, {pipeline_mode = #tpu.pipeline_mode<synchronous>, transform_indices = @transform_2, window_bounds = array<i64: 1, 64>}, {transform_indices = @transform_3, window_bounds = array<i64: 18, 64>}]} {
    %c0 = arith.constant 0 : index
    %c0_0 = arith.constant 0 : index
    %0 = vector.load %arg1[%c0, %c0_0] : memref<18x64xf32, #tpu.memory_space<vmem>>, vector<18x64xf32>
    %c0_1 = arith.constant 0 : index
    %c0_2 = arith.constant 0 : index
    %1 = vector.load %arg2[%c0_1, %c0_2] : memref<1x64xf32, #tpu.memory_space<vmem>>, vector<1x64xf32>
    %2 = vector.broadcast %1 : vector<1x64xf32> to vector<18x64xf32>
    %3 = arith.mulf %0, %2 : vector<18x64xf32>
    %c0_3 = arith.constant 0 : index
    %c0_4 = arith.constant 0 : index
    %4 = vector.load %arg3[%c0_3, %c0_4] : memref<1x64xf32, #tpu.memory_space<vmem>>, vector<1x64xf32>
    %5 = vector.broadcast %4 : vector<1x64xf32> to vector<18x64xf32>
    %6 = arith.addf %3, %5 : vector<18x64xf32>
    %cst = arith.constant 0.000000e+00 : f32
    %7 = vector.broadcast %cst : f32 to vector<18x64xf32>
    %8 = arith.cmpf oge, %6, %7 : vector<18x64xf32>
    %cst_5 = arith.constant 2.000000e-01 : f32
    %9 = vector.broadcast %cst_5 : f32 to vector<18x64xf32>
    %10 = arith.mulf %9, %6 : vector<18x64xf32>
    %11 = arith.select %8, %6, %10 : vector<18x64xi1>, vector<18x64xf32>
    %12 = arith.truncf %11 : vector<18x64xf32> to vector<18x64xbf16>
    %c0_6 = arith.constant 0 : index
    %c0_7 = arith.constant 0 : index
    %13 = vector.load %arg4[%c0_6, %c0_7] : memref<18x64xbf16, #tpu.memory_space<vmem>>, vector<18x64xbf16>
    tpu.vector_store %arg4[%c0_6, %c0_7], %12 {strides = array<i32>} : memref<18x64xbf16, #tpu.memory_space<vmem>>, vector<18x64xbf16>,
    return
  }
  func.func @transform_0(%arg0: i32) -> (i32, i32) {
    %c0_i32 = arith.constant 0 : i32
    %c0_i32_0 = arith.constant 0 : i32
    return %arg0, %c0_i32 : i32, i32
  }
  func.func @transform_1(%arg0: i32) -> (i32, i32) {
    %c0_i32 = arith.constant 0 : i32
    %c0_i32_0 = arith.constant 0 : i32
    %c0_i32_1 = arith.constant 0 : i32
    return %c0_i32, %c0_i32_0 : i32, i32
  }
  func.func @transform_2(%arg0: i32) -> (i32, i32) {
    %c0_i32 = arith.constant 0 : i32
    %c0_i32_0 = arith.constant 0 : i32
    %c0_i32_1 = arith.constant 0 : i32
    return %c0_i32, %c0_i32_0 : i32, i32
  }
  func.func @transform_3(%arg0: i32) -> (i32, i32) {
    %c0_i32 = arith.constant 0 : i32
    %c0_i32_0 = arith.constant 0 : i32
    return %arg0, %c0_i32 : i32, i32
  }
}

module attributes {stable_mosaic.version = 11 : i64} {
  func.func @gemm_stats_k1_kernel(%arg0: i32, %arg1: i32, %arg2: memref<18x1152xbf16, #tpu.memory_space<vmem>>, %arg3: memref<1152x128xbf16, #tpu.memory_space<vmem>>, %arg4: memref<18x64xf32, #tpu.memory_space<vmem>>, %arg5: memref<1x2x64xf32, #tpu.memory_space<vmem>>) attributes {dimension_semantics = [#tpu.dimension_semantics<parallel>, #tpu.dimension_semantics<parallel>], iteration_bounds = array<i64: 1, 1>, scalar_prefetch = 0 : i64, scratch_operands = 0 : i64, tpu.core_type = #tpu.core_type<tc>, window_params = [{transform_indices = @transform_0, window_bounds = array<i64: 18, 1152>}, {transform_indices = @transform_1, window_bounds = array<i64: 1152, 128>}, {transform_indices = @transform_2, window_bounds = array<i64: 18, 64>}, {transform_indices = @transform_3, window_bounds = array<i64: 1, 2, 64>}]} {
    %c0 = arith.constant 0 : index
    %c0_0 = arith.constant 0 : index
    %0 = vector.load %arg2[%c0, %c0_0] : memref<18x1152xbf16, #tpu.memory_space<vmem>>, vector<18x1152xbf16>
    %c0_1 = arith.constant 0 : index
    %c0_2 = arith.constant 0 : index
    %1 = vector.load %arg3[%c0_1, %c0_2] : memref<1152x128xbf16, #tpu.memory_space<vmem>>, vector<1152x128xbf16>
    %cst = arith.constant dense<0.000000e+00> : vector<18x128xf32>
    %2 = tpu.matmul %0, %1, %cst {dimension_numbers = #tpu.dot_dimension_numbers<[1], [0], [0], [1], [0, 0, 1, 1], [], []>} : vector<18x1152xbf16>, vector<1152x128xbf16>, vector<18x128xf32> -> vector<18x128xf32>
    %3 = vector.extract_strided_slice %2 {offsets = [0, 0], sizes = [18, 64], strides = [1, 1]} : vector<18x128xf32> to vector<18x64xf32>
    %c0_3 = arith.constant 0 : index
    %c0_4 = arith.constant 0 : index
    %4 = vector.load %arg4[%c0_3, %c0_4] : memref<18x64xf32, #tpu.memory_space<vmem>>, vector<18x64xf32>
    tpu.vector_store %arg4[%c0_3, %c0_4], %3 {strides = array<i32>} : memref<18x64xf32, #tpu.memory_space<vmem>>, vector<18x64xf32>,
    %cst_5 = arith.constant dense<0.000000e+00> : vector<64xf32>
    %5 = vector.multi_reduction <add>, %3, %cst_5 [0] : vector<18x64xf32> to vector<64xf32>
    %6 = vector.shape_cast %5 : vector<64xf32> to vector<1x64xf32>
    %7 = arith.mulf %3, %3 : vector<18x64xf32>
    %cst_6 = arith.constant dense<0.000000e+00> : vector<64xf32>
    %8 = vector.multi_reduction <add>, %7, %cst_6 [0] : vector<18x64xf32> to vector<64xf32>
    %9 = vector.shape_cast %8 : vector<64xf32> to vector<1x64xf32>
    %10 = tpu.concatenate %6, %9 in 0 : vector<1x64xf32>, vector<1x64xf32> -> vector<2x64xf32>
    %11 = vector.shape_cast %10 : vector<2x64xf32> to vector<1x2x64xf32>
    %c0_7 = arith.constant 0 : index
    %c0_8 = arith.constant 0 : index
    %c0_9 = arith.constant 0 : index
    %12 = vector.load %arg5[%c0_7, %c0_8, %c0_9] : memref<1x2x64xf32, #tpu.memory_space<vmem>>, vector<1x2x64xf32>
    tpu.vector_store %arg5[%c0_7, %c0_8, %c0_9], %11 {strides = array<i32>} : memref<1x2x64xf32, #tpu.memory_space<vmem>>, vector<1x2x64xf32>,
    return
  }
  func.func @transform_0(%arg0: i32, %arg1: i32) -> (i32, i32) {
    %c0_i32 = arith.constant 0 : i32
    %c0_i32_0 = arith.constant 0 : i32
    return %arg0, %c0_i32 : i32, i32
  }
  func.func @transform_1(%arg0: i32, %arg1: i32) -> (i32, i32) {
    %c0_i32 = arith.constant 0 : i32
    %c0_i32_0 = arith.constant 0 : i32
    return %c0_i32, %arg1 : i32, i32
  }
  func.func @transform_2(%arg0: i32, %arg1: i32) -> (i32, i32) {
    %c0_i32 = arith.constant 0 : i32
    return %arg0, %arg1 : i32, i32
  }
  func.func @transform_3(%arg0: i32, %arg1: i32) -> (i32, i32, i32) {
    %c0_i32 = arith.constant 0 : i32
    %c0_i32_0 = arith.constant 0 : i32
    return %arg0, %c0_i32, %arg1 : i32, i32, i32
  }
}

module attributes {stable_mosaic.version = 11 : i64} {
  func.func @gemm_stats_k1_kernel(%arg0: i32, %arg1: i32, %arg2: memref<18x576xbf16, #tpu.memory_space<vmem>>, %arg3: memref<576x128xbf16, #tpu.memory_space<vmem>>, %arg4: memref<18x32xf32, #tpu.memory_space<vmem>>, %arg5: memref<1x2x32xf32, #tpu.memory_space<vmem>>) attributes {dimension_semantics = [#tpu.dimension_semantics<parallel>, #tpu.dimension_semantics<parallel>], iteration_bounds = array<i64: 1, 1>, scalar_prefetch = 0 : i64, scratch_operands = 0 : i64, tpu.core_type = #tpu.core_type<tc>, window_params = [{transform_indices = @transform_0, window_bounds = array<i64: 18, 576>}, {transform_indices = @transform_1, window_bounds = array<i64: 576, 128>}, {transform_indices = @transform_2, window_bounds = array<i64: 18, 32>}, {transform_indices = @transform_3, window_bounds = array<i64: 1, 2, 32>}]} {
    %c0 = arith.constant 0 : index
    %c0_0 = arith.constant 0 : index
    %0 = vector.load %arg2[%c0, %c0_0] : memref<18x576xbf16, #tpu.memory_space<vmem>>, vector<18x576xbf16>
    %c0_1 = arith.constant 0 : index
    %c0_2 = arith.constant 0 : index
    %1 = vector.load %arg3[%c0_1, %c0_2] : memref<576x128xbf16, #tpu.memory_space<vmem>>, vector<576x128xbf16>
    %cst = arith.constant dense<0.000000e+00> : vector<18x128xf32>
    %2 = tpu.matmul %0, %1, %cst {dimension_numbers = #tpu.dot_dimension_numbers<[1], [0], [0], [1], [0, 0, 1, 1], [], []>} : vector<18x576xbf16>, vector<576x128xbf16>, vector<18x128xf32> -> vector<18x128xf32>
    %3 = vector.extract_strided_slice %2 {offsets = [0, 0], sizes = [18, 32], strides = [1, 1]} : vector<18x128xf32> to vector<18x32xf32>
    %c0_3 = arith.constant 0 : index
    %c0_4 = arith.constant 0 : index
    %4 = vector.load %arg4[%c0_3, %c0_4] : memref<18x32xf32, #tpu.memory_space<vmem>>, vector<18x32xf32>
    tpu.vector_store %arg4[%c0_3, %c0_4], %3 {strides = array<i32>} : memref<18x32xf32, #tpu.memory_space<vmem>>, vector<18x32xf32>,
    %cst_5 = arith.constant dense<0.000000e+00> : vector<32xf32>
    %5 = vector.multi_reduction <add>, %3, %cst_5 [0] : vector<18x32xf32> to vector<32xf32>
    %6 = vector.shape_cast %5 : vector<32xf32> to vector<1x32xf32>
    %7 = arith.mulf %3, %3 : vector<18x32xf32>
    %cst_6 = arith.constant dense<0.000000e+00> : vector<32xf32>
    %8 = vector.multi_reduction <add>, %7, %cst_6 [0] : vector<18x32xf32> to vector<32xf32>
    %9 = vector.shape_cast %8 : vector<32xf32> to vector<1x32xf32>
    %10 = tpu.concatenate %6, %9 in 0 : vector<1x32xf32>, vector<1x32xf32> -> vector<2x32xf32>
    %11 = vector.shape_cast %10 : vector<2x32xf32> to vector<1x2x32xf32>
    %c0_7 = arith.constant 0 : index
    %c0_8 = arith.constant 0 : index
    %c0_9 = arith.constant 0 : index
    %12 = vector.load %arg5[%c0_7, %c0_8, %c0_9] : memref<1x2x32xf32, #tpu.memory_space<vmem>>, vector<1x2x32xf32>
    tpu.vector_store %arg5[%c0_7, %c0_8, %c0_9], %11 {strides = array<i32>} : memref<1x2x32xf32, #tpu.memory_space<vmem>>, vector<1x2x32xf32>,
    return
  }
  func.func @transform_0(%arg0: i32, %arg1: i32) -> (i32, i32) {
    %c0_i32 = arith.constant 0 : i32
    %c0_i32_0 = arith.constant 0 : i32
    return %arg0, %c0_i32 : i32, i32
  }
  func.func @transform_1(%arg0: i32, %arg1: i32) -> (i32, i32) {
    %c0_i32 = arith.constant 0 : i32
    %c0_i32_0 = arith.constant 0 : i32
    return %c0_i32, %arg1 : i32, i32
  }
  func.func @transform_2(%arg0: i32, %arg1: i32) -> (i32, i32) {
    %c0_i32 = arith.constant 0 : i32
    return %arg0, %arg1 : i32, i32
  }
  func.func @transform_3(%arg0: i32, %arg1: i32) -> (i32, i32, i32) {
    %c0_i32 = arith.constant 0 : i32
    %c0_i32_0 = arith.constant 0 : i32
    return %arg0, %c0_i32, %arg1 : i32, i32, i32
  }
}

module attributes {stable_mosaic.version = 11 : i64} {
  func.func @bn_leaky_stats_kernel(%arg0: i32, %arg1: memref<18x32xf32, #tpu.memory_space<vmem>>, %arg2: memref<1x32xf32, #tpu.memory_space<vmem>>, %arg3: memref<1x32xf32, #tpu.memory_space<vmem>>, %arg4: memref<18x32xf32, #tpu.memory_space<vmem>>, %arg5: memref<1x2x32xf32, #tpu.memory_space<vmem>>) attributes {dimension_semantics = [#tpu.dimension_semantics<parallel>], iteration_bounds = array<i64: 1>, scalar_prefetch = 0 : i64, scratch_operands = 0 : i64, tpu.core_type = #tpu.core_type<tc>, window_params = [{transform_indices = @transform_0, window_bounds = array<i64: 18, 32>}, {pipeline_mode = #tpu.pipeline_mode<synchronous>, transform_indices = @transform_1, window_bounds = array<i64: 1, 32>}, {pipeline_mode = #tpu.pipeline_mode<synchronous>, transform_indices = @transform_2, window_bounds = array<i64: 1, 32>}, {transform_indices = @transform_3, window_bounds = array<i64: 18, 32>}, {transform_indices = @transform_4, window_bounds = array<i64: 1, 2, 32>}]} {
    %c0 = arith.constant 0 : index
    %c0_0 = arith.constant 0 : index
    %0 = vector.load %arg1[%c0, %c0_0] : memref<18x32xf32, #tpu.memory_space<vmem>>, vector<18x32xf32>
    %c0_1 = arith.constant 0 : index
    %c0_2 = arith.constant 0 : index
    %1 = vector.load %arg2[%c0_1, %c0_2] : memref<1x32xf32, #tpu.memory_space<vmem>>, vector<1x32xf32>
    %2 = vector.broadcast %1 : vector<1x32xf32> to vector<18x32xf32>
    %3 = arith.mulf %0, %2 : vector<18x32xf32>
    %c0_3 = arith.constant 0 : index
    %c0_4 = arith.constant 0 : index
    %4 = vector.load %arg3[%c0_3, %c0_4] : memref<1x32xf32, #tpu.memory_space<vmem>>, vector<1x32xf32>
    %5 = vector.broadcast %4 : vector<1x32xf32> to vector<18x32xf32>
    %6 = arith.addf %3, %5 : vector<18x32xf32>
    %cst = arith.constant 0.000000e+00 : f32
    %7 = vector.broadcast %cst : f32 to vector<18x32xf32>
    %8 = arith.cmpf oge, %6, %7 : vector<18x32xf32>
    %cst_5 = arith.constant 2.000000e-01 : f32
    %9 = vector.broadcast %cst_5 : f32 to vector<18x32xf32>
    %10 = arith.mulf %9, %6 : vector<18x32xf32>
    %11 = arith.select %8, %6, %10 : vector<18x32xi1>, vector<18x32xf32>
    %c0_6 = arith.constant 0 : index
    %c0_7 = arith.constant 0 : index
    %12 = vector.load %arg4[%c0_6, %c0_7] : memref<18x32xf32, #tpu.memory_space<vmem>>, vector<18x32xf32>
    tpu.vector_store %arg4[%c0_6, %c0_7], %11 {strides = array<i32>} : memref<18x32xf32, #tpu.memory_space<vmem>>, vector<18x32xf32>,
    %cst_8 = arith.constant dense<0.000000e+00> : vector<32xf32>
    %13 = vector.multi_reduction <add>, %11, %cst_8 [0] : vector<18x32xf32> to vector<32xf32>
    %14 = vector.shape_cast %13 : vector<32xf32> to vector<1x32xf32>
    %15 = arith.mulf %11, %11 : vector<18x32xf32>
    %cst_9 = arith.constant dense<0.000000e+00> : vector<32xf32>
    %16 = vector.multi_reduction <add>, %15, %cst_9 [0] : vector<18x32xf32> to vector<32xf32>
    %17 = vector.shape_cast %16 : vector<32xf32> to vector<1x32xf32>
    %18 = tpu.concatenate %14, %17 in 0 : vector<1x32xf32>, vector<1x32xf32> -> vector<2x32xf32>
    %19 = vector.shape_cast %18 : vector<2x32xf32> to vector<1x2x32xf32>
    %c0_10 = arith.constant 0 : index
    %c0_11 = arith.constant 0 : index
    %c0_12 = arith.constant 0 : index
    %20 = vector.load %arg5[%c0_10, %c0_11, %c0_12] : memref<1x2x32xf32, #tpu.memory_space<vmem>>, vector<1x2x32xf32>
    tpu.vector_store %arg5[%c0_10, %c0_11, %c0_12], %19 {strides = array<i32>} : memref<1x2x32xf32, #tpu.memory_space<vmem>>, vector<1x2x32xf32>,
    return
  }
  func.func @transform_0(%arg0: i32) -> (i32, i32) {
    %c0_i32 = arith.constant 0 : i32
    %c0_i32_0 = arith.constant 0 : i32
    return %arg0, %c0_i32 : i32, i32
  }
  func.func @transform_1(%arg0: i32) -> (i32, i32) {
    %c0_i32 = arith.constant 0 : i32
    %c0_i32_0 = arith.constant 0 : i32
    %c0_i32_1 = arith.constant 0 : i32
    return %c0_i32, %c0_i32_0 : i32, i32
  }
  func.func @transform_2(%arg0: i32) -> (i32, i32) {
    %c0_i32 = arith.constant 0 : i32
    %c0_i32_0 = arith.constant 0 : i32
    %c0_i32_1 = arith.constant 0 : i32
    return %c0_i32, %c0_i32_0 : i32, i32
  }
  func.func @transform_3(%arg0: i32) -> (i32, i32) {
    %c0_i32 = arith.constant 0 : i32
    %c0_i32_0 = arith.constant 0 : i32
    return %arg0, %c0_i32 : i32, i32
  }
  func.func @transform_4(%arg0: i32) -> (i32, i32, i32) {
    %c0_i32 = arith.constant 0 : i32
    %c0_i32_0 = arith.constant 0 : i32
    %c0_i32_1 = arith.constant 0 : i32
    return %arg0, %c0_i32, %c0_i32_0 : i32, i32, i32
  }
}

module attributes {stable_mosaic.version = 11 : i64} {
  func.func @head_kernel(%arg0: i32, %arg1: memref<2x288xf32, #tpu.memory_space<vmem>>, %arg2: memref<1x288xf32, #tpu.memory_space<vmem>>, %arg3: memref<1x288xf32, #tpu.memory_space<vmem>>, %arg4: memref<288x128xbf16, #tpu.memory_space<vmem>>, %arg5: memref<1x128xf32, #tpu.memory_space<vmem>>, %arg6: memref<2x128xf32, #tpu.memory_space<vmem>>) attributes {dimension_semantics = [#tpu.dimension_semantics<arbitrary>], iteration_bounds = array<i64: 1>, scalar_prefetch = 0 : i64, scratch_operands = 0 : i64, tpu.core_type = #tpu.core_type<tc>, window_params = [{pipeline_mode = #tpu.pipeline_mode<synchronous>, transform_indices = @transform_0, window_bounds = array<i64: 2, 288>}, {pipeline_mode = #tpu.pipeline_mode<synchronous>, transform_indices = @transform_1, window_bounds = array<i64: 1, 288>}, {pipeline_mode = #tpu.pipeline_mode<synchronous>, transform_indices = @transform_2, window_bounds = array<i64: 1, 288>}, {pipeline_mode = #tpu.pipeline_mode<synchronous>, transform_indices = @transform_3, window_bounds = array<i64: 288, 128>}, {pipeline_mode = #tpu.pipeline_mode<synchronous>, transform_indices = @transform_4, window_bounds = array<i64: 1, 128>}, {pipeline_mode = #tpu.pipeline_mode<synchronous>, transform_indices = @transform_5, window_bounds = array<i64: 2, 128>}]} {
    %c0 = arith.constant 0 : index
    %c0_0 = arith.constant 0 : index
    %0 = vector.load %arg1[%c0, %c0_0] : memref<2x288xf32, #tpu.memory_space<vmem>>, vector<2x288xf32>
    %c0_1 = arith.constant 0 : index
    %c0_2 = arith.constant 0 : index
    %1 = vector.load %arg2[%c0_1, %c0_2] : memref<1x288xf32, #tpu.memory_space<vmem>>, vector<1x288xf32>
    %2 = vector.broadcast %1 : vector<1x288xf32> to vector<2x288xf32>
    %3 = arith.mulf %0, %2 : vector<2x288xf32>
    %c0_3 = arith.constant 0 : index
    %c0_4 = arith.constant 0 : index
    %4 = vector.load %arg3[%c0_3, %c0_4] : memref<1x288xf32, #tpu.memory_space<vmem>>, vector<1x288xf32>
    %5 = vector.broadcast %4 : vector<1x288xf32> to vector<2x288xf32>
    %6 = arith.addf %3, %5 : vector<2x288xf32>
    %cst = arith.constant 0.000000e+00 : f32
    %7 = vector.broadcast %cst : f32 to vector<2x288xf32>
    %8 = arith.cmpf oge, %6, %7 : vector<2x288xf32>
    %cst_5 = arith.constant 2.000000e-01 : f32
    %9 = vector.broadcast %cst_5 : f32 to vector<2x288xf32>
    %10 = arith.mulf %9, %6 : vector<2x288xf32>
    %11 = arith.select %8, %6, %10 : vector<2x288xi1>, vector<2x288xf32>
    %12 = arith.truncf %11 : vector<2x288xf32> to vector<2x288xbf16>
    %c0_6 = arith.constant 0 : index
    %c0_7 = arith.constant 0 : index
    %13 = vector.load %arg4[%c0_6, %c0_7] : memref<288x128xbf16, #tpu.memory_space<vmem>>, vector<288x128xbf16>
    %cst_8 = arith.constant dense<0.000000e+00> : vector<2x128xf32>
    %14 = tpu.matmul %12, %13, %cst_8 {dimension_numbers = #tpu.dot_dimension_numbers<[1], [0], [0], [1], [0, 0, 1, 1], [], []>} : vector<2x288xbf16>, vector<288x128xbf16>, vector<2x128xf32> -> vector<2x128xf32>
    %c0_9 = arith.constant 0 : index
    %c0_10 = arith.constant 0 : index
    %15 = vector.load %arg5[%c0_9, %c0_10] : memref<1x128xf32, #tpu.memory_space<vmem>>, vector<1x128xf32>
    %16 = vector.broadcast %15 : vector<1x128xf32> to vector<2x128xf32>
    %17 = arith.addf %14, %16 : vector<2x128xf32>
    %cst_11 = arith.constant 0.000000e+00 : f32
    %18 = vector.broadcast %cst_11 : f32 to vector<2x128xf32>
    %19 = arith.subf %18, %17 : vector<2x128xf32>
    %20 = math.exp %19 : vector<2x128xf32>
    %cst_12 = arith.constant 1.000000e+00 : f32
    %21 = vector.broadcast %cst_12 : f32 to vector<2x128xf32>
    %22 = arith.addf %21, %20 : vector<2x128xf32>
    %cst_13 = arith.constant 1.000000e+00 : f32
    %23 = vector.broadcast %cst_13 : f32 to vector<2x128xf32>
    %24 = arith.divf %23, %22 : vector<2x128xf32>
    %c0_14 = arith.constant 0 : index
    %c0_15 = arith.constant 0 : index
    %25 = vector.load %arg6[%c0_14, %c0_15] : memref<2x128xf32, #tpu.memory_space<vmem>>, vector<2x128xf32>
    tpu.vector_store %arg6[%c0_14, %c0_15], %24 {strides = array<i32>} : memref<2x128xf32, #tpu.memory_space<vmem>>, vector<2x128xf32>,
    return
  }
  func.func @transform_0(%arg0: i32) -> (i32, i32) {
    %c0_i32 = arith.constant 0 : i32
    %c0_i32_0 = arith.constant 0 : i32
    %c0_i32_1 = arith.constant 0 : i32
    return %c0_i32, %c0_i32_0 : i32, i32
  }
  func.func @transform_1(%arg0: i32) -> (i32, i32) {
    %c0_i32 = arith.constant 0 : i32
    %c0_i32_0 = arith.constant 0 : i32
    %c0_i32_1 = arith.constant 0 : i32
    return %c0_i32, %c0_i32_0 : i32, i32
  }
  func.func @transform_2(%arg0: i32) -> (i32, i32) {
    %c0_i32 = arith.constant 0 : i32
    %c0_i32_0 = arith.constant 0 : i32
    %c0_i32_1 = arith.constant 0 : i32
    return %c0_i32, %c0_i32_0 : i32, i32
  }
  func.func @transform_3(%arg0: i32) -> (i32, i32) {
    %c0_i32 = arith.constant 0 : i32
    %c0_i32_0 = arith.constant 0 : i32
    %c0_i32_1 = arith.constant 0 : i32
    return %c0_i32, %c0_i32_0 : i32, i32
  }
  func.func @transform_4(%arg0: i32) -> (i32, i32) {
    %c0_i32 = arith.constant 0 : i32
    %c0_i32_0 = arith.constant 0 : i32
    %c0_i32_1 = arith.constant 0 : i32
    return %c0_i32, %c0_i32_0 : i32, i32
  }
  func.func @transform_5(%arg0: i32) -> (i32, i32) {
    %c0_i32 = arith.constant 0 : i32
    %c0_i32_0 = arith.constant 0 : i32
    %c0_i32_1 = arith.constant 0 : i32
    return %c0_i32, %c0_i32_0 : i32, i32
  }
}

</mosaic_0001>

<llo_original>
// kernel: stage2_d_forward.16
$region0: #{stage2_d_forward.16}
  #allocation0 [shape = 'u32[]', space=smem, size = 0x4, offset = 0x4, fixed_abs, tag = 'smem constant byte address 0x4 - core index']
  #allocation1 [shape = 'u32[144,128]{1,0:T(1,128)}', space=vmem, size = 0x12000, scoped, tag = 'internal scratch']
  %s0 = inlined_call_operand.vmem [shape: bf16[18432,128], index: 0, kind: input, shape index: {}]
  %s1 = inlined_call_operand.vmem [shape: bf16[128,128], index: 1, kind: input, shape index: {}]
  %s2 = inlined_call_operand.vmem [shape: bf16[18432,8], index: 2, kind: output, shape index: {}]
  %s3 = sld [smem:[#allocation0]]
  $region41: #{stage2_d_forward.16} parent=0
    _
  %s5 = ssub.s32 1, %s3
  %s6 = scalar_select 0, %s5, %s3
  loop: start=0, step=1, limit=38
  $region2: #{stage2_d_forward.16} parent=0 // loop_pre_header
    _
  $region3: #{stage2_d_forward.16} parent=0 // loop_header
    %s8 = sphi 0, %s12
    %p9 = scmp.ge.s32.totalorder %s8, 38
    %s15 = sphi 0, %s27
    %s16 = sphi 0, %s23
    %s17 = sphi 0, %s15
    %s18 = sphi 0, %s16
    %s19 = sphi 0, %s17
    %s20 = sphi 0, %s18
    %s30 = sphi 0, %s32
    %s33 = sphi 0, %s30
    %s34 = sphi 0, %s33
    %s50 = sphi 0, %s34
    %s56 = sphi 0, %s58
    %s59 = sphi 0, %s56
    %s60 = sphi 0, %s59
    %s76 = sphi 0, %s60
    %s84 = sphi 0, %s86
    %s87 = sphi 0, %s84
    %s88 = sphi 0, %s87
    %s104 = sphi 0, %s88
  $region4: #{stage2_d_forward.16} parent=0 // loop_header_branch
    %11 = sbr.rel (%p9) target = $region8
  $region5: #{stage2_d_forward.16} parent=0 // loop_body
    %s13 = ssub.s32 %s8, 1
    %s14 = ssub.s32 %s8, 2
    %s21 = sadd.s32 1, %s16
    %p22 = scmp.ge.s32.totalorder %s21, 1
    %s23 = scalar_select %p22, 0, %s21
    %s24 = sadd.s32 1, %s15
    %s25 = scalar_select %p22, %s24, %s15
    %p26 = scmp.ge.s32.totalorder %s25, 36
    %s27 = scalar_select %p26, 0, %s25
    %s28 = ssub.s32 %s15, %s27
    %p29 = scmp.eq.s32.totalorder %s28, 0
    %s31 = sadd.s32 %s30, 1
    %s32 = scalar_select %p29, %s30, %s31
    %p35 = pneg %p29
    %p36 = scmp.eq.s32.totalorder %s8, 35
    %p37 = por %p35, %p36
    %p38 = scmp.ne.s32.totalorder %s30, %s33
    %p39 = scmp.eq.s32.totalorder %s8, 0
    %p40 = por %p38, %p39
    %p41 = scmp.ne.s32.totalorder %s30, %s33
    %p42 = scmp.eq.s32.totalorder %s13, 35
    %p43 = por %p41, %p42
    %p44 = scmp.ne.s32.totalorder %s33, %s34
    %p45 = scmp.eq.s32.totalorder %s13, 0
    %p46 = por %p44, %p45
    %p47 = scmp.ne.s32.totalorder %s33, %s34
    %p48 = scmp.eq.s32.totalorder %s14, 35
    %p49 = por %p47, %p48
    %p51 = scmp.ne.s32.totalorder %s34, %s50
    %p52 = scmp.eq.s32.totalorder %s14, 0
    %p53 = por %p51, %p52
    %s54 = ssub.s32 %s16, %s23
    %p55 = scmp.eq.s32.totalorder %s54, 0
    %s57 = sadd.s32 %s56, 1
    %s58 = scalar_select %p55, %s56, %s57
    %p61 = pneg %p55
    %p62 = scmp.eq.s32.totalorder %s8, 35
    %p63 = por %p61, %p62
    %p64 = scmp.ne.s32.totalorder %s56, %s59
    %p65 = scmp.eq.s32.totalorder %s8, 0
    %p66 = por %p64, %p65
    %p67 = scmp.ne.s32.totalorder %s56, %s59
    %p68 = scmp.eq.s32.totalorder %s13, 35
    %p69 = por %p67, %p68
    %p70 = scmp.ne.s32.totalorder %s59, %s60
    %p71 = scmp.eq.s32.totalorder %s13, 0
    %p72 = por %p70, %p71
    %p73 = scmp.ne.s32.totalorder %s59, %s60
    %p74 = scmp.eq.s32.totalorder %s14, 35
    %p75 = por %p73, %p74
    %p77 = scmp.ne.s32.totalorder %s60, %s76
    %p78 = scmp.eq.s32.totalorder %s14, 0
    %p79 = por %p77, %p78
    %s80 = ssub.s32 %s15, %s27
    %s81 = ssub.s32 %s16, %s23
    %s82 = sor.u32 %s80, %s81
    %p83 = scmp.eq.s32.totalorder %s82, 0
    %s85 = sadd.s32 %s84, 1
    %s86 = scalar_select %p83, %s84, %s85
    %p89 = pneg %p83
    %p90 = scmp.eq.s32.totalorder %s8, 35
    %p91 = por %p89, %p90
    %p92 = scmp.ne.s32.totalorder %s84, %s87
    %p93 = scmp.eq.s32.totalorder %s8, 0
    %p94 = por %p92, %p93
    %p95 = scmp.ne.s32.totalorder %s84, %s87
    %p96 = scmp.eq.s32.totalorder %s13, 35
    %p97 = por %p95, %p96
    %p98 = scmp.ne.s32.totalorder %s87, %s88
    %p99 = scmp.eq.s32.totalorder %s13, 0
    %p100 = por %p98, %p99
    %p101 = scmp.ne.s32.totalorder %s87, %s88
    %p102 = scmp.eq.s32.totalorder %s14, 35
    %p103 = por %p101, %p102
    %p105 = scmp.ne.s32.totalorder %s88, %s104
    %p106 = scmp.eq.s32.totalorder %s14, 0
    %p107 = por %p105, %p106
    %p108 = scmp.le.s32.totalorder 1, %s8
    %p109 = scmp.lt.s32.totalorder %s8, 37
    %p110 = pnand %p108, %p109
    %p111 = pneg %p110
    // Predicated region
    $region9: #{stage2_d_forward.16} parent=5 // pred_check
      _
    $region10: #{stage2_d_forward.16} parent=5 // pred_check_branch
      %113 = sbr.rel (%p110) target = $region12
    $region11: #{stage2_d_forward.16} parent=5 // pred_region
      %s114 = ssub.s32 %s8, 1
      // Predicated region
      $region13: #{stage2_d_forward.16} parent=11 // pred_check
        %p115 = pneg %p72
      $region14: #{stage2_d_forward.16} parent=11 // pred_check_branch
        %117 = sbr.rel (%p115) target = $region16
      $region15: #{stage2_d_forward.16} parent=11 // pred_region
        %p118 = scmp.lt.s32.totalorder %s18, 0
        %s119 = scalar_select %p118, %s18, 0
        %s120 = smul.addr %s119, 4
        %s121 = scalar_lea.vmem %s1, %s120
      $region16: #{stage2_d_forward.16} parent=11 // pred_fallthru
        _
    $region12: #{stage2_d_forward.16} parent=5 // pred_fallthru
      _
    %p122 = scmp.lt.s32.totalorder %s8, 36
    // Predicated region
    $region17: #{stage2_d_forward.16} parent=5 // pred_check
      %p123 = pneg %p122
    $region18: #{stage2_d_forward.16} parent=5 // pred_check_branch
      %125 = sbr.rel (%p123) target = $region20
    $region19: #{stage2_d_forward.16} parent=5 // pred_region
      // Predicated region
      $region21: #{stage2_d_forward.16} parent=19 // pred_check
        %p126 = pneg %p40
      $region22: #{stage2_d_forward.16} parent=19 // pred_check_branch
        %128 = sbr.rel (%p126) target = $region24
      $region23: #{stage2_d_forward.16} parent=19 // pred_region
        %s129 = smul.u32 64, %s15
        %p130 = scmp.lt.s32.totalorder %s129, 2303
        %s131 = scalar_select %p130, %s129, 2303
        %s132 = smul.addr %s131, 4
        %s133 = scalar_lea.vmem %s0, %s132
        %s134 = smul.u32 64, %s15
      $region24: #{stage2_d_forward.16} parent=19 // pred_fallthru
        _
    $region20: #{stage2_d_forward.16} parent=5 // pred_fallthru
      _
    %p135 = scmp.le.s32.totalorder 1, %s8
    %p136 = scmp.lt.s32.totalorder %s8, 37
    %p137 = pnand %p135, %p136
    %p138 = pneg %p137
    // Predicated region
    $region25: #{stage2_d_forward.16} parent=5 // pred_check
      _
    $region26: #{stage2_d_forward.16} parent=5 // pred_check_branch
      %140 = sbr.rel (%p137) target = $region28
    $region27: #{stage2_d_forward.16} parent=5 // pred_region
      %s141 = ssub.s32 %s8, 1
      %s142 = smul.u32 64, %s17
      %p143 = scmp.lt.s32.totalorder %s142, 2303
      %s144 = scalar_select %p143, %s142, 2303
      %s145 = smul.addr %s144, 4
      %s146 = scalar_lea.vmem %s0, %s145
      %p147 = pneg %p46
      %p148 = pneg %p43
      %p149 = scmp.lt.s32.totalorder %s18, 0
      %s150 = scalar_select %p149, %s18, 0
      %s151 = smul.addr %s150, 4
      %s152 = scalar_lea.vmem %s1, %s151
      %p153 = pneg %p72
      %p154 = pneg %p69
      %p155 = pneg %p100
      %p156 = pneg %p97
      %s157 = smul.u32 64, %s17
      %p158 = scmp.lt.s32.totalorder %s157, 2303
      %s159 = scalar_select %p158, %s157, 2303
      %p160 = scmp.lt.s32.totalorder %s18, 0
      %s161 = scalar_select %p160, %s18, 0
      %s162 = sadd.s32 %s161, %s159
      %s163 = smul.addr %s162, 4
      %s164 = scalar_lea.vmem %s2, %s163
      %s165 = smul.u32 64, %s17
      %p166 = scmp.lt.s32.totalorder %s165, 2303
      %s167 = scalar_select %p166, %s165, 2303
      %s168 = smul.addr %s167, 4
      %s169 = scalar_lea.vmem %s0, %s168
      %s170 = smul.u32 64, %s17
      %p171 = scmp.lt.s32.totalorder %s18, 0
      %s172 = scalar_select %p171, %s18, 0
      %s173 = smul.addr %s172, 4
      %s174 = scalar_lea.vmem %s1, %s173
      %s175 = smul.u32 64, %s17
      %p176 = scmp.lt.s32.totalorder %s175, 2303
      %s177 = scalar_select %p176, %s175, 2303
      %p178 = scmp.lt.s32.totalorder %s18, 0
      %s179 = scalar_select %p178, %s18, 0
      %s180 = sadd.s32 %s179, %s177
      %s181 = smul.addr %s180, 4
      %s182 = scalar_lea.vmem %s2, %s181
      %s183 = smul.u32 64, %s17
      %v185 = vld [vmem:[%s169] sm:$0xf]
      %v186 = vld [vmem:[%s169 + $0x4] sm:$0xf]
      %v187 = vld [vmem:[%s169 + $0x8] sm:$0xf]
      %v188 = vld [vmem:[%s169 + $0xc] sm:$0xf]
      %v189 = vld [vmem:[%s169 + $0x10] sm:$0xf]
      %v190 = vld [vmem:[%s169 + $0x14] sm:$0xf]
      %v191 = vld [vmem:[%s169 + $0x18] sm:$0xf]
      %v192 = vld [vmem:[%s169 + $0x1c] sm:$0xf]
      %v193 = vld [vmem:[%s169 + $0x20] sm:$0xf]
      %v194 = vld [vmem:[%s169 + $0x24] sm:$0xf]
      %v195 = vld [vmem:[%s169 + $0x28] sm:$0xf]
      %v196 = vld [vmem:[%s169 + $0x2c] sm:$0xf]
      %v197 = vld [vmem:[%s169 + $0x30] sm:$0xf]
      %v198 = vld [vmem:[%s169 + $0x34] sm:$0xf]
      %v199 = vld [vmem:[%s169 + $0x38] sm:$0xf]
      %v200 = vld [vmem:[%s169 + $0x3c] sm:$0xf]
      %v201 = vld [vmem:[%s169 + $0x40] sm:$0xf]
      %v202 = vld [vmem:[%s169 + $0x44] sm:$0xf]
      %v203 = vld [vmem:[%s169 + $0x48] sm:$0xf]
      %v204 = vld [vmem:[%s169 + $0x4c] sm:$0xf]
      %v205 = vld [vmem:[%s169 + $0x50] sm:$0xf]
      %v206 = vld [vmem:[%s169 + $0x54] sm:$0xf]
      %v207 = vld [vmem:[%s169 + $0x58] sm:$0xf]
      %v208 = vld [vmem:[%s169 + $0x5c] sm:$0xf]
      %v209 = vld [vmem:[%s169 + $0x60] sm:$0xf]
      %v210 = vld [vmem:[%s169 + $0x64] sm:$0xf]
      %v211 = vld [vmem:[%s169 + $0x68] sm:$0xf]
      %v212 = vld [vmem:[%s169 + $0x6c] sm:$0xf]
      %v213 = vld [vmem:[%s169 + $0x70] sm:$0xf]
      %v214 = vld [vmem:[%s169 + $0x74] sm:$0xf]
      %v215 = vld [vmem:[%s169 + $0x78] sm:$0xf]
      %v216 = vld [vmem:[%s169 + $0x7c] sm:$0xf]
      %v217 = vld [vmem:[%s169 + $0x80] sm:$0xf]
      %v218 = vld [vmem:[%s169 + $0x84] sm:$0xf]
      %v219 = vld [vmem:[%s169 + $0x88] sm:$0xf]
      %v220 = vld [vmem:[%s169 + $0x8c] sm:$0xf]
      %v221 = vld [vmem:[%s169 + $0x90] sm:$0xf]
      %v222 = vld [vmem:[%s169 + $0x94] sm:$0xf]
      %v223 = vld [vmem:[%s169 + $0x98] sm:$0xf]
      %v224 = vld [vmem:[%s169 + $0x9c] sm:$0xf]
      %v225 = vld [vmem:[%s169 + $0xa0] sm:$0xf]
      %v226 = vld [vmem:[%s169 + $0xa4] sm:$0xf]
      %v227 = vld [vmem:[%s169 + $0xa8] sm:$0xf]
      %v228 = vld [vmem:[%s169 + $0xac] sm:$0xf]
      %v229 = vld [vmem:[%s169 + $0xb0] sm:$0xf]
      %v230 = vld [vmem:[%s169 + $0xb4] sm:$0xf]
      %v231 = vld [vmem:[%s169 + $0xb8] sm:$0xf]
      %v232 = vld [vmem:[%s169 + $0xbc] sm:$0xf]
      %v233 = vld [vmem:[%s169 + $0xc0] sm:$0xf]
      %v234 = vld [vmem:[%s169 + $0xc4] sm:$0xf]
      %v235 = vld [vmem:[%s169 + $0xc8] sm:$0xf]
      %v236 = vld [vmem:[%s169 + $0xcc] sm:$0xf]
      %v237 = vld [vmem:[%s169 + $0xd0] sm:$0xf]
      %v238 = vld [vmem:[%s169 + $0xd4] sm:$0xf]
      %v239 = vld [vmem:[%s169 + $0xd8] sm:$0xf]
      %v240 = vld [vmem:[%s169 + $0xdc] sm:$0xf]
      %v241 = vld [vmem:[%s169 + $0xe0] sm:$0xf]
      %v242 = vld [vmem:[%s169 + $0xe4] sm:$0xf]
      %v243 = vld [vmem:[%s169 + $0xe8] sm:$0xf]
      %v244 = vld [vmem:[%s169 + $0xec] sm:$0xf]
      %v245 = vld [vmem:[%s169 + $0xf0] sm:$0xf]
      %v246 = vld [vmem:[%s169 + $0xf4] sm:$0xf]
      %v247 = vld [vmem:[%s169 + $0xf8] sm:$0xf]
      %v248 = vld [vmem:[%s169 + $0xfc] sm:$0xf]
      %v249 = vld [vmem:[%s174] sm:$0xf]
      %v250 = vld [vmem:[%s174 + $0x4] sm:$0xf]
      %v251 = vld [vmem:[%s174 + $0x8] sm:$0xf]
      %v252 = vld [vmem:[%s174 + $0xc] sm:$0xf]
      %v253 = vld [vmem:[%s174 + $0x10] sm:$0xf]
      %v254 = vld [vmem:[%s174 + $0x14] sm:$0xf]
      %v255 = vld [vmem:[%s174 + $0x18] sm:$0xf]
      %v256 = vld [vmem:[%s174 + $0x1c] sm:$0xf]
      %v257 = vld [vmem:[%s174 + $0x20] sm:$0xf]
      %v258 = vld [vmem:[%s174 + $0x24] sm:$0xf]
      %v259 = vld [vmem:[%s174 + $0x28] sm:$0xf]
      %v260 = vld [vmem:[%s174 + $0x2c] sm:$0xf]
      %v261 = vld [vmem:[%s174 + $0x30] sm:$0xf]
      %v262 = vld [vmem:[%s174 + $0x34] sm:$0xf]
      %v263 = vld [vmem:[%s174 + $0x38] sm:$0xf]
      %v264 = vld [vmem:[%s174 + $0x3c] sm:$0xf]
      %v329 = vunpack.c.l.b16 %v185
      %v330 = vunpack.c.l.b16 %v186
      %v331 = vunpack.c.l.b16 %v187
      %v332 = vunpack.c.l.b16 %v188
      %v333 = vunpack.c.l.b16 %v189
      %v334 = vunpack.c.l.b16 %v190
      %v335 = vunpack.c.l.b16 %v191
      %v336 = vunpack.c.l.b16 %v192
      %v337 = vunpack.c.l.b16 %v193
      %v338 = vunpack.c.l.b16 %v194
      %v339 = vunpack.c.l.b16 %v195
      %v340 = vunpack.c.l.b16 %v196
      %v341 = vunpack.c.l.b16 %v197
      %v342 = vunpack.c.l.b16 %v198
      %v343 = vunpack.c.l.b16 %v199
      %v344 = vunpack.c.l.b16 %v200
      %v345 = vunpack.c.l.b16 %v201
      %v346 = vunpack.c.l.b16 %v202
      %v347 = vunpack.c.l.b16 %v203
      %v348 = vunpack.c.l.b16 %v204
      %v349 = vunpack.c.l.b16 %v205
      %v350 = vunpack.c.l.b16 %v206
      %v351 = vunpack.c.l.b16 %v207
      %v352 = vunpack.c.l.b16 %v208
      %v353 = vunpack.c.l.b16 %v209
      %v354 = vunpack.c.l.b16 %v210
      %v355 = vunpack.c.l.b16 %v211
      %v356 = vunpack.c.l.b16 %v212
      %v357 = vunpack.c.l.b16 %v213
      %v358 = vunpack.c.l.b16 %v214
      %v359 = vunpack.c.l.b16 %v215
      %v360 = vunpack.c.l.b16 %v216
      %v361 = vunpack.c.l.b16 %v217
      %v362 = vunpack.c.l.b16 %v218
      %v363 = vunpack.c.l.b16 %v219
      %v364 = vunpack.c.l.b16 %v220
      %v365 = vunpack.c.l.b16 %v221
      %v366 = vunpack.c.l.b16 %v222
      %v367 = vunpack.c.l.b16 %v223
      %v368 = vunpack.c.l.b16 %v224
      %v369 = vunpack.c.l.b16 %v225
      %v370 = vunpack.c.l.b16 %v226
      %v371 = vunpack.c.l.b16 %v227
      %v372 = vunpack.c.l.b16 %v228
      %v373 = vunpack.c.l.b16 %v229
      %v374 = vunpack.c.l.b16 %v230
      %v375 = vunpack.c.l.b16 %v231
      %v376 = vunpack.c.l.b16 %v232
      %v377 = vunpack.c.l.b16 %v233
      %v378 = vunpack.c.l.b16 %v234
      %v379 = vunpack.c.l.b16 %v235
      %v380 = vunpack.c.l.b16 %v236
      %v381 = vunpack.c.l.b16 %v237
      %v382 = vunpack.c.l.b16 %v238
      %v383 = vunpack.c.l.b16 %v239
      %v384 = vunpack.c.l.b16 %v240
      %v385 = vunpack.c.l.b16 %v241
      %v386 = vunpack.c.l.b16 %v242
      %v387 = vunpack.c.l.b16 %v243
      %v388 = vunpack.c.l.b16 %v244
      %v389 = vunpack.c.l.b16 %v245
      %v390 = vunpack.c.l.b16 %v246
      %v391 = vunpack.c.l.b16 %v247
      %v392 = vunpack.c.l.b16 %v248
      %v393 = vpack.c.b16 %v330, %v329
      %v394 = vpack.c.b16 %v332, %v331
      %v395 = vpack.c.b16 %v334, %v333
      %v396 = vpack.c.b16 %v336, %v335
      %v397 = vpack.c.b16 %v338, %v337
      %v398 = vpack.c.b16 %v340, %v339
      %v399 = vpack.c.b16 %v342, %v341
      %v400 = vpack.c.b16 %v344, %v343
      %v401 = vpack.c.b16 %v346, %v345
      %v402 = vpack.c.b16 %v348, %v347
      %v403 = vpack.c.b16 %v350, %v349
      %v404 = vpack.c.b16 %v352, %v351
      %v405 = vpack.c.b16 %v354, %v353
      %v406 = vpack.c.b16 %v356, %v355
      %v407 = vpack.c.b16 %v358, %v357
      %v408 = vpack.c.b16 %v360, %v359
      %v409 = vpack.c.b16 %v362, %v361
      %v410 = vpack.c.b16 %v364, %v363
      %v411 = vpack.c.b16 %v366, %v365
      %v412 = vpack.c.b16 %v368, %v367
      %v413 = vpack.c.b16 %v370, %v369
      %v414 = vpack.c.b16 %v372, %v371
      %v415 = vpack.c.b16 %v374, %v373
      %v416 = vpack.c.b16 %v376, %v375
      %v417 = vpack.c.b16 %v378, %v377
      %v418 = vpack.c.b16 %v380, %v379
      %v419 = vpack.c.b16 %v382, %v381
      %v420 = vpack.c.b16 %v384, %v383
      %v421 = vpack.c.b16 %v386, %v385
      %v422 = vpack.c.b16 %v388, %v387
      %v423 = vpack.c.b16 %v390, %v389
      %v424 = vpack.c.b16 %v392, %v391
      %v473 = vunpack.c.l.b16 %v249
      %v474 = vunpack.c.l.b16 %v250
      %v475 = vunpack.c.l.b16 %v251
      %v476 = vunpack.c.l.b16 %v252
      %v477 = vunpack.c.l.b16 %v253
      %v478 = vunpack.c.l.b16 %v254
      %v479 = vunpack.c.l.b16 %v255
      %v480 = vunpack.c.l.b16 %v256
      %v481 = vunpack.c.l.b16 %v257
      %v482 = vunpack.c.l.b16 %v258
      %v483 = vunpack.c.l.b16 %v259
      %v484 = vunpack.c.l.b16 %v260
      %v485 = vunpack.c.l.b16 %v261
      %v486 = vunpack.c.l.b16 %v262
      %v487 = vunpack.c.l.b16 %v263
      %v488 = vunpack.c.l.b16 %v264
      %v489 = vpack.c.b16 %v474, %v473
      %v490 = vpack.c.b16 %v476, %v475
      %v491 = vpack.c.b16 %v478, %v477
      %v492 = vpack.c.b16 %v480, %v479
      %v493 = vpack.c.b16 %v482, %v481
      %v494 = vpack.c.b16 %v484, %v483
      %v495 = vpack.c.b16 %v486, %v485
      %v496 = vpack.c.b16 %v488, %v487
      %505 = vmatprep.subr.bf16.mxu0 0
      %506 = vmatpush1.bf16.msra.mxu0 %v496
      %507 = vmatprep.subr.bf16.mxu0 0
      %508 = vmatpush1.bf16.msra.mxu0 %v495
      %509 = vmatprep.subr.bf16.mxu0 0
      %510 = vmatpush1.bf16.msra.mxu0 %v494
      %511 = vmatprep.subr.bf16.mxu0 0
      %512 = vmatpush1.bf16.msra.mxu0 %v493
      %513 = vmatprep.subr.bf16.mxu0 0
      %514 = vmatpush1.bf16.msra.mxu0 %v492
      %515 = vmatprep.subr.bf16.mxu0 0
      %516 = vmatpush1.bf16.msra.mxu0 %v491
      %517 = vmatprep.subr.bf16.mxu0 0
      %518 = vmatpush1.bf16.msra.mxu0 %v490
      %519 = vmatprep.subr.bf16.mxu0 0
      %520 = vmatpush1.bf16.msra.mxu0 %v489
      %521 = vmatprep.subr.bf16.mxu0 0
      %522 = vmatpush2.bf16.msra.mxu0 0
      %523 = vmatprep.subr.bf16.mxu0 0
      %524 = vmatpush2.bf16.msra.mxu0 0
      %525 = vmatprep.subr.bf16.mxu0 0
      %526 = vmatpush2.bf16.msra.mxu0 0
      %527 = vmatprep.subr.bf16.mxu0 0
      %528 = vmatpush2.bf16.msra.mxu0 0
      %529 = vmatprep.subr.bf16.mxu0 0
      %530 = vmatpush2.bf16.msra.mxu0 0
      %531 = vmatprep.subr.bf16.mxu0 0
      %532 = vmatpush2.bf16.msra.mxu0 0
      %533 = vmatprep.subr.bf16.mxu0 0
      %534 = vmatpush2.bf16.msra.mxu0 0
      %535 = vmatprep.subr.bf16.mxu0 0
      %536 = vmatpush2.bf16.msra.mxu0 0
      %537 = vmatprep.mubr.bf16.mxu0 0
      %538 = vmatmul.mubr.bf16.gmra.mxu0 %v393
      %v539 = vpop.f32.mrf.mxu0
      %v540 = vadd.f32 0.0, %v539
      %v541 = vpop.f32.mrf.mxu0
      %v542 = vpop.f32.mrf.mxu0
      %v543 = vadd.f32 0.0, %v542
      %v544 = vpop.f32.mrf.mxu0
      %545 = vmatprep.mubr.bf16.mxu0 0
      %546 = vmatmul.mubr.bf16.gmra.mxu0 %v394
      %v547 = vpop.f32.mrf.mxu0
      %v548 = vadd.f32 0.0, %v547
      %v549 = vpop.f32.mrf.mxu0
      %v550 = vpop.f32.mrf.mxu0
      %v551 = vadd.f32 0.0, %v550
      %v552 = vpop.f32.mrf.mxu0
      %553 = vmatprep.mubr.bf16.mxu0 0
      %554 = vmatmul.mubr.bf16.gmra.mxu0 %v395
      %v555 = vpop.f32.mrf.mxu0
      %v556 = vadd.f32 0.0, %v555
      %v557 = vpop.f32.mrf.mxu0
      %v558 = vpop.f32.mrf.mxu0
      %v559 = vadd.f32 0.0, %v558
      %v560 = vpop.f32.mrf.mxu0
      %561 = vmatprep.mubr.bf16.mxu0 0
      %562 = vmatmul.mubr.bf16.gmra.mxu0 %v396
      %v563 = vpop.f32.mrf.mxu0
      %v564 = vadd.f32 0.0, %v563
      %v565 = vpop.f32.mrf.mxu0
      %v566 = vpop.f32.mrf.mxu0
      %v567 = vadd.f32 0.0, %v566
      %v568 = vpop.f32.mrf.mxu0
      %569 = vmatprep.mubr.bf16.mxu0 0
      %570 = vmatmul.mubr.bf16.gmra.mxu0 %v397
      %v571 = vpop.f32.mrf.mxu0
      %v572 = vadd.f32 0.0, %v571
      %v573 = vpop.f32.mrf.mxu0
      %v574 = vpop.f32.mrf.mxu0
      %v575 = vadd.f32 0.0, %v574
      %v576 = vpop.f32.mrf.mxu0
      %577 = vmatprep.mubr.bf16.mxu0 0
      %578 = vmatmul.mubr.bf16.gmra.mxu0 %v398
      %v579 = vpop.f32.mrf.mxu0
      %v580 = vadd.f32 0.0, %v579
      %v581 = vpop.f32.mrf.mxu0
      %v582 = vpop.f32.mrf.mxu0
      %v583 = vadd.f32 0.0, %v582
      %v584 = vpop.f32.mrf.mxu0
      %585 = vmatprep.mubr.bf16.mxu0 0
      %586 = vmatmul.mubr.bf16.gmra.mxu0 %v399
      %v587 = vpop.f32.mrf.mxu0
      %v588 = vadd.f32 0.0, %v587
      %v589 = vpop.f32.mrf.mxu0
      %v590 = vpop.f32.mrf.mxu0
      %v591 = vadd.f32 0.0, %v590
      %v592 = vpop.f32.mrf.mxu0
      %593 = vmatprep.mubr.bf16.mxu0 0
      %594 = vmatmul.mubr.bf16.gmra.mxu0 %v400
      %v595 = vpop.f32.mrf.mxu0
      %v596 = vadd.f32 0.0, %v595
      %v597 = vpop.f32.mrf.mxu0
      %v598 = vpop.f32.mrf.mxu0
      %v599 = vadd.f32 0.0, %v598
      %v600 = vpop.f32.mrf.mxu0
      %601 = vmatprep.mubr.bf16.mxu0 0
      %602 = vmatmul.mubr.bf16.gmra.mxu0 %v401
      %v603 = vpop.f32.mrf.mxu0
      %v604 = vadd.f32 0.0, %v603
      %v605 = vpop.f32.mrf.mxu0
      %v606 = vpop.f32.mrf.mxu0
      %v607 = vadd.f32 0.0, %v606
      %v608 = vpop.f32.mrf.mxu0
      %609 = vmatprep.mubr.bf16.mxu0 0
      %610 = vmatmul.mubr.bf16.gmra.mxu0 %v402
      %v611 = vpop.f32.mrf.mxu0
      %v612 = vadd.f32 0.0, %v611
      %v613 = vpop.f32.mrf.mxu0
      %v614 = vpop.f32.mrf.mxu0
      %v615 = vadd.f32 0.0, %v614
      %v616 = vpop.f32.mrf.mxu0
      %617 = vmatprep.mubr.bf16.mxu0 0
      %618 = vmatmul.mubr.bf16.gmra.mxu0 %v403
      %v619 = vpop.f32.mrf.mxu0
      %v620 = vadd.f32 0.0, %v619
      %v621 = vpop.f32.mrf.mxu0
      %v622 = vpop.f32.mrf.mxu0
      %v623 = vadd.f32 0.0, %v622
      %v624 = vpop.f32.mrf.mxu0
      %625 = vmatprep.mubr.bf16.mxu0 0
      %626 = vmatmul.mubr.bf16.gmra.mxu0 %v404
      %v627 = vpop.f32.mrf.mxu0
      %v628 = vadd.f32 0.0, %v627
      %v629 = vpop.f32.mrf.mxu0
      %v630 = vpop.f32.mrf.mxu0
      %v631 = vadd.f32 0.0, %v630
      %v632 = vpop.f32.mrf.mxu0
      %633 = vmatprep.mubr.bf16.mxu0 0
      %634 = vmatmul.mubr.bf16.gmra.mxu0 %v405
      %v635 = vpop.f32.mrf.mxu0
      %v636 = vadd.f32 0.0, %v635
      %v637 = vpop.f32.mrf.mxu0
      %v638 = vpop.f32.mrf.mxu0
      %v639 = vadd.f32 0.0, %v638
      %v640 = vpop.f32.mrf.mxu0
      %641 = vmatprep.mubr.bf16.mxu0 0
      %642 = vmatmul.mubr.bf16.gmra.mxu0 %v406
      %v643 = vpop.f32.mrf.mxu0
      %v644 = vadd.f32 0.0, %v643
      %v645 = vpop.f32.mrf.mxu0
      %v646 = vpop.f32.mrf.mxu0
      %v647 = vadd.f32 0.0, %v646
      %v648 = vpop.f32.mrf.mxu0
      %649 = vmatprep.mubr.bf16.mxu0 0
      %650 = vmatmul.mubr.bf16.gmra.mxu0 %v407
      %v651 = vpop.f32.mrf.mxu0
      %v652 = vadd.f32 0.0, %v651
      %v653 = vpop.f32.mrf.mxu0
      %v654 = vpop.f32.mrf.mxu0
      %v655 = vadd.f32 0.0, %v654
      %v656 = vpop.f32.mrf.mxu0
      %657 = vmatprep.mubr.bf16.mxu0 0
      %658 = vmatmul.mubr.bf16.gmra.mxu0 %v408
      %v659 = vpop.f32.mrf.mxu0
      %v660 = vadd.f32 0.0, %v659
      %v661 = vpop.f32.mrf.mxu0
      %v662 = vpop.f32.mrf.mxu0
      %v663 = vadd.f32 0.0, %v662
      %v664 = vpop.f32.mrf.mxu0
      %665 = vmatprep.mubr.bf16.mxu0 0
      %666 = vmatmul.mubr.bf16.gmra.mxu0 %v409
      %v667 = vpop.f32.mrf.mxu0
      %v668 = vadd.f32 0.0, %v667
      %v669 = vpop.f32.mrf.mxu0
      %v670 = vpop.f32.mrf.mxu0
      %v671 = vadd.f32 0.0, %v670
      %v672 = vpop.f32.mrf.mxu0
      %673 = vmatprep.mubr.bf16.mxu0 0
      %674 = vmatmul.mubr.bf16.gmra.mxu0 %v410
      %v675 = vpop.f32.mrf.mxu0
      %v676 = vadd.f32 0.0, %v675
      %v677 = vpop.f32.mrf.mxu0
      %v678 = vpop.f32.mrf.mxu0
      %v679 = vadd.f32 0.0, %v678
      %v680 = vpop.f32.mrf.mxu0
      %681 = vmatprep.mubr.bf16.mxu0 0
      %682 = vmatmul.mubr.bf16.gmra.mxu0 %v411
      %v683 = vpop.f32.mrf.mxu0
      %v684 = vadd.f32 0.0, %v683
      %v685 = vpop.f32.mrf.mxu0
      %v686 = vpop.f32.mrf.mxu0
      %v687 = vadd.f32 0.0, %v686
      %v688 = vpop.f32.mrf.mxu0
      %689 = vmatprep.mubr.bf16.mxu0 0
      %690 = vmatmul.mubr.bf16.gmra.mxu0 %v412
      %v691 = vpop.f32.mrf.mxu0
      %v692 = vadd.f32 0.0, %v691
      %v693 = vpop.f32.mrf.mxu0
      %v694 = vpop.f32.mrf.mxu0
      %v695 = vadd.f32 0.0, %v694
      %v696 = vpop.f32.mrf.mxu0
      %697 = vmatprep.mubr.bf16.mxu0 0
      %698 = vmatmul.mubr.bf16.gmra.mxu0 %v413
      %v699 = vpop.f32.mrf.mxu0
      %v700 = vadd.f32 0.0, %v699
      %v701 = vpop.f32.mrf.mxu0
      %v702 = vpop.f32.mrf.mxu0
      %v703 = vadd.f32 0.0, %v702
      %v704 = vpop.f32.mrf.mxu0
      %705 = vmatprep.mubr.bf16.mxu0 0
      %706 = vmatmul.mubr.bf16.gmra.mxu0 %v414
      %v707 = vpop.f32.mrf.mxu0
      %v708 = vadd.f32 0.0, %v707
      %v709 = vpop.f32.mrf.mxu0
      %v710 = vpop.f32.mrf.mxu0
      %v711 = vadd.f32 0.0, %v710
      %v712 = vpop.f32.mrf.mxu0
      %713 = vmatprep.mubr.bf16.mxu0 0
      %714 = vmatmul.mubr.bf16.gmra.mxu0 %v415
      %v715 = vpop.f32.mrf.mxu0
      %v716 = vadd.f32 0.0, %v715
      %v717 = vpop.f32.mrf.mxu0
      %v718 = vpop.f32.mrf.mxu0
      %v719 = vadd.f32 0.0, %v718
      %v720 = vpop.f32.mrf.mxu0
      %721 = vmatprep.mubr.bf16.mxu0 0
      %722 = vmatmul.mubr.bf16.gmra.mxu0 %v416
      %v723 = vpop.f32.mrf.mxu0
      %v724 = vadd.f32 0.0, %v723
      %v725 = vpop.f32.mrf.mxu0
      %v726 = vpop.f32.mrf.mxu0
      %v727 = vadd.f32 0.0, %v726
      %v728 = vpop.f32.mrf.mxu0
      %729 = vmatprep.mubr.bf16.mxu0 0
      %730 = vmatmul.mubr.bf16.gmra.mxu0 %v417
      %v731 = vpop.f32.mrf.mxu0
      %v732 = vadd.f32 0.0, %v731
      %v733 = vpop.f32.mrf.mxu0
      %v734 = vpop.f32.mrf.mxu0
      %v735 = vadd.f32 0.0, %v734
      %v736 = vpop.f32.mrf.mxu0
      %737 = vmatprep.mubr.bf16.mxu0 0
      %738 = vmatmul.mubr.bf16.gmra.mxu0 %v418
      %v739 = vpop.f32.mrf.mxu0
      %v740 = vadd.f32 0.0, %v739
      %v741 = vpop.f32.mrf.mxu0
      %v742 = vpop.f32.mrf.mxu0
      %v743 = vadd.f32 0.0, %v742
      %v744 = vpop.f32.mrf.mxu0
      %745 = vmatprep.mubr.bf16.mxu0 0
      %746 = vmatmul.mubr.bf16.gmra.mxu0 %v419
      %v747 = vpop.f32.mrf.mxu0
      %v748 = vadd.f32 0.0, %v747
      %v749 = vpop.f32.mrf.mxu0
      %v750 = vpop.f32.mrf.mxu0
      %v751 = vadd.f32 0.0, %v750
      %v752 = vpop.f32.mrf.mxu0
      %753 = vmatprep.mubr.bf16.mxu0 0
      %754 = vmatmul.mubr.bf16.gmra.mxu0 %v420
      %v755 = vpop.f32.mrf.mxu0
      %v756 = vadd.f32 0.0, %v755
      %v757 = vpop.f32.mrf.mxu0
      %v758 = vpop.f32.mrf.mxu0
      %v759 = vadd.f32 0.0, %v758
      %v760 = vpop.f32.mrf.mxu0
      %761 = vmatprep.mubr.bf16.mxu0 0
      %762 = vmatmul.mubr.bf16.gmra.mxu0 %v421
      %v763 = vpop.f32.mrf.mxu0
      %v764 = vadd.f32 0.0, %v763
      %v765 = vpop.f32.mrf.mxu0
      %v766 = vpop.f32.mrf.mxu0
      %v767 = vadd.f32 0.0, %v766
      %v768 = vpop.f32.mrf.mxu0
      %769 = vmatprep.mubr.bf16.mxu0 0
      %770 = vmatmul.mubr.bf16.gmra.mxu0 %v422
      %v771 = vpop.f32.mrf.mxu0
      %v772 = vadd.f32 0.0, %v771
      %v773 = vpop.f32.mrf.mxu0
      %v774 = vpop.f32.mrf.mxu0
      %v775 = vadd.f32 0.0, %v774
      %v776 = vpop.f32.mrf.mxu0
      %777 = vmatprep.mubr.bf16.mxu0 0
      %778 = vmatmul.mubr.bf16.gmra.mxu0 %v423
      %v779 = vpop.f32.mrf.mxu0
      %v780 = vadd.f32 0.0, %v779
      %v781 = vpop.f32.mrf.mxu0
      %v782 = vpop.f32.mrf.mxu0
      %v783 = vadd.f32 0.0, %v782
      %v784 = vpop.f32.mrf.mxu0
      %785 = vmatprep.mubr.bf16.mxu0 0
      %786 = vmatmul.mubr.bf16.gmra.mxu0 %v424
      %v787 = vpop.f32.mrf.mxu0
      %v788 = vadd.f32 0.0, %v787
      %v789 = vpop.f32.mrf.mxu0
      %v790 = vpop.f32.mrf.mxu0
      %v791 = vadd.f32 0.0, %v790
      %v792 = vpop.f32.mrf.mxu0
      %793 = vdwg.mxu0
      %vm794 = vcmp.ge.f32.partialorder %v540, 0.0
      %vm795 = vcmp.ge.f32.partialorder %v543, 0.0
      %vm796 = vcmp.ge.f32.partialorder %v548, 0.0
      %vm797 = vcmp.ge.f32.partialorder %v551, 0.0
      %vm798 = vcmp.ge.f32.partialorder %v556, 0.0
      %vm799 = vcmp.ge.f32.partialorder %v559, 0.0
      %vm800 = vcmp.ge.f32.partialorder %v564, 0.0
      %vm801 = vcmp.ge.f32.partialorder %v567, 0.0
      %vm802 = vcmp.ge.f32.partialorder %v572, 0.0
      %vm803 = vcmp.ge.f32.partialorder %v575, 0.0
      %vm804 = vcmp.ge.f32.partialorder %v580, 0.0
      %vm805 = vcmp.ge.f32.partialorder %v583, 0.0
      %vm806 = vcmp.ge.f32.partialorder %v588, 0.0
      %vm807 = vcmp.ge.f32.partialorder %v591, 0.0
      %vm808 = vcmp.ge.f32.partialorder %v596, 0.0
      %vm809 = vcmp.ge.f32.partialorder %v599, 0.0
      %vm810 = vcmp.ge.f32.partialorder %v604, 0.0
      %vm811 = vcmp.ge.f32.partialorder %v607, 0.0
      %vm812 = vcmp.ge.f32.partialorder %v612, 0.0
      %vm813 = vcmp.ge.f32.partialorder %v615, 0.0
      %vm814 = vcmp.ge.f32.partialorder %v620, 0.0
      %vm815 = vcmp.ge.f32.partialorder %v623, 0.0
      %vm816 = vcmp.ge.f32.partialorder %v628, 0.0
      %vm817 = vcmp.ge.f32.partialorder %v631, 0.0
      %vm818 = vcmp.ge.f32.partialorder %v636, 0.0
      %vm819 = vcmp.ge.f32.partialorder %v639, 0.0
      %vm820 = vcmp.ge.f32.partialorder %v644, 0.0
      %vm821 = vcmp.ge.f32.partialorder %v647, 0.0
      %vm822 = vcmp.ge.f32.partialorder %v652, 0.0
      %vm823 = vcmp.ge.f32.partialorder %v655, 0.0
      %vm824 = vcmp.ge.f32.partialorder %v660, 0.0
      %vm825 = vcmp.ge.f32.partialorder %v663, 0.0
      %vm826 = vcmp.ge.f32.partialorder %v668, 0.0
      %vm827 = vcmp.ge.f32.partialorder %v671, 0.0
      %vm828 = vcmp.ge.f32.partialorder %v676, 0.0
      %vm829 = vcmp.ge.f32.partialorder %v679, 0.0
      %vm830 = vcmp.ge.f32.partialorder %v684, 0.0
      %vm831 = vcmp.ge.f32.partialorder %v687, 0.0
      %vm832 = vcmp.ge.f32.partialorder %v692, 0.0
      %vm833 = vcmp.ge.f32.partialorder %v695, 0.0
      %vm834 = vcmp.ge.f32.partialorder %v700, 0.0
      %vm835 = vcmp.ge.f32.partialorder %v703, 0.0
      %vm836 = vcmp.ge.f32.partialorder %v708, 0.0
      %vm837 = vcmp.ge.f32.partialorder %v711, 0.0
      %vm838 = vcmp.ge.f32.partialorder %v716, 0.0
      %vm839 = vcmp.ge.f32.partialorder %v719, 0.0
      %vm840 = vcmp.ge.f32.partialorder %v724, 0.0
      %vm841 = vcmp.ge.f32.partialorder %v727, 0.0
      %vm842 = vcmp.ge.f32.partialorder %v732, 0.0
      %vm843 = vcmp.ge.f32.partialorder %v735, 0.0
      %vm844 = vcmp.ge.f32.partialorder %v740, 0.0
      %vm845 = vcmp.ge.f32.partialorder %v743, 0.0
      %vm846 = vcmp.ge.f32.partialorder %v748, 0.0
      %vm847 = vcmp.ge.f32.partialorder %v751, 0.0
      %vm848 = vcmp.ge.f32.partialorder %v756, 0.0
      %vm849 = vcmp.ge.f32.partialorder %v759, 0.0
      %vm850 = vcmp.ge.f32.partialorder %v764, 0.0
      %vm851 = vcmp.ge.f32.partialorder %v767, 0.0
      %vm852 = vcmp.ge.f32.partialorder %v772, 0.0
      %vm853 = vcmp.ge.f32.partialorder %v775, 0.0
      %vm854 = vcmp.ge.f32.partialorder %v780, 0.0
      %vm855 = vcmp.ge.f32.partialorder %v783, 0.0
      %vm856 = vcmp.ge.f32.partialorder %v788, 0.0
      %vm857 = vcmp.ge.f32.partialorder %v791, 0.0
      %v858 = vmul.f32 %v540, 0.2
      %v859 = vmul.f32 %v543, 0.2
      %v860 = vmul.f32 %v548, 0.2
      %v861 = vmul.f32 %v551, 0.2
      %v862 = vmul.f32 %v556, 0.2
      %v863 = vmul.f32 %v559, 0.2
      %v864 = vmul.f32 %v564, 0.2
      %v865 = vmul.f32 %v567, 0.2
      %v866 = vmul.f32 %v572, 0.2
      %v867 = vmul.f32 %v575, 0.2
      %v868 = vmul.f32 %v580, 0.2
      %v869 = vmul.f32 %v583, 0.2
      %v870 = vmul.f32 %v588, 0.2
      %v871 = vmul.f32 %v591, 0.2
      %v872 = vmul.f32 %v596, 0.2
      %v873 = vmul.f32 %v599, 0.2
      %v874 = vmul.f32 %v604, 0.2
      %v875 = vmul.f32 %v607, 0.2
      %v876 = vmul.f32 %v612, 0.2
      %v877 = vmul.f32 %v615, 0.2
      %v878 = vmul.f32 %v620, 0.2
      %v879 = vmul.f32 %v623, 0.2
      %v880 = vmul.f32 %v628, 0.2
      %v881 = vmul.f32 %v631, 0.2
      %v882 = vmul.f32 %v636, 0.2
      %v883 = vmul.f32 %v639, 0.2
      %v884 = vmul.f32 %v644, 0.2
      %v885 = vmul.f32 %v647, 0.2
      %v886 = vmul.f32 %v652, 0.2
      %v887 = vmul.f32 %v655, 0.2
      %v888 = vmul.f32 %v660, 0.2
      %v889 = vmul.f32 %v663, 0.2
      %v890 = vmul.f32 %v668, 0.2
      %v891 = vmul.f32 %v671, 0.2
      %v892 = vmul.f32 %v676, 0.2
      %v893 = vmul.f32 %v679, 0.2
      %v894 = vmul.f32 %v684, 0.2
      %v895 = vmul.f32 %v687, 0.2
      %v896 = vmul.f32 %v692, 0.2
      %v897 = vmul.f32 %v695, 0.2
      %v898 = vmul.f32 %v700, 0.2
      %v899 = vmul.f32 %v703, 0.2
      %v900 = vmul.f32 %v708, 0.2
      %v901 = vmul.f32 %v711, 0.2
      %v902 = vmul.f32 %v716, 0.2
      %v903 = vmul.f32 %v719, 0.2
      %v904 = vmul.f32 %v724, 0.2
      %v905 = vmul.f32 %v727, 0.2
      %v906 = vmul.f32 %v732, 0.2
      %v907 = vmul.f32 %v735, 0.2
      %v908 = vmul.f32 %v740, 0.2
      %v909 = vmul.f32 %v743, 0.2
      %v910 = vmul.f32 %v748, 0.2
      %v911 = vmul.f32 %v751, 0.2
      %v912 = vmul.f32 %v756, 0.2
      %v913 = vmul.f32 %v759, 0.2
      %v914 = vmul.f32 %v764, 0.2
      %v915 = vmul.f32 %v767, 0.2
      %v916 = vmul.f32 %v772, 0.2
      %v917 = vmul.f32 %v775, 0.2
      %v918 = vmul.f32 %v780, 0.2
      %v919 = vmul.f32 %v783, 0.2
      %v920 = vmul.f32 %v788, 0.2
      %v921 = vmul.f32 %v791, 0.2
      %v922 = vsel %vm794, %v540, %v858
      %v923 = vsel %vm795, %v543, %v859
      %v924 = vsel %vm796, %v548, %v860
      %v925 = vsel %vm797, %v551, %v861
      %v926 = vsel %vm798, %v556, %v862
      %v927 = vsel %vm799, %v559, %v863
      %v928 = vsel %vm800, %v564, %v864
      %v929 = vsel %vm801, %v567, %v865
      %v930 = vsel %vm802, %v572, %v866
      %v931 = vsel %vm803, %v575, %v867
      %v932 = vsel %vm804, %v580, %v868
      %v933 = vsel %vm805, %v583, %v869
      %v934 = vsel %vm806, %v588, %v870
      %v935 = vsel %vm807, %v591, %v871
      %v936 = vsel %vm808, %v596, %v872
      %v937 = vsel %vm809, %v599, %v873
      %v938 = vsel %vm810, %v604, %v874
      %v939 = vsel %vm811, %v607, %v875
      %v940 = vsel %vm812, %v612, %v876
      %v941 = vsel %vm813, %v615, %v877
      %v942 = vsel %vm814, %v620, %v878
      %v943 = vsel %vm815, %v623, %v879
      %v944 = vsel %vm816, %v628, %v880
      %v945 = vsel %vm817, %v631, %v881
      %v946 = vsel %vm818, %v636, %v882
      %v947 = vsel %vm819, %v639, %v883
      %v948 = vsel %vm820, %v644, %v884
      %v949 = vsel %vm821, %v647, %v885
      %v950 = vsel %vm822, %v652, %v886
      %v951 = vsel %vm823, %v655, %v887
      %v952 = vsel %vm824, %v660, %v888
      %v953 = vsel %vm825, %v663, %v889
      %v954 = vsel %vm826, %v668, %v890
      %v955 = vsel %vm827, %v671, %v891
      %v956 = vsel %vm828, %v676, %v892
      %v957 = vsel %vm829, %v679, %v893
      %v958 = vsel %vm830, %v684, %v894
      %v959 = vsel %vm831, %v687, %v895
      %v960 = vsel %vm832, %v692, %v896
      %v961 = vsel %vm833, %v695, %v897
      %v962 = vsel %vm834, %v700, %v898
      %v963 = vsel %vm835, %v703, %v899
      %v964 = vsel %vm836, %v708, %v900
      %v965 = vsel %vm837, %v711, %v901
      %v966 = vsel %vm838, %v716, %v902
      %v967 = vsel %vm839, %v719, %v903
      %v968 = vsel %vm840, %v724, %v904
      %v969 = vsel %vm841, %v727, %v905
      %v970 = vsel %vm842, %v732, %v906
      %v971 = vsel %vm843, %v735, %v907
      %v972 = vsel %vm844, %v740, %v908
      %v973 = vsel %vm845, %v743, %v909
      %v974 = vsel %vm846, %v748, %v910
      %v975 = vsel %vm847, %v751, %v911
      %v976 = vsel %vm848, %v756, %v912
      %v977 = vsel %vm849, %v759, %v913
      %v978 = vsel %vm850, %v764, %v914
      %v979 = vsel %vm851, %v767, %v915
      %v980 = vsel %vm852, %v772, %v916
      %v981 = vsel %vm853, %v775, %v917
      %v982 = vsel %vm854, %v780, %v918
      %v983 = vsel %vm855, %v783, %v919
      %v984 = vsel %vm856, %v788, %v920
      %v985 = vsel %vm857, %v791, %v921
      %v986 = vpack.c.bf16 %v923, %v922
      %v987 = vpack.c.bf16 %v925, %v924
      %v988 = vpack.c.bf16 %v927, %v926
      %v989 = vpack.c.bf16 %v929, %v928
      %v990 = vpack.c.bf16 %v931, %v930
      %v991 = vpack.c.bf16 %v933, %v932
      %v992 = vpack.c.bf16 %v935, %v934
      %v993 = vpack.c.bf16 %v937, %v936
      %v994 = vpack.c.bf16 %v939, %v938
      %v995 = vpack.c.bf16 %v941, %v940
      %v996 = vpack.c.bf16 %v943, %v942
      %v997 = vpack.c.bf16 %v945, %v944
      %v998 = vpack.c.bf16 %v947, %v946
      %v999 = vpack.c.bf16 %v949, %v948
      %v1000 = vpack.c.bf16 %v951, %v950
      %v1001 = vpack.c.bf16 %v953, %v952
      %v1002 = vpack.c.bf16 %v955, %v954
      %v1003 = vpack.c.bf16 %v957, %v956
      %v1004 = vpack.c.bf16 %v959, %v958
      %v1005 = vpack.c.bf16 %v961, %v960
      %v1006 = vpack.c.bf16 %v963, %v962
      %v1007 = vpack.c.bf16 %v965, %v964
      %v1008 = vpack.c.bf16 %v967, %v966
      %v1009 = vpack.c.bf16 %v969, %v968
      %v1010 = vpack.c.bf16 %v971, %v970
      %v1011 = vpack.c.bf16 %v973, %v972
      %v1012 = vpack.c.bf16 %v975, %v974
      %v1013 = vpack.c.bf16 %v977, %v976
      %v1014 = vpack.c.bf16 %v979, %v978
      %v1015 = vpack.c.bf16 %v981, %v980
      %v1016 = vpack.c.bf16 %v983, %v982
      %v1017 = vpack.c.bf16 %v985, %v984
      %v1050 = vunpack.c.l.b16 %v986
      %v1051 = vunpack.c.h.b16 %v986
      %v1052 = vunpack.c.l.b16 %v987
      %v1053 = vunpack.c.h.b16 %v987
      %v1054 = vunpack.c.l.b16 %v988
      %v1055 = vunpack.c.h.b16 %v988
      %v1056 = vunpack.c.l.b16 %v989
      %v1057 = vunpack.c.h.b16 %v989
      %v1058 = vunpack.c.l.b16 %v990
      %v1059 = vunpack.c.h.b16 %v990
      %v1060 = vunpack.c.l.b16 %v991
      %v1061 = vunpack.c.h.b16 %v991
      %v1062 = vunpack.c.l.b16 %v992
      %v1063 = vunpack.c.h.b16 %v992
      %v1064 = vunpack.c.l.b16 %v993
      %v1065 = vunpack.c.h.b16 %v993
      %v1066 = vunpack.c.l.b16 %v994
      %v1067 = vunpack.c.h.b16 %v994
      %v1068 = vunpack.c.l.b16 %v995
      %v1069 = vunpack.c.h.b16 %v995
      %v1070 = vunpack.c.l.b16 %v996
      %v1071 = vunpack.c.h.b16 %v996
      %v1072 = vunpack.c.l.b16 %v997
      %v1073 = vunpack.c.h.b16 %v997
      %v1074 = vunpack.c.l.b16 %v998
      %v1075 = vunpack.c.h.b16 %v998
      %v1076 = vunpack.c.l.b16 %v999
      %v1077 = vunpack.c.h.b16 %v999
      %v1078 = vunpack.c.l.b16 %v1000
      %v1079 = vunpack.c.h.b16 %v1000
      %v1080 = vunpack.c.l.b16 %v1001
      %v1081 = vunpack.c.h.b16 %v1001
      %v1082 = vunpack.c.l.b16 %v1002
      %v1083 = vunpack.c.h.b16 %v1002
      %v1084 = vunpack.c.l.b16 %v1003
      %v1085 = vunpack.c.h.b16 %v1003
      %v1086 = vunpack.c.l.b16 %v1004
      %v1087 = vunpack.c.h.b16 %v1004
      %v1088 = vunpack.c.l.b16 %v1005
      %v1089 = vunpack.c.h.b16 %v1005
      %v1090 = vunpack.c.l.b16 %v1006
      %v1091 = vunpack.c.h.b16 %v1006
      %v1092 = vunpack.c.l.b16 %v1007
      %v1093 = vunpack.c.h.b16 %v1007
      %v1094 = vunpack.c.l.b16 %v1008
      %v1095 = vunpack.c.h.b16 %v1008
      %v1096 = vunpack.c.l.b16 %v1009
      %v1097 = vunpack.c.h.b16 %v1009
      %v1098 = vunpack.c.l.b16 %v1010
      %v1099 = vunpack.c.h.b16 %v1010
      %v1100 = vunpack.c.l.b16 %v1011
      %v1101 = vunpack.c.h.b16 %v1011
      %v1102 = vunpack.c.l.b16 %v1012
      %v1103 = vunpack.c.h.b16 %v1012
      %v1104 = vunpack.c.l.b16 %v1013
      %v1105 = vunpack.c.h.b16 %v1013
      %v1106 = vunpack.c.l.b16 %v1014
      %v1107 = vunpack.c.h.b16 %v1014
      %v1108 = vunpack.c.l.b16 %v1015
      %v1109 = vunpack.c.h.b16 %v1015
      %v1110 = vunpack.c.l.b16 %v1016
      %v1111 = vunpack.c.h.b16 %v1016
      %v1112 = vunpack.c.l.b16 %v1017
      %v1113 = vunpack.c.h.b16 %v1017
      %v1114 = vpack.c.b16 %v1050, %v1050
      %v1115 = vpack.c.b16 %v1051, %v1051
      %v1116 = vpack.c.b16 %v1052, %v1052
      %v1117 = vpack.c.b16 %v1053, %v1053
      %v1118 = vpack.c.b16 %v1054, %v1054
      %v1119 = vpack.c.b16 %v1055, %v1055
      %v1120 = vpack.c.b16 %v1056, %v1056
      %v1121 = vpack.c.b16 %v1057, %v1057
      %v1122 = vpack.c.b16 %v1058, %v1058
      %v1123 = vpack.c.b16 %v1059, %v1059
      %v1124 = vpack.c.b16 %v1060, %v1060
      %v1125 = vpack.c.b16 %v1061, %v1061
      %v1126 = vpack.c.b16 %v1062, %v1062
      %v1127 = vpack.c.b16 %v1063, %v1063
      %v1128 = vpack.c.b16 %v1064, %v1064
      %v1129 = vpack.c.b16 %v1065, %v1065
      %v1130 = vpack.c.b16 %v1066, %v1066
      %v1131 = vpack.c.b16 %v1067, %v1067
      %v1132 = vpack.c.b16 %v1068, %v1068
      %v1133 = vpack.c.b16 %v1069, %v1069
      %v1134 = vpack.c.b16 %v1070, %v1070
      %v1135 = vpack.c.b16 %v1071, %v1071
      %v1136 = vpack.c.b16 %v1072, %v1072
      %v1137 = vpack.c.b16 %v1073, %v1073
      %v1138 = vpack.c.b16 %v1074, %v1074
      %v1139 = vpack.c.b16 %v1075, %v1075
      %v1140 = vpack.c.b16 %v1076, %v1076
      %v1141 = vpack.c.b16 %v1077, %v1077
      %v1142 = vpack.c.b16 %v1078, %v1078
      %v1143 = vpack.c.b16 %v1079, %v1079
      %v1144 = vpack.c.b16 %v1080, %v1080
      %v1145 = vpack.c.b16 %v1081, %v1081
      %v1146 = vpack.c.b16 %v1082, %v1082
      %v1147 = vpack.c.b16 %v1083, %v1083
      %v1148 = vpack.c.b16 %v1084, %v1084
      %v1149 = vpack.c.b16 %v1085, %v1085
      %v1150 = vpack.c.b16 %v1086, %v1086
      %v1151 = vpack.c.b16 %v1087, %v1087
      %v1152 = vpack.c.b16 %v1088, %v1088
      %v1153 = vpack.c.b16 %v1089, %v1089
      %v1154 = vpack.c.b16 %v1090, %v1090
      %v1155 = vpack.c.b16 %v1091, %v1091
      %v1156 = vpack.c.b16 %v1092, %v1092
      %v1157 = vpack.c.b16 %v1093, %v1093
      %v1158 = vpack.c.b16 %v1094, %v1094
      %v1159 = vpack.c.b16 %v1095, %v1095
      %v1160 = vpack.c.b16 %v1096, %v1096
      %v1161 = vpack.c.b16 %v1097, %v1097
      %v1162 = vpack.c.b16 %v1098, %v1098
      %v1163 = vpack.c.b16 %v1099, %v1099
      %v1164 = vpack.c.b16 %v1100, %v1100
      %v1165 = vpack.c.b16 %v1101, %v1101
      %v1166 = vpack.c.b16 %v1102, %v1102
      %v1167 = vpack.c.b16 %v1103, %v1103
      %v1168 = vpack.c.b16 %v1104, %v1104
      %v1169 = vpack.c.b16 %v1105, %v1105
      %v1170 = vpack.c.b16 %v1106, %v1106
      %v1171 = vpack.c.b16 %v1107, %v1107
      %v1172 = vpack.c.b16 %v1108, %v1108
      %v1173 = vpack.c.b16 %v1109, %v1109
      %v1174 = vpack.c.b16 %v1110, %v1110
      %v1175 = vpack.c.b16 %v1111, %v1111
      %v1176 = vpack.c.b16 %v1112, %v1112
      %v1177 = vpack.c.b16 %v1113, %v1113
      %vm1242 = vcmask 60416
      %1243 = vst.msk [vmem:[%s182] sm:$0xf] %vm1242, %v1114
      %1244 = vst.msk [vmem:[%s182 + $0x4] sm:$0xf] %vm1242, %v1115
      %1245 = vst.msk [vmem:[%s182 + $0x8] sm:$0xf] %vm1242, %v1116
      %1246 = vst.msk [vmem:[%s182 + $0xc] sm:$0xf] %vm1242, %v1117
      %1247 = vst.msk [vmem:[%s182 + $0x10] sm:$0xf] %vm1242, %v1118
      %1248 = vst.msk [vmem:[%s182 + $0x14] sm:$0xf] %vm1242, %v1119
      %1249 = vst.msk [vmem:[%s182 + $0x18] sm:$0xf] %vm1242, %v1120
      %1250 = vst.msk [vmem:[%s182 + $0x1c] sm:$0xf] %vm1242, %v1121
      %1251 = vst.msk [vmem:[%s182 + $0x20] sm:$0xf] %vm1242, %v1122
      %1252 = vst.msk [vmem:[%s182 + $0x24] sm:$0xf] %vm1242, %v1123
      %1253 = vst.msk [vmem:[%s182 + $0x28] sm:$0xf] %vm1242, %v1124
      %1254 = vst.msk [vmem:[%s182 + $0x2c] sm:$0xf] %vm1242, %v1125
      %1255 = vst.msk [vmem:[%s182 + $0x30] sm:$0xf] %vm1242, %v1126
      %1256 = vst.msk [vmem:[%s182 + $0x34] sm:$0xf] %vm1242, %v1127
      %1257 = vst.msk [vmem:[%s182 + $0x38] sm:$0xf] %vm1242, %v1128
      %1258 = vst.msk [vmem:[%s182 + $0x3c] sm:$0xf] %vm1242, %v1129
      %1259 = vst.msk [vmem:[%s182 + $0x40] sm:$0xf] %vm1242, %v1130
      %1260 = vst.msk [vmem:[%s182 + $0x44] sm:$0xf] %vm1242, %v1131
      %1261 = vst.msk [vmem:[%s182 + $0x48] sm:$0xf] %vm1242, %v1132
      %1262 = vst.msk [vmem:[%s182 + $0x4c] sm:$0xf] %vm1242, %v1133
      %1263 = vst.msk [vmem:[%s182 + $0x50] sm:$0xf] %vm1242, %v1134
      %1264 = vst.msk [vmem:[%s182 + $0x54] sm:$0xf] %vm1242, %v1135
      %1265 = vst.msk [vmem:[%s182 + $0x58] sm:$0xf] %vm1242, %v1136
      %1266 = vst.msk [vmem:[%s182 + $0x5c] sm:$0xf] %vm1242, %v1137
      %1267 = vst.msk [vmem:[%s182 + $0x60] sm:$0xf] %vm1242, %v1138
      %1268 = vst.msk [vmem:[%s182 + $0x64] sm:$0xf] %vm1242, %v1139
      %1269 = vst.msk [vmem:[%s182 + $0x68] sm:$0xf] %vm1242, %v1140
      %1270 = vst.msk [vmem:[%s182 + $0x6c] sm:$0xf] %vm1242, %v1141
      %1271 = vst.msk [vmem:[%s182 + $0x70] sm:$0xf] %vm1242, %v1142
      %1272 = vst.msk [vmem:[%s182 + $0x74] sm:$0xf] %vm1242, %v1143
      %1273 = vst.msk [vmem:[%s182 + $0x78] sm:$0xf] %vm1242, %v1144
      %1274 = vst.msk [vmem:[%s182 + $0x7c] sm:$0xf] %vm1242, %v1145
      %1275 = vst.msk [vmem:[%s182 + $0x80] sm:$0xf] %vm1242, %v1146
      %1276 = vst.msk [vmem:[%s182 + $0x84] sm:$0xf] %vm1242, %v1147
      %1277 = vst.msk [vmem:[%s182 + $0x88] sm:$0xf] %vm1242, %v1148
      %1278 = vst.msk [vmem:[%s182 + $0x8c] sm:$0xf] %vm1242, %v1149
      %1279 = vst.msk [vmem:[%s182 + $0x90] sm:$0xf] %vm1242, %v1150
      %1280 = vst.msk [vmem:[%s182 + $0x94] sm:$0xf] %vm1242, %v1151
      %1281 = vst.msk [vmem:[%s182 + $0x98] sm:$0xf] %vm1242, %v1152
      %1282 = vst.msk [vmem:[%s182 + $0x9c] sm:$0xf] %vm1242, %v1153
      %1283 = vst.msk [vmem:[%s182 + $0xa0] sm:$0xf] %vm1242, %v1154
      %1284 = vst.msk [vmem:[%s182 + $0xa4] sm:$0xf] %vm1242, %v1155
      %1285 = vst.msk [vmem:[%s182 + $0xa8] sm:$0xf] %vm1242, %v1156
      %1286 = vst.msk [vmem:[%s182 + $0xac] sm:$0xf] %vm1242, %v1157
      %1287 = vst.msk [vmem:[%s182 + $0xb0] sm:$0xf] %vm1242, %v1158
      %1288 = vst.msk [vmem:[%s182 + $0xb4] sm:$0xf] %vm1242, %v1159
      %1289 = vst.msk [vmem:[%s182 + $0xb8] sm:$0xf] %vm1242, %v1160
      %1290 = vst.msk [vmem:[%s182 + $0xbc] sm:$0xf] %vm1242, %v1161
      %1291 = vst.msk [vmem:[%s182 + $0xc0] sm:$0xf] %vm1242, %v1162
      %1292 = vst.msk [vmem:[%s182 + $0xc4] sm:$0xf] %vm1242, %v1163
      %1293 = vst.msk [vmem:[%s182 + $0xc8] sm:$0xf] %vm1242, %v1164
      %1294 = vst.msk [vmem:[%s182 + $0xcc] sm:$0xf] %vm1242, %v1165
      %1295 = vst.msk [vmem:[%s182 + $0xd0] sm:$0xf] %vm1242, %v1166
      %1296 = vst.msk [vmem:[%s182 + $0xd4] sm:$0xf] %vm1242, %v1167
      %1297 = vst.msk [vmem:[%s182 + $0xd8] sm:$0xf] %vm1242, %v1168
      %1298 = vst.msk [vmem:[%s182 + $0xdc] sm:$0xf] %vm1242, %v1169
      %1299 = vst.msk [vmem:[%s182 + $0xe0] sm:$0xf] %vm1242, %v1170
      %1300 = vst.msk [vmem:[%s182 + $0xe4] sm:$0xf] %vm1242, %v1171
      %1301 = vst.msk [vmem:[%s182 + $0xe8] sm:$0xf] %vm1242, %v1172
      %1302 = vst.msk [vmem:[%s182 + $0xec] sm:$0xf] %vm1242, %v1173
      %1303 = vst.msk [vmem:[%s182 + $0xf0] sm:$0xf] %vm1242, %v1174
      %1304 = vst.msk [vmem:[%s182 + $0xf4] sm:$0xf] %vm1242, %v1175
      %1305 = vst.msk [vmem:[%s182 + $0xf8] sm:$0xf] %vm1242, %v1176
      %1306 = vst.msk [vmem:[%s182 + $0xfc] sm:$0xf] %vm1242, %v1177
      %s1307 = smul.u32 64, %s17
      %p1308 = scmp.lt.s32.totalorder %s1307, 2303
      %s1309 = scalar_select %p1308, %s1307, 2303
      %p1310 = scmp.lt.s32.totalorder %s18, 0
      %s1311 = scalar_select %p1310, %s18, 0
      %s1312 = sadd.s32 %s1311, %s1309
      %s1313 = smul.addr %s1312, 4
      %s1314 = scalar_lea.vmem %s2, %s1313
      // Predicated region
      $region29: #{stage2_d_forward.16} parent=27 // pred_check
        %p1315 = pneg %p97
      $region30: #{stage2_d_forward.16} parent=27 // pred_check_branch
        %1317 = sbr.rel (%p1315) target = $region32
      $region31: #{stage2_d_forward.16} parent=27 // pred_region
        %s1318 = smul.u32 64, %s17
      $region32: #{stage2_d_forward.16} parent=27 // pred_fallthru
        _
    $region28: #{stage2_d_forward.16} parent=5 // pred_fallthru
      _
    %p1319 = scmp.le.s32.totalorder 2, %s8
    // Predicated region
    $region33: #{stage2_d_forward.16} parent=5 // pred_check
      %p1320 = pneg %p1319
    $region34: #{stage2_d_forward.16} parent=5 // pred_check_branch
      %1322 = sbr.rel (%p1320) target = $region36
    $region35: #{stage2_d_forward.16} parent=5 // pred_region
      %s1323 = ssub.s32 %s8, 2
      // Predicated region
      $region37: #{stage2_d_forward.16} parent=35 // pred_check
        %p1324 = pneg %p103
      $region38: #{stage2_d_forward.16} parent=35 // pred_check_branch
        %1326 = sbr.rel (%p1324) target = $region40
      $region39: #{stage2_d_forward.16} parent=35 // pred_region
        %s1327 = smul.u32 64, %s19
        %p1328 = scmp.lt.s32.totalorder %s1327, 2303
        %s1329 = scalar_select %p1328, %s1327, 2303
        %p1330 = scmp.lt.s32.totalorder %s20, 0
        %s1331 = scalar_select %p1330, %s20, 0
        %s1332 = sadd.s32 %s1331, %s1329
        %s1333 = smul.addr %s1332, 4
        %s1334 = scalar_lea.vmem %s2, %s1333
      $region40: #{stage2_d_forward.16} parent=35 // pred_fallthru
        _
    $region36: #{stage2_d_forward.16} parent=5 // pred_fallthru
      _
  $region6: #{stage2_d_forward.16} parent=0 // loop_footer
    %s12 = sadd.s32 1, %s8
  $region7: #{stage2_d_forward.16} parent=0 // loop_footer_branch
    %7 = sbr.rel target = $region3
  $region8: #{stage2_d_forward.16} parent=0 // loop_exit
    _

// kernel: stage2_d_forward.17
$region0: #{stage2_d_forward.17}
  #allocation0 [shape = 'u32[]', space=smem, size = 0x4, offset = 0x4, fixed_abs, tag = 'smem constant byte address 0x4 - core index']
  #allocation1 [shape = 'u32[144,128]{1,0:T(1,128)}', space=vmem, size = 0x12000, scoped, tag = 'internal scratch']
  %s0 = inlined_call_operand.vmem [shape: bf16[4608,128], index: 0, kind: input, shape index: {}]
  %s1 = inlined_call_operand.vmem [shape: bf16[128,128], index: 1, kind: input, shape index: {}]
  %s2 = inlined_call_operand.vmem [shape: f32[4608,8], index: 2, kind: output, shape index: {0}]
  %s3 = inlined_call_operand.vmem [shape: f32[9,2,8], index: 3, kind: output, shape index: {1}]
  %4 = xla_tuple %s2, %s3
  %s5 = sld [smem:[#allocation0]]
  $region49: #{stage2_d_forward.17} parent=0
    _
  %s7 = ssub.s32 1, %s5
  %s8 = scalar_select 0, %s7, %s5
  loop: start=0, step=1, limit=11
  $region2: #{stage2_d_forward.17} parent=0 // loop_pre_header
    _
  $region3: #{stage2_d_forward.17} parent=0 // loop_header
    %s10 = sphi 0, %s14
    %p11 = scmp.ge.s32.totalorder %s10, 11
    %s17 = sphi 0, %s29
    %s18 = sphi 0, %s25
    %s19 = sphi 0, %s17
    %s20 = sphi 0, %s18
    %s21 = sphi 0, %s19
    %s22 = sphi 0, %s20
    %s32 = sphi 0, %s34
    %s35 = sphi 0, %s32
    %s36 = sphi 0, %s35
    %s52 = sphi 0, %s36
    %s58 = sphi 0, %s60
    %s61 = sphi 0, %s58
    %s62 = sphi 0, %s61
    %s78 = sphi 0, %s62
    %s86 = sphi 0, %s88
    %s89 = sphi 0, %s86
    %s90 = sphi 0, %s89
    %s106 = sphi 0, %s90
    %s114 = sphi 0, %s116
    %s117 = sphi 0, %s114
    %s118 = sphi 0, %s117
    %s134 = sphi 0, %s118
  $region4: #{stage2_d_forward.17} parent=0 // loop_header_branch
    %13 = sbr.rel (%p11) target = $region8
  $region5: #{stage2_d_forward.17} parent=0 // loop_body
    %s15 = ssub.s32 %s10, 1
    %s16 = ssub.s32 %s10, 2
    %s23 = sadd.s32 1, %s18
    %p24 = scmp.ge.s32.totalorder %s23, 1
    %s25 = scalar_select %p24, 0, %s23
    %s26 = sadd.s32 1, %s17
    %s27 = scalar_select %p24, %s26, %s17
    %p28 = scmp.ge.s32.totalorder %s27, 9
    %s29 = scalar_select %p28, 0, %s27
    %s30 = ssub.s32 %s17, %s29
    %p31 = scmp.eq.s32.totalorder %s30, 0
    %s33 = sadd.s32 %s32, 1
    %s34 = scalar_select %p31, %s32, %s33
    %p37 = pneg %p31
    %p38 = scmp.eq.s32.totalorder %s10, 8
    %p39 = por %p37, %p38
    %p40 = scmp.ne.s32.totalorder %s32, %s35
    %p41 = scmp.eq.s32.totalorder %s10, 0
    %p42 = por %p40, %p41
    %p43 = scmp.ne.s32.totalorder %s32, %s35
    %p44 = scmp.eq.s32.totalorder %s15, 8
    %p45 = por %p43, %p44
    %p46 = scmp.ne.s32.totalorder %s35, %s36
    %p47 = scmp.eq.s32.totalorder %s15, 0
    %p48 = por %p46, %p47
    %p49 = scmp.ne.s32.totalorder %s35, %s36
    %p50 = scmp.eq.s32.totalorder %s16, 8
    %p51 = por %p49, %p50
    %p53 = scmp.ne.s32.totalorder %s36, %s52
    %p54 = scmp.eq.s32.totalorder %s16, 0
    %p55 = por %p53, %p54
    %s56 = ssub.s32 %s18, %s25
    %p57 = scmp.eq.s32.totalorder %s56, 0
    %s59 = sadd.s32 %s58, 1
    %s60 = scalar_select %p57, %s58, %s59
    %p63 = pneg %p57
    %p64 = scmp.eq.s32.totalorder %s10, 8
    %p65 = por %p63, %p64
    %p66 = scmp.ne.s32.totalorder %s58, %s61
    %p67 = scmp.eq.s32.totalorder %s10, 0
    %p68 = por %p66, %p67
    %p69 = scmp.ne.s32.totalorder %s58, %s61
    %p70 = scmp.eq.s32.totalorder %s15, 8
    %p71 = por %p69, %p70
    %p72 = scmp.ne.s32.totalorder %s61, %s62
    %p73 = scmp.eq.s32.totalorder %s15, 0
    %p74 = por %p72, %p73
    %p75 = scmp.ne.s32.totalorder %s61, %s62
    %p76 = scmp.eq.s32.totalorder %s16, 8
    %p77 = por %p75, %p76
    %p79 = scmp.ne.s32.totalorder %s62, %s78
    %p80 = scmp.eq.s32.totalorder %s16, 0
    %p81 = por %p79, %p80
    %s82 = ssub.s32 %s17, %s29
    %s83 = ssub.s32 %s18, %s25
    %s84 = sor.u32 %s82, %s83
    %p85 = scmp.eq.s32.totalorder %s84, 0
    %s87 = sadd.s32 %s86, 1
    %s88 = scalar_select %p85, %s86, %s87
    %p91 = pneg %p85
    %p92 = scmp.eq.s32.totalorder %s10, 8
    %p93 = por %p91, %p92
    %p94 = scmp.ne.s32.totalorder %s86, %s89
    %p95 = scmp.eq.s32.totalorder %s10, 0
    %p96 = por %p94, %p95
    %p97 = scmp.ne.s32.totalorder %s86, %s89
    %p98 = scmp.eq.s32.totalorder %s15, 8
    %p99 = por %p97, %p98
    %p100 = scmp.ne.s32.totalorder %s89, %s90
    %p101 = scmp.eq.s32.totalorder %s15, 0
    %p102 = por %p100, %p101
    %p103 = scmp.ne.s32.totalorder %s89, %s90
    %p104 = scmp.eq.s32.totalorder %s16, 8
    %p105 = por %p103, %p104
    %p107 = scmp.ne.s32.totalorder %s90, %s106
    %p108 = scmp.eq.s32.totalorder %s16, 0
    %p109 = por %p107, %p108
    %s110 = ssub.s32 %s17, %s29
    %s111 = ssub.s32 %s18, %s25
    %s112 = sor.u32 %s110, %s111
    %p113 = scmp.eq.s32.totalorder %s112, 0
    %s115 = sadd.s32 %s114, 1
    %s116 = scalar_select %p113, %s114, %s115
    %p119 = pneg %p113
    %p120 = scmp.eq.s32.totalorder %s10, 8
    %p121 = por %p119, %p120
    %p122 = scmp.ne.s32.totalorder %s114, %s117
    %p123 = scmp.eq.s32.totalorder %s10, 0
    %p124 = por %p122, %p123
    %p125 = scmp.ne.s32.totalorder %s114, %s117
    %p126 = scmp.eq.s32.totalorder %s15, 8
    %p127 = por %p125, %p126
    %p128 = scmp.ne.s32.totalorder %s117, %s118
    %p129 = scmp.eq.s32.totalorder %s15, 0
    %p130 = por %p128, %p129
    %p131 = scmp.ne.s32.totalorder %s117, %s118
    %p132 = scmp.eq.s32.totalorder %s16, 8
    %p133 = por %p131, %p132
    %p135 = scmp.ne.s32.totalorder %s118, %s134
    %p136 = scmp.eq.s32.totalorder %s16, 0
    %p137 = por %p135, %p136
    %p138 = scmp.le.s32.totalorder 1, %s10
    %p139 = scmp.lt.s32.totalorder %s10, 10
    %p140 = pnand %p138, %p139
    %p141 = pneg %p140
    // Predicated region
    $region9: #{stage2_d_forward.17} parent=5 // pred_check
      _
    $region10: #{stage2_d_forward.17} parent=5 // pred_check_branch
      %143 = sbr.rel (%p140) target = $region12
    $region11: #{stage2_d_forward.17} parent=5 // pred_region
      %s144 = ssub.s32 %s10, 1
      // Predicated region
      $region13: #{stage2_d_forward.17} parent=11 // pred_check
        %p145 = pneg %p74
      $region14: #{stage2_d_forward.17} parent=11 // pred_check_branch
        %147 = sbr.rel (%p145) target = $region16
      $region15: #{stage2_d_forward.17} parent=11 // pred_region
        %p148 = scmp.lt.s32.totalorder %s20, 0
        %s149 = scalar_select %p148, %s20, 0
        %s150 = smul.addr %s149, 4
        %s151 = scalar_lea.vmem %s1, %s150
      $region16: #{stage2_d_forward.17} parent=11 // pred_fallthru
        _
    $region12: #{stage2_d_forward.17} parent=5 // pred_fallthru
      _
    %p152 = scmp.lt.s32.totalorder %s10, 9
    // Predicated region
    $region17: #{stage2_d_forward.17} parent=5 // pred_check
      %p153 = pneg %p152
    $region18: #{stage2_d_forward.17} parent=5 // pred_check_branch
      %155 = sbr.rel (%p153) target = $region20
    $region19: #{stage2_d_forward.17} parent=5 // pred_region
      // Predicated region
      $region21: #{stage2_d_forward.17} parent=19 // pred_check
        %p156 = pneg %p42
      $region22: #{stage2_d_forward.17} parent=19 // pred_check_branch
        %158 = sbr.rel (%p156) target = $region24
      $region23: #{stage2_d_forward.17} parent=19 // pred_region
        %s159 = smul.u32 64, %s17
        %p160 = scmp.lt.s32.totalorder %s159, 575
        %s161 = scalar_select %p160, %s159, 575
        %s162 = smul.addr %s161, 4
        %s163 = scalar_lea.vmem %s0, %s162
        %s164 = smul.u32 64, %s17
      $region24: #{stage2_d_forward.17} parent=19 // pred_fallthru
        _
    $region20: #{stage2_d_forward.17} parent=5 // pred_fallthru
      _
    %p165 = scmp.le.s32.totalorder 1, %s10
    %p166 = scmp.lt.s32.totalorder %s10, 10
    %p167 = pnand %p165, %p166
    %p168 = pneg %p167
    // Predicated region
    $region25: #{stage2_d_forward.17} parent=5 // pred_check
      _
    $region26: #{stage2_d_forward.17} parent=5 // pred_check_branch
      %170 = sbr.rel (%p167) target = $region28
    $region27: #{stage2_d_forward.17} parent=5 // pred_region
      %s171 = ssub.s32 %s10, 1
      %s172 = smul.u32 64, %s19
      %p173 = scmp.lt.s32.totalorder %s172, 575
      %s174 = scalar_select %p173, %s172, 575
      %s175 = smul.addr %s174, 4
      %s176 = scalar_lea.vmem %s0, %s175
      %p177 = pneg %p48
      %p178 = pneg %p45
      %p179 = scmp.lt.s32.totalorder %s20, 0
      %s180 = scalar_select %p179, %s20, 0
      %s181 = smul.addr %s180, 4
      %s182 = scalar_lea.vmem %s1, %s181
      %p183 = pneg %p74
      %p184 = pneg %p71
      %p185 = pneg %p102
      %p186 = pneg %p99
      %s187 = smul.u32 64, %s19
      %p188 = scmp.lt.s32.totalorder %s187, 575
      %s189 = scalar_select %p188, %s187, 575
      %p190 = scmp.lt.s32.totalorder %s20, 0
      %s191 = scalar_select %p190, %s20, 0
      %s192 = sadd.s32 %s191, %s189
      %s193 = smul.addr %s192, 8
      %s194 = scalar_lea.vmem %s2, %s193
      %p195 = pneg %p130
      %p196 = pneg %p127
      %p197 = scmp.lt.s32.totalorder %s19, 8
      %s198 = scalar_select %p197, %s19, 8
      %p199 = scmp.lt.s32.totalorder %s20, 0
      %s200 = scalar_select %p199, %s20, 0
      %s201 = sadd.s32 %s200, %s198
      %s202 = smul.addr %s201, 2
      %s203 = scalar_lea.vmem %s3, %s202
      %s204 = smul.u32 64, %s19
      %p205 = scmp.lt.s32.totalorder %s204, 575
      %s206 = scalar_select %p205, %s204, 575
      %s207 = smul.addr %s206, 4
      %s208 = scalar_lea.vmem %s0, %s207
      %s209 = smul.u32 64, %s19
      %p210 = scmp.lt.s32.totalorder %s20, 0
      %s211 = scalar_select %p210, %s20, 0
      %s212 = smul.addr %s211, 4
      %s213 = scalar_lea.vmem %s1, %s212
      %s214 = smul.u32 64, %s19
      %p215 = scmp.lt.s32.totalorder %s214, 575
      %s216 = scalar_select %p215, %s214, 575
      %p217 = scmp.lt.s32.totalorder %s20, 0
      %s218 = scalar_select %p217, %s20, 0
      %s219 = sadd.s32 %s218, %s216
      %s220 = smul.addr %s219, 8
      %s221 = scalar_lea.vmem %s2, %s220
      %s222 = smul.u32 64, %s19
      %p223 = scmp.lt.s32.totalorder %s19, 8
      %s224 = scalar_select %p223, %s19, 8
      %p225 = scmp.lt.s32.totalorder %s20, 0
      %s226 = scalar_select %p225, %s20, 0
      %s227 = sadd.s32 %s226, %s224
      %s228 = smul.addr %s227, 2
      %s229 = scalar_lea.vmem %s3, %s228
      %v231 = vld [vmem:[%s208] sm:$0xf]
      %v232 = vld [vmem:[%s208 + $0x4] sm:$0xf]
      %v233 = vld [vmem:[%s208 + $0x8] sm:$0xf]
      %v234 = vld [vmem:[%s208 + $0xc] sm:$0xf]
      %v235 = vld [vmem:[%s208 + $0x10] sm:$0xf]
      %v236 = vld [vmem:[%s208 + $0x14] sm:$0xf]
      %v237 = vld [vmem:[%s208 + $0x18] sm:$0xf]
      %v238 = vld [vmem:[%s208 + $0x1c] sm:$0xf]
      %v239 = vld [vmem:[%s208 + $0x20] sm:$0xf]
      %v240 = vld [vmem:[%s208 + $0x24] sm:$0xf]
      %v241 = vld [vmem:[%s208 + $0x28] sm:$0xf]
      %v242 = vld [vmem:[%s208 + $0x2c] sm:$0xf]
      %v243 = vld [vmem:[%s208 + $0x30] sm:$0xf]
      %v244 = vld [vmem:[%s208 + $0x34] sm:$0xf]
      %v245 = vld [vmem:[%s208 + $0x38] sm:$0xf]
      %v246 = vld [vmem:[%s208 + $0x3c] sm:$0xf]
      %v247 = vld [vmem:[%s208 + $0x40] sm:$0xf]
      %v248 = vld [vmem:[%s208 + $0x44] sm:$0xf]
      %v249 = vld [vmem:[%s208 + $0x48] sm:$0xf]
      %v250 = vld [vmem:[%s208 + $0x4c] sm:$0xf]
      %v251 = vld [vmem:[%s208 + $0x50] sm:$0xf]
      %v252 = vld [vmem:[%s208 + $0x54] sm:$0xf]
      %v253 = vld [vmem:[%s208 + $0x58] sm:$0xf]
      %v254 = vld [vmem:[%s208 + $0x5c] sm:$0xf]
      %v255 = vld [vmem:[%s208 + $0x60] sm:$0xf]
      %v256 = vld [vmem:[%s208 + $0x64] sm:$0xf]
      %v257 = vld [vmem:[%s208 + $0x68] sm:$0xf]
      %v258 = vld [vmem:[%s208 + $0x6c] sm:$0xf]
      %v259 = vld [vmem:[%s208 + $0x70] sm:$0xf]
      %v260 = vld [vmem:[%s208 + $0x74] sm:$0xf]
      %v261 = vld [vmem:[%s208 + $0x78] sm:$0xf]
      %v262 = vld [vmem:[%s208 + $0x7c] sm:$0xf]
      %v263 = vld [vmem:[%s208 + $0x80] sm:$0xf]
      %v264 = vld [vmem:[%s208 + $0x84] sm:$0xf]
      %v265 = vld [vmem:[%s208 + $0x88] sm:$0xf]
      %v266 = vld [vmem:[%s208 + $0x8c] sm:$0xf]
      %v267 = vld [vmem:[%s208 + $0x90] sm:$0xf]
      %v268 = vld [vmem:[%s208 + $0x94] sm:$0xf]
      %v269 = vld [vmem:[%s208 + $0x98] sm:$0xf]
      %v270 = vld [vmem:[%s208 + $0x9c] sm:$0xf]
      %v271 = vld [vmem:[%s208 + $0xa0] sm:$0xf]
      %v272 = vld [vmem:[%s208 + $0xa4] sm:$0xf]
      %v273 = vld [vmem:[%s208 + $0xa8] sm:$0xf]
      %v274 = vld [vmem:[%s208 + $0xac] sm:$0xf]
      %v275 = vld [vmem:[%s208 + $0xb0] sm:$0xf]
      %v276 = vld [vmem:[%s208 + $0xb4] sm:$0xf]
      %v277 = vld [vmem:[%s208 + $0xb8] sm:$0xf]
      %v278 = vld [vmem:[%s208 + $0xbc] sm:$0xf]
      %v279 = vld [vmem:[%s208 + $0xc0] sm:$0xf]
      %v280 = vld [vmem:[%s208 + $0xc4] sm:$0xf]
      %v281 = vld [vmem:[%s208 + $0xc8] sm:$0xf]
      %v282 = vld [vmem:[%s208 + $0xcc] sm:$0xf]
      %v283 = vld [vmem:[%s208 + $0xd0] sm:$0xf]
      %v284 = vld [vmem:[%s208 + $0xd4] sm:$0xf]
      %v285 = vld [vmem:[%s208 + $0xd8] sm:$0xf]
      %v286 = vld [vmem:[%s208 + $0xdc] sm:$0xf]
      %v287 = vld [vmem:[%s208 + $0xe0] sm:$0xf]
      %v288 = vld [vmem:[%s208 + $0xe4] sm:$0xf]
      %v289 = vld [vmem:[%s208 + $0xe8] sm:$0xf]
      %v290 = vld [vmem:[%s208 + $0xec] sm:$0xf]
      %v291 = vld [vmem:[%s208 + $0xf0] sm:$0xf]
      %v292 = vld [vmem:[%s208 + $0xf4] sm:$0xf]
      %v293 = vld [vmem:[%s208 + $0xf8] sm:$0xf]
      %v294 = vld [vmem:[%s208 + $0xfc] sm:$0xf]
      %v295 = vld [vmem:[%s213] sm:$0xf]
      %v296 = vld [vmem:[%s213 + $0x4] sm:$0xf]
      %v297 = vld [vmem:[%s213 + $0x8] sm:$0xf]
      %v298 = vld [vmem:[%s213 + $0xc] sm:$0xf]
      %v299 = vld [vmem:[%s213 + $0x10] sm:$0xf]
      %v300 = vld [vmem:[%s213 + $0x14] sm:$0xf]
      %v301 = vld [vmem:[%s213 + $0x18] sm:$0xf]
      %v302 = vld [vmem:[%s213 + $0x1c] sm:$0xf]
      %v303 = vld [vmem:[%s213 + $0x20] sm:$0xf]
      %v304 = vld [vmem:[%s213 + $0x24] sm:$0xf]
      %v305 = vld [vmem:[%s213 + $0x28] sm:$0xf]
      %v306 = vld [vmem:[%s213 + $0x2c] sm:$0xf]
      %v307 = vld [vmem:[%s213 + $0x30] sm:$0xf]
      %v308 = vld [vmem:[%s213 + $0x34] sm:$0xf]
      %v309 = vld [vmem:[%s213 + $0x38] sm:$0xf]
      %v310 = vld [vmem:[%s213 + $0x3c] sm:$0xf]
      %v375 = vunpack.c.l.b16 %v231
      %v376 = vunpack.c.l.b16 %v232
      %v377 = vunpack.c.l.b16 %v233
      %v378 = vunpack.c.l.b16 %v234
      %v379 = vunpack.c.l.b16 %v235
      %v380 = vunpack.c.l.b16 %v236
      %v381 = vunpack.c.l.b16 %v237
      %v382 = vunpack.c.l.b16 %v238
      %v383 = vunpack.c.l.b16 %v239
      %v384 = vunpack.c.l.b16 %v240
      %v385 = vunpack.c.l.b16 %v241
      %v386 = vunpack.c.l.b16 %v242
      %v387 = vunpack.c.l.b16 %v243
      %v388 = vunpack.c.l.b16 %v244
      %v389 = vunpack.c.l.b16 %v245
      %v390 = vunpack.c.l.b16 %v246
      %v391 = vunpack.c.l.b16 %v247
      %v392 = vunpack.c.l.b16 %v248
      %v393 = vunpack.c.l.b16 %v249
      %v394 = vunpack.c.l.b16 %v250
      %v395 = vunpack.c.l.b16 %v251
      %v396 = vunpack.c.l.b16 %v252
      %v397 = vunpack.c.l.b16 %v253
      %v398 = vunpack.c.l.b16 %v254
      %v399 = vunpack.c.l.b16 %v255
      %v400 = vunpack.c.l.b16 %v256
      %v401 = vunpack.c.l.b16 %v257
      %v402 = vunpack.c.l.b16 %v258
      %v403 = vunpack.c.l.b16 %v259
      %v404 = vunpack.c.l.b16 %v260
      %v405 = vunpack.c.l.b16 %v261
      %v406 = vunpack.c.l.b16 %v262
      %v407 = vunpack.c.l.b16 %v263
      %v408 = vunpack.c.l.b16 %v264
      %v409 = vunpack.c.l.b16 %v265
      %v410 = vunpack.c.l.b16 %v266
      %v411 = vunpack.c.l.b16 %v267
      %v412 = vunpack.c.l.b16 %v268
      %v413 = vunpack.c.l.b16 %v269
      %v414 = vunpack.c.l.b16 %v270
      %v415 = vunpack.c.l.b16 %v271
      %v416 = vunpack.c.l.b16 %v272
      %v417 = vunpack.c.l.b16 %v273
      %v418 = vunpack.c.l.b16 %v274
      %v419 = vunpack.c.l.b16 %v275
      %v420 = vunpack.c.l.b16 %v276
      %v421 = vunpack.c.l.b16 %v277
      %v422 = vunpack.c.l.b16 %v278
      %v423 = vunpack.c.l.b16 %v279
      %v424 = vunpack.c.l.b16 %v280
      %v425 = vunpack.c.l.b16 %v281
      %v426 = vunpack.c.l.b16 %v282
      %v427 = vunpack.c.l.b16 %v283
      %v428 = vunpack.c.l.b16 %v284
      %v429 = vunpack.c.l.b16 %v285
      %v430 = vunpack.c.l.b16 %v286
      %v431 = vunpack.c.l.b16 %v287
      %v432 = vunpack.c.l.b16 %v288
      %v433 = vunpack.c.l.b16 %v289
      %v434 = vunpack.c.l.b16 %v290
      %v435 = vunpack.c.l.b16 %v291
      %v436 = vunpack.c.l.b16 %v292
      %v437 = vunpack.c.l.b16 %v293
      %v438 = vunpack.c.l.b16 %v294
      %v439 = vpack.c.b16 %v376, %v375
      %v440 = vpack.c.b16 %v378, %v377
      %v441 = vpack.c.b16 %v380, %v379
      %v442 = vpack.c.b16 %v382, %v381
      %v443 = vpack.c.b16 %v384, %v383
      %v444 = vpack.c.b16 %v386, %v385
      %v445 = vpack.c.b16 %v388, %v387
      %v446 = vpack.c.b16 %v390, %v389
      %v447 = vpack.c.b16 %v392, %v391
      %v448 = vpack.c.b16 %v394, %v393
      %v449 = vpack.c.b16 %v396, %v395
      %v450 = vpack.c.b16 %v398, %v397
      %v451 = vpack.c.b16 %v400, %v399
      %v452 = vpack.c.b16 %v402, %v401
      %v453 = vpack.c.b16 %v404, %v403
      %v454 = vpack.c.b16 %v406, %v405
      %v455 = vpack.c.b16 %v408, %v407
      %v456 = vpack.c.b16 %v410, %v409
      %v457 = vpack.c.b16 %v412, %v411
      %v458 = vpack.c.b16 %v414, %v413
      %v459 = vpack.c.b16 %v416, %v415
      %v460 = vpack.c.b16 %v418, %v417
      %v461 = vpack.c.b16 %v420, %v419
      %v462 = vpack.c.b16 %v422, %v421
      %v463 = vpack.c.b16 %v424, %v423
      %v464 = vpack.c.b16 %v426, %v425
      %v465 = vpack.c.b16 %v428, %v427
      %v466 = vpack.c.b16 %v430, %v429
      %v467 = vpack.c.b16 %v432, %v431
      %v468 = vpack.c.b16 %v434, %v433
      %v469 = vpack.c.b16 %v436, %v435
      %v470 = vpack.c.b16 %v438, %v437
      %v519 = vunpack.c.l.b16 %v295
      %v520 = vunpack.c.l.b16 %v296
      %v521 = vunpack.c.l.b16 %v297
      %v522 = vunpack.c.l.b16 %v298
      %v523 = vunpack.c.l.b16 %v299
      %v524 = vunpack.c.l.b16 %v300
      %v525 = vunpack.c.l.b16 %v301
      %v526 = vunpack.c.l.b16 %v302
      %v527 = vunpack.c.l.b16 %v303
      %v528 = vunpack.c.l.b16 %v304
      %v529 = vunpack.c.l.b16 %v305
      %v530 = vunpack.c.l.b16 %v306
      %v531 = vunpack.c.l.b16 %v307
      %v532 = vunpack.c.l.b16 %v308
      %v533 = vunpack.c.l.b16 %v309
      %v534 = vunpack.c.l.b16 %v310
      %v535 = vpack.c.b16 %v520, %v519
      %v536 = vpack.c.b16 %v522, %v521
      %v537 = vpack.c.b16 %v524, %v523
      %v538 = vpack.c.b16 %v526, %v525
      %v539 = vpack.c.b16 %v528, %v527
      %v540 = vpack.c.b16 %v530, %v529
      %v541 = vpack.c.b16 %v532, %v531
      %v542 = vpack.c.b16 %v534, %v533
      %551 = vmatprep.subr.bf16.mxu0 0
      %552 = vmatpush1.bf16.msra.mxu0 %v542
      %553 = vmatprep.subr.bf16.mxu0 0
      %554 = vmatpush1.bf16.msra.mxu0 %v541
      %555 = vmatprep.subr.bf16.mxu0 0
      %556 = vmatpush1.bf16.msra.mxu0 %v540
      %557 = vmatprep.subr.bf16.mxu0 0
      %558 = vmatpush1.bf16.msra.mxu0 %v539
      %559 = vmatprep.subr.bf16.mxu0 0
      %560 = vmatpush1.bf16.msra.mxu0 %v538
      %561 = vmatprep.subr.bf16.mxu0 0
      %562 = vmatpush1.bf16.msra.mxu0 %v537
      %563 = vmatprep.subr.bf16.mxu0 0
      %564 = vmatpush1.bf16.msra.mxu0 %v536
      %565 = vmatprep.subr.bf16.mxu0 0
      %566 = vmatpush1.bf16.msra.mxu0 %v535
      %567 = vmatprep.subr.bf16.mxu0 0
      %568 = vmatpush2.bf16.msra.mxu0 0
      %569 = vmatprep.subr.bf16.mxu0 0
      %570 = vmatpush2.bf16.msra.mxu0 0
      %571 = vmatprep.subr.bf16.mxu0 0
      %572 = vmatpush2.bf16.msra.mxu0 0
      %573 = vmatprep.subr.bf16.mxu0 0
      %574 = vmatpush2.bf16.msra.mxu0 0
      %575 = vmatprep.subr.bf16.mxu0 0
      %576 = vmatpush2.bf16.msra.mxu0 0
      %577 = vmatprep.subr.bf16.mxu0 0
      %578 = vmatpush2.bf16.msra.mxu0 0
      %579 = vmatprep.subr.bf16.mxu0 0
      %580 = vmatpush2.bf16.msra.mxu0 0
      %581 = vmatprep.subr.bf16.mxu0 0
      %582 = vmatpush2.bf16.msra.mxu0 0
      %583 = vmatprep.mubr.bf16.mxu0 0
      %584 = vmatmul.mubr.bf16.gmra.mxu0 %v439
      %v585 = vpop.f32.mrf.mxu0
      %v586 = vadd.f32 0.0, %v585
      %v587 = vpop.f32.mrf.mxu0
      %v588 = vpop.f32.mrf.mxu0
      %v589 = vadd.f32 0.0, %v588
      %v590 = vpop.f32.mrf.mxu0
      %591 = vmatprep.mubr.bf16.mxu0 0
      %592 = vmatmul.mubr.bf16.gmra.mxu0 %v440
      %v593 = vpop.f32.mrf.mxu0
      %v594 = vadd.f32 0.0, %v593
      %v595 = vpop.f32.mrf.mxu0
      %v596 = vpop.f32.mrf.mxu0
      %v597 = vadd.f32 0.0, %v596
      %v598 = vpop.f32.mrf.mxu0
      %599 = vmatprep.mubr.bf16.mxu0 0
      %600 = vmatmul.mubr.bf16.gmra.mxu0 %v441
      %v601 = vpop.f32.mrf.mxu0
      %v602 = vadd.f32 0.0, %v601
      %v603 = vpop.f32.mrf.mxu0
      %v604 = vpop.f32.mrf.mxu0
      %v605 = vadd.f32 0.0, %v604
      %v606 = vpop.f32.mrf.mxu0
      %607 = vmatprep.mubr.bf16.mxu0 0
      %608 = vmatmul.mubr.bf16.gmra.mxu0 %v442
      %v609 = vpop.f32.mrf.mxu0
      %v610 = vadd.f32 0.0, %v609
      %v611 = vpop.f32.mrf.mxu0
      %v612 = vpop.f32.mrf.mxu0
      %v613 = vadd.f32 0.0, %v612
      %v614 = vpop.f32.mrf.mxu0
      %615 = vmatprep.mubr.bf16.mxu0 0
      %616 = vmatmul.mubr.bf16.gmra.mxu0 %v443
      %v617 = vpop.f32.mrf.mxu0
      %v618 = vadd.f32 0.0, %v617
      %v619 = vpop.f32.mrf.mxu0
      %v620 = vpop.f32.mrf.mxu0
      %v621 = vadd.f32 0.0, %v620
      %v622 = vpop.f32.mrf.mxu0
      %623 = vmatprep.mubr.bf16.mxu0 0
      %624 = vmatmul.mubr.bf16.gmra.mxu0 %v444
      %v625 = vpop.f32.mrf.mxu0
      %v626 = vadd.f32 0.0, %v625
      %v627 = vpop.f32.mrf.mxu0
      %v628 = vpop.f32.mrf.mxu0
      %v629 = vadd.f32 0.0, %v628
      %v630 = vpop.f32.mrf.mxu0
      %631 = vmatprep.mubr.bf16.mxu0 0
      %632 = vmatmul.mubr.bf16.gmra.mxu0 %v445
      %v633 = vpop.f32.mrf.mxu0
      %v634 = vadd.f32 0.0, %v633
      %v635 = vpop.f32.mrf.mxu0
      %v636 = vpop.f32.mrf.mxu0
      %v637 = vadd.f32 0.0, %v636
      %v638 = vpop.f32.mrf.mxu0
      %639 = vmatprep.mubr.bf16.mxu0 0
      %640 = vmatmul.mubr.bf16.gmra.mxu0 %v446
      %v641 = vpop.f32.mrf.mxu0
      %v642 = vadd.f32 0.0, %v641
      %v643 = vpop.f32.mrf.mxu0
      %v644 = vpop.f32.mrf.mxu0
      %v645 = vadd.f32 0.0, %v644
      %v646 = vpop.f32.mrf.mxu0
      %647 = vmatprep.mubr.bf16.mxu0 0
      %648 = vmatmul.mubr.bf16.gmra.mxu0 %v447
      %v649 = vpop.f32.mrf.mxu0
      %v650 = vadd.f32 0.0, %v649
      %v651 = vpop.f32.mrf.mxu0
      %v652 = vpop.f32.mrf.mxu0
      %v653 = vadd.f32 0.0, %v652
      %v654 = vpop.f32.mrf.mxu0
      %655 = vmatprep.mubr.bf16.mxu0 0
      %656 = vmatmul.mubr.bf16.gmra.mxu0 %v448
      %v657 = vpop.f32.mrf.mxu0
      %v658 = vadd.f32 0.0, %v657
      %v659 = vpop.f32.mrf.mxu0
      %v660 = vpop.f32.mrf.mxu0
      %v661 = vadd.f32 0.0, %v660
      %v662 = vpop.f32.mrf.mxu0
      %663 = vmatprep.mubr.bf16.mxu0 0
      %664 = vmatmul.mubr.bf16.gmra.mxu0 %v449
      %v665 = vpop.f32.mrf.mxu0
      %v666 = vadd.f32 0.0, %v665
      %v667 = vpop.f32.mrf.mxu0
      %v668 = vpop.f32.mrf.mxu0
      %v669 = vadd.f32 0.0, %v668
      %v670 = vpop.f32.mrf.mxu0
      %671 = vmatprep.mubr.bf16.mxu0 0
      %672 = vmatmul.mubr.bf16.gmra.mxu0 %v450
      %v673 = vpop.f32.mrf.mxu0
      %v674 = vadd.f32 0.0, %v673
      %v675 = vpop.f32.mrf.mxu0
      %v676 = vpop.f32.mrf.mxu0
      %v677 = vadd.f32 0.0, %v676
      %v678 = vpop.f32.mrf.mxu0
      %679 = vmatprep.mubr.bf16.mxu0 0
      %680 = vmatmul.mubr.bf16.gmra.mxu0 %v451
      %v681 = vpop.f32.mrf.mxu0
      %v682 = vadd.f32 0.0, %v681
      %v683 = vpop.f32.mrf.mxu0
      %v684 = vpop.f32.mrf.mxu0
      %v685 = vadd.f32 0.0, %v684
      %v686 = vpop.f32.mrf.mxu0
      %687 = vmatprep.mubr.bf16.mxu0 0
      %688 = vmatmul.mubr.bf16.gmra.mxu0 %v452
      %v689 = vpop.f32.mrf.mxu0
      %v690 = vadd.f32 0.0, %v689
      %v691 = vpop.f32.mrf.mxu0
      %v692 = vpop.f32.mrf.mxu0
      %v693 = vadd.f32 0.0, %v692
      %v694 = vpop.f32.mrf.mxu0
      %695 = vmatprep.mubr.bf16.mxu0 0
      %696 = vmatmul.mubr.bf16.gmra.mxu0 %v453
      %v697 = vpop.f32.mrf.mxu0
      %v698 = vadd.f32 0.0, %v697
      %v699 = vpop.f32.mrf.mxu0
      %v700 = vpop.f32.mrf.mxu0
      %v701 = vadd.f32 0.0, %v700
      %v702 = vpop.f32.mrf.mxu0
      %703 = vmatprep.mubr.bf16.mxu0 0
      %704 = vmatmul.mubr.bf16.gmra.mxu0 %v454
      %v705 = vpop.f32.mrf.mxu0
      %v706 = vadd.f32 0.0, %v705
      %v707 = vpop.f32.mrf.mxu0
      %v708 = vpop.f32.mrf.mxu0
      %v709 = vadd.f32 0.0, %v708
      %v710 = vpop.f32.mrf.mxu0
      %711 = vmatprep.mubr.bf16.mxu0 0
      %712 = vmatmul.mubr.bf16.gmra.mxu0 %v455
      %v713 = vpop.f32.mrf.mxu0
      %v714 = vadd.f32 0.0, %v713
      %v715 = vpop.f32.mrf.mxu0
      %v716 = vpop.f32.mrf.mxu0
      %v717 = vadd.f32 0.0, %v716
      %v718 = vpop.f32.mrf.mxu0
      %719 = vmatprep.mubr.bf16.mxu0 0
      %720 = vmatmul.mubr.bf16.gmra.mxu0 %v456
      %v721 = vpop.f32.mrf.mxu0
      %v722 = vadd.f32 0.0, %v721
      %v723 = vpop.f32.mrf.mxu0
      %v724 = vpop.f32.mrf.mxu0
      %v725 = vadd.f32 0.0, %v724
      %v726 = vpop.f32.mrf.mxu0
      %727 = vmatprep.mubr.bf16.mxu0 0
      %728 = vmatmul.mubr.bf16.gmra.mxu0 %v457
      %v729 = vpop.f32.mrf.mxu0
      %v730 = vadd.f32 0.0, %v729
      %v731 = vpop.f32.mrf.mxu0
      %v732 = vpop.f32.mrf.mxu0
      %v733 = vadd.f32 0.0, %v732
      %v734 = vpop.f32.mrf.mxu0
      %735 = vmatprep.mubr.bf16.mxu0 0
      %736 = vmatmul.mubr.bf16.gmra.mxu0 %v458
      %v737 = vpop.f32.mrf.mxu0
      %v738 = vadd.f32 0.0, %v737
      %v739 = vpop.f32.mrf.mxu0
      %v740 = vpop.f32.mrf.mxu0
      %v741 = vadd.f32 0.0, %v740
      %v742 = vpop.f32.mrf.mxu0
      %743 = vmatprep.mubr.bf16.mxu0 0
      %744 = vmatmul.mubr.bf16.gmra.mxu0 %v459
      %v745 = vpop.f32.mrf.mxu0
      %v746 = vadd.f32 0.0, %v745
      %v747 = vpop.f32.mrf.mxu0
      %v748 = vpop.f32.mrf.mxu0
      %v749 = vadd.f32 0.0, %v748
      %v750 = vpop.f32.mrf.mxu0
      %751 = vmatprep.mubr.bf16.mxu0 0
      %752 = vmatmul.mubr.bf16.gmra.mxu0 %v460
      %v753 = vpop.f32.mrf.mxu0
      %v754 = vadd.f32 0.0, %v753
      %v755 = vpop.f32.mrf.mxu0
      %v756 = vpop.f32.mrf.mxu0
      %v757 = vadd.f32 0.0, %v756
      %v758 = vpop.f32.mrf.mxu0
      %759 = vmatprep.mubr.bf16.mxu0 0
      %760 = vmatmul.mubr.bf16.gmra.mxu0 %v461
      %v761 = vpop.f32.mrf.mxu0
      %v762 = vadd.f32 0.0, %v761
      %v763 = vpop.f32.mrf.mxu0
      %v764 = vpop.f32.mrf.mxu0
      %v765 = vadd.f32 0.0, %v764
      %v766 = vpop.f32.mrf.mxu0
      %767 = vmatprep.mubr.bf16.mxu0 0
      %768 = vmatmul.mubr.bf16.gmra.mxu0 %v462
      %v769 = vpop.f32.mrf.mxu0
      %v770 = vadd.f32 0.0, %v769
      %v771 = vpop.f32.mrf.mxu0
      %v772 = vpop.f32.mrf.mxu0
      %v773 = vadd.f32 0.0, %v772
      %v774 = vpop.f32.mrf.mxu0
      %775 = vmatprep.mubr.bf16.mxu0 0
      %776 = vmatmul.mubr.bf16.gmra.mxu0 %v463
      %v777 = vpop.f32.mrf.mxu0
      %v778 = vadd.f32 0.0, %v777
      %v779 = vpop.f32.mrf.mxu0
      %v780 = vpop.f32.mrf.mxu0
      %v781 = vadd.f32 0.0, %v780
      %v782 = vpop.f32.mrf.mxu0
      %783 = vmatprep.mubr.bf16.mxu0 0
      %784 = vmatmul.mubr.bf16.gmra.mxu0 %v464
      %v785 = vpop.f32.mrf.mxu0
      %v786 = vadd.f32 0.0, %v785
      %v787 = vpop.f32.mrf.mxu0
      %v788 = vpop.f32.mrf.mxu0
      %v789 = vadd.f32 0.0, %v788
      %v790 = vpop.f32.mrf.mxu0
      %791 = vmatprep.mubr.bf16.mxu0 0
      %792 = vmatmul.mubr.bf16.gmra.mxu0 %v465
      %v793 = vpop.f32.mrf.mxu0
      %v794 = vadd.f32 0.0, %v793
      %v795 = vpop.f32.mrf.mxu0
      %v796 = vpop.f32.mrf.mxu0
      %v797 = vadd.f32 0.0, %v796
      %v798 = vpop.f32.mrf.mxu0
      %799 = vmatprep.mubr.bf16.mxu0 0
      %800 = vmatmul.mubr.bf16.gmra.mxu0 %v466
      %v801 = vpop.f32.mrf.mxu0
      %v802 = vadd.f32 0.0, %v801
      %v803 = vpop.f32.mrf.mxu0
      %v804 = vpop.f32.mrf.mxu0
      %v805 = vadd.f32 0.0, %v804
      %v806 = vpop.f32.mrf.mxu0
      %807 = vmatprep.mubr.bf16.mxu0 0
      %808 = vmatmul.mubr.bf16.gmra.mxu0 %v467
      %v809 = vpop.f32.mrf.mxu0
      %v810 = vadd.f32 0.0, %v809
      %v811 = vpop.f32.mrf.mxu0
      %v812 = vpop.f32.mrf.mxu0
      %v813 = vadd.f32 0.0, %v812
      %v814 = vpop.f32.mrf.mxu0
      %815 = vmatprep.mubr.bf16.mxu0 0
      %816 = vmatmul.mubr.bf16.gmra.mxu0 %v468
      %v817 = vpop.f32.mrf.mxu0
      %v818 = vadd.f32 0.0, %v817
      %v819 = vpop.f32.mrf.mxu0
      %v820 = vpop.f32.mrf.mxu0
      %v821 = vadd.f32 0.0, %v820
      %v822 = vpop.f32.mrf.mxu0
      %823 = vmatprep.mubr.bf16.mxu0 0
      %824 = vmatmul.mubr.bf16.gmra.mxu0 %v469
      %v825 = vpop.f32.mrf.mxu0
      %v826 = vadd.f32 0.0, %v825
      %v827 = vpop.f32.mrf.mxu0
      %v828 = vpop.f32.mrf.mxu0
      %v829 = vadd.f32 0.0, %v828
      %v830 = vpop.f32.mrf.mxu0
      %831 = vmatprep.mubr.bf16.mxu0 0
      %832 = vmatmul.mubr.bf16.gmra.mxu0 %v470
      %v833 = vpop.f32.mrf.mxu0
      %v834 = vadd.f32 0.0, %v833
      %v835 = vpop.f32.mrf.mxu0
      %v836 = vpop.f32.mrf.mxu0
      %v837 = vadd.f32 0.0, %v836
      %v838 = vpop.f32.mrf.mxu0
      %839 = vdwg.mxu0
      %vm840 = vcmask 64512
      %841 = vst.msk [vmem:[%s221] sm:$0xff] %vm840, %v586
      %842 = vst.msk [vmem:[%s221 + $0x8] sm:$0xff] %vm840, %v589
      %843 = vst.msk [vmem:[%s221 + $0x10] sm:$0xff] %vm840, %v594
      %844 = vst.msk [vmem:[%s221 + $0x18] sm:$0xff] %vm840, %v597
      %845 = vst.msk [vmem:[%s221 + $0x20] sm:$0xff] %vm840, %v602
      %846 = vst.msk [vmem:[%s221 + $0x28] sm:$0xff] %vm840, %v605
      %847 = vst.msk [vmem:[%s221 + $0x30] sm:$0xff] %vm840, %v610
      %848 = vst.msk [vmem:[%s221 + $0x38] sm:$0xff] %vm840, %v613
      %849 = vst.msk [vmem:[%s221 + $0x40] sm:$0xff] %vm840, %v618
      %850 = vst.msk [vmem:[%s221 + $0x48] sm:$0xff] %vm840, %v621
      %851 = vst.msk [vmem:[%s221 + $0x50] sm:$0xff] %vm840, %v626
      %852 = vst.msk [vmem:[%s221 + $0x58] sm:$0xff] %vm840, %v629
      %853 = vst.msk [vmem:[%s221 + $0x60] sm:$0xff] %vm840, %v634
      %854 = vst.msk [vmem:[%s221 + $0x68] sm:$0xff] %vm840, %v637
      %855 = vst.msk [vmem:[%s221 + $0x70] sm:$0xff] %vm840, %v642
      %856 = vst.msk [vmem:[%s221 + $0x78] sm:$0xff] %vm840, %v645
      %857 = vst.msk [vmem:[%s221 + $0x80] sm:$0xff] %vm840, %v650
      %858 = vst.msk [vmem:[%s221 + $0x88] sm:$0xff] %vm840, %v653
      %859 = vst.msk [vmem:[%s221 + $0x90] sm:$0xff] %vm840, %v658
      %860 = vst.msk [vmem:[%s221 + $0x98] sm:$0xff] %vm840, %v661
      %861 = vst.msk [vmem:[%s221 + $0xa0] sm:$0xff] %vm840, %v666
      %862 = vst.msk [vmem:[%s221 + $0xa8] sm:$0xff] %vm840, %v669
      %863 = vst.msk [vmem:[%s221 + $0xb0] sm:$0xff] %vm840, %v674
      %864 = vst.msk [vmem:[%s221 + $0xb8] sm:$0xff] %vm840, %v677
      %865 = vst.msk [vmem:[%s221 + $0xc0] sm:$0xff] %vm840, %v682
      %866 = vst.msk [vmem:[%s221 + $0xc8] sm:$0xff] %vm840, %v685
      %867 = vst.msk [vmem:[%s221 + $0xd0] sm:$0xff] %vm840, %v690
      %868 = vst.msk [vmem:[%s221 + $0xd8] sm:$0xff] %vm840, %v693
      %869 = vst.msk [vmem:[%s221 + $0xe0] sm:$0xff] %vm840, %v698
      %870 = vst.msk [vmem:[%s221 + $0xe8] sm:$0xff] %vm840, %v701
      %871 = vst.msk [vmem:[%s221 + $0xf0] sm:$0xff] %vm840, %v706
      %872 = vst.msk [vmem:[%s221 + $0xf8] sm:$0xff] %vm840, %v709
      %873 = vst.msk [vmem:[%s221 + $0x100] sm:$0xff] %vm840, %v714
      %874 = vst.msk [vmem:[%s221 + $0x108] sm:$0xff] %vm840, %v717
      %875 = vst.msk [vmem:[%s221 + $0x110] sm:$0xff] %vm840, %v722
      %876 = vst.msk [vmem:[%s221 + $0x118] sm:$0xff] %vm840, %v725
      %877 = vst.msk [vmem:[%s221 + $0x120] sm:$0xff] %vm840, %v730
      %878 = vst.msk [vmem:[%s221 + $0x128] sm:$0xff] %vm840, %v733
      %879 = vst.msk [vmem:[%s221 + $0x130] sm:$0xff] %vm840, %v738
      %880 = vst.msk [vmem:[%s221 + $0x138] sm:$0xff] %vm840, %v741
      %881 = vst.msk [vmem:[%s221 + $0x140] sm:$0xff] %vm840, %v746
      %882 = vst.msk [vmem:[%s221 + $0x148] sm:$0xff] %vm840, %v749
      %883 = vst.msk [vmem:[%s221 + $0x150] sm:$0xff] %vm840, %v754
      %884 = vst.msk [vmem:[%s221 + $0x158] sm:$0xff] %vm840, %v757
      %885 = vst.msk [vmem:[%s221 + $0x160] sm:$0xff] %vm840, %v762
      %886 = vst.msk [vmem:[%s221 + $0x168] sm:$0xff] %vm840, %v765
      %887 = vst.msk [vmem:[%s221 + $0x170] sm:$0xff] %vm840, %v770
      %888 = vst.msk [vmem:[%s221 + $0x178] sm:$0xff] %vm840, %v773
      %889 = vst.msk [vmem:[%s221 + $0x180] sm:$0xff] %vm840, %v778
      %890 = vst.msk [vmem:[%s221 + $0x188] sm:$0xff] %vm840, %v781
      %891 = vst.msk [vmem:[%s221 + $0x190] sm:$0xff] %vm840, %v786
      %892 = vst.msk [vmem:[%s221 + $0x198] sm:$0xff] %vm840, %v789
      %893 = vst.msk [vmem:[%s221 + $0x1a0] sm:$0xff] %vm840, %v794
      %894 = vst.msk [vmem:[%s221 + $0x1a8] sm:$0xff] %vm840, %v797
      %895 = vst.msk [vmem:[%s221 + $0x1b0] sm:$0xff] %vm840, %v802
      %896 = vst.msk [vmem:[%s221 + $0x1b8] sm:$0xff] %vm840, %v805
      %897 = vst.msk [vmem:[%s221 + $0x1c0] sm:$0xff] %vm840, %v810
      %898 = vst.msk [vmem:[%s221 + $0x1c8] sm:$0xff] %vm840, %v813
      %899 = vst.msk [vmem:[%s221 + $0x1d0] sm:$0xff] %vm840, %v818
      %900 = vst.msk [vmem:[%s221 + $0x1d8] sm:$0xff] %vm840, %v821
      %901 = vst.msk [vmem:[%s221 + $0x1e0] sm:$0xff] %vm840, %v826
      %902 = vst.msk [vmem:[%s221 + $0x1e8] sm:$0xff] %vm840, %v829
      %903 = vst.msk [vmem:[%s221 + $0x1f0] sm:$0xff] %vm840, %v834
      %904 = vst.msk [vmem:[%s221 + $0x1f8] sm:$0xff] %vm840, %v837
      %v905 = vsel %vm840, %v586, 0.0
      %v906 = vsel %vm840, %v589, 0.0
      %v907 = vadd.f32 %v905, %v906
      %v908 = vsel %vm840, %v594, 0.0
      %v909 = vadd.f32 %v907, %v908
      %v910 = vsel %vm840, %v597, 0.0
      %v911 = vadd.f32 %v909, %v910
      %v912 = vsel %vm840, %v602, 0.0
      %v913 = vadd.f32 %v911, %v912
      %v914 = vsel %vm840, %v605, 0.0
      %v915 = vadd.f32 %v913, %v914
      %v916 = vsel %vm840, %v610, 0.0
      %v917 = vadd.f32 %v915, %v916
      %v918 = vsel %vm840, %v613, 0.0
      %v919 = vadd.f32 %v917, %v918
      %v920 = vsel %vm840, %v618, 0.0
      %v921 = vadd.f32 %v919, %v920
      %v922 = vsel %vm840, %v621, 0.0
      %v923 = vadd.f32 %v921, %v922
      %v924 = vsel %vm840, %v626, 0.0
      %v925 = vadd.f32 %v923, %v924
      %v926 = vsel %vm840, %v629, 0.0
      %v927 = vadd.f32 %v925, %v926
      %v928 = vsel %vm840, %v634, 0.0
      %v929 = vadd.f32 %v927, %v928
      %v930 = vsel %vm840, %v637, 0.0
      %v931 = vadd.f32 %v929, %v930
      %v932 = vsel %vm840, %v642, 0.0
      %v933 = vadd.f32 %v931, %v932
      %v934 = vsel %vm840, %v645, 0.0
      %v935 = vadd.f32 %v933, %v934
      %v936 = vsel %vm840, %v650, 0.0
      %v937 = vadd.f32 %v935, %v936
      %v938 = vsel %vm840, %v653, 0.0
      %v939 = vadd.f32 %v937, %v938
      %v940 = vsel %vm840, %v658, 0.0
      %v941 = vadd.f32 %v939, %v940
      %v942 = vsel %vm840, %v661, 0.0
      %v943 = vadd.f32 %v941, %v942
      %v944 = vsel %vm840, %v666, 0.0
      %v945 = vadd.f32 %v943, %v944
      %v946 = vsel %vm840, %v669, 0.0
      %v947 = vadd.f32 %v945, %v946
      %v948 = vsel %vm840, %v674, 0.0
      %v949 = vadd.f32 %v947, %v948
      %v950 = vsel %vm840, %v677, 0.0
      %v951 = vadd.f32 %v949, %v950
      %v952 = vsel %vm840, %v682, 0.0
      %v953 = vadd.f32 %v951, %v952
      %v954 = vsel %vm840, %v685, 0.0
      %v955 = vadd.f32 %v953, %v954
      %v956 = vsel %vm840, %v690, 0.0
      %v957 = vadd.f32 %v955, %v956
      %v958 = vsel %vm840, %v693, 0.0
      %v959 = vadd.f32 %v957, %v958
      %v960 = vsel %vm840, %v698, 0.0
      %v961 = vadd.f32 %v959, %v960
      %v962 = vsel %vm840, %v701, 0.0
      %v963 = vadd.f32 %v961, %v962
      %v964 = vsel %vm840, %v706, 0.0
      %v965 = vadd.f32 %v963, %v964
      %v966 = vsel %vm840, %v709, 0.0
      %v967 = vadd.f32 %v965, %v966
      %v968 = vsel %vm840, %v714, 0.0
      %v969 = vadd.f32 %v967, %v968
      %v970 = vsel %vm840, %v717, 0.0
      %v971 = vadd.f32 %v969, %v970
      %v972 = vsel %vm840, %v722, 0.0
      %v973 = vadd.f32 %v971, %v972
      %v974 = vsel %vm840, %v725, 0.0
      %v975 = vadd.f32 %v973, %v974
      %v976 = vsel %vm840, %v730, 0.0
      %v977 = vadd.f32 %v975, %v976
      %v978 = vsel %vm840, %v733, 0.0
      %v979 = vadd.f32 %v977, %v978
      %v980 = vsel %vm840, %v738, 0.0
      %v981 = vadd.f32 %v979, %v980
      %v982 = vsel %vm840, %v741, 0.0
      %v983 = vadd.f32 %v981, %v982
      %v984 = vsel %vm840, %v746, 0.0
      %v985 = vadd.f32 %v983, %v984
      %v986 = vsel %vm840, %v749, 0.0
      %v987 = vadd.f32 %v985, %v986
      %v988 = vsel %vm840, %v754, 0.0
      %v989 = vadd.f32 %v987, %v988
      %v990 = vsel %vm840, %v757, 0.0
      %v991 = vadd.f32 %v989, %v990
      %v992 = vsel %vm840, %v762, 0.0
      %v993 = vadd.f32 %v991, %v992
      %v994 = vsel %vm840, %v765, 0.0
      %v995 = vadd.f32 %v993, %v994
      %v996 = vsel %vm840, %v770, 0.0
      %v997 = vadd.f32 %v995, %v996
      %v998 = vsel %vm840, %v773, 0.0
      %v999 = vadd.f32 %v997, %v998
      %v1000 = vsel %vm840, %v778, 0.0
      %v1001 = vadd.f32 %v999, %v1000
      %v1002 = vsel %vm840, %v781, 0.0
      %v1003 = vadd.f32 %v1001, %v1002
      %v1004 = vsel %vm840, %v786, 0.0
      %v1005 = vadd.f32 %v1003, %v1004
      %v1006 = vsel %vm840, %v789, 0.0
      %v1007 = vadd.f32 %v1005, %v1006
      %v1008 = vsel %vm840, %v794, 0.0
      %v1009 = vadd.f32 %v1007, %v1008
      %v1010 = vsel %vm840, %v797, 0.0
      %v1011 = vadd.f32 %v1009, %v1010
      %v1012 = vsel %vm840, %v802, 0.0
      %v1013 = vadd.f32 %v1011, %v1012
      %v1014 = vsel %vm840, %v805, 0.0
      %v1015 = vadd.f32 %v1013, %v1014
      %v1016 = vsel %vm840, %v810, 0.0
      %v1017 = vadd.f32 %v1015, %v1016
      %v1018 = vsel %vm840, %v813, 0.0
      %v1019 = vadd.f32 %v1017, %v1018
      %v1020 = vsel %vm840, %v818, 0.0
      %v1021 = vadd.f32 %v1019, %v1020
      %v1022 = vsel %vm840, %v821, 0.0
      %v1023 = vadd.f32 %v1021, %v1022
      %v1024 = vsel %vm840, %v826, 0.0
      %v1025 = vadd.f32 %v1023, %v1024
      %v1026 = vsel %vm840, %v829, 0.0
      %v1027 = vadd.f32 %v1025, %v1026
      %v1028 = vsel %vm840, %v834, 0.0
      %v1029 = vadd.f32 %v1027, %v1028
      %v1030 = vsel %vm840, %v837, 0.0
      %v1031 = vadd.f32 %v1029, %v1030
      %v1032 = vrot.slane %v1031, 4
      %v1033 = vadd.f32 %v1031, %v1032
      %v1034 = vrot.slane %v1033, 2
      %v1035 = vadd.f32 %v1033, %v1034
      %v1036 = vrot.slane %v1035, 1
      %v1037 = vadd.f32 %v1035, %v1036
      %v1038 = vmul.f32 %v586, %v586
      %v1039 = vmul.f32 %v589, %v589
      %v1040 = vmul.f32 %v594, %v594
      %v1041 = vmul.f32 %v597, %v597
      %v1042 = vmul.f32 %v602, %v602
      %v1043 = vmul.f32 %v605, %v605
      %v1044 = vmul.f32 %v610, %v610
      %v1045 = vmul.f32 %v613, %v613
      %v1046 = vmul.f32 %v618, %v618
      %v1047 = vmul.f32 %v621, %v621
      %v1048 = vmul.f32 %v626, %v626
      %v1049 = vmul.f32 %v629, %v629
      %v1050 = vmul.f32 %v634, %v634
      %v1051 = vmul.f32 %v637, %v637
      %v1052 = vmul.f32 %v642, %v642
      %v1053 = vmul.f32 %v645, %v645
      %v1054 = vmul.f32 %v650, %v650
      %v1055 = vmul.f32 %v653, %v653
      %v1056 = vmul.f32 %v658, %v658
      %v1057 = vmul.f32 %v661, %v661
      %v1058 = vmul.f32 %v666, %v666
      %v1059 = vmul.f32 %v669, %v669
      %v1060 = vmul.f32 %v674, %v674
      %v1061 = vmul.f32 %v677, %v677
      %v1062 = vmul.f32 %v682, %v682
      %v1063 = vmul.f32 %v685, %v685
      %v1064 = vmul.f32 %v690, %v690
      %v1065 = vmul.f32 %v693, %v693
      %v1066 = vmul.f32 %v698, %v698
      %v1067 = vmul.f32 %v701, %v701
      %v1068 = vmul.f32 %v706, %v706
      %v1069 = vmul.f32 %v709, %v709
      %v1070 = vmul.f32 %v714, %v714
      %v1071 = vmul.f32 %v717, %v717
      %v1072 = vmul.f32 %v722, %v722
      %v1073 = vmul.f32 %v725, %v725
      %v1074 = vmul.f32 %v730, %v730
      %v1075 = vmul.f32 %v733, %v733
      %v1076 = vmul.f32 %v738, %v738
      %v1077 = vmul.f32 %v741, %v741
      %v1078 = vmul.f32 %v746, %v746
      %v1079 = vmul.f32 %v749, %v749
      %v1080 = vmul.f32 %v754, %v754
      %v1081 = vmul.f32 %v757, %v757
      %v1082 = vmul.f32 %v762, %v762
      %v1083 = vmul.f32 %v765, %v765
      %v1084 = vmul.f32 %v770, %v770
      %v1085 = vmul.f32 %v773, %v773
      %v1086 = vmul.f32 %v778, %v778
      %v1087 = vmul.f32 %v781, %v781
      %v1088 = vmul.f32 %v786, %v786
      %v1089 = vmul.f32 %v789, %v789
      %v1090 = vmul.f32 %v794, %v794
      %v1091 = vmul.f32 %v797, %v797
      %v1092 = vmul.f32 %v802, %v802
      %v1093 = vmul.f32 %v805, %v805
      %v1094 = vmul.f32 %v810, %v810
      %v1095 = vmul.f32 %v813, %v813
      %v1096 = vmul.f32 %v818, %v818
      %v1097 = vmul.f32 %v821, %v821
      %v1098 = vmul.f32 %v826, %v826
      %v1099 = vmul.f32 %v829, %v829
      %v1100 = vmul.f32 %v834, %v834
      %v1101 = vmul.f32 %v837, %v837
      %v1102 = vsel %vm840, %v1038, 0.0
      %v1103 = vsel %vm840, %v1039, 0.0
      %v1104 = vadd.f32 %v1102, %v1103
      %v1105 = vsel %vm840, %v1040, 0.0
      %v1106 = vadd.f32 %v1104, %v1105
      %v1107 = vsel %vm840, %v1041, 0.0
      %v1108 = vadd.f32 %v1106, %v1107
      %v1109 = vsel %vm840, %v1042, 0.0
      %v1110 = vadd.f32 %v1108, %v1109
      %v1111 = vsel %vm840, %v1043, 0.0
      %v1112 = vadd.f32 %v1110, %v1111
      %v1113 = vsel %vm840, %v1044, 0.0
      %v1114 = vadd.f32 %v1112, %v1113
      %v1115 = vsel %vm840, %v1045, 0.0
      %v1116 = vadd.f32 %v1114, %v1115
      %v1117 = vsel %vm840, %v1046, 0.0
      %v1118 = vadd.f32 %v1116, %v1117
      %v1119 = vsel %vm840, %v1047, 0.0
      %v1120 = vadd.f32 %v1118, %v1119
      %v1121 = vsel %vm840, %v1048, 0.0
      %v1122 = vadd.f32 %v1120, %v1121
      %v1123 = vsel %vm840, %v1049, 0.0
      %v1124 = vadd.f32 %v1122, %v1123
      %v1125 = vsel %vm840, %v1050, 0.0
      %v1126 = vadd.f32 %v1124, %v1125
      %v1127 = vsel %vm840, %v1051, 0.0
      %v1128 = vadd.f32 %v1126, %v1127
      %v1129 = vsel %vm840, %v1052, 0.0
      %v1130 = vadd.f32 %v1128, %v1129
      %v1131 = vsel %vm840, %v1053, 0.0
      %v1132 = vadd.f32 %v1130, %v1131
      %v1133 = vsel %vm840, %v1054, 0.0
      %v1134 = vadd.f32 %v1132, %v1133
      %v1135 = vsel %vm840, %v1055, 0.0
      %v1136 = vadd.f32 %v1134, %v1135
      %v1137 = vsel %vm840, %v1056, 0.0
      %v1138 = vadd.f32 %v1136, %v1137
      %v1139 = vsel %vm840, %v1057, 0.0
      %v1140 = vadd.f32 %v1138, %v1139
      %v1141 = vsel %vm840, %v1058, 0.0
      %v1142 = vadd.f32 %v1140, %v1141
      %v1143 = vsel %vm840, %v1059, 0.0
      %v1144 = vadd.f32 %v1142, %v1143
      %v1145 = vsel %vm840, %v1060, 0.0
      %v1146 = vadd.f32 %v1144, %v1145
      %v1147 = vsel %vm840, %v1061, 0.0
      %v1148 = vadd.f32 %v1146, %v1147
      %v1149 = vsel %vm840, %v1062, 0.0
      %v1150 = vadd.f32 %v1148, %v1149
      %v1151 = vsel %vm840, %v1063, 0.0
      %v1152 = vadd.f32 %v1150, %v1151
      %v1153 = vsel %vm840, %v1064, 0.0
      %v1154 = vadd.f32 %v1152, %v1153
      %v1155 = vsel %vm840, %v1065, 0.0
      %v1156 = vadd.f32 %v1154, %v1155
      %v1157 = vsel %vm840, %v1066, 0.0
      %v1158 = vadd.f32 %v1156, %v1157
      %v1159 = vsel %vm840, %v1067, 0.0
      %v1160 = vadd.f32 %v1158, %v1159
      %v1161 = vsel %vm840, %v1068, 0.0
      %v1162 = vadd.f32 %v1160, %v1161
      %v1163 = vsel %vm840, %v1069, 0.0
      %v1164 = vadd.f32 %v1162, %v1163
      %v1165 = vsel %vm840, %v1070, 0.0
      %v1166 = vadd.f32 %v1164, %v1165
      %v1167 = vsel %vm840, %v1071, 0.0
      %v1168 = vadd.f32 %v1166, %v1167
      %v1169 = vsel %vm840, %v1072, 0.0
      %v1170 = vadd.f32 %v1168, %v1169
      %v1171 = vsel %vm840, %v1073, 0.0
      %v1172 = vadd.f32 %v1170, %v1171
      %v1173 = vsel %vm840, %v1074, 0.0
      %v1174 = vadd.f32 %v1172, %v1173
      %v1175 = vsel %vm840, %v1075, 0.0
      %v1176 = vadd.f32 %v1174, %v1175
      %v1177 = vsel %vm840, %v1076, 0.0
      %v1178 = vadd.f32 %v1176, %v1177
      %v1179 = vsel %vm840, %v1077, 0.0
      %v1180 = vadd.f32 %v1178, %v1179
      %v1181 = vsel %vm840, %v1078, 0.0
      %v1182 = vadd.f32 %v1180, %v1181
      %v1183 = vsel %vm840, %v1079, 0.0
      %v1184 = vadd.f32 %v1182, %v1183
      %v1185 = vsel %vm840, %v1080, 0.0
      %v1186 = vadd.f32 %v1184, %v1185
      %v1187 = vsel %vm840, %v1081, 0.0
      %v1188 = vadd.f32 %v1186, %v1187
      %v1189 = vsel %vm840, %v1082, 0.0
      %v1190 = vadd.f32 %v1188, %v1189
      %v1191 = vsel %vm840, %v1083, 0.0
      %v1192 = vadd.f32 %v1190, %v1191
      %v1193 = vsel %vm840, %v1084, 0.0
      %v1194 = vadd.f32 %v1192, %v1193
      %v1195 = vsel %vm840, %v1085, 0.0
      %v1196 = vadd.f32 %v1194, %v1195
      %v1197 = vsel %vm840, %v1086, 0.0
      %v1198 = vadd.f32 %v1196, %v1197
      %v1199 = vsel %vm840, %v1087, 0.0
      %v1200 = vadd.f32 %v1198, %v1199
      %v1201 = vsel %vm840, %v1088, 0.0
      %v1202 = vadd.f32 %v1200, %v1201
      %v1203 = vsel %vm840, %v1089, 0.0
      %v1204 = vadd.f32 %v1202, %v1203
      %v1205 = vsel %vm840, %v1090, 0.0
      %v1206 = vadd.f32 %v1204, %v1205
      %v1207 = vsel %vm840, %v1091, 0.0
      %v1208 = vadd.f32 %v1206, %v1207
      %v1209 = vsel %vm840, %v1092, 0.0
      %v1210 = vadd.f32 %v1208, %v1209
      %v1211 = vsel %vm840, %v1093, 0.0
      %v1212 = vadd.f32 %v1210, %v1211
      %v1213 = vsel %vm840, %v1094, 0.0
      %v1214 = vadd.f32 %v1212, %v1213
      %v1215 = vsel %vm840, %v1095, 0.0
      %v1216 = vadd.f32 %v1214, %v1215
      %v1217 = vsel %vm840, %v1096, 0.0
      %v1218 = vadd.f32 %v1216, %v1217
      %v1219 = vsel %vm840, %v1097, 0.0
      %v1220 = vadd.f32 %v1218, %v1219
      %v1221 = vsel %vm840, %v1098, 0.0
      %v1222 = vadd.f32 %v1220, %v1221
      %v1223 = vsel %vm840, %v1099, 0.0
      %v1224 = vadd.f32 %v1222, %v1223
      %v1225 = vsel %vm840, %v1100, 0.0
      %v1226 = vadd.f32 %v1224, %v1225
      %v1227 = vsel %vm840, %v1101, 0.0
      %v1228 = vadd.f32 %v1226, %v1227
      %v1229 = vrot.slane %v1228, 4
      %v1230 = vadd.f32 %v1228, %v1229
      %v1231 = vrot.slane %v1230, 2
      %v1232 = vadd.f32 %v1230, %v1231
      %v1233 = vrot.slane %v1232, 1
      %v1234 = vadd.f32 %v1232, %v1233
      %vm1235 = vcmask 1040384
      %v1236 = vsel %vm1235, %v1037, %v1234
      %vm1237 = vcmask 58368
      %1238 = vst.msk [vmem:[%s229] sm:$0x3] %vm1237, %v1236
      %s1239 = smul.u32 64, %s19
      %p1240 = scmp.lt.s32.totalorder %s1239, 575
      %s1241 = scalar_select %p1240, %s1239, 575
      %p1242 = scmp.lt.s32.totalorder %s20, 0
      %s1243 = scalar_select %p1242, %s20, 0
      %s1244 = sadd.s32 %s1243, %s1241
      %s1245 = smul.addr %s1244, 8
      %s1246 = scalar_lea.vmem %s2, %s1245
      %p1247 = scmp.lt.s32.totalorder %s19, 8
      %s1248 = scalar_select %p1247, %s19, 8
      %p1249 = scmp.lt.s32.totalorder %s20, 0
      %s1250 = scalar_select %p1249, %s20, 0
      %s1251 = sadd.s32 %s1250, %s1248
      %s1252 = smul.addr %s1251, 2
      %s1253 = scalar_lea.vmem %s3, %s1252
      // Predicated region
      $region29: #{stage2_d_forward.17} parent=27 // pred_check
        %p1254 = pneg %p99
      $region30: #{stage2_d_forward.17} parent=27 // pred_check_branch
        %1256 = sbr.rel (%p1254) target = $region32
      $region31: #{stage2_d_forward.17} parent=27 // pred_region
        %s1257 = smul.u32 64, %s19
      $region32: #{stage2_d_forward.17} parent=27 // pred_fallthru
        _
      // Predicated region
      $region33: #{stage2_d_forward.17} parent=27 // pred_check
        %p1258 = pneg %p127
      $region34: #{stage2_d_forward.17} parent=27 // pred_check_branch
        %1260 = sbr.rel (%p1258) target = $region36
      $region35: #{stage2_d_forward.17} parent=27 // pred_region
        _
      $region36: #{stage2_d_forward.17} parent=27 // pred_fallthru
        _
    $region28: #{stage2_d_forward.17} parent=5 // pred_fallthru
      _
    %p1261 = scmp.le.s32.totalorder 2, %s10
    // Predicated region
    $region37: #{stage2_d_forward.17} parent=5 // pred_check
      %p1262 = pneg %p1261
    $region38: #{stage2_d_forward.17} parent=5 // pred_check_branch
      %1264 = sbr.rel (%p1262) target = $region40
    $region39: #{stage2_d_forward.17} parent=5 // pred_region
      %s1265 = ssub.s32 %s10, 2
      // Predicated region
      $region41: #{stage2_d_forward.17} parent=39 // pred_check
        %p1266 = pneg %p105
      $region42: #{stage2_d_forward.17} parent=39 // pred_check_branch
        %1268 = sbr.rel (%p1266) target = $region44
      $region43: #{stage2_d_forward.17} parent=39 // pred_region
        %s1269 = smul.u32 64, %s21
        %p1270 = scmp.lt.s32.totalorder %s1269, 575
        %s1271 = scalar_select %p1270, %s1269, 575
        %p1272 = scmp.lt.s32.totalorder %s22, 0
        %s1273 = scalar_select %p1272, %s22, 0
        %s1274 = sadd.s32 %s1273, %s1271
        %s1275 = smul.addr %s1274, 8
        %s1276 = scalar_lea.vmem %s2, %s1275
      $region44: #{stage2_d_forward.17} parent=39 // pred_fallthru
        _
      // Predicated region
      $region45: #{stage2_d_forward.17} parent=39 // pred_check
        %p1277 = pneg %p133
      $region46: #{stage2_d_forward.17} parent=39 // pred_check_branch
        %1279 = sbr.rel (%p1277) target = $region48
      $region47: #{stage2_d_forward.17} parent=39 // pred_region
        %p1280 = scmp.lt.s32.totalorder %s21, 8
        %s1281 = scalar_select %p1280, %s21, 8
        %p1282 = scmp.lt.s32.totalorder %s22, 0
        %s1283 = scalar_select %p1282, %s22, 0
        %s1284 = sadd.s32 %s1283, %s1281
        %s1285 = smul.addr %s1284, 2
        %s1286 = scalar_lea.vmem %s3, %s1285
      $region48: #{stage2_d_forward.17} parent=39 // pred_fallthru
        _
    $region40: #{stage2_d_forward.17} parent=5 // pred_fallthru
      _
  $region6: #{stage2_d_forward.17} parent=0 // loop_footer
    %s14 = sadd.s32 1, %s10
  $region7: #{stage2_d_forward.17} parent=0 // loop_footer_branch
    %9 = sbr.rel target = $region3
  $region8: #{stage2_d_forward.17} parent=0 // loop_exit
    _

// kernel: stage2_d_forward.18
$region0: #{stage2_d_forward.18}
  #allocation0 [shape = 'u32[]', space=smem, size = 0x4, offset = 0x4, fixed_abs, tag = 'smem constant byte address 0x4 - core index']
  #allocation1 [shape = 'u32[144,128]{1,0:T(1,128)}', space=vmem, size = 0x12000, scoped, tag = 'internal scratch']
  %s0 = inlined_call_operand.vmem [shape: f32[4608,8], index: 0, kind: input, shape index: {}]
  %s1 = inlined_call_operand.vmem [shape: f32[1,8], index: 1, kind: input, shape index: {}]
  %s2 = inlined_call_operand.vmem [shape: f32[1,8], index: 2, kind: input, shape index: {}]
  %s3 = inlined_call_operand.vmem [shape: bf16[4608,8], index: 3, kind: output, shape index: {}]
  %s4 = sld [smem:[#allocation0]]
  $region45: #{stage2_d_forward.18} parent=0
    _
  %s6 = ssub.s32 1, %s4
  %s7 = scalar_select 0, %s6, %s4
  loop: start=0, step=1, limit=8
  $region2: #{stage2_d_forward.18} parent=0 // loop_pre_header
    _
  $region3: #{stage2_d_forward.18} parent=0 // loop_header
    %s9 = sphi 0, %s13
    %p10 = scmp.ge.s32.totalorder %s9, 8
    %s19 = sphi 0, %s21
    %s22 = sphi 0, %s19
    %s23 = sphi 0, %s22
    %s39 = sphi 0, %s23
    %s43 = sphi 0, %s43
    %s45 = sphi 0, %s43
    %s46 = sphi 0, %s45
    %s60 = sphi 0, %s46
    %s64 = sphi 0, %s64
    %s66 = sphi 0, %s64
    %s67 = sphi 0, %s66
    %s81 = sphi 0, %s67
    %s87 = sphi 0, %s89
    %s90 = sphi 0, %s87
    %s91 = sphi 0, %s90
    %s107 = sphi 0, %s91
  $region4: #{stage2_d_forward.18} parent=0 // loop_header_branch
    %12 = sbr.rel (%p10) target = $region8
  $region5: #{stage2_d_forward.18} parent=0 // loop_body
    %s14 = ssub.s32 %s9, 1
    %s15 = ssub.s32 %s9, 2
    %s16 = sadd.s32 %s9, 1
    %s17 = ssub.s32 %s9, %s16
    %p18 = scmp.eq.s32.totalorder %s17, 0
    %s20 = sadd.s32 %s19, 1
    %s21 = scalar_select %p18, %s19, %s20
    %p24 = pneg %p18
    %p25 = scmp.eq.s32.totalorder %s9, 5
    %p26 = por %p24, %p25
    %p27 = scmp.ne.s32.totalorder %s19, %s22
    %p28 = scmp.eq.s32.totalorder %s9, 0
    %p29 = por %p27, %p28
    %p30 = scmp.ne.s32.totalorder %s19, %s22
    %p31 = scmp.eq.s32.totalorder %s14, 5
    %p32 = por %p30, %p31
    %p33 = scmp.ne.s32.totalorder %s22, %s23
    %p34 = scmp.eq.s32.totalorder %s14, 0
    %p35 = por %p33, %p34
    %p36 = scmp.ne.s32.totalorder %s22, %s23
    %p37 = scmp.eq.s32.totalorder %s15, 5
    %p38 = por %p36, %p37
    %p40 = scmp.ne.s32.totalorder %s23, %s39
    %p41 = scmp.eq.s32.totalorder %s15, 0
    %p42 = por %p40, %p41
    %s44 = sadd.s32 %s43, 1
    %p47 = scmp.eq.s32.totalorder %s9, 5
    %p48 = scmp.ne.s32.totalorder %s43, %s45
    %p49 = scmp.eq.s32.totalorder %s9, 0
    %p50 = por %p48, %p49
    %p51 = scmp.ne.s32.totalorder %s43, %s45
    %p52 = scmp.eq.s32.totalorder %s14, 5
    %p53 = por %p51, %p52
    %p54 = scmp.ne.s32.totalorder %s45, %s46
    %p55 = scmp.eq.s32.totalorder %s14, 0
    %p56 = por %p54, %p55
    %p57 = scmp.ne.s32.totalorder %s45, %s46
    %p58 = scmp.eq.s32.totalorder %s15, 5
    %p59 = por %p57, %p58
    %p61 = scmp.ne.s32.totalorder %s46, %s60
    %p62 = scmp.eq.s32.totalorder %s15, 0
    %p63 = por %p61, %p62
    %s65 = sadd.s32 %s64, 1
    %p68 = scmp.eq.s32.totalorder %s9, 5
    %p69 = scmp.ne.s32.totalorder %s64, %s66
    %p70 = scmp.eq.s32.totalorder %s9, 0
    %p71 = por %p69, %p70
    %p72 = scmp.ne.s32.totalorder %s64, %s66
    %p73 = scmp.eq.s32.totalorder %s14, 5
    %p74 = por %p72, %p73
    %p75 = scmp.ne.s32.totalorder %s66, %s67
    %p76 = scmp.eq.s32.totalorder %s14, 0
    %p77 = por %p75, %p76
    %p78 = scmp.ne.s32.totalorder %s66, %s67
    %p79 = scmp.eq.s32.totalorder %s15, 5
    %p80 = por %p78, %p79
    %p82 = scmp.ne.s32.totalorder %s67, %s81
    %p83 = scmp.eq.s32.totalorder %s15, 0
    %p84 = por %p82, %p83
    %s85 = ssub.s32 %s9, %s16
    %p86 = scmp.eq.s32.totalorder %s85, 0
    %s88 = sadd.s32 %s87, 1
    %s89 = scalar_select %p86, %s87, %s88
    %p92 = pneg %p86
    %p93 = scmp.eq.s32.totalorder %s9, 5
    %p94 = por %p92, %p93
    %p95 = scmp.ne.s32.totalorder %s87, %s90
    %p96 = scmp.eq.s32.totalorder %s9, 0
    %p97 = por %p95, %p96
    %p98 = scmp.ne.s32.totalorder %s87, %s90
    %p99 = scmp.eq.s32.totalorder %s14, 5
    %p100 = por %p98, %p99
    %p101 = scmp.ne.s32.totalorder %s90, %s91
    %p102 = scmp.eq.s32.totalorder %s14, 0
    %p103 = por %p101, %p102
    %p104 = scmp.ne.s32.totalorder %s90, %s91
    %p105 = scmp.eq.s32.totalorder %s15, 5
    %p106 = por %p104, %p105
    %p108 = scmp.ne.s32.totalorder %s91, %s107
    %p109 = scmp.eq.s32.totalorder %s15, 0
    %p110 = por %p108, %p109
    %p111 = scmp.le.s32.totalorder 1, %s9
    %p112 = scmp.lt.s32.totalorder %s9, 7
    %p113 = pnand %p111, %p112
    %p114 = pneg %p113
    // Predicated region
    $region9: #{stage2_d_forward.18} parent=5 // pred_check
      _
    $region10: #{stage2_d_forward.18} parent=5 // pred_check_branch
      %116 = sbr.rel (%p113) target = $region12
    $region11: #{stage2_d_forward.18} parent=5 // pred_region
      %s117 = ssub.s32 %s9, 1
      // Predicated region
      $region13: #{stage2_d_forward.18} parent=11 // pred_check
        %p118 = pneg %p56
      $region14: #{stage2_d_forward.18} parent=11 // pred_check_branch
        %120 = sbr.rel (%p118) target = $region16
      $region15: #{stage2_d_forward.18} parent=11 // pred_region
        _
      $region16: #{stage2_d_forward.18} parent=11 // pred_fallthru
        _
      // Predicated region
      $region17: #{stage2_d_forward.18} parent=11 // pred_check
        %p121 = pneg %p77
      $region18: #{stage2_d_forward.18} parent=11 // pred_check_branch
        %123 = sbr.rel (%p121) target = $region20
      $region19: #{stage2_d_forward.18} parent=11 // pred_region
        _
      $region20: #{stage2_d_forward.18} parent=11 // pred_fallthru
        _
    $region12: #{stage2_d_forward.18} parent=5 // pred_fallthru
      _
    %p124 = scmp.lt.s32.totalorder %s9, 6
    // Predicated region
    $region21: #{stage2_d_forward.18} parent=5 // pred_check
      %p125 = pneg %p124
    $region22: #{stage2_d_forward.18} parent=5 // pred_check_branch
      %127 = sbr.rel (%p125) target = $region24
    $region23: #{stage2_d_forward.18} parent=5 // pred_region
      // Predicated region
      $region25: #{stage2_d_forward.18} parent=23 // pred_check
        %p128 = pneg %p29
      $region26: #{stage2_d_forward.18} parent=23 // pred_check_branch
        %130 = sbr.rel (%p128) target = $region28
      $region27: #{stage2_d_forward.18} parent=23 // pred_region
        %s131 = smul.u32 96, %s9
        %p132 = scmp.lt.s32.totalorder %s131, 575
        %s133 = scalar_select %p132, %s131, 575
        %s134 = smul.addr %s133, 8
        %s135 = scalar_lea.vmem %s0, %s134
        %s136 = smul.u32 96, %s9
      $region28: #{stage2_d_forward.18} parent=23 // pred_fallthru
        _
    $region24: #{stage2_d_forward.18} parent=5 // pred_fallthru
      _
    %p137 = scmp.le.s32.totalorder 1, %s9
    %p138 = scmp.lt.s32.totalorder %s9, 7
    %p139 = pnand %p137, %p138
    %p140 = pneg %p139
    // Predicated region
    $region29: #{stage2_d_forward.18} parent=5 // pred_check
      _
    $region30: #{stage2_d_forward.18} parent=5 // pred_check_branch
      %142 = sbr.rel (%p139) target = $region32
    $region31: #{stage2_d_forward.18} parent=5 // pred_region
      %s143 = ssub.s32 %s9, 1
      %s144 = smul.u32 96, %s14
      %p145 = scmp.lt.s32.totalorder %s144, 575
      %s146 = scalar_select %p145, %s144, 575
      %s147 = smul.addr %s146, 8
      %s148 = scalar_lea.vmem %s0, %s147
      %p149 = pneg %p35
      %p150 = pneg %p32
      %p151 = pneg %p56
      %p152 = pneg %p53
      %p153 = pneg %p77
      %p154 = pneg %p74
      %p155 = pneg %p103
      %p156 = pneg %p100
      %s157 = smul.u32 96, %s14
      %p158 = scmp.lt.s32.totalorder %s157, 575
      %s159 = scalar_select %p158, %s157, 575
      %s160 = smul.addr %s159, 4
      %s161 = scalar_lea.vmem %s3, %s160
      %s162 = smul.u32 96, %s14
      %p163 = scmp.lt.s32.totalorder %s162, 575
      %s164 = scalar_select %p163, %s162, 575
      %s165 = smul.addr %s164, 8
      %s166 = scalar_lea.vmem %s0, %s165
      %s167 = smul.u32 96, %s14
      %s168 = smul.u32 96, %s14
      %p169 = scmp.lt.s32.totalorder %s168, 575
      %s170 = scalar_select %p169, %s168, 575
      %s171 = smul.addr %s170, 4
      %s172 = scalar_lea.vmem %s3, %s171
      %s173 = smul.u32 96, %s14
      %v174 = vld [vmem:[%s166] sm:$0xff]
      %v175 = vld [vmem:[%s166 + $0x8] sm:$0xff]
      %v176 = vld [vmem:[%s166 + $0x10] sm:$0xff]
      %v177 = vld [vmem:[%s166 + $0x18] sm:$0xff]
      %v178 = vld [vmem:[%s166 + $0x20] sm:$0xff]
      %v179 = vld [vmem:[%s166 + $0x28] sm:$0xff]
      %v180 = vld [vmem:[%s166 + $0x30] sm:$0xff]
      %v181 = vld [vmem:[%s166 + $0x38] sm:$0xff]
      %v182 = vld [vmem:[%s166 + $0x40] sm:$0xff]
      %v183 = vld [vmem:[%s166 + $0x48] sm:$0xff]
      %v184 = vld [vmem:[%s166 + $0x50] sm:$0xff]
      %v185 = vld [vmem:[%s166 + $0x58] sm:$0xff]
      %v186 = vld [vmem:[%s166 + $0x60] sm:$0xff]
      %v187 = vld [vmem:[%s166 + $0x68] sm:$0xff]
      %v188 = vld [vmem:[%s166 + $0x70] sm:$0xff]
      %v189 = vld [vmem:[%s166 + $0x78] sm:$0xff]
      %v190 = vld [vmem:[%s166 + $0x80] sm:$0xff]
      %v191 = vld [vmem:[%s166 + $0x88] sm:$0xff]
      %v192 = vld [vmem:[%s166 + $0x90] sm:$0xff]
      %v193 = vld [vmem:[%s166 + $0x98] sm:$0xff]
      %v194 = vld [vmem:[%s166 + $0xa0] sm:$0xff]
      %v195 = vld [vmem:[%s166 + $0xa8] sm:$0xff]
      %v196 = vld [vmem:[%s166 + $0xb0] sm:$0xff]
      %v197 = vld [vmem:[%s166 + $0xb8] sm:$0xff]
      %v198 = vld [vmem:[%s166 + $0xc0] sm:$0xff]
      %v199 = vld [vmem:[%s166 + $0xc8] sm:$0xff]
      %v200 = vld [vmem:[%s166 + $0xd0] sm:$0xff]
      %v201 = vld [vmem:[%s166 + $0xd8] sm:$0xff]
      %v202 = vld [vmem:[%s166 + $0xe0] sm:$0xff]
      %v203 = vld [vmem:[%s166 + $0xe8] sm:$0xff]
      %v204 = vld [vmem:[%s166 + $0xf0] sm:$0xff]
      %v205 = vld [vmem:[%s166 + $0xf8] sm:$0xff]
      %v206 = vld [vmem:[%s166 + $0x100] sm:$0xff]
      %v207 = vld [vmem:[%s166 + $0x108] sm:$0xff]
      %v208 = vld [vmem:[%s166 + $0x110] sm:$0xff]
      %v209 = vld [vmem:[%s166 + $0x118] sm:$0xff]
      %v210 = vld [vmem:[%s166 + $0x120] sm:$0xff]
      %v211 = vld [vmem:[%s166 + $0x128] sm:$0xff]
      %v212 = vld [vmem:[%s166 + $0x130] sm:$0xff]
      %v213 = vld [vmem:[%s166 + $0x138] sm:$0xff]
      %v214 = vld [vmem:[%s166 + $0x140] sm:$0xff]
      %v215 = vld [vmem:[%s166 + $0x148] sm:$0xff]
      %v216 = vld [vmem:[%s166 + $0x150] sm:$0xff]
      %v217 = vld [vmem:[%s166 + $0x158] sm:$0xff]
      %v218 = vld [vmem:[%s166 + $0x160] sm:$0xff]
      %v219 = vld [vmem:[%s166 + $0x168] sm:$0xff]
      %v220 = vld [vmem:[%s166 + $0x170] sm:$0xff]
      %v221 = vld [vmem:[%s166 + $0x178] sm:$0xff]
      %v222 = vld [vmem:[%s166 + $0x180] sm:$0xff]
      %v223 = vld [vmem:[%s166 + $0x188] sm:$0xff]
      %v224 = vld [vmem:[%s166 + $0x190] sm:$0xff]
      %v225 = vld [vmem:[%s166 + $0x198] sm:$0xff]
      %v226 = vld [vmem:[%s166 + $0x1a0] sm:$0xff]
      %v227 = vld [vmem:[%s166 + $0x1a8] sm:$0xff]
      %v228 = vld [vmem:[%s166 + $0x1b0] sm:$0xff]
      %v229 = vld [vmem:[%s166 + $0x1b8] sm:$0xff]
      %v230 = vld [vmem:[%s166 + $0x1c0] sm:$0xff]
      %v231 = vld [vmem:[%s166 + $0x1c8] sm:$0xff]
      %v232 = vld [vmem:[%s166 + $0x1d0] sm:$0xff]
      %v233 = vld [vmem:[%s166 + $0x1d8] sm:$0xff]
      %v234 = vld [vmem:[%s166 + $0x1e0] sm:$0xff]
      %v235 = vld [vmem:[%s166 + $0x1e8] sm:$0xff]
      %v236 = vld [vmem:[%s166 + $0x1f0] sm:$0xff]
      %v237 = vld [vmem:[%s166 + $0x1f8] sm:$0xff]
      %v238 = vld [vmem:[%s166 + $0x200] sm:$0xff]
      %v239 = vld [vmem:[%s166 + $0x208] sm:$0xff]
      %v240 = vld [vmem:[%s166 + $0x210] sm:$0xff]
      %v241 = vld [vmem:[%s166 + $0x218] sm:$0xff]
      %v242 = vld [vmem:[%s166 + $0x220] sm:$0xff]
      %v243 = vld [vmem:[%s166 + $0x228] sm:$0xff]
      %v244 = vld [vmem:[%s166 + $0x230] sm:$0xff]
      %v245 = vld [vmem:[%s166 + $0x238] sm:$0xff]
      %v246 = vld [vmem:[%s166 + $0x240] sm:$0xff]
      %v247 = vld [vmem:[%s166 + $0x248] sm:$0xff]
      %v248 = vld [vmem:[%s166 + $0x250] sm:$0xff]
      %v249 = vld [vmem:[%s166 + $0x258] sm:$0xff]
      %v250 = vld [vmem:[%s166 + $0x260] sm:$0xff]
      %v251 = vld [vmem:[%s166 + $0x268] sm:$0xff]
      %v252 = vld [vmem:[%s166 + $0x270] sm:$0xff]
      %v253 = vld [vmem:[%s166 + $0x278] sm:$0xff]
      %v254 = vld [vmem:[%s166 + $0x280] sm:$0xff]
      %v255 = vld [vmem:[%s166 + $0x288] sm:$0xff]
      %v256 = vld [vmem:[%s166 + $0x290] sm:$0xff]
      %v257 = vld [vmem:[%s166 + $0x298] sm:$0xff]
      %v258 = vld [vmem:[%s166 + $0x2a0] sm:$0xff]
      %v259 = vld [vmem:[%s166 + $0x2a8] sm:$0xff]
      %v260 = vld [vmem:[%s166 + $0x2b0] sm:$0xff]
      %v261 = vld [vmem:[%s166 + $0x2b8] sm:$0xff]
      %v262 = vld [vmem:[%s166 + $0x2c0] sm:$0xff]
      %v263 = vld [vmem:[%s166 + $0x2c8] sm:$0xff]
      %v264 = vld [vmem:[%s166 + $0x2d0] sm:$0xff]
      %v265 = vld [vmem:[%s166 + $0x2d8] sm:$0xff]
      %v266 = vld [vmem:[%s166 + $0x2e0] sm:$0xff]
      %v267 = vld [vmem:[%s166 + $0x2e8] sm:$0xff]
      %v268 = vld [vmem:[%s166 + $0x2f0] sm:$0xff]
      %v269 = vld [vmem:[%s166 + $0x2f8] sm:$0xff]
      %v270 = vld [vmem:[%s1] sm:$0x1]
      %v272 = vlaneseq
      %v273 = vshrl.u32 %v272, 7
      %v274 = vsub.s32 0, %v273
      %v275 = vrot.slane %v270, %v274
      %v277 = vmul.f32 %v174, %v275
      %v278 = vmul.f32 %v175, %v275
      %v279 = vmul.f32 %v176, %v275
      %v280 = vmul.f32 %v177, %v275
      %v281 = vmul.f32 %v178, %v275
      %v282 = vmul.f32 %v179, %v275
      %v283 = vmul.f32 %v180, %v275
      %v284 = vmul.f32 %v181, %v275
      %v285 = vmul.f32 %v182, %v275
      %v286 = vmul.f32 %v183, %v275
      %v287 = vmul.f32 %v184, %v275
      %v288 = vmul.f32 %v185, %v275
      %v289 = vmul.f32 %v186, %v275
      %v290 = vmul.f32 %v187, %v275
      %v291 = vmul.f32 %v188, %v275
      %v292 = vmul.f32 %v189, %v275
      %v293 = vmul.f32 %v190, %v275
      %v294 = vmul.f32 %v191, %v275
      %v295 = vmul.f32 %v192, %v275
      %v296 = vmul.f32 %v193, %v275
      %v297 = vmul.f32 %v194, %v275
      %v298 = vmul.f32 %v195, %v275
      %v299 = vmul.f32 %v196, %v275
      %v300 = vmul.f32 %v197, %v275
      %v301 = vmul.f32 %v198, %v275
      %v302 = vmul.f32 %v199, %v275
      %v303 = vmul.f32 %v200, %v275
      %v304 = vmul.f32 %v201, %v275
      %v305 = vmul.f32 %v202, %v275
      %v306 = vmul.f32 %v203, %v275
      %v307 = vmul.f32 %v204, %v275
      %v308 = vmul.f32 %v205, %v275
      %v309 = vmul.f32 %v206, %v275
      %v310 = vmul.f32 %v207, %v275
      %v311 = vmul.f32 %v208, %v275
      %v312 = vmul.f32 %v209, %v275
      %v313 = vmul.f32 %v210, %v275
      %v314 = vmul.f32 %v211, %v275
      %v315 = vmul.f32 %v212, %v275
      %v316 = vmul.f32 %v213, %v275
      %v317 = vmul.f32 %v214, %v275
      %v318 = vmul.f32 %v215, %v275
      %v319 = vmul.f32 %v216, %v275
      %v320 = vmul.f32 %v217, %v275
      %v321 = vmul.f32 %v218, %v275
      %v322 = vmul.f32 %v219, %v275
      %v323 = vmul.f32 %v220, %v275
      %v324 = vmul.f32 %v221, %v275
      %v325 = vmul.f32 %v222, %v275
      %v326 = vmul.f32 %v223, %v275
      %v327 = vmul.f32 %v224, %v275
      %v328 = vmul.f32 %v225, %v275
      %v329 = vmul.f32 %v226, %v275
      %v330 = vmul.f32 %v227, %v275
      %v331 = vmul.f32 %v228, %v275
      %v332 = vmul.f32 %v229, %v275
      %v333 = vmul.f32 %v230, %v275
      %v334 = vmul.f32 %v231, %v275
      %v335 = vmul.f32 %v232, %v275
      %v336 = vmul.f32 %v233, %v275
      %v337 = vmul.f32 %v234, %v275
      %v338 = vmul.f32 %v235, %v275
      %v339 = vmul.f32 %v236, %v275
      %v340 = vmul.f32 %v237, %v275
      %v341 = vmul.f32 %v238, %v275
      %v342 = vmul.f32 %v239, %v275
      %v343 = vmul.f32 %v240, %v275
      %v344 = vmul.f32 %v241, %v275
      %v345 = vmul.f32 %v242, %v275
      %v346 = vmul.f32 %v243, %v275
      %v347 = vmul.f32 %v244, %v275
      %v348 = vmul.f32 %v245, %v275
      %v349 = vmul.f32 %v246, %v275
      %v350 = vmul.f32 %v247, %v275
      %v351 = vmul.f32 %v248, %v275
      %v352 = vmul.f32 %v249, %v275
      %v353 = vmul.f32 %v250, %v275
      %v354 = vmul.f32 %v251, %v275
      %v355 = vmul.f32 %v252, %v275
      %v356 = vmul.f32 %v253, %v275
      %v357 = vmul.f32 %v254, %v275
      %v358 = vmul.f32 %v255, %v275
      %v359 = vmul.f32 %v256, %v275
      %v360 = vmul.f32 %v257, %v275
      %v361 = vmul.f32 %v258, %v275
      %v362 = vmul.f32 %v259, %v275
      %v363 = vmul.f32 %v260, %v275
      %v364 = vmul.f32 %v261, %v275
      %v365 = vmul.f32 %v262, %v275
      %v366 = vmul.f32 %v263, %v275
      %v367 = vmul.f32 %v264, %v275
      %v368 = vmul.f32 %v265, %v275
      %v369 = vmul.f32 %v266, %v275
      %v370 = vmul.f32 %v267, %v275
      %v371 = vmul.f32 %v268, %v275
      %v372 = vmul.f32 %v269, %v275
      %v373 = vld [vmem:[%s2] sm:$0x1]
      %v375 = vlaneseq
      %v376 = vshrl.u32 %v375, 7
      %v377 = vsub.s32 0, %v376
      %v378 = vrot.slane %v373, %v377
      %v380 = vadd.f32 %v277, %v378
      %v381 = vadd.f32 %v278, %v378
      %v382 = vadd.f32 %v279, %v378
      %v383 = vadd.f32 %v280, %v378
      %v384 = vadd.f32 %v281, %v378
      %v385 = vadd.f32 %v282, %v378
      %v386 = vadd.f32 %v283, %v378
      %v387 = vadd.f32 %v284, %v378
      %v388 = vadd.f32 %v285, %v378
      %v389 = vadd.f32 %v286, %v378
      %v390 = vadd.f32 %v287, %v378
      %v391 = vadd.f32 %v288, %v378
      %v392 = vadd.f32 %v289, %v378
      %v393 = vadd.f32 %v290, %v378
      %v394 = vadd.f32 %v291, %v378
      %v395 = vadd.f32 %v292, %v378
      %v396 = vadd.f32 %v293, %v378
      %v397 = vadd.f32 %v294, %v378
      %v398 = vadd.f32 %v295, %v378
      %v399 = vadd.f32 %v296, %v378
      %v400 = vadd.f32 %v297, %v378
      %v401 = vadd.f32 %v298, %v378
      %v402 = vadd.f32 %v299, %v378
      %v403 = vadd.f32 %v300, %v378
      %v404 = vadd.f32 %v301, %v378
      %v405 = vadd.f32 %v302, %v378
      %v406 = vadd.f32 %v303, %v378
      %v407 = vadd.f32 %v304, %v378
      %v408 = vadd.f32 %v305, %v378
      %v409 = vadd.f32 %v306, %v378
      %v410 = vadd.f32 %v307, %v378
      %v411 = vadd.f32 %v308, %v378
      %v412 = vadd.f32 %v309, %v378
      %v413 = vadd.f32 %v310, %v378
      %v414 = vadd.f32 %v311, %v378
      %v415 = vadd.f32 %v312, %v378
      %v416 = vadd.f32 %v313, %v378
      %v417 = vadd.f32 %v314, %v378
      %v418 = vadd.f32 %v315, %v378
      %v419 = vadd.f32 %v316, %v378
      %v420 = vadd.f32 %v317, %v378
      %v421 = vadd.f32 %v318, %v378
      %v422 = vadd.f32 %v319, %v378
      %v423 = vadd.f32 %v320, %v378
      %v424 = vadd.f32 %v321, %v378
      %v425 = vadd.f32 %v322, %v378
      %v426 = vadd.f32 %v323, %v378
      %v427 = vadd.f32 %v324, %v378
      %v428 = vadd.f32 %v325, %v378
      %v429 = vadd.f32 %v326, %v378
      %v430 = vadd.f32 %v327, %v378
      %v431 = vadd.f32 %v328, %v378
      %v432 = vadd.f32 %v329, %v378
      %v433 = vadd.f32 %v330, %v378
      %v434 = vadd.f32 %v331, %v378
      %v435 = vadd.f32 %v332, %v378
      %v436 = vadd.f32 %v333, %v378
      %v437 = vadd.f32 %v334, %v378
      %v438 = vadd.f32 %v335, %v378
      %v439 = vadd.f32 %v336, %v378
      %v440 = vadd.f32 %v337, %v378
      %v441 = vadd.f32 %v338, %v378
      %v442 = vadd.f32 %v339, %v378
      %v443 = vadd.f32 %v340, %v378
      %v444 = vadd.f32 %v341, %v378
      %v445 = vadd.f32 %v342, %v378
      %v446 = vadd.f32 %v343, %v378
      %v447 = vadd.f32 %v344, %v378
      %v448 = vadd.f32 %v345, %v378
      %v449 = vadd.f32 %v346, %v378
      %v450 = vadd.f32 %v347, %v378
      %v451 = vadd.f32 %v348, %v378
      %v452 = vadd.f32 %v349, %v378
      %v453 = vadd.f32 %v350, %v378
      %v454 = vadd.f32 %v351, %v378
      %v455 = vadd.f32 %v352, %v378
      %v456 = vadd.f32 %v353, %v378
      %v457 = vadd.f32 %v354, %v378
      %v458 = vadd.f32 %v355, %v378
      %v459 = vadd.f32 %v356, %v378
      %v460 = vadd.f32 %v357, %v378
      %v461 = vadd.f32 %v358, %v378
      %v462 = vadd.f32 %v359, %v378
      %v463 = vadd.f32 %v360, %v378
      %v464 = vadd.f32 %v361, %v378
      %v465 = vadd.f32 %v362, %v378
      %v466 = vadd.f32 %v363, %v378
      %v467 = vadd.f32 %v364, %v378
      %v468 = vadd.f32 %v365, %v378
      %v469 = vadd.f32 %v366, %v378
      %v470 = vadd.f32 %v367, %v378
      %v471 = vadd.f32 %v368, %v378
      %v472 = vadd.f32 %v369, %v378
      %v473 = vadd.f32 %v370, %v378
      %v474 = vadd.f32 %v371, %v378
      %v475 = vadd.f32 %v372, %v378
      %vm476 = vcmp.ge.f32.partialorder %v380, 0.0
      %vm477 = vcmp.ge.f32.partialorder %v381, 0.0
      %vm478 = vcmp.ge.f32.partialorder %v382, 0.0
      %vm479 = vcmp.ge.f32.partialorder %v383, 0.0
      %vm480 = vcmp.ge.f32.partialorder %v384, 0.0
      %vm481 = vcmp.ge.f32.partialorder %v385, 0.0
      %vm482 = vcmp.ge.f32.partialorder %v386, 0.0
      %vm483 = vcmp.ge.f32.partialorder %v387, 0.0
      %vm484 = vcmp.ge.f32.partialorder %v388, 0.0
      %vm485 = vcmp.ge.f32.partialorder %v389, 0.0
      %vm486 = vcmp.ge.f32.partialorder %v390, 0.0
      %vm487 = vcmp.ge.f32.partialorder %v391, 0.0
      %vm488 = vcmp.ge.f32.partialorder %v392, 0.0
      %vm489 = vcmp.ge.f32.partialorder %v393, 0.0
      %vm490 = vcmp.ge.f32.partialorder %v394, 0.0
      %vm491 = vcmp.ge.f32.partialorder %v395, 0.0
      %vm492 = vcmp.ge.f32.partialorder %v396, 0.0
      %vm493 = vcmp.ge.f32.partialorder %v397, 0.0
      %vm494 = vcmp.ge.f32.partialorder %v398, 0.0
      %vm495 = vcmp.ge.f32.partialorder %v399, 0.0
      %vm496 = vcmp.ge.f32.partialorder %v400, 0.0
      %vm497 = vcmp.ge.f32.partialorder %v401, 0.0
      %vm498 = vcmp.ge.f32.partialorder %v402, 0.0
      %vm499 = vcmp.ge.f32.partialorder %v403, 0.0
      %vm500 = vcmp.ge.f32.partialorder %v404, 0.0
      %vm501 = vcmp.ge.f32.partialorder %v405, 0.0
      %vm502 = vcmp.ge.f32.partialorder %v406, 0.0
      %vm503 = vcmp.ge.f32.partialorder %v407, 0.0
      %vm504 = vcmp.ge.f32.partialorder %v408, 0.0
      %vm505 = vcmp.ge.f32.partialorder %v409, 0.0
      %vm506 = vcmp.ge.f32.partialorder %v410, 0.0
      %vm507 = vcmp.ge.f32.partialorder %v411, 0.0
      %vm508 = vcmp.ge.f32.partialorder %v412, 0.0
      %vm509 = vcmp.ge.f32.partialorder %v413, 0.0
      %vm510 = vcmp.ge.f32.partialorder %v414, 0.0
      %vm511 = vcmp.ge.f32.partialorder %v415, 0.0
      %vm512 = vcmp.ge.f32.partialorder %v416, 0.0
      %vm513 = vcmp.ge.f32.partialorder %v417, 0.0
      %vm514 = vcmp.ge.f32.partialorder %v418, 0.0
      %vm515 = vcmp.ge.f32.partialorder %v419, 0.0
      %vm516 = vcmp.ge.f32.partialorder %v420, 0.0
      %vm517 = vcmp.ge.f32.partialorder %v421, 0.0
      %vm518 = vcmp.ge.f32.partialorder %v422, 0.0
      %vm519 = vcmp.ge.f32.partialorder %v423, 0.0
      %vm520 = vcmp.ge.f32.partialorder %v424, 0.0
      %vm521 = vcmp.ge.f32.partialorder %v425, 0.0
      %vm522 = vcmp.ge.f32.partialorder %v426, 0.0
      %vm523 = vcmp.ge.f32.partialorder %v427, 0.0
      %vm524 = vcmp.ge.f32.partialorder %v428, 0.0
      %vm525 = vcmp.ge.f32.partialorder %v429, 0.0
      %vm526 = vcmp.ge.f32.partialorder %v430, 0.0
      %vm527 = vcmp.ge.f32.partialorder %v431, 0.0
      %vm528 = vcmp.ge.f32.partialorder %v432, 0.0
      %vm529 = vcmp.ge.f32.partialorder %v433, 0.0
      %vm530 = vcmp.ge.f32.partialorder %v434, 0.0
      %vm531 = vcmp.ge.f32.partialorder %v435, 0.0
      %vm532 = vcmp.ge.f32.partialorder %v436, 0.0
      %vm533 = vcmp.ge.f32.partialorder %v437, 0.0
      %vm534 = vcmp.ge.f32.partialorder %v438, 0.0
      %vm535 = vcmp.ge.f32.partialorder %v439, 0.0
      %vm536 = vcmp.ge.f32.partialorder %v440, 0.0
      %vm537 = vcmp.ge.f32.partialorder %v441, 0.0
      %vm538 = vcmp.ge.f32.partialorder %v442, 0.0
      %vm539 = vcmp.ge.f32.partialorder %v443, 0.0
      %vm540 = vcmp.ge.f32.partialorder %v444, 0.0
      %vm541 = vcmp.ge.f32.partialorder %v445, 0.0
      %vm542 = vcmp.ge.f32.partialorder %v446, 0.0
      %vm543 = vcmp.ge.f32.partialorder %v447, 0.0
      %vm544 = vcmp.ge.f32.partialorder %v448, 0.0
      %vm545 = vcmp.ge.f32.partialorder %v449, 0.0
      %vm546 = vcmp.ge.f32.partialorder %v450, 0.0
      %vm547 = vcmp.ge.f32.partialorder %v451, 0.0
      %vm548 = vcmp.ge.f32.partialorder %v452, 0.0
      %vm549 = vcmp.ge.f32.partialorder %v453, 0.0
      %vm550 = vcmp.ge.f32.partialorder %v454, 0.0
      %vm551 = vcmp.ge.f32.partialorder %v455, 0.0
      %vm552 = vcmp.ge.f32.partialorder %v456, 0.0
      %vm553 = vcmp.ge.f32.partialorder %v457, 0.0
      %vm554 = vcmp.ge.f32.partialorder %v458, 0.0
      %vm555 = vcmp.ge.f32.partialorder %v459, 0.0
      %vm556 = vcmp.ge.f32.partialorder %v460, 0.0
      %vm557 = vcmp.ge.f32.partialorder %v461, 0.0
      %vm558 = vcmp.ge.f32.partialorder %v462, 0.0
      %vm559 = vcmp.ge.f32.partialorder %v463, 0.0
      %vm560 = vcmp.ge.f32.partialorder %v464, 0.0
      %vm561 = vcmp.ge.f32.partialorder %v465, 0.0
      %vm562 = vcmp.ge.f32.partialorder %v466, 0.0
      %vm563 = vcmp.ge.f32.partialorder %v467, 0.0
      %vm564 = vcmp.ge.f32.partialorder %v468, 0.0
      %vm565 = vcmp.ge.f32.partialorder %v469, 0.0
      %vm566 = vcmp.ge.f32.partialorder %v470, 0.0
      %vm567 = vcmp.ge.f32.partialorder %v471, 0.0
      %vm568 = vcmp.ge.f32.partialorder %v472, 0.0
      %vm569 = vcmp.ge.f32.partialorder %v473, 0.0
      %vm570 = vcmp.ge.f32.partialorder %v474, 0.0
      %vm571 = vcmp.ge.f32.partialorder %v475, 0.0
      %v572 = vmul.f32 %v380, 0.2
      %v573 = vmul.f32 %v381, 0.2
      %v574 = vmul.f32 %v382, 0.2
      %v575 = vmul.f32 %v383, 0.2
      %v576 = vmul.f32 %v384, 0.2
      %v577 = vmul.f32 %v385, 0.2
      %v578 = vmul.f32 %v386, 0.2
      %v579 = vmul.f32 %v387, 0.2
      %v580 = vmul.f32 %v388, 0.2
      %v581 = vmul.f32 %v389, 0.2
      %v582 = vmul.f32 %v390, 0.2
      %v583 = vmul.f32 %v391, 0.2
      %v584 = vmul.f32 %v392, 0.2
      %v585 = vmul.f32 %v393, 0.2
      %v586 = vmul.f32 %v394, 0.2
      %v587 = vmul.f32 %v395, 0.2
      %v588 = vmul.f32 %v396, 0.2
      %v589 = vmul.f32 %v397, 0.2
      %v590 = vmul.f32 %v398, 0.2
      %v591 = vmul.f32 %v399, 0.2
      %v592 = vmul.f32 %v400, 0.2
      %v593 = vmul.f32 %v401, 0.2
      %v594 = vmul.f32 %v402, 0.2
      %v595 = vmul.f32 %v403, 0.2
      %v596 = vmul.f32 %v404, 0.2
      %v597 = vmul.f32 %v405, 0.2
      %v598 = vmul.f32 %v406, 0.2
      %v599 = vmul.f32 %v407, 0.2
      %v600 = vmul.f32 %v408, 0.2
      %v601 = vmul.f32 %v409, 0.2
      %v602 = vmul.f32 %v410, 0.2
      %v603 = vmul.f32 %v411, 0.2
      %v604 = vmul.f32 %v412, 0.2
      %v605 = vmul.f32 %v413, 0.2
      %v606 = vmul.f32 %v414, 0.2
      %v607 = vmul.f32 %v415, 0.2
      %v608 = vmul.f32 %v416, 0.2
      %v609 = vmul.f32 %v417, 0.2
      %v610 = vmul.f32 %v418, 0.2
      %v611 = vmul.f32 %v419, 0.2
      %v612 = vmul.f32 %v420, 0.2
      %v613 = vmul.f32 %v421, 0.2
      %v614 = vmul.f32 %v422, 0.2
      %v615 = vmul.f32 %v423, 0.2
      %v616 = vmul.f32 %v424, 0.2
      %v617 = vmul.f32 %v425, 0.2
      %v618 = vmul.f32 %v426, 0.2
      %v619 = vmul.f32 %v427, 0.2
      %v620 = vmul.f32 %v428, 0.2
      %v621 = vmul.f32 %v429, 0.2
      %v622 = vmul.f32 %v430, 0.2
      %v623 = vmul.f32 %v431, 0.2
      %v624 = vmul.f32 %v432, 0.2
      %v625 = vmul.f32 %v433, 0.2
      %v626 = vmul.f32 %v434, 0.2
      %v627 = vmul.f32 %v435, 0.2
      %v628 = vmul.f32 %v436, 0.2
      %v629 = vmul.f32 %v437, 0.2
      %v630 = vmul.f32 %v438, 0.2
      %v631 = vmul.f32 %v439, 0.2
      %v632 = vmul.f32 %v440, 0.2
      %v633 = vmul.f32 %v441, 0.2
      %v634 = vmul.f32 %v442, 0.2
      %v635 = vmul.f32 %v443, 0.2
      %v636 = vmul.f32 %v444, 0.2
      %v637 = vmul.f32 %v445, 0.2
      %v638 = vmul.f32 %v446, 0.2
      %v639 = vmul.f32 %v447, 0.2
      %v640 = vmul.f32 %v448, 0.2
      %v641 = vmul.f32 %v449, 0.2
      %v642 = vmul.f32 %v450, 0.2
      %v643 = vmul.f32 %v451, 0.2
      %v644 = vmul.f32 %v452, 0.2
      %v645 = vmul.f32 %v453, 0.2
      %v646 = vmul.f32 %v454, 0.2
      %v647 = vmul.f32 %v455, 0.2
      %v648 = vmul.f32 %v456, 0.2
      %v649 = vmul.f32 %v457, 0.2
      %v650 = vmul.f32 %v458, 0.2
      %v651 = vmul.f32 %v459, 0.2
      %v652 = vmul.f32 %v460, 0.2
      %v653 = vmul.f32 %v461, 0.2
      %v654 = vmul.f32 %v462, 0.2
      %v655 = vmul.f32 %v463, 0.2
      %v656 = vmul.f32 %v464, 0.2
      %v657 = vmul.f32 %v465, 0.2
      %v658 = vmul.f32 %v466, 0.2
      %v659 = vmul.f32 %v467, 0.2
      %v660 = vmul.f32 %v468, 0.2
      %v661 = vmul.f32 %v469, 0.2
      %v662 = vmul.f32 %v470, 0.2
      %v663 = vmul.f32 %v471, 0.2
      %v664 = vmul.f32 %v472, 0.2
      %v665 = vmul.f32 %v473, 0.2
      %v666 = vmul.f32 %v474, 0.2
      %v667 = vmul.f32 %v475, 0.2
      %v668 = vsel %vm476, %v380, %v572
      %v669 = vsel %vm477, %v381, %v573
      %v670 = vsel %vm478, %v382, %v574
      %v671 = vsel %vm479, %v383, %v575
      %v672 = vsel %vm480, %v384, %v576
      %v673 = vsel %vm481, %v385, %v577
      %v674 = vsel %vm482, %v386, %v578
      %v675 = vsel %vm483, %v387, %v579
      %v676 = vsel %vm484, %v388, %v580
      %v677 = vsel %vm485, %v389, %v581
      %v678 = vsel %vm486, %v390, %v582
      %v679 = vsel %vm487, %v391, %v583
      %v680 = vsel %vm488, %v392, %v584
      %v681 = vsel %vm489, %v393, %v585
      %v682 = vsel %vm490, %v394, %v586
      %v683 = vsel %vm491, %v395, %v587
      %v684 = vsel %vm492, %v396, %v588
      %v685 = vsel %vm493, %v397, %v589
      %v686 = vsel %vm494, %v398, %v590
      %v687 = vsel %vm495, %v399, %v591
      %v688 = vsel %vm496, %v400, %v592
      %v689 = vsel %vm497, %v401, %v593
      %v690 = vsel %vm498, %v402, %v594
      %v691 = vsel %vm499, %v403, %v595
      %v692 = vsel %vm500, %v404, %v596
      %v693 = vsel %vm501, %v405, %v597
      %v694 = vsel %vm502, %v406, %v598
      %v695 = vsel %vm503, %v407, %v599
      %v696 = vsel %vm504, %v408, %v600
      %v697 = vsel %vm505, %v409, %v601
      %v698 = vsel %vm506, %v410, %v602
      %v699 = vsel %vm507, %v411, %v603
      %v700 = vsel %vm508, %v412, %v604
      %v701 = vsel %vm509, %v413, %v605
      %v702 = vsel %vm510, %v414, %v606
      %v703 = vsel %vm511, %v415, %v607
      %v704 = vsel %vm512, %v416, %v608
      %v705 = vsel %vm513, %v417, %v609
      %v706 = vsel %vm514, %v418, %v610
      %v707 = vsel %vm515, %v419, %v611
      %v708 = vsel %vm516, %v420, %v612
      %v709 = vsel %vm517, %v421, %v613
      %v710 = vsel %vm518, %v422, %v614
      %v711 = vsel %vm519, %v423, %v615
      %v712 = vsel %vm520, %v424, %v616
      %v713 = vsel %vm521, %v425, %v617
      %v714 = vsel %vm522, %v426, %v618
      %v715 = vsel %vm523, %v427, %v619
      %v716 = vsel %vm524, %v428, %v620
      %v717 = vsel %vm525, %v429, %v621
      %v718 = vsel %vm526, %v430, %v622
      %v719 = vsel %vm527, %v431, %v623
      %v720 = vsel %vm528, %v432, %v624
      %v721 = vsel %vm529, %v433, %v625
      %v722 = vsel %vm530, %v434, %v626
      %v723 = vsel %vm531, %v435, %v627
      %v724 = vsel %vm532, %v436, %v628
      %v725 = vsel %vm533, %v437, %v629
      %v726 = vsel %vm534, %v438, %v630
      %v727 = vsel %vm535, %v439, %v631
      %v728 = vsel %vm536, %v440, %v632
      %v729 = vsel %vm537, %v441, %v633
      %v730 = vsel %vm538, %v442, %v634
      %v731 = vsel %vm539, %v443, %v635
      %v732 = vsel %vm540, %v444, %v636
      %v733 = vsel %vm541, %v445, %v637
      %v734 = vsel %vm542, %v446, %v638
      %v735 = vsel %vm543, %v447, %v639
      %v736 = vsel %vm544, %v448, %v640
      %v737 = vsel %vm545, %v449, %v641
      %v738 = vsel %vm546, %v450, %v642
      %v739 = vsel %vm547, %v451, %v643
      %v740 = vsel %vm548, %v452, %v644
      %v741 = vsel %vm549, %v453, %v645
      %v742 = vsel %vm550, %v454, %v646
      %v743 = vsel %vm551, %v455, %v647
      %v744 = vsel %vm552, %v456, %v648
      %v745 = vsel %vm553, %v457, %v649
      %v746 = vsel %vm554, %v458, %v650
      %v747 = vsel %vm555, %v459, %v651
      %v748 = vsel %vm556, %v460, %v652
      %v749 = vsel %vm557, %v461, %v653
      %v750 = vsel %vm558, %v462, %v654
      %v751 = vsel %vm559, %v463, %v655
      %v752 = vsel %vm560, %v464, %v656
      %v753 = vsel %vm561, %v465, %v657
      %v754 = vsel %vm562, %v466, %v658
      %v755 = vsel %vm563, %v467, %v659
      %v756 = vsel %vm564, %v468, %v660
      %v757 = vsel %vm565, %v469, %v661
      %v758 = vsel %vm566, %v470, %v662
      %v759 = vsel %vm567, %v471, %v663
      %v760 = vsel %vm568, %v472, %v664
      %v761 = vsel %vm569, %v473, %v665
      %v762 = vsel %vm570, %v474, %v666
      %v763 = vsel %vm571, %v475, %v667
      %v764 = vpack.c.bf16 %v669, %v668
      %v765 = vpack.c.bf16 %v671, %v670
      %v766 = vpack.c.bf16 %v673, %v672
      %v767 = vpack.c.bf16 %v675, %v674
      %v768 = vpack.c.bf16 %v677, %v676
      %v769 = vpack.c.bf16 %v679, %v678
      %v770 = vpack.c.bf16 %v681, %v680
      %v771 = vpack.c.bf16 %v683, %v682
      %v772 = vpack.c.bf16 %v685, %v684
      %v773 = vpack.c.bf16 %v687, %v686
      %v774 = vpack.c.bf16 %v689, %v688
      %v775 = vpack.c.bf16 %v691, %v690
      %v776 = vpack.c.bf16 %v693, %v692
      %v777 = vpack.c.bf16 %v695, %v694
      %v778 = vpack.c.bf16 %v697, %v696
      %v779 = vpack.c.bf16 %v699, %v698
      %v780 = vpack.c.bf16 %v701, %v700
      %v781 = vpack.c.bf16 %v703, %v702
      %v782 = vpack.c.bf16 %v705, %v704
      %v783 = vpack.c.bf16 %v707, %v706
      %v784 = vpack.c.bf16 %v709, %v708
      %v785 = vpack.c.bf16 %v711, %v710
      %v786 = vpack.c.bf16 %v713, %v712
      %v787 = vpack.c.bf16 %v715, %v714
      %v788 = vpack.c.bf16 %v717, %v716
      %v789 = vpack.c.bf16 %v719, %v718
      %v790 = vpack.c.bf16 %v721, %v720
      %v791 = vpack.c.bf16 %v723, %v722
      %v792 = vpack.c.bf16 %v725, %v724
      %v793 = vpack.c.bf16 %v727, %v726
      %v794 = vpack.c.bf16 %v729, %v728
      %v795 = vpack.c.bf16 %v731, %v730
      %v796 = vpack.c.bf16 %v733, %v732
      %v797 = vpack.c.bf16 %v735, %v734
      %v798 = vpack.c.bf16 %v737, %v736
      %v799 = vpack.c.bf16 %v739, %v738
      %v800 = vpack.c.bf16 %v741, %v740
      %v801 = vpack.c.bf16 %v743, %v742
      %v802 = vpack.c.bf16 %v745, %v744
      %v803 = vpack.c.bf16 %v747, %v746
      %v804 = vpack.c.bf16 %v749, %v748
      %v805 = vpack.c.bf16 %v751, %v750
      %v806 = vpack.c.bf16 %v753, %v752
      %v807 = vpack.c.bf16 %v755, %v754
      %v808 = vpack.c.bf16 %v757, %v756
      %v809 = vpack.c.bf16 %v759, %v758
      %v810 = vpack.c.bf16 %v761, %v760
      %v811 = vpack.c.bf16 %v763, %v762
      %v860 = vunpack.c.l.b16 %v764
      %v861 = vunpack.c.h.b16 %v764
      %v862 = vunpack.c.l.b16 %v765
      %v863 = vunpack.c.h.b16 %v765
      %v864 = vunpack.c.l.b16 %v766
      %v865 = vunpack.c.h.b16 %v766
      %v866 = vunpack.c.l.b16 %v767
      %v867 = vunpack.c.h.b16 %v767
      %v868 = vunpack.c.l.b16 %v768
      %v869 = vunpack.c.h.b16 %v768
      %v870 = vunpack.c.l.b16 %v769
      %v871 = vunpack.c.h.b16 %v769
      %v872 = vunpack.c.l.b16 %v770
      %v873 = vunpack.c.h.b16 %v770
      %v874 = vunpack.c.l.b16 %v771
      %v875 = vunpack.c.h.b16 %v771
      %v876 = vunpack.c.l.b16 %v772
      %v877 = vunpack.c.h.b16 %v772
      %v878 = vunpack.c.l.b16 %v773
      %v879 = vunpack.c.h.b16 %v773
      %v880 = vunpack.c.l.b16 %v774
      %v881 = vunpack.c.h.b16 %v774
      %v882 = vunpack.c.l.b16 %v775
      %v883 = vunpack.c.h.b16 %v775
      %v884 = vunpack.c.l.b16 %v776
      %v885 = vunpack.c.h.b16 %v776
      %v886 = vunpack.c.l.b16 %v777
      %v887 = vunpack.c.h.b16 %v777
      %v888 = vunpack.c.l.b16 %v778
      %v889 = vunpack.c.h.b16 %v778
      %v890 = vunpack.c.l.b16 %v779
      %v891 = vunpack.c.h.b16 %v779
      %v892 = vunpack.c.l.b16 %v780
      %v893 = vunpack.c.h.b16 %v780
      %v894 = vunpack.c.l.b16 %v781
      %v895 = vunpack.c.h.b16 %v781
      %v896 = vunpack.c.l.b16 %v782
      %v897 = vunpack.c.h.b16 %v782
      %v898 = vunpack.c.l.b16 %v783
      %v899 = vunpack.c.h.b16 %v783
      %v900 = vunpack.c.l.b16 %v784
      %v901 = vunpack.c.h.b16 %v784
      %v902 = vunpack.c.l.b16 %v785
      %v903 = vunpack.c.h.b16 %v785
      %v904 = vunpack.c.l.b16 %v786
      %v905 = vunpack.c.h.b16 %v786
      %v906 = vunpack.c.l.b16 %v787
      %v907 = vunpack.c.h.b16 %v787
      %v908 = vunpack.c.l.b16 %v788
      %v909 = vunpack.c.h.b16 %v788
      %v910 = vunpack.c.l.b16 %v789
      %v911 = vunpack.c.h.b16 %v789
      %v912 = vunpack.c.l.b16 %v790
      %v913 = vunpack.c.h.b16 %v790
      %v914 = vunpack.c.l.b16 %v791
      %v915 = vunpack.c.h.b16 %v791
      %v916 = vunpack.c.l.b16 %v792
      %v917 = vunpack.c.h.b16 %v792
      %v918 = vunpack.c.l.b16 %v793
      %v919 = vunpack.c.h.b16 %v793
      %v920 = vunpack.c.l.b16 %v794
      %v921 = vunpack.c.h.b16 %v794
      %v922 = vunpack.c.l.b16 %v795
      %v923 = vunpack.c.h.b16 %v795
      %v924 = vunpack.c.l.b16 %v796
      %v925 = vunpack.c.h.b16 %v796
      %v926 = vunpack.c.l.b16 %v797
      %v927 = vunpack.c.h.b16 %v797
      %v928 = vunpack.c.l.b16 %v798
      %v929 = vunpack.c.h.b16 %v798
      %v930 = vunpack.c.l.b16 %v799
      %v931 = vunpack.c.h.b16 %v799
      %v932 = vunpack.c.l.b16 %v800
      %v933 = vunpack.c.h.b16 %v800
      %v934 = vunpack.c.l.b16 %v801
      %v935 = vunpack.c.h.b16 %v801
      %v936 = vunpack.c.l.b16 %v802
      %v937 = vunpack.c.h.b16 %v802
      %v938 = vunpack.c.l.b16 %v803
      %v939 = vunpack.c.h.b16 %v803
      %v940 = vunpack.c.l.b16 %v804
      %v941 = vunpack.c.h.b16 %v804
      %v942 = vunpack.c.l.b16 %v805
      %v943 = vunpack.c.h.b16 %v805
      %v944 = vunpack.c.l.b16 %v806
      %v945 = vunpack.c.h.b16 %v806
      %v946 = vunpack.c.l.b16 %v807
      %v947 = vunpack.c.h.b16 %v807
      %v948 = vunpack.c.l.b16 %v808
      %v949 = vunpack.c.h.b16 %v808
      %v950 = vunpack.c.l.b16 %v809
      %v951 = vunpack.c.h.b16 %v809
      %v952 = vunpack.c.l.b16 %v810
      %v953 = vunpack.c.h.b16 %v810
      %v954 = vunpack.c.l.b16 %v811
      %v955 = vunpack.c.h.b16 %v811
      %v956 = vpack.c.b16 %v860, %v860
      %v957 = vpack.c.b16 %v861, %v861
      %v958 = vpack.c.b16 %v862, %v862
      %v959 = vpack.c.b16 %v863, %v863
      %v960 = vpack.c.b16 %v864, %v864
      %v961 = vpack.c.b16 %v865, %v865
      %v962 = vpack.c.b16 %v866, %v866
      %v963 = vpack.c.b16 %v867, %v867
      %v964 = vpack.c.b16 %v868, %v868
      %v965 = vpack.c.b16 %v869, %v869
      %v966 = vpack.c.b16 %v870, %v870
      %v967 = vpack.c.b16 %v871, %v871
      %v968 = vpack.c.b16 %v872, %v872
      %v969 = vpack.c.b16 %v873, %v873
      %v970 = vpack.c.b16 %v874, %v874
      %v971 = vpack.c.b16 %v875, %v875
      %v972 = vpack.c.b16 %v876, %v876
      %v973 = vpack.c.b16 %v877, %v877
      %v974 = vpack.c.b16 %v878, %v878
      %v975 = vpack.c.b16 %v879, %v879
      %v976 = vpack.c.b16 %v880, %v880
      %v977 = vpack.c.b16 %v881, %v881
      %v978 = vpack.c.b16 %v882, %v882
      %v979 = vpack.c.b16 %v883, %v883
      %v980 = vpack.c.b16 %v884, %v884
      %v981 = vpack.c.b16 %v885, %v885
      %v982 = vpack.c.b16 %v886, %v886
      %v983 = vpack.c.b16 %v887, %v887
      %v984 = vpack.c.b16 %v888, %v888
      %v985 = vpack.c.b16 %v889, %v889
      %v986 = vpack.c.b16 %v890, %v890
      %v987 = vpack.c.b16 %v891, %v891
      %v988 = vpack.c.b16 %v892, %v892
      %v989 = vpack.c.b16 %v893, %v893
      %v990 = vpack.c.b16 %v894, %v894
      %v991 = vpack.c.b16 %v895, %v895
      %v992 = vpack.c.b16 %v896, %v896
      %v993 = vpack.c.b16 %v897, %v897
      %v994 = vpack.c.b16 %v898, %v898
      %v995 = vpack.c.b16 %v899, %v899
      %v996 = vpack.c.b16 %v900, %v900
      %v997 = vpack.c.b16 %v901, %v901
      %v998 = vpack.c.b16 %v902, %v902
      %v999 = vpack.c.b16 %v903, %v903
      %v1000 = vpack.c.b16 %v904, %v904
      %v1001 = vpack.c.b16 %v905, %v905
      %v1002 = vpack.c.b16 %v906, %v906
      %v1003 = vpack.c.b16 %v907, %v907
      %v1004 = vpack.c.b16 %v908, %v908
      %v1005 = vpack.c.b16 %v909, %v909
      %v1006 = vpack.c.b16 %v910, %v910
      %v1007 = vpack.c.b16 %v911, %v911
      %v1008 = vpack.c.b16 %v912, %v912
      %v1009 = vpack.c.b16 %v913, %v913
      %v1010 = vpack.c.b16 %v914, %v914
      %v1011 = vpack.c.b16 %v915, %v915
      %v1012 = vpack.c.b16 %v916, %v916
      %v1013 = vpack.c.b16 %v917, %v917
      %v1014 = vpack.c.b16 %v918, %v918
      %v1015 = vpack.c.b16 %v919, %v919
      %v1016 = vpack.c.b16 %v920, %v920
      %v1017 = vpack.c.b16 %v921, %v921
      %v1018 = vpack.c.b16 %v922, %v922
      %v1019 = vpack.c.b16 %v923, %v923
      %v1020 = vpack.c.b16 %v924, %v924
      %v1021 = vpack.c.b16 %v925, %v925
      %v1022 = vpack.c.b16 %v926, %v926
      %v1023 = vpack.c.b16 %v927, %v927
      %v1024 = vpack.c.b16 %v928, %v928
      %v1025 = vpack.c.b16 %v929, %v929
      %v1026 = vpack.c.b16 %v930, %v930
      %v1027 = vpack.c.b16 %v931, %v931
      %v1028 = vpack.c.b16 %v932, %v932
      %v1029 = vpack.c.b16 %v933, %v933
      %v1030 = vpack.c.b16 %v934, %v934
      %v1031 = vpack.c.b16 %v935, %v935
      %v1032 = vpack.c.b16 %v936, %v936
      %v1033 = vpack.c.b16 %v937, %v937
      %v1034 = vpack.c.b16 %v938, %v938
      %v1035 = vpack.c.b16 %v939, %v939
      %v1036 = vpack.c.b16 %v940, %v940
      %v1037 = vpack.c.b16 %v941, %v941
      %v1038 = vpack.c.b16 %v942, %v942
      %v1039 = vpack.c.b16 %v943, %v943
      %v1040 = vpack.c.b16 %v944, %v944
      %v1041 = vpack.c.b16 %v945, %v945
      %v1042 = vpack.c.b16 %v946, %v946
      %v1043 = vpack.c.b16 %v947, %v947
      %v1044 = vpack.c.b16 %v948, %v948
      %v1045 = vpack.c.b16 %v949, %v949
      %v1046 = vpack.c.b16 %v950, %v950
      %v1047 = vpack.c.b16 %v951, %v951
      %v1048 = vpack.c.b16 %v952, %v952
      %v1049 = vpack.c.b16 %v953, %v953
      %v1050 = vpack.c.b16 %v954, %v954
      %v1051 = vpack.c.b16 %v955, %v955
      %vm1148 = vcmask 60416
      %1149 = vst.msk [vmem:[%s172] sm:$0xf] %vm1148, %v956
      %1150 = vst.msk [vmem:[%s172 + $0x4] sm:$0xf] %vm1148, %v957
      %1151 = vst.msk [vmem:[%s172 + $0x8] sm:$0xf] %vm1148, %v958
      %1152 = vst.msk [vmem:[%s172 + $0xc] sm:$0xf] %vm1148, %v959
      %1153 = vst.msk [vmem:[%s172 + $0x10] sm:$0xf] %vm1148, %v960
      %1154 = vst.msk [vmem:[%s172 + $0x14] sm:$0xf] %vm1148, %v961
      %1155 = vst.msk [vmem:[%s172 + $0x18] sm:$0xf] %vm1148, %v962
      %1156 = vst.msk [vmem:[%s172 + $0x1c] sm:$0xf] %vm1148, %v963
      %1157 = vst.msk [vmem:[%s172 + $0x20] sm:$0xf] %vm1148, %v964
      %1158 = vst.msk [vmem:[%s172 + $0x24] sm:$0xf] %vm1148, %v965
      %1159 = vst.msk [vmem:[%s172 + $0x28] sm:$0xf] %vm1148, %v966
      %1160 = vst.msk [vmem:[%s172 + $0x2c] sm:$0xf] %vm1148, %v967
      %1161 = vst.msk [vmem:[%s172 + $0x30] sm:$0xf] %vm1148, %v968
      %1162 = vst.msk [vmem:[%s172 + $0x34] sm:$0xf] %vm1148, %v969
      %1163 = vst.msk [vmem:[%s172 + $0x38] sm:$0xf] %vm1148, %v970
      %1164 = vst.msk [vmem:[%s172 + $0x3c] sm:$0xf] %vm1148, %v971
      %1165 = vst.msk [vmem:[%s172 + $0x40] sm:$0xf] %vm1148, %v972
      %1166 = vst.msk [vmem:[%s172 + $0x44] sm:$0xf] %vm1148, %v973
      %1167 = vst.msk [vmem:[%s172 + $0x48] sm:$0xf] %vm1148, %v974
      %1168 = vst.msk [vmem:[%s172 + $0x4c] sm:$0xf] %vm1148, %v975
      %1169 = vst.msk [vmem:[%s172 + $0x50] sm:$0xf] %vm1148, %v976
      %1170 = vst.msk [vmem:[%s172 + $0x54] sm:$0xf] %vm1148, %v977
      %1171 = vst.msk [vmem:[%s172 + $0x58] sm:$0xf] %vm1148, %v978
      %1172 = vst.msk [vmem:[%s172 + $0x5c] sm:$0xf] %vm1148, %v979
      %1173 = vst.msk [vmem:[%s172 + $0x60] sm:$0xf] %vm1148, %v980
      %1174 = vst.msk [vmem:[%s172 + $0x64] sm:$0xf] %vm1148, %v981
      %1175 = vst.msk [vmem:[%s172 + $0x68] sm:$0xf] %vm1148, %v982
      %1176 = vst.msk [vmem:[%s172 + $0x6c] sm:$0xf] %vm1148, %v983
      %1177 = vst.msk [vmem:[%s172 + $0x70] sm:$0xf] %vm1148, %v984
      %1178 = vst.msk [vmem:[%s172 + $0x74] sm:$0xf] %vm1148, %v985
      %1179 = vst.msk [vmem:[%s172 + $0x78] sm:$0xf] %vm1148, %v986
      %1180 = vst.msk [vmem:[%s172 + $0x7c] sm:$0xf] %vm1148, %v987
      %1181 = vst.msk [vmem:[%s172 + $0x80] sm:$0xf] %vm1148, %v988
      %1182 = vst.msk [vmem:[%s172 + $0x84] sm:$0xf] %vm1148, %v989
      %1183 = vst.msk [vmem:[%s172 + $0x88] sm:$0xf] %vm1148, %v990
      %1184 = vst.msk [vmem:[%s172 + $0x8c] sm:$0xf] %vm1148, %v991
      %1185 = vst.msk [vmem:[%s172 + $0x90] sm:$0xf] %vm1148, %v992
      %1186 = vst.msk [vmem:[%s172 + $0x94] sm:$0xf] %vm1148, %v993
      %1187 = vst.msk [vmem:[%s172 + $0x98] sm:$0xf] %vm1148, %v994
      %1188 = vst.msk [vmem:[%s172 + $0x9c] sm:$0xf] %vm1148, %v995
      %1189 = vst.msk [vmem:[%s172 + $0xa0] sm:$0xf] %vm1148, %v996
      %1190 = vst.msk [vmem:[%s172 + $0xa4] sm:$0xf] %vm1148, %v997
      %1191 = vst.msk [vmem:[%s172 + $0xa8] sm:$0xf] %vm1148, %v998
      %1192 = vst.msk [vmem:[%s172 + $0xac] sm:$0xf] %vm1148, %v999
      %1193 = vst.msk [vmem:[%s172 + $0xb0] sm:$0xf] %vm1148, %v1000
      %1194 = vst.msk [vmem:[%s172 + $0xb4] sm:$0xf] %vm1148, %v1001
      %1195 = vst.msk [vmem:[%s172 + $0xb8] sm:$0xf] %vm1148, %v1002
      %1196 = vst.msk [vmem:[%s172 + $0xbc] sm:$0xf] %vm1148, %v1003
      %1197 = vst.msk [vmem:[%s172 + $0xc0] sm:$0xf] %vm1148, %v1004
      %1198 = vst.msk [vmem:[%s172 + $0xc4] sm:$0xf] %vm1148, %v1005
      %1199 = vst.msk [vmem:[%s172 + $0xc8] sm:$0xf] %vm1148, %v1006
      %1200 = vst.msk [vmem:[%s172 + $0xcc] sm:$0xf] %vm1148, %v1007
      %1201 = vst.msk [vmem:[%s172 + $0xd0] sm:$0xf] %vm1148, %v1008
      %1202 = vst.msk [vmem:[%s172 + $0xd4] sm:$0xf] %vm1148, %v1009
      %1203 = vst.msk [vmem:[%s172 + $0xd8] sm:$0xf] %vm1148, %v1010
      %1204 = vst.msk [vmem:[%s172 + $0xdc] sm:$0xf] %vm1148, %v1011
      %1205 = vst.msk [vmem:[%s172 + $0xe0] sm:$0xf] %vm1148, %v1012
      %1206 = vst.msk [vmem:[%s172 + $0xe4] sm:$0xf] %vm1148, %v1013
      %1207 = vst.msk [vmem:[%s172 + $0xe8] sm:$0xf] %vm1148, %v1014
      %1208 = vst.msk [vmem:[%s172 + $0xec] sm:$0xf] %vm1148, %v1015
      %1209 = vst.msk [vmem:[%s172 + $0xf0] sm:$0xf] %vm1148, %v1016
      %1210 = vst.msk [vmem:[%s172 + $0xf4] sm:$0xf] %vm1148, %v1017
      %1211 = vst.msk [vmem:[%s172 + $0xf8] sm:$0xf] %vm1148, %v1018
      %1212 = vst.msk [vmem:[%s172 + $0xfc] sm:$0xf] %vm1148, %v1019
      %1213 = vst.msk [vmem:[%s172 + $0x100] sm:$0xf] %vm1148, %v1020
      %1214 = vst.msk [vmem:[%s172 + $0x104] sm:$0xf] %vm1148, %v1021
      %1215 = vst.msk [vmem:[%s172 + $0x108] sm:$0xf] %vm1148, %v1022
      %1216 = vst.msk [vmem:[%s172 + $0x10c] sm:$0xf] %vm1148, %v1023
      %1217 = vst.msk [vmem:[%s172 + $0x110] sm:$0xf] %vm1148, %v1024
      %1218 = vst.msk [vmem:[%s172 + $0x114] sm:$0xf] %vm1148, %v1025
      %1219 = vst.msk [vmem:[%s172 + $0x118] sm:$0xf] %vm1148, %v1026
      %1220 = vst.msk [vmem:[%s172 + $0x11c] sm:$0xf] %vm1148, %v1027
      %1221 = vst.msk [vmem:[%s172 + $0x120] sm:$0xf] %vm1148, %v1028
      %1222 = vst.msk [vmem:[%s172 + $0x124] sm:$0xf] %vm1148, %v1029
      %1223 = vst.msk [vmem:[%s172 + $0x128] sm:$0xf] %vm1148, %v1030
      %1224 = vst.msk [vmem:[%s172 + $0x12c] sm:$0xf] %vm1148, %v1031
      %1225 = vst.msk [vmem:[%s172 + $0x130] sm:$0xf] %vm1148, %v1032
      %1226 = vst.msk [vmem:[%s172 + $0x134] sm:$0xf] %vm1148, %v1033
      %1227 = vst.msk [vmem:[%s172 + $0x138] sm:$0xf] %vm1148, %v1034
      %1228 = vst.msk [vmem:[%s172 + $0x13c] sm:$0xf] %vm1148, %v1035
      %1229 = vst.msk [vmem:[%s172 + $0x140] sm:$0xf] %vm1148, %v1036
      %1230 = vst.msk [vmem:[%s172 + $0x144] sm:$0xf] %vm1148, %v1037
      %1231 = vst.msk [vmem:[%s172 + $0x148] sm:$0xf] %vm1148, %v1038
      %1232 = vst.msk [vmem:[%s172 + $0x14c] sm:$0xf] %vm1148, %v1039
      %1233 = vst.msk [vmem:[%s172 + $0x150] sm:$0xf] %vm1148, %v1040
      %1234 = vst.msk [vmem:[%s172 + $0x154] sm:$0xf] %vm1148, %v1041
      %1235 = vst.msk [vmem:[%s172 + $0x158] sm:$0xf] %vm1148, %v1042
      %1236 = vst.msk [vmem:[%s172 + $0x15c] sm:$0xf] %vm1148, %v1043
      %1237 = vst.msk [vmem:[%s172 + $0x160] sm:$0xf] %vm1148, %v1044
      %1238 = vst.msk [vmem:[%s172 + $0x164] sm:$0xf] %vm1148, %v1045
      %1239 = vst.msk [vmem:[%s172 + $0x168] sm:$0xf] %vm1148, %v1046
      %1240 = vst.msk [vmem:[%s172 + $0x16c] sm:$0xf] %vm1148, %v1047
      %1241 = vst.msk [vmem:[%s172 + $0x170] sm:$0xf] %vm1148, %v1048
      %1242 = vst.msk [vmem:[%s172 + $0x174] sm:$0xf] %vm1148, %v1049
      %1243 = vst.msk [vmem:[%s172 + $0x178] sm:$0xf] %vm1148, %v1050
      %1244 = vst.msk [vmem:[%s172 + $0x17c] sm:$0xf] %vm1148, %v1051
      %s1245 = smul.u32 96, %s14
      %p1246 = scmp.lt.s32.totalorder %s1245, 575
      %s1247 = scalar_select %p1246, %s1245, 575
      %s1248 = smul.addr %s1247, 4
      %s1249 = scalar_lea.vmem %s3, %s1248
      // Predicated region
      $region33: #{stage2_d_forward.18} parent=31 // pred_check
        %p1250 = pneg %p100
      $region34: #{stage2_d_forward.18} parent=31 // pred_check_branch
        %1252 = sbr.rel (%p1250) target = $region36
      $region35: #{stage2_d_forward.18} parent=31 // pred_region
        %s1253 = smul.u32 96, %s14
      $region36: #{stage2_d_forward.18} parent=31 // pred_fallthru
        _
    $region32: #{stage2_d_forward.18} parent=5 // pred_fallthru
      _
    %p1254 = scmp.le.s32.totalorder 2, %s9
    // Predicated region
    $region37: #{stage2_d_forward.18} parent=5 // pred_check
      %p1255 = pneg %p1254
    $region38: #{stage2_d_forward.18} parent=5 // pred_check_branch
      %1257 = sbr.rel (%p1255) target = $region40
    $region39: #{stage2_d_forward.18} parent=5 // pred_region
      %s1258 = ssub.s32 %s9, 2
      // Predicated region
      $region41: #{stage2_d_forward.18} parent=39 // pred_check
        %p1259 = pneg %p106
      $region42: #{stage2_d_forward.18} parent=39 // pred_check_branch
        %1261 = sbr.rel (%p1259) target = $region44
      $region43: #{stage2_d_forward.18} parent=39 // pred_region
        %s1262 = smul.u32 96, %s15
        %p1263 = scmp.lt.s32.totalorder %s1262, 575
        %s1264 = scalar_select %p1263, %s1262, 575
        %s1265 = smul.addr %s1264, 4
        %s1266 = scalar_lea.vmem %s3, %s1265
      $region44: #{stage2_d_forward.18} parent=39 // pred_fallthru
        _
    $region40: #{stage2_d_forward.18} parent=5 // pred_fallthru
      _
  $region6: #{stage2_d_forward.18} parent=0 // loop_footer
    %s13 = sadd.s32 1, %s9
  $region7: #{stage2_d_forward.18} parent=0 // loop_footer_branch
    %8 = sbr.rel target = $region3
  $region8: #{stage2_d_forward.18} parent=0 // loop_exit
    _

// kernel: stage2_d_forward.19
$region0: #{stage2_d_forward.19}
  #allocation0 [shape = 'u32[]', space=smem, size = 0x4, offset = 0x4, fixed_abs, tag = 'smem constant byte address 0x4 - core index']
  #allocation1 [shape = 'u32[144,128]{1,0:T(1,128)}', space=vmem, size = 0x12000, scoped, tag = 'internal scratch']
  %s0 = inlined_call_operand.vmem [shape: bf16[1152,128], index: 0, kind: input, shape index: {}]
  %s1 = inlined_call_operand.vmem [shape: bf16[128,128], index: 1, kind: input, shape index: {}]
  %s2 = inlined_call_operand.vmem [shape: f32[1152,16], index: 2, kind: output, shape index: {0}]
  %s3 = inlined_call_operand.vmem [shape: f32[3,2,16], index: 3, kind: output, shape index: {1}]
  %4 = xla_tuple %s2, %s3
  %s5 = sld [smem:[#allocation0]]
  $region49: #{stage2_d_forward.19} parent=0
    _
  %s7 = ssub.s32 1, %s5
  %s8 = scalar_select 0, %s7, %s5
  loop: start=0, step=1, limit=5
  $region2: #{stage2_d_forward.19} parent=0 // loop_pre_header
    _
  $region3: #{stage2_d_forward.19} parent=0 // loop_header
    %s10 = sphi 0, %s14
    %p11 = scmp.ge.s32.totalorder %s10, 5
    %s17 = sphi 0, %s29
    %s18 = sphi 0, %s25
    %s19 = sphi 0, %s17
    %s20 = sphi 0, %s18
    %s21 = sphi 0, %s19
    %s22 = sphi 0, %s20
    %s32 = sphi 0, %s34
    %s35 = sphi 0, %s32
    %s36 = sphi 0, %s35
    %s52 = sphi 0, %s36
    %s58 = sphi 0, %s60
    %s61 = sphi 0, %s58
    %s62 = sphi 0, %s61
    %s78 = sphi 0, %s62
    %s86 = sphi 0, %s88
    %s89 = sphi 0, %s86
    %s90 = sphi 0, %s89
    %s106 = sphi 0, %s90
    %s114 = sphi 0, %s116
    %s117 = sphi 0, %s114
    %s118 = sphi 0, %s117
    %s134 = sphi 0, %s118
  $region4: #{stage2_d_forward.19} parent=0 // loop_header_branch
    %13 = sbr.rel (%p11) target = $region8
  $region5: #{stage2_d_forward.19} parent=0 // loop_body
    %s15 = ssub.s32 %s10, 1
    %s16 = ssub.s32 %s10, 2
    %s23 = sadd.s32 1, %s18
    %p24 = scmp.ge.s32.totalorder %s23, 1
    %s25 = scalar_select %p24, 0, %s23
    %s26 = sadd.s32 1, %s17
    %s27 = scalar_select %p24, %s26, %s17
    %p28 = scmp.ge.s32.totalorder %s27, 3
    %s29 = scalar_select %p28, 0, %s27
    %s30 = ssub.s32 %s17, %s29
    %p31 = scmp.eq.s32.totalorder %s30, 0
    %s33 = sadd.s32 %s32, 1
    %s34 = scalar_select %p31, %s32, %s33
    %p37 = pneg %p31
    %p38 = scmp.eq.s32.totalorder %s10, 2
    %p39 = por %p37, %p38
    %p40 = scmp.ne.s32.totalorder %s32, %s35
    %p41 = scmp.eq.s32.totalorder %s10, 0
    %p42 = por %p40, %p41
    %p43 = scmp.ne.s32.totalorder %s32, %s35
    %p44 = scmp.eq.s32.totalorder %s15, 2
    %p45 = por %p43, %p44
    %p46 = scmp.ne.s32.totalorder %s35, %s36
    %p47 = scmp.eq.s32.totalorder %s15, 0
    %p48 = por %p46, %p47
    %p49 = scmp.ne.s32.totalorder %s35, %s36
    %p50 = scmp.eq.s32.totalorder %s16, 2
    %p51 = por %p49, %p50
    %p53 = scmp.ne.s32.totalorder %s36, %s52
    %p54 = scmp.eq.s32.totalorder %s16, 0
    %p55 = por %p53, %p54
    %s56 = ssub.s32 %s18, %s25
    %p57 = scmp.eq.s32.totalorder %s56, 0
    %s59 = sadd.s32 %s58, 1
    %s60 = scalar_select %p57, %s58, %s59
    %p63 = pneg %p57
    %p64 = scmp.eq.s32.totalorder %s10, 2
    %p65 = por %p63, %p64
    %p66 = scmp.ne.s32.totalorder %s58, %s61
    %p67 = scmp.eq.s32.totalorder %s10, 0
    %p68 = por %p66, %p67
    %p69 = scmp.ne.s32.totalorder %s58, %s61
    %p70 = scmp.eq.s32.totalorder %s15, 2
    %p71 = por %p69, %p70
    %p72 = scmp.ne.s32.totalorder %s61, %s62
    %p73 = scmp.eq.s32.totalorder %s15, 0
    %p74 = por %p72, %p73
    %p75 = scmp.ne.s32.totalorder %s61, %s62
    %p76 = scmp.eq.s32.totalorder %s16, 2
    %p77 = por %p75, %p76
    %p79 = scmp.ne.s32.totalorder %s62, %s78
    %p80 = scmp.eq.s32.totalorder %s16, 0
    %p81 = por %p79, %p80
    %s82 = ssub.s32 %s17, %s29
    %s83 = ssub.s32 %s18, %s25
    %s84 = sor.u32 %s82, %s83
    %p85 = scmp.eq.s32.totalorder %s84, 0
    %s87 = sadd.s32 %s86, 1
    %s88 = scalar_select %p85, %s86, %s87
    %p91 = pneg %p85
    %p92 = scmp.eq.s32.totalorder %s10, 2
    %p93 = por %p91, %p92
    %p94 = scmp.ne.s32.totalorder %s86, %s89
    %p95 = scmp.eq.s32.totalorder %s10, 0
    %p96 = por %p94, %p95
    %p97 = scmp.ne.s32.totalorder %s86, %s89
    %p98 = scmp.eq.s32.totalorder %s15, 2
    %p99 = por %p97, %p98
    %p100 = scmp.ne.s32.totalorder %s89, %s90
    %p101 = scmp.eq.s32.totalorder %s15, 0
    %p102 = por %p100, %p101
    %p103 = scmp.ne.s32.totalorder %s89, %s90
    %p104 = scmp.eq.s32.totalorder %s16, 2
    %p105 = por %p103, %p104
    %p107 = scmp.ne.s32.totalorder %s90, %s106
    %p108 = scmp.eq.s32.totalorder %s16, 0
    %p109 = por %p107, %p108
    %s110 = ssub.s32 %s17, %s29
    %s111 = ssub.s32 %s18, %s25
    %s112 = sor.u32 %s110, %s111
    %p113 = scmp.eq.s32.totalorder %s112, 0
    %s115 = sadd.s32 %s114, 1
    %s116 = scalar_select %p113, %s114, %s115
    %p119 = pneg %p113
    %p120 = scmp.eq.s32.totalorder %s10, 2
    %p121 = por %p119, %p120
    %p122 = scmp.ne.s32.totalorder %s114, %s117
    %p123 = scmp.eq.s32.totalorder %s10, 0
    %p124 = por %p122, %p123
    %p125 = scmp.ne.s32.totalorder %s114, %s117
    %p126 = scmp.eq.s32.totalorder %s15, 2
    %p127 = por %p125, %p126
    %p128 = scmp.ne.s32.totalorder %s117, %s118
    %p129 = scmp.eq.s32.totalorder %s15, 0
    %p130 = por %p128, %p129
    %p131 = scmp.ne.s32.totalorder %s117, %s118
    %p132 = scmp.eq.s32.totalorder %s16, 2
    %p133 = por %p131, %p132
    %p135 = scmp.ne.s32.totalorder %s118, %s134
    %p136 = scmp.eq.s32.totalorder %s16, 0
    %p137 = por %p135, %p136
    %p138 = scmp.le.s32.totalorder 1, %s10
    %p139 = scmp.lt.s32.totalorder %s10, 4
    %p140 = pnand %p138, %p139
    %p141 = pneg %p140
    // Predicated region
    $region9: #{stage2_d_forward.19} parent=5 // pred_check
      _
    $region10: #{stage2_d_forward.19} parent=5 // pred_check_branch
      %143 = sbr.rel (%p140) target = $region12
    $region11: #{stage2_d_forward.19} parent=5 // pred_region
      %s144 = ssub.s32 %s10, 1
      // Predicated region
      $region13: #{stage2_d_forward.19} parent=11 // pred_check
        %p145 = pneg %p74
      $region14: #{stage2_d_forward.19} parent=11 // pred_check_branch
        %147 = sbr.rel (%p145) target = $region16
      $region15: #{stage2_d_forward.19} parent=11 // pred_region
        %p148 = scmp.lt.s32.totalorder %s20, 0
        %s149 = scalar_select %p148, %s20, 0
        %s150 = smul.addr %s149, 4
        %s151 = scalar_lea.vmem %s1, %s150
      $region16: #{stage2_d_forward.19} parent=11 // pred_fallthru
        _
    $region12: #{stage2_d_forward.19} parent=5 // pred_fallthru
      _
    %p152 = scmp.lt.s32.totalorder %s10, 3
    // Predicated region
    $region17: #{stage2_d_forward.19} parent=5 // pred_check
      %p153 = pneg %p152
    $region18: #{stage2_d_forward.19} parent=5 // pred_check_branch
      %155 = sbr.rel (%p153) target = $region20
    $region19: #{stage2_d_forward.19} parent=5 // pred_region
      // Predicated region
      $region21: #{stage2_d_forward.19} parent=19 // pred_check
        %p156 = pneg %p42
      $region22: #{stage2_d_forward.19} parent=19 // pred_check_branch
        %158 = sbr.rel (%p156) target = $region24
      $region23: #{stage2_d_forward.19} parent=19 // pred_region
        %s159 = smul.u32 48, %s17
        %p160 = scmp.lt.s32.totalorder %s159, 143
        %s161 = scalar_select %p160, %s159, 143
        %s162 = smul.addr %s161, 4
        %s163 = scalar_lea.vmem %s0, %s162
        %s164 = smul.u32 48, %s17
      $region24: #{stage2_d_forward.19} parent=19 // pred_fallthru
        _
    $region20: #{stage2_d_forward.19} parent=5 // pred_fallthru
      _
    %p165 = scmp.le.s32.totalorder 1, %s10
    %p166 = scmp.lt.s32.totalorder %s10, 4
    %p167 = pnand %p165, %p166
    %p168 = pneg %p167
    // Predicated region
    $region25: #{stage2_d_forward.19} parent=5 // pred_check
      _
    $region26: #{stage2_d_forward.19} parent=5 // pred_check_branch
      %170 = sbr.rel (%p167) target = $region28
    $region27: #{stage2_d_forward.19} parent=5 // pred_region
      %s171 = ssub.s32 %s10, 1
      %s172 = smul.u32 48, %s19
      %p173 = scmp.lt.s32.totalorder %s172, 143
      %s174 = scalar_select %p173, %s172, 143
      %s175 = smul.addr %s174, 4
      %s176 = scalar_lea.vmem %s0, %s175
      %p177 = pneg %p48
      %p178 = pneg %p45
      %p179 = scmp.lt.s32.totalorder %s20, 0
      %s180 = scalar_select %p179, %s20, 0
      %s181 = smul.addr %s180, 4
      %s182 = scalar_lea.vmem %s1, %s181
      %p183 = pneg %p74
      %p184 = pneg %p71
      %p185 = pneg %p102
      %p186 = pneg %p99
      %s187 = smul.u32 48, %s19
      %p188 = scmp.lt.s32.totalorder %s187, 143
      %s189 = scalar_select %p188, %s187, 143
      %p190 = scmp.lt.s32.totalorder %s20, 0
      %s191 = scalar_select %p190, %s20, 0
      %s192 = sadd.s32 %s191, %s189
      %s193 = smul.addr %s192, 8
      %s194 = scalar_lea.vmem %s2, %s193
      %p195 = pneg %p130
      %p196 = pneg %p127
      %p197 = scmp.lt.s32.totalorder %s19, 2
      %s198 = scalar_select %p197, %s19, 2
      %p199 = scmp.lt.s32.totalorder %s20, 0
      %s200 = scalar_select %p199, %s20, 0
      %s201 = sadd.s32 %s200, %s198
      %s202 = smul.addr %s201, 2
      %s203 = scalar_lea.vmem %s3, %s202
      %s204 = smul.u32 48, %s19
      %p205 = scmp.lt.s32.totalorder %s204, 143
      %s206 = scalar_select %p205, %s204, 143
      %s207 = smul.addr %s206, 4
      %s208 = scalar_lea.vmem %s0, %s207
      %s209 = smul.u32 48, %s19
      %p210 = scmp.lt.s32.totalorder %s20, 0
      %s211 = scalar_select %p210, %s20, 0
      %s212 = smul.addr %s211, 4
      %s213 = scalar_lea.vmem %s1, %s212
      %s214 = smul.u32 48, %s19
      %p215 = scmp.lt.s32.totalorder %s214, 143
      %s216 = scalar_select %p215, %s214, 143
      %p217 = scmp.lt.s32.totalorder %s20, 0
      %s218 = scalar_select %p217, %s20, 0
      %s219 = sadd.s32 %s218, %s216
      %s220 = smul.addr %s219, 8
      %s221 = scalar_lea.vmem %s2, %s220
      %s222 = smul.u32 48, %s19
      %p223 = scmp.lt.s32.totalorder %s19, 2
      %s224 = scalar_select %p223, %s19, 2
      %p225 = scmp.lt.s32.totalorder %s20, 0
      %s226 = scalar_select %p225, %s20, 0
      %s227 = sadd.s32 %s226, %s224
      %s228 = smul.addr %s227, 2
      %s229 = scalar_lea.vmem %s3, %s228
      %v231 = vld [vmem:[%s208] sm:$0xf]
      %v232 = vld [vmem:[%s208 + $0x4] sm:$0xf]
      %v233 = vld [vmem:[%s208 + $0x8] sm:$0xf]
      %v234 = vld [vmem:[%s208 + $0xc] sm:$0xf]
      %v235 = vld [vmem:[%s208 + $0x10] sm:$0xf]
      %v236 = vld [vmem:[%s208 + $0x14] sm:$0xf]
      %v237 = vld [vmem:[%s208 + $0x18] sm:$0xf]
      %v238 = vld [vmem:[%s208 + $0x1c] sm:$0xf]
      %v239 = vld [vmem:[%s208 + $0x20] sm:$0xf]
      %v240 = vld [vmem:[%s208 + $0x24] sm:$0xf]
      %v241 = vld [vmem:[%s208 + $0x28] sm:$0xf]
      %v242 = vld [vmem:[%s208 + $0x2c] sm:$0xf]
      %v243 = vld [vmem:[%s208 + $0x30] sm:$0xf]
      %v244 = vld [vmem:[%s208 + $0x34] sm:$0xf]
      %v245 = vld [vmem:[%s208 + $0x38] sm:$0xf]
      %v246 = vld [vmem:[%s208 + $0x3c] sm:$0xf]
      %v247 = vld [vmem:[%s208 + $0x40] sm:$0xf]
      %v248 = vld [vmem:[%s208 + $0x44] sm:$0xf]
      %v249 = vld [vmem:[%s208 + $0x48] sm:$0xf]
      %v250 = vld [vmem:[%s208 + $0x4c] sm:$0xf]
      %v251 = vld [vmem:[%s208 + $0x50] sm:$0xf]
      %v252 = vld [vmem:[%s208 + $0x54] sm:$0xf]
      %v253 = vld [vmem:[%s208 + $0x58] sm:$0xf]
      %v254 = vld [vmem:[%s208 + $0x5c] sm:$0xf]
      %v255 = vld [vmem:[%s208 + $0x60] sm:$0xf]
      %v256 = vld [vmem:[%s208 + $0x64] sm:$0xf]
      %v257 = vld [vmem:[%s208 + $0x68] sm:$0xf]
      %v258 = vld [vmem:[%s208 + $0x6c] sm:$0xf]
      %v259 = vld [vmem:[%s208 + $0x70] sm:$0xf]
      %v260 = vld [vmem:[%s208 + $0x74] sm:$0xf]
      %v261 = vld [vmem:[%s208 + $0x78] sm:$0xf]
      %v262 = vld [vmem:[%s208 + $0x7c] sm:$0xf]
      %v263 = vld [vmem:[%s208 + $0x80] sm:$0xf]
      %v264 = vld [vmem:[%s208 + $0x84] sm:$0xf]
      %v265 = vld [vmem:[%s208 + $0x88] sm:$0xf]
      %v266 = vld [vmem:[%s208 + $0x8c] sm:$0xf]
      %v267 = vld [vmem:[%s208 + $0x90] sm:$0xf]
      %v268 = vld [vmem:[%s208 + $0x94] sm:$0xf]
      %v269 = vld [vmem:[%s208 + $0x98] sm:$0xf]
      %v270 = vld [vmem:[%s208 + $0x9c] sm:$0xf]
      %v271 = vld [vmem:[%s208 + $0xa0] sm:$0xf]
      %v272 = vld [vmem:[%s208 + $0xa4] sm:$0xf]
      %v273 = vld [vmem:[%s208 + $0xa8] sm:$0xf]
      %v274 = vld [vmem:[%s208 + $0xac] sm:$0xf]
      %v275 = vld [vmem:[%s208 + $0xb0] sm:$0xf]
      %v276 = vld [vmem:[%s208 + $0xb4] sm:$0xf]
      %v277 = vld [vmem:[%s208 + $0xb8] sm:$0xf]
      %v278 = vld [vmem:[%s208 + $0xbc] sm:$0xf]
      %v279 = vld [vmem:[%s213] sm:$0xf]
      %v280 = vld [vmem:[%s213 + $0x4] sm:$0xf]
      %v281 = vld [vmem:[%s213 + $0x8] sm:$0xf]
      %v282 = vld [vmem:[%s213 + $0xc] sm:$0xf]
      %v283 = vld [vmem:[%s213 + $0x10] sm:$0xf]
      %v284 = vld [vmem:[%s213 + $0x14] sm:$0xf]
      %v285 = vld [vmem:[%s213 + $0x18] sm:$0xf]
      %v286 = vld [vmem:[%s213 + $0x1c] sm:$0xf]
      %v287 = vld [vmem:[%s213 + $0x20] sm:$0xf]
      %v288 = vld [vmem:[%s213 + $0x24] sm:$0xf]
      %v289 = vld [vmem:[%s213 + $0x28] sm:$0xf]
      %v290 = vld [vmem:[%s213 + $0x2c] sm:$0xf]
      %v291 = vld [vmem:[%s213 + $0x30] sm:$0xf]
      %v292 = vld [vmem:[%s213 + $0x34] sm:$0xf]
      %v293 = vld [vmem:[%s213 + $0x38] sm:$0xf]
      %v294 = vld [vmem:[%s213 + $0x3c] sm:$0xf]
      %v343 = vunpack.c.l.b16 %v231
      %v344 = vunpack.c.l.b16 %v232
      %v345 = vunpack.c.l.b16 %v233
      %v346 = vunpack.c.l.b16 %v234
      %v347 = vunpack.c.l.b16 %v235
      %v348 = vunpack.c.l.b16 %v236
      %v349 = vunpack.c.l.b16 %v237
      %v350 = vunpack.c.l.b16 %v238
      %v351 = vunpack.c.l.b16 %v239
      %v352 = vunpack.c.l.b16 %v240
      %v353 = vunpack.c.l.b16 %v241
      %v354 = vunpack.c.l.b16 %v242
      %v355 = vunpack.c.l.b16 %v243
      %v356 = vunpack.c.l.b16 %v244
      %v357 = vunpack.c.l.b16 %v245
      %v358 = vunpack.c.l.b16 %v246
      %v359 = vunpack.c.l.b16 %v247
      %v360 = vunpack.c.l.b16 %v248
      %v361 = vunpack.c.l.b16 %v249
      %v362 = vunpack.c.l.b16 %v250
      %v363 = vunpack.c.l.b16 %v251
      %v364 = vunpack.c.l.b16 %v252
      %v365 = vunpack.c.l.b16 %v253
      %v366 = vunpack.c.l.b16 %v254
      %v367 = vunpack.c.l.b16 %v255
      %v368 = vunpack.c.l.b16 %v256
      %v369 = vunpack.c.l.b16 %v257
      %v370 = vunpack.c.l.b16 %v258
      %v371 = vunpack.c.l.b16 %v259
      %v372 = vunpack.c.l.b16 %v260
      %v373 = vunpack.c.l.b16 %v261
      %v374 = vunpack.c.l.b16 %v262
      %v375 = vunpack.c.l.b16 %v263
      %v376 = vunpack.c.l.b16 %v264
      %v377 = vunpack.c.l.b16 %v265
      %v378 = vunpack.c.l.b16 %v266
      %v379 = vunpack.c.l.b16 %v267
      %v380 = vunpack.c.l.b16 %v268
      %v381 = vunpack.c.l.b16 %v269
      %v382 = vunpack.c.l.b16 %v270
      %v383 = vunpack.c.l.b16 %v271
      %v384 = vunpack.c.l.b16 %v272
      %v385 = vunpack.c.l.b16 %v273
      %v386 = vunpack.c.l.b16 %v274
      %v387 = vunpack.c.l.b16 %v275
      %v388 = vunpack.c.l.b16 %v276
      %v389 = vunpack.c.l.b16 %v277
      %v390 = vunpack.c.l.b16 %v278
      %v391 = vpack.c.b16 %v344, %v343
      %v392 = vpack.c.b16 %v346, %v345
      %v393 = vpack.c.b16 %v348, %v347
      %v394 = vpack.c.b16 %v350, %v349
      %v395 = vpack.c.b16 %v352, %v351
      %v396 = vpack.c.b16 %v354, %v353
      %v397 = vpack.c.b16 %v356, %v355
      %v398 = vpack.c.b16 %v358, %v357
      %v399 = vpack.c.b16 %v360, %v359
      %v400 = vpack.c.b16 %v362, %v361
      %v401 = vpack.c.b16 %v364, %v363
      %v402 = vpack.c.b16 %v366, %v365
      %v403 = vpack.c.b16 %v368, %v367
      %v404 = vpack.c.b16 %v370, %v369
      %v405 = vpack.c.b16 %v372, %v371
      %v406 = vpack.c.b16 %v374, %v373
      %v407 = vpack.c.b16 %v376, %v375
      %v408 = vpack.c.b16 %v378, %v377
      %v409 = vpack.c.b16 %v380, %v379
      %v410 = vpack.c.b16 %v382, %v381
      %v411 = vpack.c.b16 %v384, %v383
      %v412 = vpack.c.b16 %v386, %v385
      %v413 = vpack.c.b16 %v388, %v387
      %v414 = vpack.c.b16 %v390, %v389
      %v455 = vunpack.c.l.b16 %v279
      %v456 = vunpack.c.l.b16 %v280
      %v457 = vunpack.c.l.b16 %v281
      %v458 = vunpack.c.l.b16 %v282
      %v459 = vunpack.c.l.b16 %v283
      %v460 = vunpack.c.l.b16 %v284
      %v461 = vunpack.c.l.b16 %v285
      %v462 = vunpack.c.l.b16 %v286
      %v463 = vunpack.c.l.b16 %v287
      %v464 = vunpack.c.l.b16 %v288
      %v465 = vunpack.c.l.b16 %v289
      %v466 = vunpack.c.l.b16 %v290
      %v467 = vunpack.c.l.b16 %v291
      %v468 = vunpack.c.l.b16 %v292
      %v469 = vunpack.c.l.b16 %v293
      %v470 = vunpack.c.l.b16 %v294
      %v471 = vpack.c.b16 %v456, %v455
      %v472 = vpack.c.b16 %v458, %v457
      %v473 = vpack.c.b16 %v460, %v459
      %v474 = vpack.c.b16 %v462, %v461
      %v475 = vpack.c.b16 %v464, %v463
      %v476 = vpack.c.b16 %v466, %v465
      %v477 = vpack.c.b16 %v468, %v467
      %v478 = vpack.c.b16 %v470, %v469
      %487 = vmatprep.subr.bf16.mxu0 0
      %488 = vmatpush1.bf16.msra.mxu0 %v478
      %489 = vmatprep.subr.bf16.mxu0 0
      %490 = vmatpush1.bf16.msra.mxu0 %v477
      %491 = vmatprep.subr.bf16.mxu0 0
      %492 = vmatpush1.bf16.msra.mxu0 %v476
      %493 = vmatprep.subr.bf16.mxu0 0
      %494 = vmatpush1.bf16.msra.mxu0 %v475
      %495 = vmatprep.subr.bf16.mxu0 0
      %496 = vmatpush1.bf16.msra.mxu0 %v474
      %497 = vmatprep.subr.bf16.mxu0 0
      %498 = vmatpush1.bf16.msra.mxu0 %v473
      %499 = vmatprep.subr.bf16.mxu0 0
      %500 = vmatpush1.bf16.msra.mxu0 %v472
      %501 = vmatprep.subr.bf16.mxu0 0
      %502 = vmatpush1.bf16.msra.mxu0 %v471
      %503 = vmatprep.subr.bf16.mxu0 0
      %504 = vmatpush2.bf16.msra.mxu0 0
      %505 = vmatprep.subr.bf16.mxu0 0
      %506 = vmatpush2.bf16.msra.mxu0 0
      %507 = vmatprep.subr.bf16.mxu0 0
      %508 = vmatpush2.bf16.msra.mxu0 0
      %509 = vmatprep.subr.bf16.mxu0 0
      %510 = vmatpush2.bf16.msra.mxu0 0
      %511 = vmatprep.subr.bf16.mxu0 0
      %512 = vmatpush2.bf16.msra.mxu0 0
      %513 = vmatprep.subr.bf16.mxu0 0
      %514 = vmatpush2.bf16.msra.mxu0 0
      %515 = vmatprep.subr.bf16.mxu0 0
      %516 = vmatpush2.bf16.msra.mxu0 0
      %517 = vmatprep.subr.bf16.mxu0 0
      %518 = vmatpush2.bf16.msra.mxu0 0
      %519 = vmatprep.mubr.bf16.mxu0 0
      %520 = vmatmul.mubr.bf16.gmra.mxu0 %v391
      %v521 = vpop.f32.mrf.mxu0
      %v522 = vadd.f32 0.0, %v521
      %v523 = vpop.f32.mrf.mxu0
      %v524 = vpop.f32.mrf.mxu0
      %v525 = vadd.f32 0.0, %v524
      %v526 = vpop.f32.mrf.mxu0
      %527 = vmatprep.mubr.bf16.mxu0 0
      %528 = vmatmul.mubr.bf16.gmra.mxu0 %v392
      %v529 = vpop.f32.mrf.mxu0
      %v530 = vadd.f32 0.0, %v529
      %v531 = vpop.f32.mrf.mxu0
      %v532 = vpop.f32.mrf.mxu0
      %v533 = vadd.f32 0.0, %v532
      %v534 = vpop.f32.mrf.mxu0
      %535 = vmatprep.mubr.bf16.mxu0 0
      %536 = vmatmul.mubr.bf16.gmra.mxu0 %v393
      %v537 = vpop.f32.mrf.mxu0
      %v538 = vadd.f32 0.0, %v537
      %v539 = vpop.f32.mrf.mxu0
      %v540 = vpop.f32.mrf.mxu0
      %v541 = vadd.f32 0.0, %v540
      %v542 = vpop.f32.mrf.mxu0
      %543 = vmatprep.mubr.bf16.mxu0 0
      %544 = vmatmul.mubr.bf16.gmra.mxu0 %v394
      %v545 = vpop.f32.mrf.mxu0
      %v546 = vadd.f32 0.0, %v545
      %v547 = vpop.f32.mrf.mxu0
      %v548 = vpop.f32.mrf.mxu0
      %v549 = vadd.f32 0.0, %v548
      %v550 = vpop.f32.mrf.mxu0
      %551 = vmatprep.mubr.bf16.mxu0 0
      %552 = vmatmul.mubr.bf16.gmra.mxu0 %v395
      %v553 = vpop.f32.mrf.mxu0
      %v554 = vadd.f32 0.0, %v553
      %v555 = vpop.f32.mrf.mxu0
      %v556 = vpop.f32.mrf.mxu0
      %v557 = vadd.f32 0.0, %v556
      %v558 = vpop.f32.mrf.mxu0
      %559 = vmatprep.mubr.bf16.mxu0 0
      %560 = vmatmul.mubr.bf16.gmra.mxu0 %v396
      %v561 = vpop.f32.mrf.mxu0
      %v562 = vadd.f32 0.0, %v561
      %v563 = vpop.f32.mrf.mxu0
      %v564 = vpop.f32.mrf.mxu0
      %v565 = vadd.f32 0.0, %v564
      %v566 = vpop.f32.mrf.mxu0
      %567 = vmatprep.mubr.bf16.mxu0 0
      %568 = vmatmul.mubr.bf16.gmra.mxu0 %v397
      %v569 = vpop.f32.mrf.mxu0
      %v570 = vadd.f32 0.0, %v569
      %v571 = vpop.f32.mrf.mxu0
      %v572 = vpop.f32.mrf.mxu0
      %v573 = vadd.f32 0.0, %v572
      %v574 = vpop.f32.mrf.mxu0
      %575 = vmatprep.mubr.bf16.mxu0 0
      %576 = vmatmul.mubr.bf16.gmra.mxu0 %v398
      %v577 = vpop.f32.mrf.mxu0
      %v578 = vadd.f32 0.0, %v577
      %v579 = vpop.f32.mrf.mxu0
      %v580 = vpop.f32.mrf.mxu0
      %v581 = vadd.f32 0.0, %v580
      %v582 = vpop.f32.mrf.mxu0
      %583 = vmatprep.mubr.bf16.mxu0 0
      %584 = vmatmul.mubr.bf16.gmra.mxu0 %v399
      %v585 = vpop.f32.mrf.mxu0
      %v586 = vadd.f32 0.0, %v585
      %v587 = vpop.f32.mrf.mxu0
      %v588 = vpop.f32.mrf.mxu0
      %v589 = vadd.f32 0.0, %v588
      %v590 = vpop.f32.mrf.mxu0
      %591 = vmatprep.mubr.bf16.mxu0 0
      %592 = vmatmul.mubr.bf16.gmra.mxu0 %v400
      %v593 = vpop.f32.mrf.mxu0
      %v594 = vadd.f32 0.0, %v593
      %v595 = vpop.f32.mrf.mxu0
      %v596 = vpop.f32.mrf.mxu0
      %v597 = vadd.f32 0.0, %v596
      %v598 = vpop.f32.mrf.mxu0
      %599 = vmatprep.mubr.bf16.mxu0 0
      %600 = vmatmul.mubr.bf16.gmra.mxu0 %v401
      %v601 = vpop.f32.mrf.mxu0
      %v602 = vadd.f32 0.0, %v601
      %v603 = vpop.f32.mrf.mxu0
      %v604 = vpop.f32.mrf.mxu0
      %v605 = vadd.f32 0.0, %v604
      %v606 = vpop.f32.mrf.mxu0
      %607 = vmatprep.mubr.bf16.mxu0 0
      %608 = vmatmul.mubr.bf16.gmra.mxu0 %v402
      %v609 = vpop.f32.mrf.mxu0
      %v610 = vadd.f32 0.0, %v609
      %v611 = vpop.f32.mrf.mxu0
      %v612 = vpop.f32.mrf.mxu0
      %v613 = vadd.f32 0.0, %v612
      %v614 = vpop.f32.mrf.mxu0
      %615 = vmatprep.mubr.bf16.mxu0 0
      %616 = vmatmul.mubr.bf16.gmra.mxu0 %v403
      %v617 = vpop.f32.mrf.mxu0
      %v618 = vadd.f32 0.0, %v617
      %v619 = vpop.f32.mrf.mxu0
      %v620 = vpop.f32.mrf.mxu0
      %v621 = vadd.f32 0.0, %v620
      %v622 = vpop.f32.mrf.mxu0
      %623 = vmatprep.mubr.bf16.mxu0 0
      %624 = vmatmul.mubr.bf16.gmra.mxu0 %v404
      %v625 = vpop.f32.mrf.mxu0
      %v626 = vadd.f32 0.0, %v625
      %v627 = vpop.f32.mrf.mxu0
      %v628 = vpop.f32.mrf.mxu0
      %v629 = vadd.f32 0.0, %v628
      %v630 = vpop.f32.mrf.mxu0
      %631 = vmatprep.mubr.bf16.mxu0 0
      %632 = vmatmul.mubr.bf16.gmra.mxu0 %v405
      %v633 = vpop.f32.mrf.mxu0
      %v634 = vadd.f32 0.0, %v633
      %v635 = vpop.f32.mrf.mxu0
      %v636 = vpop.f32.mrf.mxu0
      %v637 = vadd.f32 0.0, %v636
      %v638 = vpop.f32.mrf.mxu0
      %639 = vmatprep.mubr.bf16.mxu0 0
      %640 = vmatmul.mubr.bf16.gmra.mxu0 %v406
      %v641 = vpop.f32.mrf.mxu0
      %v642 = vadd.f32 0.0, %v641
      %v643 = vpop.f32.mrf.mxu0
      %v644 = vpop.f32.mrf.mxu0
      %v645 = vadd.f32 0.0, %v644
      %v646 = vpop.f32.mrf.mxu0
      %647 = vmatprep.mubr.bf16.mxu0 0
      %648 = vmatmul.mubr.bf16.gmra.mxu0 %v407
      %v649 = vpop.f32.mrf.mxu0
      %v650 = vadd.f32 0.0, %v649
      %v651 = vpop.f32.mrf.mxu0
      %v652 = vpop.f32.mrf.mxu0
      %v653 = vadd.f32 0.0, %v652
      %v654 = vpop.f32.mrf.mxu0
      %655 = vmatprep.mubr.bf16.mxu0 0
      %656 = vmatmul.mubr.bf16.gmra.mxu0 %v408
      %v657 = vpop.f32.mrf.mxu0
      %v658 = vadd.f32 0.0, %v657
      %v659 = vpop.f32.mrf.mxu0
      %v660 = vpop.f32.mrf.mxu0
      %v661 = vadd.f32 0.0, %v660
      %v662 = vpop.f32.mrf.mxu0
      %663 = vmatprep.mubr.bf16.mxu0 0
      %664 = vmatmul.mubr.bf16.gmra.mxu0 %v409
      %v665 = vpop.f32.mrf.mxu0
      %v666 = vadd.f32 0.0, %v665
      %v667 = vpop.f32.mrf.mxu0
      %v668 = vpop.f32.mrf.mxu0
      %v669 = vadd.f32 0.0, %v668
      %v670 = vpop.f32.mrf.mxu0
      %671 = vmatprep.mubr.bf16.mxu0 0
      %672 = vmatmul.mubr.bf16.gmra.mxu0 %v410
      %v673 = vpop.f32.mrf.mxu0
      %v674 = vadd.f32 0.0, %v673
      %v675 = vpop.f32.mrf.mxu0
      %v676 = vpop.f32.mrf.mxu0
      %v677 = vadd.f32 0.0, %v676
      %v678 = vpop.f32.mrf.mxu0
      %679 = vmatprep.mubr.bf16.mxu0 0
      %680 = vmatmul.mubr.bf16.gmra.mxu0 %v411
      %v681 = vpop.f32.mrf.mxu0
      %v682 = vadd.f32 0.0, %v681
      %v683 = vpop.f32.mrf.mxu0
      %v684 = vpop.f32.mrf.mxu0
      %v685 = vadd.f32 0.0, %v684
      %v686 = vpop.f32.mrf.mxu0
      %687 = vmatprep.mubr.bf16.mxu0 0
      %688 = vmatmul.mubr.bf16.gmra.mxu0 %v412
      %v689 = vpop.f32.mrf.mxu0
      %v690 = vadd.f32 0.0, %v689
      %v691 = vpop.f32.mrf.mxu0
      %v692 = vpop.f32.mrf.mxu0
      %v693 = vadd.f32 0.0, %v692
      %v694 = vpop.f32.mrf.mxu0
      %695 = vmatprep.mubr.bf16.mxu0 0
      %696 = vmatmul.mubr.bf16.gmra.mxu0 %v413
      %v697 = vpop.f32.mrf.mxu0
      %v698 = vadd.f32 0.0, %v697
      %v699 = vpop.f32.mrf.mxu0
      %v700 = vpop.f32.mrf.mxu0
      %v701 = vadd.f32 0.0, %v700
      %v702 = vpop.f32.mrf.mxu0
      %703 = vmatprep.mubr.bf16.mxu0 0
      %704 = vmatmul.mubr.bf16.gmra.mxu0 %v414
      %v705 = vpop.f32.mrf.mxu0
      %v706 = vadd.f32 0.0, %v705
      %v707 = vpop.f32.mrf.mxu0
      %v708 = vpop.f32.mrf.mxu0
      %v709 = vadd.f32 0.0, %v708
      %v710 = vpop.f32.mrf.mxu0
      %711 = vdwg.mxu0
      %vm712 = vcmask 130048
      %713 = vst.msk [vmem:[%s221] sm:$0xff] %vm712, %v522
      %714 = vst.msk [vmem:[%s221 + $0x8] sm:$0xff] %vm712, %v525
      %715 = vst.msk [vmem:[%s221 + $0x10] sm:$0xff] %vm712, %v530
      %716 = vst.msk [vmem:[%s221 + $0x18] sm:$0xff] %vm712, %v533
      %717 = vst.msk [vmem:[%s221 + $0x20] sm:$0xff] %vm712, %v538
      %718 = vst.msk [vmem:[%s221 + $0x28] sm:$0xff] %vm712, %v541
      %719 = vst.msk [vmem:[%s221 + $0x30] sm:$0xff] %vm712, %v546
      %720 = vst.msk [vmem:[%s221 + $0x38] sm:$0xff] %vm712, %v549
      %721 = vst.msk [vmem:[%s221 + $0x40] sm:$0xff] %vm712, %v554
      %722 = vst.msk [vmem:[%s221 + $0x48] sm:$0xff] %vm712, %v557
      %723 = vst.msk [vmem:[%s221 + $0x50] sm:$0xff] %vm712, %v562
      %724 = vst.msk [vmem:[%s221 + $0x58] sm:$0xff] %vm712, %v565
      %725 = vst.msk [vmem:[%s221 + $0x60] sm:$0xff] %vm712, %v570
      %726 = vst.msk [vmem:[%s221 + $0x68] sm:$0xff] %vm712, %v573
      %727 = vst.msk [vmem:[%s221 + $0x70] sm:$0xff] %vm712, %v578
      %728 = vst.msk [vmem:[%s221 + $0x78] sm:$0xff] %vm712, %v581
      %729 = vst.msk [vmem:[%s221 + $0x80] sm:$0xff] %vm712, %v586
      %730 = vst.msk [vmem:[%s221 + $0x88] sm:$0xff] %vm712, %v589
      %731 = vst.msk [vmem:[%s221 + $0x90] sm:$0xff] %vm712, %v594
      %732 = vst.msk [vmem:[%s221 + $0x98] sm:$0xff] %vm712, %v597
      %733 = vst.msk [vmem:[%s221 + $0xa0] sm:$0xff] %vm712, %v602
      %734 = vst.msk [vmem:[%s221 + $0xa8] sm:$0xff] %vm712, %v605
      %735 = vst.msk [vmem:[%s221 + $0xb0] sm:$0xff] %vm712, %v610
      %736 = vst.msk [vmem:[%s221 + $0xb8] sm:$0xff] %vm712, %v613
      %737 = vst.msk [vmem:[%s221 + $0xc0] sm:$0xff] %vm712, %v618
      %738 = vst.msk [vmem:[%s221 + $0xc8] sm:$0xff] %vm712, %v621
      %739 = vst.msk [vmem:[%s221 + $0xd0] sm:$0xff] %vm712, %v626
      %740 = vst.msk [vmem:[%s221 + $0xd8] sm:$0xff] %vm712, %v629
      %741 = vst.msk [vmem:[%s221 + $0xe0] sm:$0xff] %vm712, %v634
      %742 = vst.msk [vmem:[%s221 + $0xe8] sm:$0xff] %vm712, %v637
      %743 = vst.msk [vmem:[%s221 + $0xf0] sm:$0xff] %vm712, %v642
      %744 = vst.msk [vmem:[%s221 + $0xf8] sm:$0xff] %vm712, %v645
      %745 = vst.msk [vmem:[%s221 + $0x100] sm:$0xff] %vm712, %v650
      %746 = vst.msk [vmem:[%s221 + $0x108] sm:$0xff] %vm712, %v653
      %747 = vst.msk [vmem:[%s221 + $0x110] sm:$0xff] %vm712, %v658
      %748 = vst.msk [vmem:[%s221 + $0x118] sm:$0xff] %vm712, %v661
      %749 = vst.msk [vmem:[%s221 + $0x120] sm:$0xff] %vm712, %v666
      %750 = vst.msk [vmem:[%s221 + $0x128] sm:$0xff] %vm712, %v669
      %751 = vst.msk [vmem:[%s221 + $0x130] sm:$0xff] %vm712, %v674
      %752 = vst.msk [vmem:[%s221 + $0x138] sm:$0xff] %vm712, %v677
      %753 = vst.msk [vmem:[%s221 + $0x140] sm:$0xff] %vm712, %v682
      %754 = vst.msk [vmem:[%s221 + $0x148] sm:$0xff] %vm712, %v685
      %755 = vst.msk [vmem:[%s221 + $0x150] sm:$0xff] %vm712, %v690
      %756 = vst.msk [vmem:[%s221 + $0x158] sm:$0xff] %vm712, %v693
      %757 = vst.msk [vmem:[%s221 + $0x160] sm:$0xff] %vm712, %v698
      %758 = vst.msk [vmem:[%s221 + $0x168] sm:$0xff] %vm712, %v701
      %759 = vst.msk [vmem:[%s221 + $0x170] sm:$0xff] %vm712, %v706
      %760 = vst.msk [vmem:[%s221 + $0x178] sm:$0xff] %vm712, %v709
      %v761 = vsel %vm712, %v522, 0.0
      %v762 = vsel %vm712, %v525, 0.0
      %v763 = vadd.f32 %v761, %v762
      %v764 = vsel %vm712, %v530, 0.0
      %v765 = vadd.f32 %v763, %v764
      %v766 = vsel %vm712, %v533, 0.0
      %v767 = vadd.f32 %v765, %v766
      %v768 = vsel %vm712, %v538, 0.0
      %v769 = vadd.f32 %v767, %v768
      %v770 = vsel %vm712, %v541, 0.0
      %v771 = vadd.f32 %v769, %v770
      %v772 = vsel %vm712, %v546, 0.0
      %v773 = vadd.f32 %v771, %v772
      %v774 = vsel %vm712, %v549, 0.0
      %v775 = vadd.f32 %v773, %v774
      %v776 = vsel %vm712, %v554, 0.0
      %v777 = vadd.f32 %v775, %v776
      %v778 = vsel %vm712, %v557, 0.0
      %v779 = vadd.f32 %v777, %v778
      %v780 = vsel %vm712, %v562, 0.0
      %v781 = vadd.f32 %v779, %v780
      %v782 = vsel %vm712, %v565, 0.0
      %v783 = vadd.f32 %v781, %v782
      %v784 = vsel %vm712, %v570, 0.0
      %v785 = vadd.f32 %v783, %v784
      %v786 = vsel %vm712, %v573, 0.0
      %v787 = vadd.f32 %v785, %v786
      %v788 = vsel %vm712, %v578, 0.0
      %v789 = vadd.f32 %v787, %v788
      %v790 = vsel %vm712, %v581, 0.0
      %v791 = vadd.f32 %v789, %v790
      %v792 = vsel %vm712, %v586, 0.0
      %v793 = vadd.f32 %v791, %v792
      %v794 = vsel %vm712, %v589, 0.0
      %v795 = vadd.f32 %v793, %v794
      %v796 = vsel %vm712, %v594, 0.0
      %v797 = vadd.f32 %v795, %v796
      %v798 = vsel %vm712, %v597, 0.0
      %v799 = vadd.f32 %v797, %v798
      %v800 = vsel %vm712, %v602, 0.0
      %v801 = vadd.f32 %v799, %v800
      %v802 = vsel %vm712, %v605, 0.0
      %v803 = vadd.f32 %v801, %v802
      %v804 = vsel %vm712, %v610, 0.0
      %v805 = vadd.f32 %v803, %v804
      %v806 = vsel %vm712, %v613, 0.0
      %v807 = vadd.f32 %v805, %v806
      %v808 = vsel %vm712, %v618, 0.0
      %v809 = vadd.f32 %v807, %v808
      %v810 = vsel %vm712, %v621, 0.0
      %v811 = vadd.f32 %v809, %v810
      %v812 = vsel %vm712, %v626, 0.0
      %v813 = vadd.f32 %v811, %v812
      %v814 = vsel %vm712, %v629, 0.0
      %v815 = vadd.f32 %v813, %v814
      %v816 = vsel %vm712, %v634, 0.0
      %v817 = vadd.f32 %v815, %v816
      %v818 = vsel %vm712, %v637, 0.0
      %v819 = vadd.f32 %v817, %v818
      %v820 = vsel %vm712, %v642, 0.0
      %v821 = vadd.f32 %v819, %v820
      %v822 = vsel %vm712, %v645, 0.0
      %v823 = vadd.f32 %v821, %v822
      %v824 = vsel %vm712, %v650, 0.0
      %v825 = vadd.f32 %v823, %v824
      %v826 = vsel %vm712, %v653, 0.0
      %v827 = vadd.f32 %v825, %v826
      %v828 = vsel %vm712, %v658, 0.0
      %v829 = vadd.f32 %v827, %v828
      %v830 = vsel %vm712, %v661, 0.0
      %v831 = vadd.f32 %v829, %v830
      %v832 = vsel %vm712, %v666, 0.0
      %v833 = vadd.f32 %v831, %v832
      %v834 = vsel %vm712, %v669, 0.0
      %v835 = vadd.f32 %v833, %v834
      %v836 = vsel %vm712, %v674, 0.0
      %v837 = vadd.f32 %v835, %v836
      %v838 = vsel %vm712, %v677, 0.0
      %v839 = vadd.f32 %v837, %v838
      %v840 = vsel %vm712, %v682, 0.0
      %v841 = vadd.f32 %v839, %v840
      %v842 = vsel %vm712, %v685, 0.0
      %v843 = vadd.f32 %v841, %v842
      %v844 = vsel %vm712, %v690, 0.0
      %v845 = vadd.f32 %v843, %v844
      %v846 = vsel %vm712, %v693, 0.0
      %v847 = vadd.f32 %v845, %v846
      %v848 = vsel %vm712, %v698, 0.0
      %v849 = vadd.f32 %v847, %v848
      %v850 = vsel %vm712, %v701, 0.0
      %v851 = vadd.f32 %v849, %v850
      %v852 = vsel %vm712, %v706, 0.0
      %v853 = vadd.f32 %v851, %v852
      %v854 = vsel %vm712, %v709, 0.0
      %v855 = vadd.f32 %v853, %v854
      %v856 = vrot.slane %v855, 4
      %v857 = vadd.f32 %v855, %v856
      %v858 = vrot.slane %v857, 2
      %v859 = vadd.f32 %v857, %v858
      %v860 = vrot.slane %v859, 1
      %v861 = vadd.f32 %v859, %v860
      %v862 = vmul.f32 %v522, %v522
      %v863 = vmul.f32 %v525, %v525
      %v864 = vmul.f32 %v530, %v530
      %v865 = vmul.f32 %v533, %v533
      %v866 = vmul.f32 %v538, %v538
      %v867 = vmul.f32 %v541, %v541
      %v868 = vmul.f32 %v546, %v546
      %v869 = vmul.f32 %v549, %v549
      %v870 = vmul.f32 %v554, %v554
      %v871 = vmul.f32 %v557, %v557
      %v872 = vmul.f32 %v562, %v562
      %v873 = vmul.f32 %v565, %v565
      %v874 = vmul.f32 %v570, %v570
      %v875 = vmul.f32 %v573, %v573
      %v876 = vmul.f32 %v578, %v578
      %v877 = vmul.f32 %v581, %v581
      %v878 = vmul.f32 %v586, %v586
      %v879 = vmul.f32 %v589, %v589
      %v880 = vmul.f32 %v594, %v594
      %v881 = vmul.f32 %v597, %v597
      %v882 = vmul.f32 %v602, %v602
      %v883 = vmul.f32 %v605, %v605
      %v884 = vmul.f32 %v610, %v610
      %v885 = vmul.f32 %v613, %v613
      %v886 = vmul.f32 %v618, %v618
      %v887 = vmul.f32 %v621, %v621
      %v888 = vmul.f32 %v626, %v626
      %v889 = vmul.f32 %v629, %v629
      %v890 = vmul.f32 %v634, %v634
      %v891 = vmul.f32 %v637, %v637
      %v892 = vmul.f32 %v642, %v642
      %v893 = vmul.f32 %v645, %v645
      %v894 = vmul.f32 %v650, %v650
      %v895 = vmul.f32 %v653, %v653
      %v896 = vmul.f32 %v658, %v658
      %v897 = vmul.f32 %v661, %v661
      %v898 = vmul.f32 %v666, %v666
      %v899 = vmul.f32 %v669, %v669
      %v900 = vmul.f32 %v674, %v674
      %v901 = vmul.f32 %v677, %v677
      %v902 = vmul.f32 %v682, %v682
      %v903 = vmul.f32 %v685, %v685
      %v904 = vmul.f32 %v690, %v690
      %v905 = vmul.f32 %v693, %v693
      %v906 = vmul.f32 %v698, %v698
      %v907 = vmul.f32 %v701, %v701
      %v908 = vmul.f32 %v706, %v706
      %v909 = vmul.f32 %v709, %v709
      %v910 = vsel %vm712, %v862, 0.0
      %v911 = vsel %vm712, %v863, 0.0
      %v912 = vadd.f32 %v910, %v911
      %v913 = vsel %vm712, %v864, 0.0
      %v914 = vadd.f32 %v912, %v913
      %v915 = vsel %vm712, %v865, 0.0
      %v916 = vadd.f32 %v914, %v915
      %v917 = vsel %vm712, %v866, 0.0
      %v918 = vadd.f32 %v916, %v917
      %v919 = vsel %vm712, %v867, 0.0
      %v920 = vadd.f32 %v918, %v919
      %v921 = vsel %vm712, %v868, 0.0
      %v922 = vadd.f32 %v920, %v921
      %v923 = vsel %vm712, %v869, 0.0
      %v924 = vadd.f32 %v922, %v923
      %v925 = vsel %vm712, %v870, 0.0
      %v926 = vadd.f32 %v924, %v925
      %v927 = vsel %vm712, %v871, 0.0
      %v928 = vadd.f32 %v926, %v927
      %v929 = vsel %vm712, %v872, 0.0
      %v930 = vadd.f32 %v928, %v929
      %v931 = vsel %vm712, %v873, 0.0
      %v932 = vadd.f32 %v930, %v931
      %v933 = vsel %vm712, %v874, 0.0
      %v934 = vadd.f32 %v932, %v933
      %v935 = vsel %vm712, %v875, 0.0
      %v936 = vadd.f32 %v934, %v935
      %v937 = vsel %vm712, %v876, 0.0
      %v938 = vadd.f32 %v936, %v937
      %v939 = vsel %vm712, %v877, 0.0
      %v940 = vadd.f32 %v938, %v939
      %v941 = vsel %vm712, %v878, 0.0
      %v942 = vadd.f32 %v940, %v941
      %v943 = vsel %vm712, %v879, 0.0
      %v944 = vadd.f32 %v942, %v943
      %v945 = vsel %vm712, %v880, 0.0
      %v946 = vadd.f32 %v944, %v945
      %v947 = vsel %vm712, %v881, 0.0
      %v948 = vadd.f32 %v946, %v947
      %v949 = vsel %vm712, %v882, 0.0
      %v950 = vadd.f32 %v948, %v949
      %v951 = vsel %vm712, %v883, 0.0
      %v952 = vadd.f32 %v950, %v951
      %v953 = vsel %vm712, %v884, 0.0
      %v954 = vadd.f32 %v952, %v953
      %v955 = vsel %vm712, %v885, 0.0
      %v956 = vadd.f32 %v954, %v955
      %v957 = vsel %vm712, %v886, 0.0
      %v958 = vadd.f32 %v956, %v957
      %v959 = vsel %vm712, %v887, 0.0
      %v960 = vadd.f32 %v958, %v959
      %v961 = vsel %vm712, %v888, 0.0
      %v962 = vadd.f32 %v960, %v961
      %v963 = vsel %vm712, %v889, 0.0
      %v964 = vadd.f32 %v962, %v963
      %v965 = vsel %vm712, %v890, 0.0
      %v966 = vadd.f32 %v964, %v965
      %v967 = vsel %vm712, %v891, 0.0
      %v968 = vadd.f32 %v966, %v967
      %v969 = vsel %vm712, %v892, 0.0
      %v970 = vadd.f32 %v968, %v969
      %v971 = vsel %vm712, %v893, 0.0
      %v972 = vadd.f32 %v970, %v971
      %v973 = vsel %vm712, %v894, 0.0
      %v974 = vadd.f32 %v972, %v973
      %v975 = vsel %vm712, %v895, 0.0
      %v976 = vadd.f32 %v974, %v975
      %v977 = vsel %vm712, %v896, 0.0
      %v978 = vadd.f32 %v976, %v977
      %v979 = vsel %vm712, %v897, 0.0
      %v980 = vadd.f32 %v978, %v979
      %v981 = vsel %vm712, %v898, 0.0
      %v982 = vadd.f32 %v980, %v981
      %v983 = vsel %vm712, %v899, 0.0
      %v984 = vadd.f32 %v982, %v983
      %v985 = vsel %vm712, %v900, 0.0
      %v986 = vadd.f32 %v984, %v985
      %v987 = vsel %vm712, %v901, 0.0
      %v988 = vadd.f32 %v986, %v987
      %v989 = vsel %vm712, %v902, 0.0
      %v990 = vadd.f32 %v988, %v989
      %v991 = vsel %vm712, %v903, 0.0
      %v992 = vadd.f32 %v990, %v991
      %v993 = vsel %vm712, %v904, 0.0
      %v994 = vadd.f32 %v992, %v993
      %v995 = vsel %vm712, %v905, 0.0
      %v996 = vadd.f32 %v994, %v995
      %v997 = vsel %vm712, %v906, 0.0
      %v998 = vadd.f32 %v996, %v997
      %v999 = vsel %vm712, %v907, 0.0
      %v1000 = vadd.f32 %v998, %v999
      %v1001 = vsel %vm712, %v908, 0.0
      %v1002 = vadd.f32 %v1000, %v1001
      %v1003 = vsel %vm712, %v909, 0.0
      %v1004 = vadd.f32 %v1002, %v1003
      %v1005 = vrot.slane %v1004, 4
      %v1006 = vadd.f32 %v1004, %v1005
      %v1007 = vrot.slane %v1006, 2
      %v1008 = vadd.f32 %v1006, %v1007
      %v1009 = vrot.slane %v1008, 1
      %v1010 = vadd.f32 %v1008, %v1009
      %vm1011 = vcmask 1040384
      %v1012 = vsel %vm1011, %v861, %v1010
      %vm1013 = vcmask 123904
      %1014 = vst.msk [vmem:[%s229] sm:$0x3] %vm1013, %v1012
      %s1015 = smul.u32 48, %s19
      %p1016 = scmp.lt.s32.totalorder %s1015, 143
      %s1017 = scalar_select %p1016, %s1015, 143
      %p1018 = scmp.lt.s32.totalorder %s20, 0
      %s1019 = scalar_select %p1018, %s20, 0
      %s1020 = sadd.s32 %s1019, %s1017
      %s1021 = smul.addr %s1020, 8
      %s1022 = scalar_lea.vmem %s2, %s1021
      %p1023 = scmp.lt.s32.totalorder %s19, 2
      %s1024 = scalar_select %p1023, %s19, 2
      %p1025 = scmp.lt.s32.totalorder %s20, 0
      %s1026 = scalar_select %p1025, %s20, 0
      %s1027 = sadd.s32 %s1026, %s1024
      %s1028 = smul.addr %s1027, 2
      %s1029 = scalar_lea.vmem %s3, %s1028
      // Predicated region
      $region29: #{stage2_d_forward.19} parent=27 // pred_check
        %p1030 = pneg %p99
      $region30: #{stage2_d_forward.19} parent=27 // pred_check_branch
        %1032 = sbr.rel (%p1030) target = $region32
      $region31: #{stage2_d_forward.19} parent=27 // pred_region
        %s1033 = smul.u32 48, %s19
      $region32: #{stage2_d_forward.19} parent=27 // pred_fallthru
        _
      // Predicated region
      $region33: #{stage2_d_forward.19} parent=27 // pred_check
        %p1034 = pneg %p127
      $region34: #{stage2_d_forward.19} parent=27 // pred_check_branch
        %1036 = sbr.rel (%p1034) target = $region36
      $region35: #{stage2_d_forward.19} parent=27 // pred_region
        _
      $region36: #{stage2_d_forward.19} parent=27 // pred_fallthru
        _
    $region28: #{stage2_d_forward.19} parent=5 // pred_fallthru
      _
    %p1037 = scmp.le.s32.totalorder 2, %s10
    // Predicated region
    $region37: #{stage2_d_forward.19} parent=5 // pred_check
      %p1038 = pneg %p1037
    $region38: #{stage2_d_forward.19} parent=5 // pred_check_branch
      %1040 = sbr.rel (%p1038) target = $region40
    $region39: #{stage2_d_forward.19} parent=5 // pred_region
      %s1041 = ssub.s32 %s10, 2
      // Predicated region
      $region41: #{stage2_d_forward.19} parent=39 // pred_check
        %p1042 = pneg %p105
      $region42: #{stage2_d_forward.19} parent=39 // pred_check_branch
        %1044 = sbr.rel (%p1042) target = $region44
      $region43: #{stage2_d_forward.19} parent=39 // pred_region
        %s1045 = smul.u32 48, %s21
        %p1046 = scmp.lt.s32.totalorder %s1045, 143
        %s1047 = scalar_select %p1046, %s1045, 143
        %p1048 = scmp.lt.s32.totalorder %s22, 0
        %s1049 = scalar_select %p1048, %s22, 0
        %s1050 = sadd.s32 %s1049, %s1047
        %s1051 = smul.addr %s1050, 8
        %s1052 = scalar_lea.vmem %s2, %s1051
      $region44: #{stage2_d_forward.19} parent=39 // pred_fallthru
        _
      // Predicated region
      $region45: #{stage2_d_forward.19} parent=39 // pred_check
        %p1053 = pneg %p133
      $region46: #{stage2_d_forward.19} parent=39 // pred_check_branch
        %1055 = sbr.rel (%p1053) target = $region48
      $region47: #{stage2_d_forward.19} parent=39 // pred_region
        %p1056 = scmp.lt.s32.totalorder %s21, 2
        %s1057 = scalar_select %p1056, %s21, 2
        %p1058 = scmp.lt.s32.totalorder %s22, 0
        %s1059 = scalar_select %p1058, %s22, 0
        %s1060 = sadd.s32 %s1059, %s1057
        %s1061 = smul.addr %s1060, 2
        %s1062 = scalar_lea.vmem %s3, %s1061
      $region48: #{stage2_d_forward.19} parent=39 // pred_fallthru
        _
    $region40: #{stage2_d_forward.19} parent=5 // pred_fallthru
      _
  $region6: #{stage2_d_forward.19} parent=0 // loop_footer
    %s14 = sadd.s32 1, %s10
  $region7: #{stage2_d_forward.19} parent=0 // loop_footer_branch
    %9 = sbr.rel target = $region3
  $region8: #{stage2_d_forward.19} parent=0 // loop_exit
    _

// kernel: stage2_d_forward.20
$region0: #{stage2_d_forward.20}
  #allocation0 [shape = 'u32[]', space=smem, size = 0x4, offset = 0x4, fixed_abs, tag = 'smem constant byte address 0x4 - core index']
  #allocation1 [shape = 'u32[144,128]{1,0:T(1,128)}', space=vmem, size = 0x12000, scoped, tag = 'internal scratch']
  %s0 = inlined_call_operand.vmem [shape: f32[1152,16], index: 0, kind: input, shape index: {}]
  %s1 = inlined_call_operand.vmem [shape: f32[1,16], index: 1, kind: input, shape index: {}]
  %s2 = inlined_call_operand.vmem [shape: f32[1,16], index: 2, kind: input, shape index: {}]
  %s3 = inlined_call_operand.vmem [shape: bf16[1152,16], index: 3, kind: output, shape index: {}]
  %s4 = sld [smem:[#allocation0]]
  $region45: #{stage2_d_forward.20} parent=0
    _
  %s6 = ssub.s32 1, %s4
  %s7 = scalar_select 0, %s6, %s4
  loop: start=0, step=1, limit=4
  $region2: #{stage2_d_forward.20} parent=0 // loop_pre_header
    _
  $region3: #{stage2_d_forward.20} parent=0 // loop_header
    %s9 = sphi 0, %s13
    %p10 = scmp.ge.s32.totalorder %s9, 4
    %s19 = sphi 0, %s21
    %s22 = sphi 0, %s19
    %s23 = sphi 0, %s22
    %s39 = sphi 0, %s23
    %s43 = sphi 0, %s43
    %s45 = sphi 0, %s43
    %s46 = sphi 0, %s45
    %s60 = sphi 0, %s46
    %s64 = sphi 0, %s64
    %s66 = sphi 0, %s64
    %s67 = sphi 0, %s66
    %s81 = sphi 0, %s67
    %s87 = sphi 0, %s89
    %s90 = sphi 0, %s87
    %s91 = sphi 0, %s90
    %s107 = sphi 0, %s91
  $region4: #{stage2_d_forward.20} parent=0 // loop_header_branch
    %12 = sbr.rel (%p10) target = $region8
  $region5: #{stage2_d_forward.20} parent=0 // loop_body
    %s14 = ssub.s32 %s9, 1
    %s15 = ssub.s32 %s9, 2
    %s16 = sadd.s32 %s9, 1
    %s17 = ssub.s32 %s9, %s16
    %p18 = scmp.eq.s32.totalorder %s17, 0
    %s20 = sadd.s32 %s19, 1
    %s21 = scalar_select %p18, %s19, %s20
    %p24 = pneg %p18
    %p25 = scmp.eq.s32.totalorder %s9, 1
    %p26 = por %p24, %p25
    %p27 = scmp.ne.s32.totalorder %s19, %s22
    %p28 = scmp.eq.s32.totalorder %s9, 0
    %p29 = por %p27, %p28
    %p30 = scmp.ne.s32.totalorder %s19, %s22
    %p31 = scmp.eq.s32.totalorder %s14, 1
    %p32 = por %p30, %p31
    %p33 = scmp.ne.s32.totalorder %s22, %s23
    %p34 = scmp.eq.s32.totalorder %s14, 0
    %p35 = por %p33, %p34
    %p36 = scmp.ne.s32.totalorder %s22, %s23
    %p37 = scmp.eq.s32.totalorder %s15, 1
    %p38 = por %p36, %p37
    %p40 = scmp.ne.s32.totalorder %s23, %s39
    %p41 = scmp.eq.s32.totalorder %s15, 0
    %p42 = por %p40, %p41
    %s44 = sadd.s32 %s43, 1
    %p47 = scmp.eq.s32.totalorder %s9, 1
    %p48 = scmp.ne.s32.totalorder %s43, %s45
    %p49 = scmp.eq.s32.totalorder %s9, 0
    %p50 = por %p48, %p49
    %p51 = scmp.ne.s32.totalorder %s43, %s45
    %p52 = scmp.eq.s32.totalorder %s14, 1
    %p53 = por %p51, %p52
    %p54 = scmp.ne.s32.totalorder %s45, %s46
    %p55 = scmp.eq.s32.totalorder %s14, 0
    %p56 = por %p54, %p55
    %p57 = scmp.ne.s32.totalorder %s45, %s46
    %p58 = scmp.eq.s32.totalorder %s15, 1
    %p59 = por %p57, %p58
    %p61 = scmp.ne.s32.totalorder %s46, %s60
    %p62 = scmp.eq.s32.totalorder %s15, 0
    %p63 = por %p61, %p62
    %s65 = sadd.s32 %s64, 1
    %p68 = scmp.eq.s32.totalorder %s9, 1
    %p69 = scmp.ne.s32.totalorder %s64, %s66
    %p70 = scmp.eq.s32.totalorder %s9, 0
    %p71 = por %p69, %p70
    %p72 = scmp.ne.s32.totalorder %s64, %s66
    %p73 = scmp.eq.s32.totalorder %s14, 1
    %p74 = por %p72, %p73
    %p75 = scmp.ne.s32.totalorder %s66, %s67
    %p76 = scmp.eq.s32.totalorder %s14, 0
    %p77 = por %p75, %p76
    %p78 = scmp.ne.s32.totalorder %s66, %s67
    %p79 = scmp.eq.s32.totalorder %s15, 1
    %p80 = por %p78, %p79
    %p82 = scmp.ne.s32.totalorder %s67, %s81
    %p83 = scmp.eq.s32.totalorder %s15, 0
    %p84 = por %p82, %p83
    %s85 = ssub.s32 %s9, %s16
    %p86 = scmp.eq.s32.totalorder %s85, 0
    %s88 = sadd.s32 %s87, 1
    %s89 = scalar_select %p86, %s87, %s88
    %p92 = pneg %p86
    %p93 = scmp.eq.s32.totalorder %s9, 1
    %p94 = por %p92, %p93
    %p95 = scmp.ne.s32.totalorder %s87, %s90
    %p96 = scmp.eq.s32.totalorder %s9, 0
    %p97 = por %p95, %p96
    %p98 = scmp.ne.s32.totalorder %s87, %s90
    %p99 = scmp.eq.s32.totalorder %s14, 1
    %p100 = por %p98, %p99
    %p101 = scmp.ne.s32.totalorder %s90, %s91
    %p102 = scmp.eq.s32.totalorder %s14, 0
    %p103 = por %p101, %p102
    %p104 = scmp.ne.s32.totalorder %s90, %s91
    %p105 = scmp.eq.s32.totalorder %s15, 1
    %p106 = por %p104, %p105
    %p108 = scmp.ne.s32.totalorder %s91, %s107
    %p109 = scmp.eq.s32.totalorder %s15, 0
    %p110 = por %p108, %p109
    %p111 = scmp.le.s32.totalorder 1, %s9
    %p112 = scmp.lt.s32.totalorder %s9, 3
    %p113 = pnand %p111, %p112
    %p114 = pneg %p113
    // Predicated region
    $region9: #{stage2_d_forward.20} parent=5 // pred_check
      _
    $region10: #{stage2_d_forward.20} parent=5 // pred_check_branch
      %116 = sbr.rel (%p113) target = $region12
    $region11: #{stage2_d_forward.20} parent=5 // pred_region
      %s117 = ssub.s32 %s9, 1
      // Predicated region
      $region13: #{stage2_d_forward.20} parent=11 // pred_check
        %p118 = pneg %p56
      $region14: #{stage2_d_forward.20} parent=11 // pred_check_branch
        %120 = sbr.rel (%p118) target = $region16
      $region15: #{stage2_d_forward.20} parent=11 // pred_region
        _
      $region16: #{stage2_d_forward.20} parent=11 // pred_fallthru
        _
      // Predicated region
      $region17: #{stage2_d_forward.20} parent=11 // pred_check
        %p121 = pneg %p77
      $region18: #{stage2_d_forward.20} parent=11 // pred_check_branch
        %123 = sbr.rel (%p121) target = $region20
      $region19: #{stage2_d_forward.20} parent=11 // pred_region
        _
      $region20: #{stage2_d_forward.20} parent=11 // pred_fallthru
        _
    $region12: #{stage2_d_forward.20} parent=5 // pred_fallthru
      _
    %p124 = scmp.lt.s32.totalorder %s9, 2
    // Predicated region
    $region21: #{stage2_d_forward.20} parent=5 // pred_check
      %p125 = pneg %p124
    $region22: #{stage2_d_forward.20} parent=5 // pred_check_branch
      %127 = sbr.rel (%p125) target = $region24
    $region23: #{stage2_d_forward.20} parent=5 // pred_region
      // Predicated region
      $region25: #{stage2_d_forward.20} parent=23 // pred_check
        %p128 = pneg %p29
      $region26: #{stage2_d_forward.20} parent=23 // pred_check_branch
        %130 = sbr.rel (%p128) target = $region28
      $region27: #{stage2_d_forward.20} parent=23 // pred_region
        %s131 = smul.u32 72, %s9
        %p132 = scmp.lt.s32.totalorder %s131, 143
        %s133 = scalar_select %p132, %s131, 143
        %s134 = smul.addr %s133, 8
        %s135 = scalar_lea.vmem %s0, %s134
        %s136 = smul.u32 72, %s9
      $region28: #{stage2_d_forward.20} parent=23 // pred_fallthru
        _
    $region24: #{stage2_d_forward.20} parent=5 // pred_fallthru
      _
    %p137 = scmp.le.s32.totalorder 1, %s9
    %p138 = scmp.lt.s32.totalorder %s9, 3
    %p139 = pnand %p137, %p138
    %p140 = pneg %p139
    // Predicated region
    $region29: #{stage2_d_forward.20} parent=5 // pred_check
      _
    $region30: #{stage2_d_forward.20} parent=5 // pred_check_branch
      %142 = sbr.rel (%p139) target = $region32
    $region31: #{stage2_d_forward.20} parent=5 // pred_region
      %s143 = ssub.s32 %s9, 1
      %s144 = smul.u32 72, %s14
      %p145 = scmp.lt.s32.totalorder %s144, 143
      %s146 = scalar_select %p145, %s144, 143
      %s147 = smul.addr %s146, 8
      %s148 = scalar_lea.vmem %s0, %s147
      %p149 = pneg %p35
      %p150 = pneg %p32
      %p151 = pneg %p56
      %p152 = pneg %p53
      %p153 = pneg %p77
      %p154 = pneg %p74
      %p155 = pneg %p103
      %p156 = pneg %p100
      %s157 = smul.u32 72, %s14
      %p158 = scmp.lt.s32.totalorder %s157, 143
      %s159 = scalar_select %p158, %s157, 143
      %s160 = smul.addr %s159, 4
      %s161 = scalar_lea.vmem %s3, %s160
      %s162 = smul.u32 72, %s14
      %p163 = scmp.lt.s32.totalorder %s162, 143
      %s164 = scalar_select %p163, %s162, 143
      %s165 = smul.addr %s164, 8
      %s166 = scalar_lea.vmem %s0, %s165
      %s167 = smul.u32 72, %s14
      %s168 = smul.u32 72, %s14
      %p169 = scmp.lt.s32.totalorder %s168, 143
      %s170 = scalar_select %p169, %s168, 143
      %s171 = smul.addr %s170, 4
      %s172 = scalar_lea.vmem %s3, %s171
      %s173 = smul.u32 72, %s14
      %v174 = vld [vmem:[%s166] sm:$0xff]
      %v175 = vld [vmem:[%s166 + $0x8] sm:$0xff]
      %v176 = vld [vmem:[%s166 + $0x10] sm:$0xff]
      %v177 = vld [vmem:[%s166 + $0x18] sm:$0xff]
      %v178 = vld [vmem:[%s166 + $0x20] sm:$0xff]
      %v179 = vld [vmem:[%s166 + $0x28] sm:$0xff]
      %v180 = vld [vmem:[%s166 + $0x30] sm:$0xff]
      %v181 = vld [vmem:[%s166 + $0x38] sm:$0xff]
      %v182 = vld [vmem:[%s166 + $0x40] sm:$0xff]
      %v183 = vld [vmem:[%s166 + $0x48] sm:$0xff]
      %v184 = vld [vmem:[%s166 + $0x50] sm:$0xff]
      %v185 = vld [vmem:[%s166 + $0x58] sm:$0xff]
      %v186 = vld [vmem:[%s166 + $0x60] sm:$0xff]
      %v187 = vld [vmem:[%s166 + $0x68] sm:$0xff]
      %v188 = vld [vmem:[%s166 + $0x70] sm:$0xff]
      %v189 = vld [vmem:[%s166 + $0x78] sm:$0xff]
      %v190 = vld [vmem:[%s166 + $0x80] sm:$0xff]
      %v191 = vld [vmem:[%s166 + $0x88] sm:$0xff]
      %v192 = vld [vmem:[%s166 + $0x90] sm:$0xff]
      %v193 = vld [vmem:[%s166 + $0x98] sm:$0xff]
      %v194 = vld [vmem:[%s166 + $0xa0] sm:$0xff]
      %v195 = vld [vmem:[%s166 + $0xa8] sm:$0xff]
      %v196 = vld [vmem:[%s166 + $0xb0] sm:$0xff]
      %v197 = vld [vmem:[%s166 + $0xb8] sm:$0xff]
      %v198 = vld [vmem:[%s166 + $0xc0] sm:$0xff]
      %v199 = vld [vmem:[%s166 + $0xc8] sm:$0xff]
      %v200 = vld [vmem:[%s166 + $0xd0] sm:$0xff]
      %v201 = vld [vmem:[%s166 + $0xd8] sm:$0xff]
      %v202 = vld [vmem:[%s166 + $0xe0] sm:$0xff]
      %v203 = vld [vmem:[%s166 + $0xe8] sm:$0xff]
      %v204 = vld [vmem:[%s166 + $0xf0] sm:$0xff]
      %v205 = vld [vmem:[%s166 + $0xf8] sm:$0xff]
      %v206 = vld [vmem:[%s166 + $0x100] sm:$0xff]
      %v207 = vld [vmem:[%s166 + $0x108] sm:$0xff]
      %v208 = vld [vmem:[%s166 + $0x110] sm:$0xff]
      %v209 = vld [vmem:[%s166 + $0x118] sm:$0xff]
      %v210 = vld [vmem:[%s166 + $0x120] sm:$0xff]
      %v211 = vld [vmem:[%s166 + $0x128] sm:$0xff]
      %v212 = vld [vmem:[%s166 + $0x130] sm:$0xff]
      %v213 = vld [vmem:[%s166 + $0x138] sm:$0xff]
      %v214 = vld [vmem:[%s166 + $0x140] sm:$0xff]
      %v215 = vld [vmem:[%s166 + $0x148] sm:$0xff]
      %v216 = vld [vmem:[%s166 + $0x150] sm:$0xff]
      %v217 = vld [vmem:[%s166 + $0x158] sm:$0xff]
      %v218 = vld [vmem:[%s166 + $0x160] sm:$0xff]
      %v219 = vld [vmem:[%s166 + $0x168] sm:$0xff]
      %v220 = vld [vmem:[%s166 + $0x170] sm:$0xff]
      %v221 = vld [vmem:[%s166 + $0x178] sm:$0xff]
      %v222 = vld [vmem:[%s166 + $0x180] sm:$0xff]
      %v223 = vld [vmem:[%s166 + $0x188] sm:$0xff]
      %v224 = vld [vmem:[%s166 + $0x190] sm:$0xff]
      %v225 = vld [vmem:[%s166 + $0x198] sm:$0xff]
      %v226 = vld [vmem:[%s166 + $0x1a0] sm:$0xff]
      %v227 = vld [vmem:[%s166 + $0x1a8] sm:$0xff]
      %v228 = vld [vmem:[%s166 + $0x1b0] sm:$0xff]
      %v229 = vld [vmem:[%s166 + $0x1b8] sm:$0xff]
      %v230 = vld [vmem:[%s166 + $0x1c0] sm:$0xff]
      %v231 = vld [vmem:[%s166 + $0x1c8] sm:$0xff]
      %v232 = vld [vmem:[%s166 + $0x1d0] sm:$0xff]
      %v233 = vld [vmem:[%s166 + $0x1d8] sm:$0xff]
      %v234 = vld [vmem:[%s166 + $0x1e0] sm:$0xff]
      %v235 = vld [vmem:[%s166 + $0x1e8] sm:$0xff]
      %v236 = vld [vmem:[%s166 + $0x1f0] sm:$0xff]
      %v237 = vld [vmem:[%s166 + $0x1f8] sm:$0xff]
      %v238 = vld [vmem:[%s166 + $0x200] sm:$0xff]
      %v239 = vld [vmem:[%s166 + $0x208] sm:$0xff]
      %v240 = vld [vmem:[%s166 + $0x210] sm:$0xff]
      %v241 = vld [vmem:[%s166 + $0x218] sm:$0xff]
      %v242 = vld [vmem:[%s166 + $0x220] sm:$0xff]
      %v243 = vld [vmem:[%s166 + $0x228] sm:$0xff]
      %v244 = vld [vmem:[%s166 + $0x230] sm:$0xff]
      %v245 = vld [vmem:[%s166 + $0x238] sm:$0xff]
      %v246 = vld [vmem:[%s1] sm:$0x1]
      %v248 = vlaneseq
      %v249 = vshrl.u32 %v248, 7
      %v250 = vsub.s32 0, %v249
      %v251 = vrot.slane %v246, %v250
      %v253 = vmul.f32 %v174, %v251
      %v254 = vmul.f32 %v175, %v251
      %v255 = vmul.f32 %v176, %v251
      %v256 = vmul.f32 %v177, %v251
      %v257 = vmul.f32 %v178, %v251
      %v258 = vmul.f32 %v179, %v251
      %v259 = vmul.f32 %v180, %v251
      %v260 = vmul.f32 %v181, %v251
      %v261 = vmul.f32 %v182, %v251
      %v262 = vmul.f32 %v183, %v251
      %v263 = vmul.f32 %v184, %v251
      %v264 = vmul.f32 %v185, %v251
      %v265 = vmul.f32 %v186, %v251
      %v266 = vmul.f32 %v187, %v251
      %v267 = vmul.f32 %v188, %v251
      %v268 = vmul.f32 %v189, %v251
      %v269 = vmul.f32 %v190, %v251
      %v270 = vmul.f32 %v191, %v251
      %v271 = vmul.f32 %v192, %v251
      %v272 = vmul.f32 %v193, %v251
      %v273 = vmul.f32 %v194, %v251
      %v274 = vmul.f32 %v195, %v251
      %v275 = vmul.f32 %v196, %v251
      %v276 = vmul.f32 %v197, %v251
      %v277 = vmul.f32 %v198, %v251
      %v278 = vmul.f32 %v199, %v251
      %v279 = vmul.f32 %v200, %v251
      %v280 = vmul.f32 %v201, %v251
      %v281 = vmul.f32 %v202, %v251
      %v282 = vmul.f32 %v203, %v251
      %v283 = vmul.f32 %v204, %v251
      %v284 = vmul.f32 %v205, %v251
      %v285 = vmul.f32 %v206, %v251
      %v286 = vmul.f32 %v207, %v251
      %v287 = vmul.f32 %v208, %v251
      %v288 = vmul.f32 %v209, %v251
      %v289 = vmul.f32 %v210, %v251
      %v290 = vmul.f32 %v211, %v251
      %v291 = vmul.f32 %v212, %v251
      %v292 = vmul.f32 %v213, %v251
      %v293 = vmul.f32 %v214, %v251
      %v294 = vmul.f32 %v215, %v251
      %v295 = vmul.f32 %v216, %v251
      %v296 = vmul.f32 %v217, %v251
      %v297 = vmul.f32 %v218, %v251
      %v298 = vmul.f32 %v219, %v251
      %v299 = vmul.f32 %v220, %v251
      %v300 = vmul.f32 %v221, %v251
      %v301 = vmul.f32 %v222, %v251
      %v302 = vmul.f32 %v223, %v251
      %v303 = vmul.f32 %v224, %v251
      %v304 = vmul.f32 %v225, %v251
      %v305 = vmul.f32 %v226, %v251
      %v306 = vmul.f32 %v227, %v251
      %v307 = vmul.f32 %v228, %v251
      %v308 = vmul.f32 %v229, %v251
      %v309 = vmul.f32 %v230, %v251
      %v310 = vmul.f32 %v231, %v251
      %v311 = vmul.f32 %v232, %v251
      %v312 = vmul.f32 %v233, %v251
      %v313 = vmul.f32 %v234, %v251
      %v314 = vmul.f32 %v235, %v251
      %v315 = vmul.f32 %v236, %v251
      %v316 = vmul.f32 %v237, %v251
      %v317 = vmul.f32 %v238, %v251
      %v318 = vmul.f32 %v239, %v251
      %v319 = vmul.f32 %v240, %v251
      %v320 = vmul.f32 %v241, %v251
      %v321 = vmul.f32 %v242, %v251
      %v322 = vmul.f32 %v243, %v251
      %v323 = vmul.f32 %v244, %v251
      %v324 = vmul.f32 %v245, %v251
      %v325 = vld [vmem:[%s2] sm:$0x1]
      %v327 = vlaneseq
      %v328 = vshrl.u32 %v327, 7
      %v329 = vsub.s32 0, %v328
      %v330 = vrot.slane %v325, %v329
      %v332 = vadd.f32 %v253, %v330
      %v333 = vadd.f32 %v254, %v330
      %v334 = vadd.f32 %v255, %v330
      %v335 = vadd.f32 %v256, %v330
      %v336 = vadd.f32 %v257, %v330
      %v337 = vadd.f32 %v258, %v330
      %v338 = vadd.f32 %v259, %v330
      %v339 = vadd.f32 %v260, %v330
      %v340 = vadd.f32 %v261, %v330
      %v341 = vadd.f32 %v262, %v330
      %v342 = vadd.f32 %v263, %v330
      %v343 = vadd.f32 %v264, %v330
      %v344 = vadd.f32 %v265, %v330
      %v345 = vadd.f32 %v266, %v330
      %v346 = vadd.f32 %v267, %v330
      %v347 = vadd.f32 %v268, %v330
      %v348 = vadd.f32 %v269, %v330
      %v349 = vadd.f32 %v270, %v330
      %v350 = vadd.f32 %v271, %v330
      %v351 = vadd.f32 %v272, %v330
      %v352 = vadd.f32 %v273, %v330
      %v353 = vadd.f32 %v274, %v330
      %v354 = vadd.f32 %v275, %v330
      %v355 = vadd.f32 %v276, %v330
      %v356 = vadd.f32 %v277, %v330
      %v357 = vadd.f32 %v278, %v330
      %v358 = vadd.f32 %v279, %v330
      %v359 = vadd.f32 %v280, %v330
      %v360 = vadd.f32 %v281, %v330
      %v361 = vadd.f32 %v282, %v330
      %v362 = vadd.f32 %v283, %v330
      %v363 = vadd.f32 %v284, %v330
      %v364 = vadd.f32 %v285, %v330
      %v365 = vadd.f32 %v286, %v330
      %v366 = vadd.f32 %v287, %v330
      %v367 = vadd.f32 %v288, %v330
      %v368 = vadd.f32 %v289, %v330
      %v369 = vadd.f32 %v290, %v330
      %v370 = vadd.f32 %v291, %v330
      %v371 = vadd.f32 %v292, %v330
      %v372 = vadd.f32 %v293, %v330
      %v373 = vadd.f32 %v294, %v330
      %v374 = vadd.f32 %v295, %v330
      %v375 = vadd.f32 %v296, %v330
      %v376 = vadd.f32 %v297, %v330
      %v377 = vadd.f32 %v298, %v330
      %v378 = vadd.f32 %v299, %v330
      %v379 = vadd.f32 %v300, %v330
      %v380 = vadd.f32 %v301, %v330
      %v381 = vadd.f32 %v302, %v330
      %v382 = vadd.f32 %v303, %v330
      %v383 = vadd.f32 %v304, %v330
      %v384 = vadd.f32 %v305, %v330
      %v385 = vadd.f32 %v306, %v330
      %v386 = vadd.f32 %v307, %v330
      %v387 = vadd.f32 %v308, %v330
      %v388 = vadd.f32 %v309, %v330
      %v389 = vadd.f32 %v310, %v330
      %v390 = vadd.f32 %v311, %v330
      %v391 = vadd.f32 %v312, %v330
      %v392 = vadd.f32 %v313, %v330
      %v393 = vadd.f32 %v314, %v330
      %v394 = vadd.f32 %v315, %v330
      %v395 = vadd.f32 %v316, %v330
      %v396 = vadd.f32 %v317, %v330
      %v397 = vadd.f32 %v318, %v330
      %v398 = vadd.f32 %v319, %v330
      %v399 = vadd.f32 %v320, %v330
      %v400 = vadd.f32 %v321, %v330
      %v401 = vadd.f32 %v322, %v330
      %v402 = vadd.f32 %v323, %v330
      %v403 = vadd.f32 %v324, %v330
      %vm404 = vcmp.ge.f32.partialorder %v332, 0.0
      %vm405 = vcmp.ge.f32.partialorder %v333, 0.0
      %vm406 = vcmp.ge.f32.partialorder %v334, 0.0
      %vm407 = vcmp.ge.f32.partialorder %v335, 0.0
      %vm408 = vcmp.ge.f32.partialorder %v336, 0.0
      %vm409 = vcmp.ge.f32.partialorder %v337, 0.0
      %vm410 = vcmp.ge.f32.partialorder %v338, 0.0
      %vm411 = vcmp.ge.f32.partialorder %v339, 0.0
      %vm412 = vcmp.ge.f32.partialorder %v340, 0.0
      %vm413 = vcmp.ge.f32.partialorder %v341, 0.0
      %vm414 = vcmp.ge.f32.partialorder %v342, 0.0
      %vm415 = vcmp.ge.f32.partialorder %v343, 0.0
      %vm416 = vcmp.ge.f32.partialorder %v344, 0.0
      %vm417 = vcmp.ge.f32.partialorder %v345, 0.0
      %vm418 = vcmp.ge.f32.partialorder %v346, 0.0
      %vm419 = vcmp.ge.f32.partialorder %v347, 0.0
      %vm420 = vcmp.ge.f32.partialorder %v348, 0.0
      %vm421 = vcmp.ge.f32.partialorder %v349, 0.0
      %vm422 = vcmp.ge.f32.partialorder %v350, 0.0
      %vm423 = vcmp.ge.f32.partialorder %v351, 0.0
      %vm424 = vcmp.ge.f32.partialorder %v352, 0.0
      %vm425 = vcmp.ge.f32.partialorder %v353, 0.0
      %vm426 = vcmp.ge.f32.partialorder %v354, 0.0
      %vm427 = vcmp.ge.f32.partialorder %v355, 0.0
      %vm428 = vcmp.ge.f32.partialorder %v356, 0.0
      %vm429 = vcmp.ge.f32.partialorder %v357, 0.0
      %vm430 = vcmp.ge.f32.partialorder %v358, 0.0
      %vm431 = vcmp.ge.f32.partialorder %v359, 0.0
      %vm432 = vcmp.ge.f32.partialorder %v360, 0.0
      %vm433 = vcmp.ge.f32.partialorder %v361, 0.0
      %vm434 = vcmp.ge.f32.partialorder %v362, 0.0
      %vm435 = vcmp.ge.f32.partialorder %v363, 0.0
      %vm436 = vcmp.ge.f32.partialorder %v364, 0.0
      %vm437 = vcmp.ge.f32.partialorder %v365, 0.0
      %vm438 = vcmp.ge.f32.partialorder %v366, 0.0
      %vm439 = vcmp.ge.f32.partialorder %v367, 0.0
      %vm440 = vcmp.ge.f32.partialorder %v368, 0.0
      %vm441 = vcmp.ge.f32.partialorder %v369, 0.0
      %vm442 = vcmp.ge.f32.partialorder %v370, 0.0
      %vm443 = vcmp.ge.f32.partialorder %v371, 0.0
      %vm444 = vcmp.ge.f32.partialorder %v372, 0.0
      %vm445 = vcmp.ge.f32.partialorder %v373, 0.0
      %vm446 = vcmp.ge.f32.partialorder %v374, 0.0
      %vm447 = vcmp.ge.f32.partialorder %v375, 0.0
      %vm448 = vcmp.ge.f32.partialorder %v376, 0.0
      %vm449 = vcmp.ge.f32.partialorder %v377, 0.0
      %vm450 = vcmp.ge.f32.partialorder %v378, 0.0
      %vm451 = vcmp.ge.f32.partialorder %v379, 0.0
      %vm452 = vcmp.ge.f32.partialorder %v380, 0.0
      %vm453 = vcmp.ge.f32.partialorder %v381, 0.0
      %vm454 = vcmp.ge.f32.partialorder %v382, 0.0
      %vm455 = vcmp.ge.f32.partialorder %v383, 0.0
      %vm456 = vcmp.ge.f32.partialorder %v384, 0.0
      %vm457 = vcmp.ge.f32.partialorder %v385, 0.0
      %vm458 = vcmp.ge.f32.partialorder %v386, 0.0
      %vm459 = vcmp.ge.f32.partialorder %v387, 0.0
      %vm460 = vcmp.ge.f32.partialorder %v388, 0.0
      %vm461 = vcmp.ge.f32.partialorder %v389, 0.0
      %vm462 = vcmp.ge.f32.partialorder %v390, 0.0
      %vm463 = vcmp.ge.f32.partialorder %v391, 0.0
      %vm464 = vcmp.ge.f32.partialorder %v392, 0.0
      %vm465 = vcmp.ge.f32.partialorder %v393, 0.0
      %vm466 = vcmp.ge.f32.partialorder %v394, 0.0
      %vm467 = vcmp.ge.f32.partialorder %v395, 0.0
      %vm468 = vcmp.ge.f32.partialorder %v396, 0.0
      %vm469 = vcmp.ge.f32.partialorder %v397, 0.0
      %vm470 = vcmp.ge.f32.partialorder %v398, 0.0
      %vm471 = vcmp.ge.f32.partialorder %v399, 0.0
      %vm472 = vcmp.ge.f32.partialorder %v400, 0.0
      %vm473 = vcmp.ge.f32.partialorder %v401, 0.0
      %vm474 = vcmp.ge.f32.partialorder %v402, 0.0
      %vm475 = vcmp.ge.f32.partialorder %v403, 0.0
      %v476 = vmul.f32 %v332, 0.2
      %v477 = vmul.f32 %v333, 0.2
      %v478 = vmul.f32 %v334, 0.2
      %v479 = vmul.f32 %v335, 0.2
      %v480 = vmul.f32 %v336, 0.2
      %v481 = vmul.f32 %v337, 0.2
      %v482 = vmul.f32 %v338, 0.2
      %v483 = vmul.f32 %v339, 0.2
      %v484 = vmul.f32 %v340, 0.2
      %v485 = vmul.f32 %v341, 0.2
      %v486 = vmul.f32 %v342, 0.2
      %v487 = vmul.f32 %v343, 0.2
      %v488 = vmul.f32 %v344, 0.2
      %v489 = vmul.f32 %v345, 0.2
      %v490 = vmul.f32 %v346, 0.2
      %v491 = vmul.f32 %v347, 0.2
      %v492 = vmul.f32 %v348, 0.2
      %v493 = vmul.f32 %v349, 0.2
      %v494 = vmul.f32 %v350, 0.2
      %v495 = vmul.f32 %v351, 0.2
      %v496 = vmul.f32 %v352, 0.2
      %v497 = vmul.f32 %v353, 0.2
      %v498 = vmul.f32 %v354, 0.2
      %v499 = vmul.f32 %v355, 0.2
      %v500 = vmul.f32 %v356, 0.2
      %v501 = vmul.f32 %v357, 0.2
      %v502 = vmul.f32 %v358, 0.2
      %v503 = vmul.f32 %v359, 0.2
      %v504 = vmul.f32 %v360, 0.2
      %v505 = vmul.f32 %v361, 0.2
      %v506 = vmul.f32 %v362, 0.2
      %v507 = vmul.f32 %v363, 0.2
      %v508 = vmul.f32 %v364, 0.2
      %v509 = vmul.f32 %v365, 0.2
      %v510 = vmul.f32 %v366, 0.2
      %v511 = vmul.f32 %v367, 0.2
      %v512 = vmul.f32 %v368, 0.2
      %v513 = vmul.f32 %v369, 0.2
      %v514 = vmul.f32 %v370, 0.2
      %v515 = vmul.f32 %v371, 0.2
      %v516 = vmul.f32 %v372, 0.2
      %v517 = vmul.f32 %v373, 0.2
      %v518 = vmul.f32 %v374, 0.2
      %v519 = vmul.f32 %v375, 0.2
      %v520 = vmul.f32 %v376, 0.2
      %v521 = vmul.f32 %v377, 0.2
      %v522 = vmul.f32 %v378, 0.2
      %v523 = vmul.f32 %v379, 0.2
      %v524 = vmul.f32 %v380, 0.2
      %v525 = vmul.f32 %v381, 0.2
      %v526 = vmul.f32 %v382, 0.2
      %v527 = vmul.f32 %v383, 0.2
      %v528 = vmul.f32 %v384, 0.2
      %v529 = vmul.f32 %v385, 0.2
      %v530 = vmul.f32 %v386, 0.2
      %v531 = vmul.f32 %v387, 0.2
      %v532 = vmul.f32 %v388, 0.2
      %v533 = vmul.f32 %v389, 0.2
      %v534 = vmul.f32 %v390, 0.2
      %v535 = vmul.f32 %v391, 0.2
      %v536 = vmul.f32 %v392, 0.2
      %v537 = vmul.f32 %v393, 0.2
      %v538 = vmul.f32 %v394, 0.2
      %v539 = vmul.f32 %v395, 0.2
      %v540 = vmul.f32 %v396, 0.2
      %v541 = vmul.f32 %v397, 0.2
      %v542 = vmul.f32 %v398, 0.2
      %v543 = vmul.f32 %v399, 0.2
      %v544 = vmul.f32 %v400, 0.2
      %v545 = vmul.f32 %v401, 0.2
      %v546 = vmul.f32 %v402, 0.2
      %v547 = vmul.f32 %v403, 0.2
      %v548 = vsel %vm404, %v332, %v476
      %v549 = vsel %vm405, %v333, %v477
      %v550 = vsel %vm406, %v334, %v478
      %v551 = vsel %vm407, %v335, %v479
      %v552 = vsel %vm408, %v336, %v480
      %v553 = vsel %vm409, %v337, %v481
      %v554 = vsel %vm410, %v338, %v482
      %v555 = vsel %vm411, %v339, %v483
      %v556 = vsel %vm412, %v340, %v484
      %v557 = vsel %vm413, %v341, %v485
      %v558 = vsel %vm414, %v342, %v486
      %v559 = vsel %vm415, %v343, %v487
      %v560 = vsel %vm416, %v344, %v488
      %v561 = vsel %vm417, %v345, %v489
      %v562 = vsel %vm418, %v346, %v490
      %v563 = vsel %vm419, %v347, %v491
      %v564 = vsel %vm420, %v348, %v492
      %v565 = vsel %vm421, %v349, %v493
      %v566 = vsel %vm422, %v350, %v494
      %v567 = vsel %vm423, %v351, %v495
      %v568 = vsel %vm424, %v352, %v496
      %v569 = vsel %vm425, %v353, %v497
      %v570 = vsel %vm426, %v354, %v498
      %v571 = vsel %vm427, %v355, %v499
      %v572 = vsel %vm428, %v356, %v500
      %v573 = vsel %vm429, %v357, %v501
      %v574 = vsel %vm430, %v358, %v502
      %v575 = vsel %vm431, %v359, %v503
      %v576 = vsel %vm432, %v360, %v504
      %v577 = vsel %vm433, %v361, %v505
      %v578 = vsel %vm434, %v362, %v506
      %v579 = vsel %vm435, %v363, %v507
      %v580 = vsel %vm436, %v364, %v508
      %v581 = vsel %vm437, %v365, %v509
      %v582 = vsel %vm438, %v366, %v510
      %v583 = vsel %vm439, %v367, %v511
      %v584 = vsel %vm440, %v368, %v512
      %v585 = vsel %vm441, %v369, %v513
      %v586 = vsel %vm442, %v370, %v514
      %v587 = vsel %vm443, %v371, %v515
      %v588 = vsel %vm444, %v372, %v516
      %v589 = vsel %vm445, %v373, %v517
      %v590 = vsel %vm446, %v374, %v518
      %v591 = vsel %vm447, %v375, %v519
      %v592 = vsel %vm448, %v376, %v520
      %v593 = vsel %vm449, %v377, %v521
      %v594 = vsel %vm450, %v378, %v522
      %v595 = vsel %vm451, %v379, %v523
      %v596 = vsel %vm452, %v380, %v524
      %v597 = vsel %vm453, %v381, %v525
      %v598 = vsel %vm454, %v382, %v526
      %v599 = vsel %vm455, %v383, %v527
      %v600 = vsel %vm456, %v384, %v528
      %v601 = vsel %vm457, %v385, %v529
      %v602 = vsel %vm458, %v386, %v530
      %v603 = vsel %vm459, %v387, %v531
      %v604 = vsel %vm460, %v388, %v532
      %v605 = vsel %vm461, %v389, %v533
      %v606 = vsel %vm462, %v390, %v534
      %v607 = vsel %vm463, %v391, %v535
      %v608 = vsel %vm464, %v392, %v536
      %v609 = vsel %vm465, %v393, %v537
      %v610 = vsel %vm466, %v394, %v538
      %v611 = vsel %vm467, %v395, %v539
      %v612 = vsel %vm468, %v396, %v540
      %v613 = vsel %vm469, %v397, %v541
      %v614 = vsel %vm470, %v398, %v542
      %v615 = vsel %vm471, %v399, %v543
      %v616 = vsel %vm472, %v400, %v544
      %v617 = vsel %vm473, %v401, %v545
      %v618 = vsel %vm474, %v402, %v546
      %v619 = vsel %vm475, %v403, %v547
      %v620 = vpack.c.bf16 %v549, %v548
      %v621 = vpack.c.bf16 %v551, %v550
      %v622 = vpack.c.bf16 %v553, %v552
      %v623 = vpack.c.bf16 %v555, %v554
      %v624 = vpack.c.bf16 %v557, %v556
      %v625 = vpack.c.bf16 %v559, %v558
      %v626 = vpack.c.bf16 %v561, %v560
      %v627 = vpack.c.bf16 %v563, %v562
      %v628 = vpack.c.bf16 %v565, %v564
      %v629 = vpack.c.bf16 %v567, %v566
      %v630 = vpack.c.bf16 %v569, %v568
      %v631 = vpack.c.bf16 %v571, %v570
      %v632 = vpack.c.bf16 %v573, %v572
      %v633 = vpack.c.bf16 %v575, %v574
      %v634 = vpack.c.bf16 %v577, %v576
      %v635 = vpack.c.bf16 %v579, %v578
      %v636 = vpack.c.bf16 %v581, %v580
      %v637 = vpack.c.bf16 %v583, %v582
      %v638 = vpack.c.bf16 %v585, %v584
      %v639 = vpack.c.bf16 %v587, %v586
      %v640 = vpack.c.bf16 %v589, %v588
      %v641 = vpack.c.bf16 %v591, %v590
      %v642 = vpack.c.bf16 %v593, %v592
      %v643 = vpack.c.bf16 %v595, %v594
      %v644 = vpack.c.bf16 %v597, %v596
      %v645 = vpack.c.bf16 %v599, %v598
      %v646 = vpack.c.bf16 %v601, %v600
      %v647 = vpack.c.bf16 %v603, %v602
      %v648 = vpack.c.bf16 %v605, %v604
      %v649 = vpack.c.bf16 %v607, %v606
      %v650 = vpack.c.bf16 %v609, %v608
      %v651 = vpack.c.bf16 %v611, %v610
      %v652 = vpack.c.bf16 %v613, %v612
      %v653 = vpack.c.bf16 %v615, %v614
      %v654 = vpack.c.bf16 %v617, %v616
      %v655 = vpack.c.bf16 %v619, %v618
      %v692 = vunpack.c.l.b16 %v620
      %v693 = vunpack.c.h.b16 %v620
      %v694 = vunpack.c.l.b16 %v621
      %v695 = vunpack.c.h.b16 %v621
      %v696 = vunpack.c.l.b16 %v622
      %v697 = vunpack.c.h.b16 %v622
      %v698 = vunpack.c.l.b16 %v623
      %v699 = vunpack.c.h.b16 %v623
      %v700 = vunpack.c.l.b16 %v624
      %v701 = vunpack.c.h.b16 %v624
      %v702 = vunpack.c.l.b16 %v625
      %v703 = vunpack.c.h.b16 %v625
      %v704 = vunpack.c.l.b16 %v626
      %v705 = vunpack.c.h.b16 %v626
      %v706 = vunpack.c.l.b16 %v627
      %v707 = vunpack.c.h.b16 %v627
      %v708 = vunpack.c.l.b16 %v628
      %v709 = vunpack.c.h.b16 %v628
      %v710 = vunpack.c.l.b16 %v629
      %v711 = vunpack.c.h.b16 %v629
      %v712 = vunpack.c.l.b16 %v630
      %v713 = vunpack.c.h.b16 %v630
      %v714 = vunpack.c.l.b16 %v631
      %v715 = vunpack.c.h.b16 %v631
      %v716 = vunpack.c.l.b16 %v632
      %v717 = vunpack.c.h.b16 %v632
      %v718 = vunpack.c.l.b16 %v633
      %v719 = vunpack.c.h.b16 %v633
      %v720 = vunpack.c.l.b16 %v634
      %v721 = vunpack.c.h.b16 %v634
      %v722 = vunpack.c.l.b16 %v635
      %v723 = vunpack.c.h.b16 %v635
      %v724 = vunpack.c.l.b16 %v636
      %v725 = vunpack.c.h.b16 %v636
      %v726 = vunpack.c.l.b16 %v637
      %v727 = vunpack.c.h.b16 %v637
      %v728 = vunpack.c.l.b16 %v638
      %v729 = vunpack.c.h.b16 %v638
      %v730 = vunpack.c.l.b16 %v639
      %v731 = vunpack.c.h.b16 %v639
      %v732 = vunpack.c.l.b16 %v640
      %v733 = vunpack.c.h.b16 %v640
      %v734 = vunpack.c.l.b16 %v641
      %v735 = vunpack.c.h.b16 %v641
      %v736 = vunpack.c.l.b16 %v642
      %v737 = vunpack.c.h.b16 %v642
      %v738 = vunpack.c.l.b16 %v643
      %v739 = vunpack.c.h.b16 %v643
      %v740 = vunpack.c.l.b16 %v644
      %v741 = vunpack.c.h.b16 %v644
      %v742 = vunpack.c.l.b16 %v645
      %v743 = vunpack.c.h.b16 %v645
      %v744 = vunpack.c.l.b16 %v646
      %v745 = vunpack.c.h.b16 %v646
      %v746 = vunpack.c.l.b16 %v647
      %v747 = vunpack.c.h.b16 %v647
      %v748 = vunpack.c.l.b16 %v648
      %v749 = vunpack.c.h.b16 %v648
      %v750 = vunpack.c.l.b16 %v649
      %v751 = vunpack.c.h.b16 %v649
      %v752 = vunpack.c.l.b16 %v650
      %v753 = vunpack.c.h.b16 %v650
      %v754 = vunpack.c.l.b16 %v651
      %v755 = vunpack.c.h.b16 %v651
      %v756 = vunpack.c.l.b16 %v652
      %v757 = vunpack.c.h.b16 %v652
      %v758 = vunpack.c.l.b16 %v653
      %v759 = vunpack.c.h.b16 %v653
      %v760 = vunpack.c.l.b16 %v654
      %v761 = vunpack.c.h.b16 %v654
      %v762 = vunpack.c.l.b16 %v655
      %v763 = vunpack.c.h.b16 %v655
      %v764 = vpack.c.b16 %v692, %v692
      %v765 = vpack.c.b16 %v693, %v693
      %v766 = vpack.c.b16 %v694, %v694
      %v767 = vpack.c.b16 %v695, %v695
      %v768 = vpack.c.b16 %v696, %v696
      %v769 = vpack.c.b16 %v697, %v697
      %v770 = vpack.c.b16 %v698, %v698
      %v771 = vpack.c.b16 %v699, %v699
      %v772 = vpack.c.b16 %v700, %v700
      %v773 = vpack.c.b16 %v701, %v701
      %v774 = vpack.c.b16 %v702, %v702
      %v775 = vpack.c.b16 %v703, %v703
      %v776 = vpack.c.b16 %v704, %v704
      %v777 = vpack.c.b16 %v705, %v705
      %v778 = vpack.c.b16 %v706, %v706
      %v779 = vpack.c.b16 %v707, %v707
      %v780 = vpack.c.b16 %v708, %v708
      %v781 = vpack.c.b16 %v709, %v709
      %v782 = vpack.c.b16 %v710, %v710
      %v783 = vpack.c.b16 %v711, %v711
      %v784 = vpack.c.b16 %v712, %v712
      %v785 = vpack.c.b16 %v713, %v713
      %v786 = vpack.c.b16 %v714, %v714
      %v787 = vpack.c.b16 %v715, %v715
      %v788 = vpack.c.b16 %v716, %v716
      %v789 = vpack.c.b16 %v717, %v717
      %v790 = vpack.c.b16 %v718, %v718
      %v791 = vpack.c.b16 %v719, %v719
      %v792 = vpack.c.b16 %v720, %v720
      %v793 = vpack.c.b16 %v721, %v721
      %v794 = vpack.c.b16 %v722, %v722
      %v795 = vpack.c.b16 %v723, %v723
      %v796 = vpack.c.b16 %v724, %v724
      %v797 = vpack.c.b16 %v725, %v725
      %v798 = vpack.c.b16 %v726, %v726
      %v799 = vpack.c.b16 %v727, %v727
      %v800 = vpack.c.b16 %v728, %v728
      %v801 = vpack.c.b16 %v729, %v729
      %v802 = vpack.c.b16 %v730, %v730
      %v803 = vpack.c.b16 %v731, %v731
      %v804 = vpack.c.b16 %v732, %v732
      %v805 = vpack.c.b16 %v733, %v733
      %v806 = vpack.c.b16 %v734, %v734
      %v807 = vpack.c.b16 %v735, %v735
      %v808 = vpack.c.b16 %v736, %v736
      %v809 = vpack.c.b16 %v737, %v737
      %v810 = vpack.c.b16 %v738, %v738
      %v811 = vpack.c.b16 %v739, %v739
      %v812 = vpack.c.b16 %v740, %v740
      %v813 = vpack.c.b16 %v741, %v741
      %v814 = vpack.c.b16 %v742, %v742
      %v815 = vpack.c.b16 %v743, %v743
      %v816 = vpack.c.b16 %v744, %v744
      %v817 = vpack.c.b16 %v745, %v745
      %v818 = vpack.c.b16 %v746, %v746
      %v819 = vpack.c.b16 %v747, %v747
      %v820 = vpack.c.b16 %v748, %v748
      %v821 = vpack.c.b16 %v749, %v749
      %v822 = vpack.c.b16 %v750, %v750
      %v823 = vpack.c.b16 %v751, %v751
      %v824 = vpack.c.b16 %v752, %v752
      %v825 = vpack.c.b16 %v753, %v753
      %v826 = vpack.c.b16 %v754, %v754
      %v827 = vpack.c.b16 %v755, %v755
      %v828 = vpack.c.b16 %v756, %v756
      %v829 = vpack.c.b16 %v757, %v757
      %v830 = vpack.c.b16 %v758, %v758
      %v831 = vpack.c.b16 %v759, %v759
      %v832 = vpack.c.b16 %v760, %v760
      %v833 = vpack.c.b16 %v761, %v761
      %v834 = vpack.c.b16 %v762, %v762
      %v835 = vpack.c.b16 %v763, %v763
      %vm908 = vcmask 125952
      %909 = vst.msk [vmem:[%s172] sm:$0xf] %vm908, %v764
      %910 = vst.msk [vmem:[%s172 + $0x4] sm:$0xf] %vm908, %v765
      %911 = vst.msk [vmem:[%s172 + $0x8] sm:$0xf] %vm908, %v766
      %912 = vst.msk [vmem:[%s172 + $0xc] sm:$0xf] %vm908, %v767
      %913 = vst.msk [vmem:[%s172 + $0x10] sm:$0xf] %vm908, %v768
      %914 = vst.msk [vmem:[%s172 + $0x14] sm:$0xf] %vm908, %v769
      %915 = vst.msk [vmem:[%s172 + $0x18] sm:$0xf] %vm908, %v770
      %916 = vst.msk [vmem:[%s172 + $0x1c] sm:$0xf] %vm908, %v771
      %917 = vst.msk [vmem:[%s172 + $0x20] sm:$0xf] %vm908, %v772
      %918 = vst.msk [vmem:[%s172 + $0x24] sm:$0xf] %vm908, %v773
      %919 = vst.msk [vmem:[%s172 + $0x28] sm:$0xf] %vm908, %v774
      %920 = vst.msk [vmem:[%s172 + $0x2c] sm:$0xf] %vm908, %v775
      %921 = vst.msk [vmem:[%s172 + $0x30] sm:$0xf] %vm908, %v776
      %922 = vst.msk [vmem:[%s172 + $0x34] sm:$0xf] %vm908, %v777
      %923 = vst.msk [vmem:[%s172 + $0x38] sm:$0xf] %vm908, %v778
      %924 = vst.msk [vmem:[%s172 + $0x3c] sm:$0xf] %vm908, %v779
      %925 = vst.msk [vmem:[%s172 + $0x40] sm:$0xf] %vm908, %v780
      %926 = vst.msk [vmem:[%s172 + $0x44] sm:$0xf] %vm908, %v781
      %927 = vst.msk [vmem:[%s172 + $0x48] sm:$0xf] %vm908, %v782
      %928 = vst.msk [vmem:[%s172 + $0x4c] sm:$0xf] %vm908, %v783
      %929 = vst.msk [vmem:[%s172 + $0x50] sm:$0xf] %vm908, %v784
      %930 = vst.msk [vmem:[%s172 + $0x54] sm:$0xf] %vm908, %v785
      %931 = vst.msk [vmem:[%s172 + $0x58] sm:$0xf] %vm908, %v786
      %932 = vst.msk [vmem:[%s172 + $0x5c] sm:$0xf] %vm908, %v787
      %933 = vst.msk [vmem:[%s172 + $0x60] sm:$0xf] %vm908, %v788
      %934 = vst.msk [vmem:[%s172 + $0x64] sm:$0xf] %vm908, %v789
      %935 = vst.msk [vmem:[%s172 + $0x68] sm:$0xf] %vm908, %v790
      %936 = vst.msk [vmem:[%s172 + $0x6c] sm:$0xf] %vm908, %v791
      %937 = vst.msk [vmem:[%s172 + $0x70] sm:$0xf] %vm908, %v792
      %938 = vst.msk [vmem:[%s172 + $0x74] sm:$0xf] %vm908, %v793
      %939 = vst.msk [vmem:[%s172 + $0x78] sm:$0xf] %vm908, %v794
      %940 = vst.msk [vmem:[%s172 + $0x7c] sm:$0xf] %vm908, %v795
      %941 = vst.msk [vmem:[%s172 + $0x80] sm:$0xf] %vm908, %v796
      %942 = vst.msk [vmem:[%s172 + $0x84] sm:$0xf] %vm908, %v797
      %943 = vst.msk [vmem:[%s172 + $0x88] sm:$0xf] %vm908, %v798
      %944 = vst.msk [vmem:[%s172 + $0x8c] sm:$0xf] %vm908, %v799
      %945 = vst.msk [vmem:[%s172 + $0x90] sm:$0xf] %vm908, %v800
      %946 = vst.msk [vmem:[%s172 + $0x94] sm:$0xf] %vm908, %v801
      %947 = vst.msk [vmem:[%s172 + $0x98] sm:$0xf] %vm908, %v802
      %948 = vst.msk [vmem:[%s172 + $0x9c] sm:$0xf] %vm908, %v803
      %949 = vst.msk [vmem:[%s172 + $0xa0] sm:$0xf] %vm908, %v804
      %950 = vst.msk [vmem:[%s172 + $0xa4] sm:$0xf] %vm908, %v805
      %951 = vst.msk [vmem:[%s172 + $0xa8] sm:$0xf] %vm908, %v806
      %952 = vst.msk [vmem:[%s172 + $0xac] sm:$0xf] %vm908, %v807
      %953 = vst.msk [vmem:[%s172 + $0xb0] sm:$0xf] %vm908, %v808
      %954 = vst.msk [vmem:[%s172 + $0xb4] sm:$0xf] %vm908, %v809
      %955 = vst.msk [vmem:[%s172 + $0xb8] sm:$0xf] %vm908, %v810
      %956 = vst.msk [vmem:[%s172 + $0xbc] sm:$0xf] %vm908, %v811
      %957 = vst.msk [vmem:[%s172 + $0xc0] sm:$0xf] %vm908, %v812
      %958 = vst.msk [vmem:[%s172 + $0xc4] sm:$0xf] %vm908, %v813
      %959 = vst.msk [vmem:[%s172 + $0xc8] sm:$0xf] %vm908, %v814
      %960 = vst.msk [vmem:[%s172 + $0xcc] sm:$0xf] %vm908, %v815
      %961 = vst.msk [vmem:[%s172 + $0xd0] sm:$0xf] %vm908, %v816
      %962 = vst.msk [vmem:[%s172 + $0xd4] sm:$0xf] %vm908, %v817
      %963 = vst.msk [vmem:[%s172 + $0xd8] sm:$0xf] %vm908, %v818
      %964 = vst.msk [vmem:[%s172 + $0xdc] sm:$0xf] %vm908, %v819
      %965 = vst.msk [vmem:[%s172 + $0xe0] sm:$0xf] %vm908, %v820
      %966 = vst.msk [vmem:[%s172 + $0xe4] sm:$0xf] %vm908, %v821
      %967 = vst.msk [vmem:[%s172 + $0xe8] sm:$0xf] %vm908, %v822
      %968 = vst.msk [vmem:[%s172 + $0xec] sm:$0xf] %vm908, %v823
      %969 = vst.msk [vmem:[%s172 + $0xf0] sm:$0xf] %vm908, %v824
      %970 = vst.msk [vmem:[%s172 + $0xf4] sm:$0xf] %vm908, %v825
      %971 = vst.msk [vmem:[%s172 + $0xf8] sm:$0xf] %vm908, %v826
      %972 = vst.msk [vmem:[%s172 + $0xfc] sm:$0xf] %vm908, %v827
      %973 = vst.msk [vmem:[%s172 + $0x100] sm:$0xf] %vm908, %v828
      %974 = vst.msk [vmem:[%s172 + $0x104] sm:$0xf] %vm908, %v829
      %975 = vst.msk [vmem:[%s172 + $0x108] sm:$0xf] %vm908, %v830
      %976 = vst.msk [vmem:[%s172 + $0x10c] sm:$0xf] %vm908, %v831
      %977 = vst.msk [vmem:[%s172 + $0x110] sm:$0xf] %vm908, %v832
      %978 = vst.msk [vmem:[%s172 + $0x114] sm:$0xf] %vm908, %v833
      %979 = vst.msk [vmem:[%s172 + $0x118] sm:$0xf] %vm908, %v834
      %980 = vst.msk [vmem:[%s172 + $0x11c] sm:$0xf] %vm908, %v835
      %s981 = smul.u32 72, %s14
      %p982 = scmp.lt.s32.totalorder %s981, 143
      %s983 = scalar_select %p982, %s981, 143
      %s984 = smul.addr %s983, 4
      %s985 = scalar_lea.vmem %s3, %s984
      // Predicated region
      $region33: #{stage2_d_forward.20} parent=31 // pred_check
        %p986 = pneg %p100
      $region34: #{stage2_d_forward.20} parent=31 // pred_check_branch
        %988 = sbr.rel (%p986) target = $region36
      $region35: #{stage2_d_forward.20} parent=31 // pred_region
        %s989 = smul.u32 72, %s14
      $region36: #{stage2_d_forward.20} parent=31 // pred_fallthru
        _
    $region32: #{stage2_d_forward.20} parent=5 // pred_fallthru
      _
    %p990 = scmp.le.s32.totalorder 2, %s9
    // Predicated region
    $region37: #{stage2_d_forward.20} parent=5 // pred_check
      %p991 = pneg %p990
    $region38: #{stage2_d_forward.20} parent=5 // pred_check_branch
      %993 = sbr.rel (%p991) target = $region40
    $region39: #{stage2_d_forward.20} parent=5 // pred_region
      %s994 = ssub.s32 %s9, 2
      // Predicated region
      $region41: #{stage2_d_forward.20} parent=39 // pred_check
        %p995 = pneg %p106
      $region42: #{stage2_d_forward.20} parent=39 // pred_check_branch
        %997 = sbr.rel (%p995) target = $region44
      $region43: #{stage2_d_forward.20} parent=39 // pred_region
        %s998 = smul.u32 72, %s15
        %p999 = scmp.lt.s32.totalorder %s998, 143
        %s1000 = scalar_select %p999, %s998, 143
        %s1001 = smul.addr %s1000, 4
        %s1002 = scalar_lea.vmem %s3, %s1001
      $region44: #{stage2_d_forward.20} parent=39 // pred_fallthru
        _
    $region40: #{stage2_d_forward.20} parent=5 // pred_fallthru
      _
  $region6: #{stage2_d_forward.20} parent=0 // loop_footer
    %s13 = sadd.s32 1, %s9
  $region7: #{stage2_d_forward.20} parent=0 // loop_footer_branch
    %8 = sbr.rel target = $region3
  $region8: #{stage2_d_forward.20} parent=0 // loop_exit
    _

// kernel: stage2_d_forward.21
$region0: #{stage2_d_forward.21}
  #allocation0 [shape = 'u32[]', space=smem, size = 0x4, offset = 0x4, fixed_abs, tag = 'smem constant byte address 0x4 - core index']
  #allocation1 [shape = 'u32[144,128]{1,0:T(1,128)}', space=vmem, size = 0x12000, scoped, tag = 'internal scratch']
  %s0 = inlined_call_operand.vmem [shape: bf16[288,256], index: 0, kind: input, shape index: {}]
  %s1 = inlined_call_operand.vmem [shape: bf16[256,128], index: 1, kind: input, shape index: {}]
  %s2 = inlined_call_operand.vmem [shape: f32[288,32], index: 2, kind: output, shape index: {0}]
  %s3 = inlined_call_operand.vmem [shape: f32[1,2,32], index: 3, kind: output, shape index: {1}]
  %4 = xla_tuple %s2, %s3
  %s5 = sld [smem:[#allocation0]]
  $region26: #{stage2_d_forward.21} parent=0
    _
  %s7 = ssub.s32 1, %s5
  %s8 = scalar_select 0, %s7, %s5
  // Predicated region
  $region2: #{stage2_d_forward.21} parent=0 // pred_check
    _
  $region3: #{stage2_d_forward.21} parent=0 // pred_check_branch
    %10 = sbr.rel (0) target = $region5
  $region4: #{stage2_d_forward.21} parent=0 // pred_region
    _
  $region5: #{stage2_d_forward.21} parent=0 // pred_fallthru
    _
  // Predicated region
  $region6: #{stage2_d_forward.21} parent=0 // pred_check
    _
  $region7: #{stage2_d_forward.21} parent=0 // pred_check_branch
    %12 = sbr.rel (0) target = $region9
  $region8: #{stage2_d_forward.21} parent=0 // pred_region
    _
  $region9: #{stage2_d_forward.21} parent=0 // pred_fallthru
    _
  %v14 = vld [vmem:[%s0] sm:$0xff]
  %v15 = vld [vmem:[%s0 + $0x8] sm:$0xff]
  %v16 = vld [vmem:[%s0 + $0x10] sm:$0xff]
  %v17 = vld [vmem:[%s0 + $0x18] sm:$0xff]
  %v18 = vld [vmem:[%s0 + $0x20] sm:$0xff]
  %v19 = vld [vmem:[%s0 + $0x28] sm:$0xff]
  %v20 = vld [vmem:[%s0 + $0x30] sm:$0xff]
  %v21 = vld [vmem:[%s0 + $0x38] sm:$0xff]
  %v22 = vld [vmem:[%s0 + $0x40] sm:$0xff]
  %v23 = vld [vmem:[%s0 + $0x48] sm:$0xff]
  %v24 = vld [vmem:[%s0 + $0x50] sm:$0xff]
  %v25 = vld [vmem:[%s0 + $0x58] sm:$0xff]
  %v26 = vld [vmem:[%s0 + $0x60] sm:$0xff]
  %v27 = vld [vmem:[%s0 + $0x68] sm:$0xff]
  %v28 = vld [vmem:[%s0 + $0x70] sm:$0xff]
  %v29 = vld [vmem:[%s0 + $0x78] sm:$0xff]
  %v30 = vld [vmem:[%s0 + $0x80] sm:$0xff]
  %v31 = vld [vmem:[%s0 + $0x88] sm:$0xff]
  %v32 = vld [vmem:[%s0 + $0x90] sm:$0xff]
  %v33 = vld [vmem:[%s0 + $0x98] sm:$0xff]
  %v34 = vld [vmem:[%s0 + $0xa0] sm:$0xff]
  %v35 = vld [vmem:[%s0 + $0xa8] sm:$0xff]
  %v36 = vld [vmem:[%s0 + $0xb0] sm:$0xff]
  %v37 = vld [vmem:[%s0 + $0xb8] sm:$0xff]
  %v38 = vld [vmem:[%s0 + $0xc0] sm:$0xff]
  %v39 = vld [vmem:[%s0 + $0xc8] sm:$0xff]
  %v40 = vld [vmem:[%s0 + $0xd0] sm:$0xff]
  %v41 = vld [vmem:[%s0 + $0xd8] sm:$0xff]
  %v42 = vld [vmem:[%s0 + $0xe0] sm:$0xff]
  %v43 = vld [vmem:[%s0 + $0xe8] sm:$0xff]
  %v44 = vld [vmem:[%s0 + $0xf0] sm:$0xff]
  %v45 = vld [vmem:[%s0 + $0xf8] sm:$0xff]
  %v46 = vld [vmem:[%s0 + $0x100] sm:$0xff]
  %v47 = vld [vmem:[%s0 + $0x108] sm:$0xff]
  %v48 = vld [vmem:[%s0 + $0x110] sm:$0xff]
  %v49 = vld [vmem:[%s0 + $0x118] sm:$0xff]
  %v50 = vld [vmem:[%s1] sm:$0xf]
  %v51 = vld [vmem:[%s1 + $0x4] sm:$0xf]
  %v52 = vld [vmem:[%s1 + $0x8] sm:$0xf]
  %v53 = vld [vmem:[%s1 + $0xc] sm:$0xf]
  %v54 = vld [vmem:[%s1 + $0x10] sm:$0xf]
  %v55 = vld [vmem:[%s1 + $0x14] sm:$0xf]
  %v56 = vld [vmem:[%s1 + $0x18] sm:$0xf]
  %v57 = vld [vmem:[%s1 + $0x1c] sm:$0xf]
  %v58 = vld [vmem:[%s1 + $0x20] sm:$0xf]
  %v59 = vld [vmem:[%s1 + $0x24] sm:$0xf]
  %v60 = vld [vmem:[%s1 + $0x28] sm:$0xf]
  %v61 = vld [vmem:[%s1 + $0x2c] sm:$0xf]
  %v62 = vld [vmem:[%s1 + $0x30] sm:$0xf]
  %v63 = vld [vmem:[%s1 + $0x34] sm:$0xf]
  %v64 = vld [vmem:[%s1 + $0x38] sm:$0xf]
  %v65 = vld [vmem:[%s1 + $0x3c] sm:$0xf]
  %v66 = vld [vmem:[%s1 + $0x40] sm:$0xf]
  %v67 = vld [vmem:[%s1 + $0x44] sm:$0xf]
  %v68 = vld [vmem:[%s1 + $0x48] sm:$0xf]
  %v69 = vld [vmem:[%s1 + $0x4c] sm:$0xf]
  %v70 = vld [vmem:[%s1 + $0x50] sm:$0xf]
  %v71 = vld [vmem:[%s1 + $0x54] sm:$0xf]
  %v72 = vld [vmem:[%s1 + $0x58] sm:$0xf]
  %v73 = vld [vmem:[%s1 + $0x5c] sm:$0xf]
  %v74 = vld [vmem:[%s1 + $0x60] sm:$0xf]
  %v75 = vld [vmem:[%s1 + $0x64] sm:$0xf]
  %v76 = vld [vmem:[%s1 + $0x68] sm:$0xf]
  %v77 = vld [vmem:[%s1 + $0x6c] sm:$0xf]
  %v78 = vld [vmem:[%s1 + $0x70] sm:$0xf]
  %v79 = vld [vmem:[%s1 + $0x74] sm:$0xf]
  %v80 = vld [vmem:[%s1 + $0x78] sm:$0xf]
  %v81 = vld [vmem:[%s1 + $0x7c] sm:$0xf]
  %v118 = vunpack.c.l.b16 %v14
  %v119 = vunpack.c.h.b16 %v14
  %v120 = vunpack.c.l.b16 %v15
  %v121 = vunpack.c.h.b16 %v15
  %v122 = vunpack.c.l.b16 %v16
  %v123 = vunpack.c.h.b16 %v16
  %v124 = vunpack.c.l.b16 %v17
  %v125 = vunpack.c.h.b16 %v17
  %v126 = vunpack.c.l.b16 %v18
  %v127 = vunpack.c.h.b16 %v18
  %v128 = vunpack.c.l.b16 %v19
  %v129 = vunpack.c.h.b16 %v19
  %v130 = vunpack.c.l.b16 %v20
  %v131 = vunpack.c.h.b16 %v20
  %v132 = vunpack.c.l.b16 %v21
  %v133 = vunpack.c.h.b16 %v21
  %v134 = vunpack.c.l.b16 %v22
  %v135 = vunpack.c.h.b16 %v22
  %v136 = vunpack.c.l.b16 %v23
  %v137 = vunpack.c.h.b16 %v23
  %v138 = vunpack.c.l.b16 %v24
  %v139 = vunpack.c.h.b16 %v24
  %v140 = vunpack.c.l.b16 %v25
  %v141 = vunpack.c.h.b16 %v25
  %v142 = vunpack.c.l.b16 %v26
  %v143 = vunpack.c.h.b16 %v26
  %v144 = vunpack.c.l.b16 %v27
  %v145 = vunpack.c.h.b16 %v27
  %v146 = vunpack.c.l.b16 %v28
  %v147 = vunpack.c.h.b16 %v28
  %v148 = vunpack.c.l.b16 %v29
  %v149 = vunpack.c.h.b16 %v29
  %v150 = vunpack.c.l.b16 %v30
  %v151 = vunpack.c.h.b16 %v30
  %v152 = vunpack.c.l.b16 %v31
  %v153 = vunpack.c.h.b16 %v31
  %v154 = vunpack.c.l.b16 %v32
  %v155 = vunpack.c.h.b16 %v32
  %v156 = vunpack.c.l.b16 %v33
  %v157 = vunpack.c.h.b16 %v33
  %v158 = vunpack.c.l.b16 %v34
  %v159 = vunpack.c.h.b16 %v34
  %v160 = vunpack.c.l.b16 %v35
  %v161 = vunpack.c.h.b16 %v35
  %v162 = vunpack.c.l.b16 %v36
  %v163 = vunpack.c.h.b16 %v36
  %v164 = vunpack.c.l.b16 %v37
  %v165 = vunpack.c.h.b16 %v37
  %v166 = vunpack.c.l.b16 %v38
  %v167 = vunpack.c.h.b16 %v38
  %v168 = vunpack.c.l.b16 %v39
  %v169 = vunpack.c.h.b16 %v39
  %v170 = vunpack.c.l.b16 %v40
  %v171 = vunpack.c.h.b16 %v40
  %v172 = vunpack.c.l.b16 %v41
  %v173 = vunpack.c.h.b16 %v41
  %v174 = vunpack.c.l.b16 %v42
  %v175 = vunpack.c.h.b16 %v42
  %v176 = vunpack.c.l.b16 %v43
  %v177 = vunpack.c.h.b16 %v43
  %v178 = vunpack.c.l.b16 %v44
  %v179 = vunpack.c.h.b16 %v44
  %v180 = vunpack.c.l.b16 %v45
  %v181 = vunpack.c.h.b16 %v45
  %v182 = vunpack.c.l.b16 %v46
  %v183 = vunpack.c.h.b16 %v46
  %v184 = vunpack.c.l.b16 %v47
  %v185 = vunpack.c.h.b16 %v47
  %v186 = vunpack.c.l.b16 %v48
  %v187 = vunpack.c.h.b16 %v48
  %v188 = vunpack.c.l.b16 %v49
  %v189 = vunpack.c.h.b16 %v49
  %v190 = vpack.c.b16 %v120, %v118
  %v191 = vpack.c.b16 %v121, %v119
  %v192 = vpack.c.b16 %v124, %v122
  %v193 = vpack.c.b16 %v125, %v123
  %v194 = vpack.c.b16 %v128, %v126
  %v195 = vpack.c.b16 %v129, %v127
  %v196 = vpack.c.b16 %v132, %v130
  %v197 = vpack.c.b16 %v133, %v131
  %v198 = vpack.c.b16 %v136, %v134
  %v199 = vpack.c.b16 %v137, %v135
  %v200 = vpack.c.b16 %v140, %v138
  %v201 = vpack.c.b16 %v141, %v139
  %v202 = vpack.c.b16 %v144, %v142
  %v203 = vpack.c.b16 %v145, %v143
  %v204 = vpack.c.b16 %v148, %v146
  %v205 = vpack.c.b16 %v149, %v147
  %v206 = vpack.c.b16 %v152, %v150
  %v207 = vpack.c.b16 %v153, %v151
  %v208 = vpack.c.b16 %v156, %v154
  %v209 = vpack.c.b16 %v157, %v155
  %v210 = vpack.c.b16 %v160, %v158
  %v211 = vpack.c.b16 %v161, %v159
  %v212 = vpack.c.b16 %v164, %v162
  %v213 = vpack.c.b16 %v165, %v163
  %v214 = vpack.c.b16 %v168, %v166
  %v215 = vpack.c.b16 %v169, %v167
  %v216 = vpack.c.b16 %v172, %v170
  %v217 = vpack.c.b16 %v173, %v171
  %v218 = vpack.c.b16 %v176, %v174
  %v219 = vpack.c.b16 %v177, %v175
  %v220 = vpack.c.b16 %v180, %v178
  %v221 = vpack.c.b16 %v181, %v179
  %v222 = vpack.c.b16 %v184, %v182
  %v223 = vpack.c.b16 %v185, %v183
  %v224 = vpack.c.b16 %v188, %v186
  %v225 = vpack.c.b16 %v189, %v187
  %v294 = vunpack.c.l.b16 %v50
  %v295 = vunpack.c.l.b16 %v51
  %v296 = vunpack.c.l.b16 %v52
  %v297 = vunpack.c.l.b16 %v53
  %v298 = vunpack.c.l.b16 %v54
  %v299 = vunpack.c.l.b16 %v55
  %v300 = vunpack.c.l.b16 %v56
  %v301 = vunpack.c.l.b16 %v57
  %v302 = vunpack.c.l.b16 %v58
  %v303 = vunpack.c.l.b16 %v59
  %v304 = vunpack.c.l.b16 %v60
  %v305 = vunpack.c.l.b16 %v61
  %v306 = vunpack.c.l.b16 %v62
  %v307 = vunpack.c.l.b16 %v63
  %v308 = vunpack.c.l.b16 %v64
  %v309 = vunpack.c.l.b16 %v65
  %v310 = vunpack.c.l.b16 %v66
  %v311 = vunpack.c.l.b16 %v67
  %v312 = vunpack.c.l.b16 %v68
  %v313 = vunpack.c.l.b16 %v69
  %v314 = vunpack.c.l.b16 %v70
  %v315 = vunpack.c.l.b16 %v71
  %v316 = vunpack.c.l.b16 %v72
  %v317 = vunpack.c.l.b16 %v73
  %v318 = vunpack.c.l.b16 %v74
  %v319 = vunpack.c.l.b16 %v75
  %v320 = vunpack.c.l.b16 %v76
  %v321 = vunpack.c.l.b16 %v77
  %v322 = vunpack.c.l.b16 %v78
  %v323 = vunpack.c.l.b16 %v79
  %v324 = vunpack.c.l.b16 %v80
  %v325 = vunpack.c.l.b16 %v81
  %v326 = vpack.c.b16 %v295, %v294
  %v327 = vpack.c.b16 %v297, %v296
  %v328 = vpack.c.b16 %v299, %v298
  %v329 = vpack.c.b16 %v301, %v300
  %v330 = vpack.c.b16 %v303, %v302
  %v331 = vpack.c.b16 %v305, %v304
  %v332 = vpack.c.b16 %v307, %v306
  %v333 = vpack.c.b16 %v309, %v308
  %v334 = vpack.c.b16 %v311, %v310
  %v335 = vpack.c.b16 %v313, %v312
  %v336 = vpack.c.b16 %v315, %v314
  %v337 = vpack.c.b16 %v317, %v316
  %v338 = vpack.c.b16 %v319, %v318
  %v339 = vpack.c.b16 %v321, %v320
  %v340 = vpack.c.b16 %v323, %v322
  %v341 = vpack.c.b16 %v325, %v324
  %358 = vmatprep.subr.bf16.mxu0 0
  %359 = vmatpush1.bf16.msra.mxu0 %v333
  %360 = vmatprep.subr.bf16.mxu0 0
  %361 = vmatpush1.bf16.msra.mxu0 %v332
  %362 = vmatprep.subr.bf16.mxu0 0
  %363 = vmatpush1.bf16.msra.mxu0 %v331
  %364 = vmatprep.subr.bf16.mxu0 0
  %365 = vmatpush1.bf16.msra.mxu0 %v330
  %366 = vmatprep.subr.bf16.mxu0 0
  %367 = vmatpush1.bf16.msra.mxu0 %v329
  %368 = vmatprep.subr.bf16.mxu0 0
  %369 = vmatpush1.bf16.msra.mxu0 %v328
  %370 = vmatprep.subr.bf16.mxu0 0
  %371 = vmatpush1.bf16.msra.mxu0 %v327
  %372 = vmatprep.subr.bf16.mxu0 0
  %373 = vmatpush1.bf16.msra.mxu0 %v326
  %374 = vmatprep.subr.bf16.mxu0 0
  %375 = vmatpush2.bf16.msra.mxu0 %v341
  %376 = vmatprep.subr.bf16.mxu0 0
  %377 = vmatpush2.bf16.msra.mxu0 %v340
  %378 = vmatprep.subr.bf16.mxu0 0
  %379 = vmatpush2.bf16.msra.mxu0 %v339
  %380 = vmatprep.subr.bf16.mxu0 0
  %381 = vmatpush2.bf16.msra.mxu0 %v338
  %382 = vmatprep.subr.bf16.mxu0 0
  %383 = vmatpush2.bf16.msra.mxu0 %v337
  %384 = vmatprep.subr.bf16.mxu0 0
  %385 = vmatpush2.bf16.msra.mxu0 %v336
  %386 = vmatprep.subr.bf16.mxu0 0
  %387 = vmatpush2.bf16.msra.mxu0 %v335
  %388 = vmatprep.subr.bf16.mxu0 0
  %389 = vmatpush2.bf16.msra.mxu0 %v334
  %390 = vmatprep.mubr.bf16.mxu0 %v191
  %391 = vmatmul.mubr.bf16.gmra.mxu0 %v190
  %v392 = vpop.f32.mrf.mxu0
  %v393 = vadd.f32 0.0, %v392
  %v394 = vpop.f32.mrf.mxu0
  %v395 = vpop.f32.mrf.mxu0
  %v396 = vadd.f32 0.0, %v395
  %v397 = vpop.f32.mrf.mxu0
  %398 = vmatprep.mubr.bf16.mxu0 %v193
  %399 = vmatmul.mubr.bf16.gmra.mxu0 %v192
  %v400 = vpop.f32.mrf.mxu0
  %v401 = vadd.f32 0.0, %v400
  %v402 = vpop.f32.mrf.mxu0
  %v403 = vpop.f32.mrf.mxu0
  %v404 = vadd.f32 0.0, %v403
  %v405 = vpop.f32.mrf.mxu0
  %406 = vmatprep.mubr.bf16.mxu0 %v195
  %407 = vmatmul.mubr.bf16.gmra.mxu0 %v194
  %v408 = vpop.f32.mrf.mxu0
  %v409 = vadd.f32 0.0, %v408
  %v410 = vpop.f32.mrf.mxu0
  %v411 = vpop.f32.mrf.mxu0
  %v412 = vadd.f32 0.0, %v411
  %v413 = vpop.f32.mrf.mxu0
  %414 = vmatprep.mubr.bf16.mxu0 %v197
  %415 = vmatmul.mubr.bf16.gmra.mxu0 %v196
  %v416 = vpop.f32.mrf.mxu0
  %v417 = vadd.f32 0.0, %v416
  %v418 = vpop.f32.mrf.mxu0
  %v419 = vpop.f32.mrf.mxu0
  %v420 = vadd.f32 0.0, %v419
  %v421 = vpop.f32.mrf.mxu0
  %422 = vmatprep.mubr.bf16.mxu0 %v199
  %423 = vmatmul.mubr.bf16.gmra.mxu0 %v198
  %v424 = vpop.f32.mrf.mxu0
  %v425 = vadd.f32 0.0, %v424
  %v426 = vpop.f32.mrf.mxu0
  %v427 = vpop.f32.mrf.mxu0
  %v428 = vadd.f32 0.0, %v427
  %v429 = vpop.f32.mrf.mxu0
  %430 = vmatprep.mubr.bf16.mxu0 %v201
  %431 = vmatmul.mubr.bf16.gmra.mxu0 %v200
  %v432 = vpop.f32.mrf.mxu0
  %v433 = vadd.f32 0.0, %v432
  %v434 = vpop.f32.mrf.mxu0
  %v435 = vpop.f32.mrf.mxu0
  %v436 = vadd.f32 0.0, %v435
  %v437 = vpop.f32.mrf.mxu0
  %438 = vmatprep.mubr.bf16.mxu0 %v203
  %439 = vmatmul.mubr.bf16.gmra.mxu0 %v202
  %v440 = vpop.f32.mrf.mxu0
  %v441 = vadd.f32 0.0, %v440
  %v442 = vpop.f32.mrf.mxu0
  %v443 = vpop.f32.mrf.mxu0
  %v444 = vadd.f32 0.0, %v443
  %v445 = vpop.f32.mrf.mxu0
  %446 = vmatprep.mubr.bf16.mxu0 %v205
  %447 = vmatmul.mubr.bf16.gmra.mxu0 %v204
  %v448 = vpop.f32.mrf.mxu0
  %v449 = vadd.f32 0.0, %v448
  %v450 = vpop.f32.mrf.mxu0
  %v451 = vpop.f32.mrf.mxu0
  %v452 = vadd.f32 0.0, %v451
  %v453 = vpop.f32.mrf.mxu0
  %454 = vmatprep.mubr.bf16.mxu0 %v207
  %455 = vmatmul.mubr.bf16.gmra.mxu0 %v206
  %v456 = vpop.f32.mrf.mxu0
  %v457 = vadd.f32 0.0, %v456
  %v458 = vpop.f32.mrf.mxu0
  %v459 = vpop.f32.mrf.mxu0
  %v460 = vadd.f32 0.0, %v459
  %v461 = vpop.f32.mrf.mxu0
  %462 = vmatprep.mubr.bf16.mxu0 %v209
  %463 = vmatmul.mubr.bf16.gmra.mxu0 %v208
  %v464 = vpop.f32.mrf.mxu0
  %v465 = vadd.f32 0.0, %v464
  %v466 = vpop.f32.mrf.mxu0
  %v467 = vpop.f32.mrf.mxu0
  %v468 = vadd.f32 0.0, %v467
  %v469 = vpop.f32.mrf.mxu0
  %470 = vmatprep.mubr.bf16.mxu0 %v211
  %471 = vmatmul.mubr.bf16.gmra.mxu0 %v210
  %v472 = vpop.f32.mrf.mxu0
  %v473 = vadd.f32 0.0, %v472
  %v474 = vpop.f32.mrf.mxu0
  %v475 = vpop.f32.mrf.mxu0
  %v476 = vadd.f32 0.0, %v475
  %v477 = vpop.f32.mrf.mxu0
  %478 = vmatprep.mubr.bf16.mxu0 %v213
  %479 = vmatmul.mubr.bf16.gmra.mxu0 %v212
  %v480 = vpop.f32.mrf.mxu0
  %v481 = vadd.f32 0.0, %v480
  %v482 = vpop.f32.mrf.mxu0
  %v483 = vpop.f32.mrf.mxu0
  %v484 = vadd.f32 0.0, %v483
  %v485 = vpop.f32.mrf.mxu0
  %486 = vmatprep.mubr.bf16.mxu0 %v215
  %487 = vmatmul.mubr.bf16.gmra.mxu0 %v214
  %v488 = vpop.f32.mrf.mxu0
  %v489 = vadd.f32 0.0, %v488
  %v490 = vpop.f32.mrf.mxu0
  %v491 = vpop.f32.mrf.mxu0
  %v492 = vadd.f32 0.0, %v491
  %v493 = vpop.f32.mrf.mxu0
  %494 = vmatprep.mubr.bf16.mxu0 %v217
  %495 = vmatmul.mubr.bf16.gmra.mxu0 %v216
  %v496 = vpop.f32.mrf.mxu0
  %v497 = vadd.f32 0.0, %v496
  %v498 = vpop.f32.mrf.mxu0
  %v499 = vpop.f32.mrf.mxu0
  %v500 = vadd.f32 0.0, %v499
  %v501 = vpop.f32.mrf.mxu0
  %502 = vmatprep.mubr.bf16.mxu0 %v219
  %503 = vmatmul.mubr.bf16.gmra.mxu0 %v218
  %v504 = vpop.f32.mrf.mxu0
  %v505 = vadd.f32 0.0, %v504
  %v506 = vpop.f32.mrf.mxu0
  %v507 = vpop.f32.mrf.mxu0
  %v508 = vadd.f32 0.0, %v507
  %v509 = vpop.f32.mrf.mxu0
  %510 = vmatprep.mubr.bf16.mxu0 %v221
  %511 = vmatmul.mubr.bf16.gmra.mxu0 %v220
  %v512 = vpop.f32.mrf.mxu0
  %v513 = vadd.f32 0.0, %v512
  %v514 = vpop.f32.mrf.mxu0
  %v515 = vpop.f32.mrf.mxu0
  %v516 = vadd.f32 0.0, %v515
  %v517 = vpop.f32.mrf.mxu0
  %518 = vmatprep.mubr.bf16.mxu0 %v223
  %519 = vmatmul.mubr.bf16.gmra.mxu0 %v222
  %v520 = vpop.f32.mrf.mxu0
  %v521 = vadd.f32 0.0, %v520
  %v522 = vpop.f32.mrf.mxu0
  %v523 = vpop.f32.mrf.mxu0
  %v524 = vadd.f32 0.0, %v523
  %v525 = vpop.f32.mrf.mxu0
  %526 = vmatprep.mubr.bf16.mxu0 %v225
  %527 = vmatmul.mubr.bf16.gmra.mxu0 %v224
  %v528 = vpop.f32.mrf.mxu0
  %v529 = vadd.f32 0.0, %v528
  %v530 = vpop.f32.mrf.mxu0
  %v531 = vpop.f32.mrf.mxu0
  %v532 = vadd.f32 0.0, %v531
  %v533 = vpop.f32.mrf.mxu0
  %534 = vdwg.mxu0
  %vm535 = vcmask 261120
  %536 = vst.msk [vmem:[%s2] sm:$0xff] %vm535, %v393
  %537 = vst.msk [vmem:[%s2 + $0x8] sm:$0xff] %vm535, %v396
  %538 = vst.msk [vmem:[%s2 + $0x10] sm:$0xff] %vm535, %v401
  %539 = vst.msk [vmem:[%s2 + $0x18] sm:$0xff] %vm535, %v404
  %540 = vst.msk [vmem:[%s2 + $0x20] sm:$0xff] %vm535, %v409
  %541 = vst.msk [vmem:[%s2 + $0x28] sm:$0xff] %vm535, %v412
  %542 = vst.msk [vmem:[%s2 + $0x30] sm:$0xff] %vm535, %v417
  %543 = vst.msk [vmem:[%s2 + $0x38] sm:$0xff] %vm535, %v420
  %544 = vst.msk [vmem:[%s2 + $0x40] sm:$0xff] %vm535, %v425
  %545 = vst.msk [vmem:[%s2 + $0x48] sm:$0xff] %vm535, %v428
  %546 = vst.msk [vmem:[%s2 + $0x50] sm:$0xff] %vm535, %v433
  %547 = vst.msk [vmem:[%s2 + $0x58] sm:$0xff] %vm535, %v436
  %548 = vst.msk [vmem:[%s2 + $0x60] sm:$0xff] %vm535, %v441
  %549 = vst.msk [vmem:[%s2 + $0x68] sm:$0xff] %vm535, %v444
  %550 = vst.msk [vmem:[%s2 + $0x70] sm:$0xff] %vm535, %v449
  %551 = vst.msk [vmem:[%s2 + $0x78] sm:$0xff] %vm535, %v452
  %552 = vst.msk [vmem:[%s2 + $0x80] sm:$0xff] %vm535, %v457
  %553 = vst.msk [vmem:[%s2 + $0x88] sm:$0xff] %vm535, %v460
  %554 = vst.msk [vmem:[%s2 + $0x90] sm:$0xff] %vm535, %v465
  %555 = vst.msk [vmem:[%s2 + $0x98] sm:$0xff] %vm535, %v468
  %556 = vst.msk [vmem:[%s2 + $0xa0] sm:$0xff] %vm535, %v473
  %557 = vst.msk [vmem:[%s2 + $0xa8] sm:$0xff] %vm535, %v476
  %558 = vst.msk [vmem:[%s2 + $0xb0] sm:$0xff] %vm535, %v481
  %559 = vst.msk [vmem:[%s2 + $0xb8] sm:$0xff] %vm535, %v484
  %560 = vst.msk [vmem:[%s2 + $0xc0] sm:$0xff] %vm535, %v489
  %561 = vst.msk [vmem:[%s2 + $0xc8] sm:$0xff] %vm535, %v492
  %562 = vst.msk [vmem:[%s2 + $0xd0] sm:$0xff] %vm535, %v497
  %563 = vst.msk [vmem:[%s2 + $0xd8] sm:$0xff] %vm535, %v500
  %564 = vst.msk [vmem:[%s2 + $0xe0] sm:$0xff] %vm535, %v505
  %565 = vst.msk [vmem:[%s2 + $0xe8] sm:$0xff] %vm535, %v508
  %566 = vst.msk [vmem:[%s2 + $0xf0] sm:$0xff] %vm535, %v513
  %567 = vst.msk [vmem:[%s2 + $0xf8] sm:$0xff] %vm535, %v516
  %568 = vst.msk [vmem:[%s2 + $0x100] sm:$0xff] %vm535, %v521
  %569 = vst.msk [vmem:[%s2 + $0x108] sm:$0xff] %vm535, %v524
  %570 = vst.msk [vmem:[%s2 + $0x110] sm:$0xff] %vm535, %v529
  %571 = vst.msk [vmem:[%s2 + $0x118] sm:$0xff] %vm535, %v532
  %v572 = vsel %vm535, %v393, 0.0
  %v573 = vsel %vm535, %v396, 0.0
  %v574 = vadd.f32 %v572, %v573
  %v575 = vsel %vm535, %v401, 0.0
  %v576 = vadd.f32 %v574, %v575
  %v577 = vsel %vm535, %v404, 0.0
  %v578 = vadd.f32 %v576, %v577
  %v579 = vsel %vm535, %v409, 0.0
  %v580 = vadd.f32 %v578, %v579
  %v581 = vsel %vm535, %v412, 0.0
  %v582 = vadd.f32 %v580, %v581
  %v583 = vsel %vm535, %v417, 0.0
  %v584 = vadd.f32 %v582, %v583
  %v585 = vsel %vm535, %v420, 0.0
  %v586 = vadd.f32 %v584, %v585
  %v587 = vsel %vm535, %v425, 0.0
  %v588 = vadd.f32 %v586, %v587
  %v589 = vsel %vm535, %v428, 0.0
  %v590 = vadd.f32 %v588, %v589
  %v591 = vsel %vm535, %v433, 0.0
  %v592 = vadd.f32 %v590, %v591
  %v593 = vsel %vm535, %v436, 0.0
  %v594 = vadd.f32 %v592, %v593
  %v595 = vsel %vm535, %v441, 0.0
  %v596 = vadd.f32 %v594, %v595
  %v597 = vsel %vm535, %v444, 0.0
  %v598 = vadd.f32 %v596, %v597
  %v599 = vsel %vm535, %v449, 0.0
  %v600 = vadd.f32 %v598, %v599
  %v601 = vsel %vm535, %v452, 0.0
  %v602 = vadd.f32 %v600, %v601
  %v603 = vsel %vm535, %v457, 0.0
  %v604 = vadd.f32 %v602, %v603
  %v605 = vsel %vm535, %v460, 0.0
  %v606 = vadd.f32 %v604, %v605
  %v607 = vsel %vm535, %v465, 0.0
  %v608 = vadd.f32 %v606, %v607
  %v609 = vsel %vm535, %v468, 0.0
  %v610 = vadd.f32 %v608, %v609
  %v611 = vsel %vm535, %v473, 0.0
  %v612 = vadd.f32 %v610, %v611
  %v613 = vsel %vm535, %v476, 0.0
  %v614 = vadd.f32 %v612, %v613
  %v615 = vsel %vm535, %v481, 0.0
  %v616 = vadd.f32 %v614, %v615
  %v617 = vsel %vm535, %v484, 0.0
  %v618 = vadd.f32 %v616, %v617
  %v619 = vsel %vm535, %v489, 0.0
  %v620 = vadd.f32 %v618, %v619
  %v621 = vsel %vm535, %v492, 0.0
  %v622 = vadd.f32 %v620, %v621
  %v623 = vsel %vm535, %v497, 0.0
  %v624 = vadd.f32 %v622, %v623
  %v625 = vsel %vm535, %v500, 0.0
  %v626 = vadd.f32 %v624, %v625
  %v627 = vsel %vm535, %v505, 0.0
  %v628 = vadd.f32 %v626, %v627
  %v629 = vsel %vm535, %v508, 0.0
  %v630 = vadd.f32 %v628, %v629
  %v631 = vsel %vm535, %v513, 0.0
  %v632 = vadd.f32 %v630, %v631
  %v633 = vsel %vm535, %v516, 0.0
  %v634 = vadd.f32 %v632, %v633
  %v635 = vsel %vm535, %v521, 0.0
  %v636 = vadd.f32 %v634, %v635
  %v637 = vsel %vm535, %v524, 0.0
  %v638 = vadd.f32 %v636, %v637
  %v639 = vsel %vm535, %v529, 0.0
  %v640 = vadd.f32 %v638, %v639
  %v641 = vsel %vm535, %v532, 0.0
  %v642 = vadd.f32 %v640, %v641
  %v643 = vrot.slane %v642, 4
  %v644 = vadd.f32 %v642, %v643
  %v645 = vrot.slane %v644, 2
  %v646 = vadd.f32 %v644, %v645
  %v647 = vrot.slane %v646, 1
  %v648 = vadd.f32 %v646, %v647
  %v649 = vmul.f32 %v393, %v393
  %v650 = vmul.f32 %v396, %v396
  %v651 = vmul.f32 %v401, %v401
  %v652 = vmul.f32 %v404, %v404
  %v653 = vmul.f32 %v409, %v409
  %v654 = vmul.f32 %v412, %v412
  %v655 = vmul.f32 %v417, %v417
  %v656 = vmul.f32 %v420, %v420
  %v657 = vmul.f32 %v425, %v425
  %v658 = vmul.f32 %v428, %v428
  %v659 = vmul.f32 %v433, %v433
  %v660 = vmul.f32 %v436, %v436
  %v661 = vmul.f32 %v441, %v441
  %v662 = vmul.f32 %v444, %v444
  %v663 = vmul.f32 %v449, %v449
  %v664 = vmul.f32 %v452, %v452
  %v665 = vmul.f32 %v457, %v457
  %v666 = vmul.f32 %v460, %v460
  %v667 = vmul.f32 %v465, %v465
  %v668 = vmul.f32 %v468, %v468
  %v669 = vmul.f32 %v473, %v473
  %v670 = vmul.f32 %v476, %v476
  %v671 = vmul.f32 %v481, %v481
  %v672 = vmul.f32 %v484, %v484
  %v673 = vmul.f32 %v489, %v489
  %v674 = vmul.f32 %v492, %v492
  %v675 = vmul.f32 %v497, %v497
  %v676 = vmul.f32 %v500, %v500
  %v677 = vmul.f32 %v505, %v505
  %v678 = vmul.f32 %v508, %v508
  %v679 = vmul.f32 %v513, %v513
  %v680 = vmul.f32 %v516, %v516
  %v681 = vmul.f32 %v521, %v521
  %v682 = vmul.f32 %v524, %v524
  %v683 = vmul.f32 %v529, %v529
  %v684 = vmul.f32 %v532, %v532
  %v685 = vsel %vm535, %v649, 0.0
  %v686 = vsel %vm535, %v650, 0.0
  %v687 = vadd.f32 %v685, %v686
  %v688 = vsel %vm535, %v651, 0.0
  %v689 = vadd.f32 %v687, %v688
  %v690 = vsel %vm535, %v652, 0.0
  %v691 = vadd.f32 %v689, %v690
  %v692 = vsel %vm535, %v653, 0.0
  %v693 = vadd.f32 %v691, %v692
  %v694 = vsel %vm535, %v654, 0.0
  %v695 = vadd.f32 %v693, %v694
  %v696 = vsel %vm535, %v655, 0.0
  %v697 = vadd.f32 %v695, %v696
  %v698 = vsel %vm535, %v656, 0.0
  %v699 = vadd.f32 %v697, %v698
  %v700 = vsel %vm535, %v657, 0.0
  %v701 = vadd.f32 %v699, %v700
  %v702 = vsel %vm535, %v658, 0.0
  %v703 = vadd.f32 %v701, %v702
  %v704 = vsel %vm535, %v659, 0.0
  %v705 = vadd.f32 %v703, %v704
  %v706 = vsel %vm535, %v660, 0.0
  %v707 = vadd.f32 %v705, %v706
  %v708 = vsel %vm535, %v661, 0.0
  %v709 = vadd.f32 %v707, %v708
  %v710 = vsel %vm535, %v662, 0.0
  %v711 = vadd.f32 %v709, %v710
  %v712 = vsel %vm535, %v663, 0.0
  %v713 = vadd.f32 %v711, %v712
  %v714 = vsel %vm535, %v664, 0.0
  %v715 = vadd.f32 %v713, %v714
  %v716 = vsel %vm535, %v665, 0.0
  %v717 = vadd.f32 %v715, %v716
  %v718 = vsel %vm535, %v666, 0.0
  %v719 = vadd.f32 %v717, %v718
  %v720 = vsel %vm535, %v667, 0.0
  %v721 = vadd.f32 %v719, %v720
  %v722 = vsel %vm535, %v668, 0.0
  %v723 = vadd.f32 %v721, %v722
  %v724 = vsel %vm535, %v669, 0.0
  %v725 = vadd.f32 %v723, %v724
  %v726 = vsel %vm535, %v670, 0.0
  %v727 = vadd.f32 %v725, %v726
  %v728 = vsel %vm535, %v671, 0.0
  %v729 = vadd.f32 %v727, %v728
  %v730 = vsel %vm535, %v672, 0.0
  %v731 = vadd.f32 %v729, %v730
  %v732 = vsel %vm535, %v673, 0.0
  %v733 = vadd.f32 %v731, %v732
  %v734 = vsel %vm535, %v674, 0.0
  %v735 = vadd.f32 %v733, %v734
  %v736 = vsel %vm535, %v675, 0.0
  %v737 = vadd.f32 %v735, %v736
  %v738 = vsel %vm535, %v676, 0.0
  %v739 = vadd.f32 %v737, %v738
  %v740 = vsel %vm535, %v677, 0.0
  %v741 = vadd.f32 %v739, %v740
  %v742 = vsel %vm535, %v678, 0.0
  %v743 = vadd.f32 %v741, %v742
  %v744 = vsel %vm535, %v679, 0.0
  %v745 = vadd.f32 %v743, %v744
  %v746 = vsel %vm535, %v680, 0.0
  %v747 = vadd.f32 %v745, %v746
  %v748 = vsel %vm535, %v681, 0.0
  %v749 = vadd.f32 %v747, %v748
  %v750 = vsel %vm535, %v682, 0.0
  %v751 = vadd.f32 %v749, %v750
  %v752 = vsel %vm535, %v683, 0.0
  %v753 = vadd.f32 %v751, %v752
  %v754 = vsel %vm535, %v684, 0.0
  %v755 = vadd.f32 %v753, %v754
  %v756 = vrot.slane %v755, 4
  %v757 = vadd.f32 %v755, %v756
  %v758 = vrot.slane %v757, 2
  %v759 = vadd.f32 %v757, %v758
  %v760 = vrot.slane %v759, 1
  %v761 = vadd.f32 %v759, %v760
  %vm762 = vcmask 1040384
  %v763 = vsel %vm762, %v648, %v761
  %vm764 = vcmask 254976
  %765 = vst.msk [vmem:[%s3] sm:$0x3] %vm764, %v763
  // Predicated region
  $region10: #{stage2_d_forward.21} parent=0 // pred_check
    _
  $region11: #{stage2_d_forward.21} parent=0 // pred_check_branch
    %767 = sbr.rel (0) target = $region13
  $region12: #{stage2_d_forward.21} parent=0 // pred_region
    _
  $region13: #{stage2_d_forward.21} parent=0 // pred_fallthru
    _
  // Predicated region
  $region14: #{stage2_d_forward.21} parent=0 // pred_check
    _
  $region15: #{stage2_d_forward.21} parent=0 // pred_check_branch
    %769 = sbr.rel (0) target = $region17
  $region16: #{stage2_d_forward.21} parent=0 // pred_region
    _
  $region17: #{stage2_d_forward.21} parent=0 // pred_fallthru
    _
  // Predicated region
  $region18: #{stage2_d_forward.21} parent=0 // pred_check
    _
  $region19: #{stage2_d_forward.21} parent=0 // pred_check_branch
    %771 = sbr.rel (0) target = $region21
  $region20: #{stage2_d_forward.21} parent=0 // pred_region
    _
  $region21: #{stage2_d_forward.21} parent=0 // pred_fallthru
    _
  // Predicated region
  $region22: #{stage2_d_forward.21} parent=0 // pred_check
    _
  $region23: #{stage2_d_forward.21} parent=0 // pred_check_branch
    %773 = sbr.rel (0) target = $region25
  $region24: #{stage2_d_forward.21} parent=0 // pred_region
    _
  $region25: #{stage2_d_forward.21} parent=0 // pred_fallthru
    _

// kernel: stage2_d_forward.22
$region0: #{stage2_d_forward.22}
  #allocation0 [shape = 'u32[]', space=smem, size = 0x4, offset = 0x4, fixed_abs, tag = 'smem constant byte address 0x4 - core index']
  #allocation1 [shape = 'u32[144,128]{1,0:T(1,128)}', space=vmem, size = 0x12000, scoped, tag = 'internal scratch']
  %s0 = inlined_call_operand.vmem [shape: f32[288,32], index: 0, kind: input, shape index: {}]
  %s1 = inlined_call_operand.vmem [shape: f32[1,32], index: 1, kind: input, shape index: {}]
  %s2 = inlined_call_operand.vmem [shape: f32[1,32], index: 2, kind: input, shape index: {}]
  %s3 = inlined_call_operand.vmem [shape: bf16[288,32], index: 3, kind: output, shape index: {}]
  %s4 = sld [smem:[#allocation0]]
  $region22: #{stage2_d_forward.22} parent=0
    _
  %s6 = ssub.s32 1, %s4
  %s7 = scalar_select 0, %s6, %s4
  // Predicated region
  $region2: #{stage2_d_forward.22} parent=0 // pred_check
    _
  $region3: #{stage2_d_forward.22} parent=0 // pred_check_branch
    %9 = sbr.rel (0) target = $region5
  $region4: #{stage2_d_forward.22} parent=0 // pred_region
    _
  $region5: #{stage2_d_forward.22} parent=0 // pred_fallthru
    _
  // Predicated region
  $region6: #{stage2_d_forward.22} parent=0 // pred_check
    _
  $region7: #{stage2_d_forward.22} parent=0 // pred_check_branch
    %11 = sbr.rel (0) target = $region9
  $region8: #{stage2_d_forward.22} parent=0 // pred_region
    _
  $region9: #{stage2_d_forward.22} parent=0 // pred_fallthru
    _
  // Predicated region
  $region10: #{stage2_d_forward.22} parent=0 // pred_check
    _
  $region11: #{stage2_d_forward.22} parent=0 // pred_check_branch
    %13 = sbr.rel (0) target = $region13
  $region12: #{stage2_d_forward.22} parent=0 // pred_region
    _
  $region13: #{stage2_d_forward.22} parent=0 // pred_fallthru
    _
  %v14 = vld [vmem:[%s0] sm:$0xff]
  %v15 = vld [vmem:[%s0 + $0x8] sm:$0xff]
  %v16 = vld [vmem:[%s0 + $0x10] sm:$0xff]
  %v17 = vld [vmem:[%s0 + $0x18] sm:$0xff]
  %v18 = vld [vmem:[%s0 + $0x20] sm:$0xff]
  %v19 = vld [vmem:[%s0 + $0x28] sm:$0xff]
  %v20 = vld [vmem:[%s0 + $0x30] sm:$0xff]
  %v21 = vld [vmem:[%s0 + $0x38] sm:$0xff]
  %v22 = vld [vmem:[%s0 + $0x40] sm:$0xff]
  %v23 = vld [vmem:[%s0 + $0x48] sm:$0xff]
  %v24 = vld [vmem:[%s0 + $0x50] sm:$0xff]
  %v25 = vld [vmem:[%s0 + $0x58] sm:$0xff]
  %v26 = vld [vmem:[%s0 + $0x60] sm:$0xff]
  %v27 = vld [vmem:[%s0 + $0x68] sm:$0xff]
  %v28 = vld [vmem:[%s0 + $0x70] sm:$0xff]
  %v29 = vld [vmem:[%s0 + $0x78] sm:$0xff]
  %v30 = vld [vmem:[%s0 + $0x80] sm:$0xff]
  %v31 = vld [vmem:[%s0 + $0x88] sm:$0xff]
  %v32 = vld [vmem:[%s0 + $0x90] sm:$0xff]
  %v33 = vld [vmem:[%s0 + $0x98] sm:$0xff]
  %v34 = vld [vmem:[%s0 + $0xa0] sm:$0xff]
  %v35 = vld [vmem:[%s0 + $0xa8] sm:$0xff]
  %v36 = vld [vmem:[%s0 + $0xb0] sm:$0xff]
  %v37 = vld [vmem:[%s0 + $0xb8] sm:$0xff]
  %v38 = vld [vmem:[%s0 + $0xc0] sm:$0xff]
  %v39 = vld [vmem:[%s0 + $0xc8] sm:$0xff]
  %v40 = vld [vmem:[%s0 + $0xd0] sm:$0xff]
  %v41 = vld [vmem:[%s0 + $0xd8] sm:$0xff]
  %v42 = vld [vmem:[%s0 + $0xe0] sm:$0xff]
  %v43 = vld [vmem:[%s0 + $0xe8] sm:$0xff]
  %v44 = vld [vmem:[%s0 + $0xf0] sm:$0xff]
  %v45 = vld [vmem:[%s0 + $0xf8] sm:$0xff]
  %v46 = vld [vmem:[%s0 + $0x100] sm:$0xff]
  %v47 = vld [vmem:[%s0 + $0x108] sm:$0xff]
  %v48 = vld [vmem:[%s0 + $0x110] sm:$0xff]
  %v49 = vld [vmem:[%s0 + $0x118] sm:$0xff]
  %v50 = vld [vmem:[%s1] sm:$0x1]
  %v52 = vlaneseq
  %v53 = vshrl.u32 %v52, 7
  %v54 = vsub.s32 0, %v53
  %v55 = vrot.slane %v50, %v54
  %v57 = vmul.f32 %v14, %v55
  %v58 = vmul.f32 %v15, %v55
  %v59 = vmul.f32 %v16, %v55
  %v60 = vmul.f32 %v17, %v55
  %v61 = vmul.f32 %v18, %v55
  %v62 = vmul.f32 %v19, %v55
  %v63 = vmul.f32 %v20, %v55
  %v64 = vmul.f32 %v21, %v55
  %v65 = vmul.f32 %v22, %v55
  %v66 = vmul.f32 %v23, %v55
  %v67 = vmul.f32 %v24, %v55
  %v68 = vmul.f32 %v25, %v55
  %v69 = vmul.f32 %v26, %v55
  %v70 = vmul.f32 %v27, %v55
  %v71 = vmul.f32 %v28, %v55
  %v72 = vmul.f32 %v29, %v55
  %v73 = vmul.f32 %v30, %v55
  %v74 = vmul.f32 %v31, %v55
  %v75 = vmul.f32 %v32, %v55
  %v76 = vmul.f32 %v33, %v55
  %v77 = vmul.f32 %v34, %v55
  %v78 = vmul.f32 %v35, %v55
  %v79 = vmul.f32 %v36, %v55
  %v80 = vmul.f32 %v37, %v55
  %v81 = vmul.f32 %v38, %v55
  %v82 = vmul.f32 %v39, %v55
  %v83 = vmul.f32 %v40, %v55
  %v84 = vmul.f32 %v41, %v55
  %v85 = vmul.f32 %v42, %v55
  %v86 = vmul.f32 %v43, %v55
  %v87 = vmul.f32 %v44, %v55
  %v88 = vmul.f32 %v45, %v55
  %v89 = vmul.f32 %v46, %v55
  %v90 = vmul.f32 %v47, %v55
  %v91 = vmul.f32 %v48, %v55
  %v92 = vmul.f32 %v49, %v55
  %v93 = vld [vmem:[%s2] sm:$0x1]
  %v95 = vlaneseq
  %v96 = vshrl.u32 %v95, 7
  %v97 = vsub.s32 0, %v96
  %v98 = vrot.slane %v93, %v97
  %v100 = vadd.f32 %v57, %v98
  %v101 = vadd.f32 %v58, %v98
  %v102 = vadd.f32 %v59, %v98
  %v103 = vadd.f32 %v60, %v98
  %v104 = vadd.f32 %v61, %v98
  %v105 = vadd.f32 %v62, %v98
  %v106 = vadd.f32 %v63, %v98
  %v107 = vadd.f32 %v64, %v98
  %v108 = vadd.f32 %v65, %v98
  %v109 = vadd.f32 %v66, %v98
  %v110 = vadd.f32 %v67, %v98
  %v111 = vadd.f32 %v68, %v98
  %v112 = vadd.f32 %v69, %v98
  %v113 = vadd.f32 %v70, %v98
  %v114 = vadd.f32 %v71, %v98
  %v115 = vadd.f32 %v72, %v98
  %v116 = vadd.f32 %v73, %v98
  %v117 = vadd.f32 %v74, %v98
  %v118 = vadd.f32 %v75, %v98
  %v119 = vadd.f32 %v76, %v98
  %v120 = vadd.f32 %v77, %v98
  %v121 = vadd.f32 %v78, %v98
  %v122 = vadd.f32 %v79, %v98
  %v123 = vadd.f32 %v80, %v98
  %v124 = vadd.f32 %v81, %v98
  %v125 = vadd.f32 %v82, %v98
  %v126 = vadd.f32 %v83, %v98
  %v127 = vadd.f32 %v84, %v98
  %v128 = vadd.f32 %v85, %v98
  %v129 = vadd.f32 %v86, %v98
  %v130 = vadd.f32 %v87, %v98
  %v131 = vadd.f32 %v88, %v98
  %v132 = vadd.f32 %v89, %v98
  %v133 = vadd.f32 %v90, %v98
  %v134 = vadd.f32 %v91, %v98
  %v135 = vadd.f32 %v92, %v98
  %vm136 = vcmp.ge.f32.partialorder %v100, 0.0
  %vm137 = vcmp.ge.f32.partialorder %v101, 0.0
  %vm138 = vcmp.ge.f32.partialorder %v102, 0.0
  %vm139 = vcmp.ge.f32.partialorder %v103, 0.0
  %vm140 = vcmp.ge.f32.partialorder %v104, 0.0
  %vm141 = vcmp.ge.f32.partialorder %v105, 0.0
  %vm142 = vcmp.ge.f32.partialorder %v106, 0.0
  %vm143 = vcmp.ge.f32.partialorder %v107, 0.0
  %vm144 = vcmp.ge.f32.partialorder %v108, 0.0
  %vm145 = vcmp.ge.f32.partialorder %v109, 0.0
  %vm146 = vcmp.ge.f32.partialorder %v110, 0.0
  %vm147 = vcmp.ge.f32.partialorder %v111, 0.0
  %vm148 = vcmp.ge.f32.partialorder %v112, 0.0
  %vm149 = vcmp.ge.f32.partialorder %v113, 0.0
  %vm150 = vcmp.ge.f32.partialorder %v114, 0.0
  %vm151 = vcmp.ge.f32.partialorder %v115, 0.0
  %vm152 = vcmp.ge.f32.partialorder %v116, 0.0
  %vm153 = vcmp.ge.f32.partialorder %v117, 0.0
  %vm154 = vcmp.ge.f32.partialorder %v118, 0.0
  %vm155 = vcmp.ge.f32.partialorder %v119, 0.0
  %vm156 = vcmp.ge.f32.partialorder %v120, 0.0
  %vm157 = vcmp.ge.f32.partialorder %v121, 0.0
  %vm158 = vcmp.ge.f32.partialorder %v122, 0.0
  %vm159 = vcmp.ge.f32.partialorder %v123, 0.0
  %vm160 = vcmp.ge.f32.partialorder %v124, 0.0
  %vm161 = vcmp.ge.f32.partialorder %v125, 0.0
  %vm162 = vcmp.ge.f32.partialorder %v126, 0.0
  %vm163 = vcmp.ge.f32.partialorder %v127, 0.0
  %vm164 = vcmp.ge.f32.partialorder %v128, 0.0
  %vm165 = vcmp.ge.f32.partialorder %v129, 0.0
  %vm166 = vcmp.ge.f32.partialorder %v130, 0.0
  %vm167 = vcmp.ge.f32.partialorder %v131, 0.0
  %vm168 = vcmp.ge.f32.partialorder %v132, 0.0
  %vm169 = vcmp.ge.f32.partialorder %v133, 0.0
  %vm170 = vcmp.ge.f32.partialorder %v134, 0.0
  %vm171 = vcmp.ge.f32.partialorder %v135, 0.0
  %v172 = vmul.f32 %v100, 0.2
  %v173 = vmul.f32 %v101, 0.2
  %v174 = vmul.f32 %v102, 0.2
  %v175 = vmul.f32 %v103, 0.2
  %v176 = vmul.f32 %v104, 0.2
  %v177 = vmul.f32 %v105, 0.2
  %v178 = vmul.f32 %v106, 0.2
  %v179 = vmul.f32 %v107, 0.2
  %v180 = vmul.f32 %v108, 0.2
  %v181 = vmul.f32 %v109, 0.2
  %v182 = vmul.f32 %v110, 0.2
  %v183 = vmul.f32 %v111, 0.2
  %v184 = vmul.f32 %v112, 0.2
  %v185 = vmul.f32 %v113, 0.2
  %v186 = vmul.f32 %v114, 0.2
  %v187 = vmul.f32 %v115, 0.2
  %v188 = vmul.f32 %v116, 0.2
  %v189 = vmul.f32 %v117, 0.2
  %v190 = vmul.f32 %v118, 0.2
  %v191 = vmul.f32 %v119, 0.2
  %v192 = vmul.f32 %v120, 0.2
  %v193 = vmul.f32 %v121, 0.2
  %v194 = vmul.f32 %v122, 0.2
  %v195 = vmul.f32 %v123, 0.2
  %v196 = vmul.f32 %v124, 0.2
  %v197 = vmul.f32 %v125, 0.2
  %v198 = vmul.f32 %v126, 0.2
  %v199 = vmul.f32 %v127, 0.2
  %v200 = vmul.f32 %v128, 0.2
  %v201 = vmul.f32 %v129, 0.2
  %v202 = vmul.f32 %v130, 0.2
  %v203 = vmul.f32 %v131, 0.2
  %v204 = vmul.f32 %v132, 0.2
  %v205 = vmul.f32 %v133, 0.2
  %v206 = vmul.f32 %v134, 0.2
  %v207 = vmul.f32 %v135, 0.2
  %v208 = vsel %vm136, %v100, %v172
  %v209 = vsel %vm137, %v101, %v173
  %v210 = vsel %vm138, %v102, %v174
  %v211 = vsel %vm139, %v103, %v175
  %v212 = vsel %vm140, %v104, %v176
  %v213 = vsel %vm141, %v105, %v177
  %v214 = vsel %vm142, %v106, %v178
  %v215 = vsel %vm143, %v107, %v179
  %v216 = vsel %vm144, %v108, %v180
  %v217 = vsel %vm145, %v109, %v181
  %v218 = vsel %vm146, %v110, %v182
  %v219 = vsel %vm147, %v111, %v183
  %v220 = vsel %vm148, %v112, %v184
  %v221 = vsel %vm149, %v113, %v185
  %v222 = vsel %vm150, %v114, %v186
  %v223 = vsel %vm151, %v115, %v187
  %v224 = vsel %vm152, %v116, %v188
  %v225 = vsel %vm153, %v117, %v189
  %v226 = vsel %vm154, %v118, %v190
  %v227 = vsel %vm155, %v119, %v191
  %v228 = vsel %vm156, %v120, %v192
  %v229 = vsel %vm157, %v121, %v193
  %v230 = vsel %vm158, %v122, %v194
  %v231 = vsel %vm159, %v123, %v195
  %v232 = vsel %vm160, %v124, %v196
  %v233 = vsel %vm161, %v125, %v197
  %v234 = vsel %vm162, %v126, %v198
  %v235 = vsel %vm163, %v127, %v199
  %v236 = vsel %vm164, %v128, %v200
  %v237 = vsel %vm165, %v129, %v201
  %v238 = vsel %vm166, %v130, %v202
  %v239 = vsel %vm167, %v131, %v203
  %v240 = vsel %vm168, %v132, %v204
  %v241 = vsel %vm169, %v133, %v205
  %v242 = vsel %vm170, %v134, %v206
  %v243 = vsel %vm171, %v135, %v207
  %v244 = vpack.c.bf16 %v209, %v208
  %v245 = vpack.c.bf16 %v211, %v210
  %v246 = vpack.c.bf16 %v213, %v212
  %v247 = vpack.c.bf16 %v215, %v214
  %v248 = vpack.c.bf16 %v217, %v216
  %v249 = vpack.c.bf16 %v219, %v218
  %v250 = vpack.c.bf16 %v221, %v220
  %v251 = vpack.c.bf16 %v223, %v222
  %v252 = vpack.c.bf16 %v225, %v224
  %v253 = vpack.c.bf16 %v227, %v226
  %v254 = vpack.c.bf16 %v229, %v228
  %v255 = vpack.c.bf16 %v231, %v230
  %v256 = vpack.c.bf16 %v233, %v232
  %v257 = vpack.c.bf16 %v235, %v234
  %v258 = vpack.c.bf16 %v237, %v236
  %v259 = vpack.c.bf16 %v239, %v238
  %v260 = vpack.c.bf16 %v241, %v240
  %v261 = vpack.c.bf16 %v243, %v242
  %v280 = vunpack.c.l.b16 %v244
  %v281 = vunpack.c.h.b16 %v244
  %v282 = vunpack.c.l.b16 %v245
  %v283 = vunpack.c.h.b16 %v245
  %v284 = vunpack.c.l.b16 %v246
  %v285 = vunpack.c.h.b16 %v246
  %v286 = vunpack.c.l.b16 %v247
  %v287 = vunpack.c.h.b16 %v247
  %v288 = vunpack.c.l.b16 %v248
  %v289 = vunpack.c.h.b16 %v248
  %v290 = vunpack.c.l.b16 %v249
  %v291 = vunpack.c.h.b16 %v249
  %v292 = vunpack.c.l.b16 %v250
  %v293 = vunpack.c.h.b16 %v250
  %v294 = vunpack.c.l.b16 %v251
  %v295 = vunpack.c.h.b16 %v251
  %v296 = vunpack.c.l.b16 %v252
  %v297 = vunpack.c.h.b16 %v252
  %v298 = vunpack.c.l.b16 %v253
  %v299 = vunpack.c.h.b16 %v253
  %v300 = vunpack.c.l.b16 %v254
  %v301 = vunpack.c.h.b16 %v254
  %v302 = vunpack.c.l.b16 %v255
  %v303 = vunpack.c.h.b16 %v255
  %v304 = vunpack.c.l.b16 %v256
  %v305 = vunpack.c.h.b16 %v256
  %v306 = vunpack.c.l.b16 %v257
  %v307 = vunpack.c.h.b16 %v257
  %v308 = vunpack.c.l.b16 %v258
  %v309 = vunpack.c.h.b16 %v258
  %v310 = vunpack.c.l.b16 %v259
  %v311 = vunpack.c.h.b16 %v259
  %v312 = vunpack.c.l.b16 %v260
  %v313 = vunpack.c.h.b16 %v260
  %v314 = vunpack.c.l.b16 %v261
  %v315 = vunpack.c.h.b16 %v261
  %v316 = vpack.c.b16 %v280, %v280
  %v317 = vpack.c.b16 %v281, %v281
  %v318 = vpack.c.b16 %v282, %v282
  %v319 = vpack.c.b16 %v283, %v283
  %v320 = vpack.c.b16 %v284, %v284
  %v321 = vpack.c.b16 %v285, %v285
  %v322 = vpack.c.b16 %v286, %v286
  %v323 = vpack.c.b16 %v287, %v287
  %v324 = vpack.c.b16 %v288, %v288
  %v325 = vpack.c.b16 %v289, %v289
  %v326 = vpack.c.b16 %v290, %v290
  %v327 = vpack.c.b16 %v291, %v291
  %v328 = vpack.c.b16 %v292, %v292
  %v329 = vpack.c.b16 %v293, %v293
  %v330 = vpack.c.b16 %v294, %v294
  %v331 = vpack.c.b16 %v295, %v295
  %v332 = vpack.c.b16 %v296, %v296
  %v333 = vpack.c.b16 %v297, %v297
  %v334 = vpack.c.b16 %v298, %v298
  %v335 = vpack.c.b16 %v299, %v299
  %v336 = vpack.c.b16 %v300, %v300
  %v337 = vpack.c.b16 %v301, %v301
  %v338 = vpack.c.b16 %v302, %v302
  %v339 = vpack.c.b16 %v303, %v303
  %v340 = vpack.c.b16 %v304, %v304
  %v341 = vpack.c.b16 %v305, %v305
  %v342 = vpack.c.b16 %v306, %v306
  %v343 = vpack.c.b16 %v307, %v307
  %v344 = vpack.c.b16 %v308, %v308
  %v345 = vpack.c.b16 %v309, %v309
  %v346 = vpack.c.b16 %v310, %v310
  %v347 = vpack.c.b16 %v311, %v311
  %v348 = vpack.c.b16 %v312, %v312
  %v349 = vpack.c.b16 %v313, %v313
  %v350 = vpack.c.b16 %v314, %v314
  %v351 = vpack.c.b16 %v315, %v315
  %vm388 = vcmask 257024
  %389 = vst.msk [vmem:[%s3] sm:$0xf] %vm388, %v316
  %390 = vst.msk [vmem:[%s3 + $0x4] sm:$0xf] %vm388, %v317
  %391 = vst.msk [vmem:[%s3 + $0x8] sm:$0xf] %vm388, %v318
  %392 = vst.msk [vmem:[%s3 + $0xc] sm:$0xf] %vm388, %v319
  %393 = vst.msk [vmem:[%s3 + $0x10] sm:$0xf] %vm388, %v320
  %394 = vst.msk [vmem:[%s3 + $0x14] sm:$0xf] %vm388, %v321
  %395 = vst.msk [vmem:[%s3 + $0x18] sm:$0xf] %vm388, %v322
  %396 = vst.msk [vmem:[%s3 + $0x1c] sm:$0xf] %vm388, %v323
  %397 = vst.msk [vmem:[%s3 + $0x20] sm:$0xf] %vm388, %v324
  %398 = vst.msk [vmem:[%s3 + $0x24] sm:$0xf] %vm388, %v325
  %399 = vst.msk [vmem:[%s3 + $0x28] sm:$0xf] %vm388, %v326
  %400 = vst.msk [vmem:[%s3 + $0x2c] sm:$0xf] %vm388, %v327
  %401 = vst.msk [vmem:[%s3 + $0x30] sm:$0xf] %vm388, %v328
  %402 = vst.msk [vmem:[%s3 + $0x34] sm:$0xf] %vm388, %v329
  %403 = vst.msk [vmem:[%s3 + $0x38] sm:$0xf] %vm388, %v330
  %404 = vst.msk [vmem:[%s3 + $0x3c] sm:$0xf] %vm388, %v331
  %405 = vst.msk [vmem:[%s3 + $0x40] sm:$0xf] %vm388, %v332
  %406 = vst.msk [vmem:[%s3 + $0x44] sm:$0xf] %vm388, %v333
  %407 = vst.msk [vmem:[%s3 + $0x48] sm:$0xf] %vm388, %v334
  %408 = vst.msk [vmem:[%s3 + $0x4c] sm:$0xf] %vm388, %v335
  %409 = vst.msk [vmem:[%s3 + $0x50] sm:$0xf] %vm388, %v336
  %410 = vst.msk [vmem:[%s3 + $0x54] sm:$0xf] %vm388, %v337
  %411 = vst.msk [vmem:[%s3 + $0x58] sm:$0xf] %vm388, %v338
  %412 = vst.msk [vmem:[%s3 + $0x5c] sm:$0xf] %vm388, %v339
  %413 = vst.msk [vmem:[%s3 + $0x60] sm:$0xf] %vm388, %v340
  %414 = vst.msk [vmem:[%s3 + $0x64] sm:$0xf] %vm388, %v341
  %415 = vst.msk [vmem:[%s3 + $0x68] sm:$0xf] %vm388, %v342
  %416 = vst.msk [vmem:[%s3 + $0x6c] sm:$0xf] %vm388, %v343
  %417 = vst.msk [vmem:[%s3 + $0x70] sm:$0xf] %vm388, %v344
  %418 = vst.msk [vmem:[%s3 + $0x74] sm:$0xf] %vm388, %v345
  %419 = vst.msk [vmem:[%s3 + $0x78] sm:$0xf] %vm388, %v346
  %420 = vst.msk [vmem:[%s3 + $0x7c] sm:$0xf] %vm388, %v347
  %421 = vst.msk [vmem:[%s3 + $0x80] sm:$0xf] %vm388, %v348
  %422 = vst.msk [vmem:[%s3 + $0x84] sm:$0xf] %vm388, %v349
  %423 = vst.msk [vmem:[%s3 + $0x88] sm:$0xf] %vm388, %v350
  %424 = vst.msk [vmem:[%s3 + $0x8c] sm:$0xf] %vm388, %v351
  // Predicated region
  $region14: #{stage2_d_forward.22} parent=0 // pred_check
    _
  $region15: #{stage2_d_forward.22} parent=0 // pred_check_branch
    %426 = sbr.rel (0) target = $region17
  $region16: #{stage2_d_forward.22} parent=0 // pred_region
    _
  $region17: #{stage2_d_forward.22} parent=0 // pred_fallthru
    _
  // Predicated region
  $region18: #{stage2_d_forward.22} parent=0 // pred_check
    _
  $region19: #{stage2_d_forward.22} parent=0 // pred_check_branch
    %428 = sbr.rel (0) target = $region21
  $region20: #{stage2_d_forward.22} parent=0 // pred_region
    _
  $region21: #{stage2_d_forward.22} parent=0 // pred_fallthru
    _

// kernel: stage2_d_forward.23
$region0: #{stage2_d_forward.23}
  #allocation0 [shape = 'u32[]', space=smem, size = 0x4, offset = 0x4, fixed_abs, tag = 'smem constant byte address 0x4 - core index']
  #allocation1 [shape = 'u32[144,128]{1,0:T(1,128)}', space=vmem, size = 0x12000, scoped, tag = 'internal scratch']
  %s0 = inlined_call_operand.vmem [shape: bf16[72,512], index: 0, kind: input, shape index: {}]
  %s1 = inlined_call_operand.vmem [shape: bf16[512,128], index: 1, kind: input, shape index: {}]
  %s2 = inlined_call_operand.vmem [shape: f32[72,64], index: 2, kind: output, shape index: {0}]
  %s3 = inlined_call_operand.vmem [shape: f32[1,2,64], index: 3, kind: output, shape index: {1}]
  %4 = xla_tuple %s2, %s3
  %s5 = sld [smem:[#allocation0]]
  $region26: #{stage2_d_forward.23} parent=0
    _
  %s7 = ssub.s32 1, %s5
  %s8 = scalar_select 0, %s7, %s5
  // Predicated region
  $region2: #{stage2_d_forward.23} parent=0 // pred_check
    _
  $region3: #{stage2_d_forward.23} parent=0 // pred_check_branch
    %10 = sbr.rel (0) target = $region5
  $region4: #{stage2_d_forward.23} parent=0 // pred_region
    _
  $region5: #{stage2_d_forward.23} parent=0 // pred_fallthru
    _
  // Predicated region
  $region6: #{stage2_d_forward.23} parent=0 // pred_check
    _
  $region7: #{stage2_d_forward.23} parent=0 // pred_check_branch
    %12 = sbr.rel (0) target = $region9
  $region8: #{stage2_d_forward.23} parent=0 // pred_region
    _
  $region9: #{stage2_d_forward.23} parent=0 // pred_fallthru
    _
  %v14 = vld [vmem:[%s0] sm:$0xff]
  %v15 = vld [vmem:[%s0 + $0x8] sm:$0xff]
  %v16 = vld [vmem:[%s0 + $0x10] sm:$0xff]
  %v17 = vld [vmem:[%s0 + $0x18] sm:$0xff]
  %v18 = vld [vmem:[%s0 + $0x20] sm:$0xff]
  %v19 = vld [vmem:[%s0 + $0x28] sm:$0xff]
  %v20 = vld [vmem:[%s0 + $0x30] sm:$0xff]
  %v21 = vld [vmem:[%s0 + $0x38] sm:$0xff]
  %v22 = vld [vmem:[%s0 + $0x40] sm:$0xff]
  %v23 = vld [vmem:[%s0 + $0x48] sm:$0xff]
  %v24 = vld [vmem:[%s0 + $0x50] sm:$0xff]
  %v25 = vld [vmem:[%s0 + $0x58] sm:$0xff]
  %v26 = vld [vmem:[%s0 + $0x60] sm:$0xff]
  %v27 = vld [vmem:[%s0 + $0x68] sm:$0xff]
  %v28 = vld [vmem:[%s0 + $0x70] sm:$0xff]
  %v29 = vld [vmem:[%s0 + $0x78] sm:$0xff]
  %v30 = vld [vmem:[%s0 + $0x80] sm:$0xff]
  %v31 = vld [vmem:[%s0 + $0x88] sm:$0xff]
  %v32 = vld [vmem:[%s1] sm:$0xf]
  %v33 = vld [vmem:[%s1 + $0x4] sm:$0xf]
  %v34 = vld [vmem:[%s1 + $0x8] sm:$0xf]
  %v35 = vld [vmem:[%s1 + $0xc] sm:$0xf]
  %v36 = vld [vmem:[%s1 + $0x10] sm:$0xf]
  %v37 = vld [vmem:[%s1 + $0x14] sm:$0xf]
  %v38 = vld [vmem:[%s1 + $0x18] sm:$0xf]
  %v39 = vld [vmem:[%s1 + $0x1c] sm:$0xf]
  %v40 = vld [vmem:[%s1 + $0x20] sm:$0xf]
  %v41 = vld [vmem:[%s1 + $0x24] sm:$0xf]
  %v42 = vld [vmem:[%s1 + $0x28] sm:$0xf]
  %v43 = vld [vmem:[%s1 + $0x2c] sm:$0xf]
  %v44 = vld [vmem:[%s1 + $0x30] sm:$0xf]
  %v45 = vld [vmem:[%s1 + $0x34] sm:$0xf]
  %v46 = vld [vmem:[%s1 + $0x38] sm:$0xf]
  %v47 = vld [vmem:[%s1 + $0x3c] sm:$0xf]
  %v48 = vld [vmem:[%s1 + $0x40] sm:$0xf]
  %v49 = vld [vmem:[%s1 + $0x44] sm:$0xf]
  %v50 = vld [vmem:[%s1 + $0x48] sm:$0xf]
  %v51 = vld [vmem:[%s1 + $0x4c] sm:$0xf]
  %v52 = vld [vmem:[%s1 + $0x50] sm:$0xf]
  %v53 = vld [vmem:[%s1 + $0x54] sm:$0xf]
  %v54 = vld [vmem:[%s1 + $0x58] sm:$0xf]
  %v55 = vld [vmem:[%s1 + $0x5c] sm:$0xf]
  %v56 = vld [vmem:[%s1 + $0x60] sm:$0xf]
  %v57 = vld [vmem:[%s1 + $0x64] sm:$0xf]
  %v58 = vld [vmem:[%s1 + $0x68] sm:$0xf]
  %v59 = vld [vmem:[%s1 + $0x6c] sm:$0xf]
  %v60 = vld [vmem:[%s1 + $0x70] sm:$0xf]
  %v61 = vld [vmem:[%s1 + $0x74] sm:$0xf]
  %v62 = vld [vmem:[%s1 + $0x78] sm:$0xf]
  %v63 = vld [vmem:[%s1 + $0x7c] sm:$0xf]
  %v64 = vld [vmem:[%s1 + $0x80] sm:$0xf]
  %v65 = vld [vmem:[%s1 + $0x84] sm:$0xf]
  %v66 = vld [vmem:[%s1 + $0x88] sm:$0xf]
  %v67 = vld [vmem:[%s1 + $0x8c] sm:$0xf]
  %v68 = vld [vmem:[%s1 + $0x90] sm:$0xf]
  %v69 = vld [vmem:[%s1 + $0x94] sm:$0xf]
  %v70 = vld [vmem:[%s1 + $0x98] sm:$0xf]
  %v71 = vld [vmem:[%s1 + $0x9c] sm:$0xf]
  %v72 = vld [vmem:[%s1 + $0xa0] sm:$0xf]
  %v73 = vld [vmem:[%s1 + $0xa4] sm:$0xf]
  %v74 = vld [vmem:[%s1 + $0xa8] sm:$0xf]
  %v75 = vld [vmem:[%s1 + $0xac] sm:$0xf]
  %v76 = vld [vmem:[%s1 + $0xb0] sm:$0xf]
  %v77 = vld [vmem:[%s1 + $0xb4] sm:$0xf]
  %v78 = vld [vmem:[%s1 + $0xb8] sm:$0xf]
  %v79 = vld [vmem:[%s1 + $0xbc] sm:$0xf]
  %v80 = vld [vmem:[%s1 + $0xc0] sm:$0xf]
  %v81 = vld [vmem:[%s1 + $0xc4] sm:$0xf]
  %v82 = vld [vmem:[%s1 + $0xc8] sm:$0xf]
  %v83 = vld [vmem:[%s1 + $0xcc] sm:$0xf]
  %v84 = vld [vmem:[%s1 + $0xd0] sm:$0xf]
  %v85 = vld [vmem:[%s1 + $0xd4] sm:$0xf]
  %v86 = vld [vmem:[%s1 + $0xd8] sm:$0xf]
  %v87 = vld [vmem:[%s1 + $0xdc] sm:$0xf]
  %v88 = vld [vmem:[%s1 + $0xe0] sm:$0xf]
  %v89 = vld [vmem:[%s1 + $0xe4] sm:$0xf]
  %v90 = vld [vmem:[%s1 + $0xe8] sm:$0xf]
  %v91 = vld [vmem:[%s1 + $0xec] sm:$0xf]
  %v92 = vld [vmem:[%s1 + $0xf0] sm:$0xf]
  %v93 = vld [vmem:[%s1 + $0xf4] sm:$0xf]
  %v94 = vld [vmem:[%s1 + $0xf8] sm:$0xf]
  %v95 = vld [vmem:[%s1 + $0xfc] sm:$0xf]
  %v114 = vunpack.c.l.b16 %v14
  %v115 = vunpack.c.h.b16 %v14
  %v116 = vunpack.c.l.b16 %v15
  %v117 = vunpack.c.h.b16 %v15
  %v118 = vunpack.c.l.b16 %v16
  %v119 = vunpack.c.h.b16 %v16
  %v120 = vunpack.c.l.b16 %v17
  %v121 = vunpack.c.h.b16 %v17
  %v122 = vunpack.c.l.b16 %v18
  %v123 = vunpack.c.h.b16 %v18
  %v124 = vunpack.c.l.b16 %v19
  %v125 = vunpack.c.h.b16 %v19
  %v126 = vunpack.c.l.b16 %v20
  %v127 = vunpack.c.h.b16 %v20
  %v128 = vunpack.c.l.b16 %v21
  %v129 = vunpack.c.h.b16 %v21
  %v130 = vunpack.c.l.b16 %v22
  %v131 = vunpack.c.h.b16 %v22
  %v132 = vunpack.c.l.b16 %v23
  %v133 = vunpack.c.h.b16 %v23
  %v134 = vunpack.c.l.b16 %v24
  %v135 = vunpack.c.h.b16 %v24
  %v136 = vunpack.c.l.b16 %v25
  %v137 = vunpack.c.h.b16 %v25
  %v138 = vunpack.c.l.b16 %v26
  %v139 = vunpack.c.h.b16 %v26
  %v140 = vunpack.c.l.b16 %v27
  %v141 = vunpack.c.h.b16 %v27
  %v142 = vunpack.c.l.b16 %v28
  %v143 = vunpack.c.h.b16 %v28
  %v144 = vunpack.c.l.b16 %v29
  %v145 = vunpack.c.h.b16 %v29
  %v146 = vunpack.c.l.b16 %v30
  %v147 = vunpack.c.h.b16 %v30
  %v148 = vunpack.c.l.b16 %v31
  %v149 = vunpack.c.h.b16 %v31
  %v150 = vpack.c.b16 %v118, %v114
  %v151 = vpack.c.b16 %v119, %v115
  %v152 = vpack.c.b16 %v120, %v116
  %v153 = vpack.c.b16 %v121, %v117
  %v154 = vpack.c.b16 %v126, %v122
  %v155 = vpack.c.b16 %v127, %v123
  %v156 = vpack.c.b16 %v128, %v124
  %v157 = vpack.c.b16 %v129, %v125
  %v158 = vpack.c.b16 %v134, %v130
  %v159 = vpack.c.b16 %v135, %v131
  %v160 = vpack.c.b16 %v136, %v132
  %v161 = vpack.c.b16 %v137, %v133
  %v162 = vpack.c.b16 %v142, %v138
  %v163 = vpack.c.b16 %v143, %v139
  %v164 = vpack.c.b16 %v144, %v140
  %v165 = vpack.c.b16 %v145, %v141
  %v166 = vpack.c.b16 %v146, %v146
  %v167 = vpack.c.b16 %v147, %v147
  %v168 = vpack.c.b16 %v148, %v148
  %v169 = vpack.c.b16 %v149, %v149
  %v254 = vunpack.c.l.b16 %v32
  %v255 = vunpack.c.l.b16 %v33
  %v256 = vunpack.c.l.b16 %v34
  %v257 = vunpack.c.l.b16 %v35
  %v258 = vunpack.c.l.b16 %v36
  %v259 = vunpack.c.l.b16 %v37
  %v260 = vunpack.c.l.b16 %v38
  %v261 = vunpack.c.l.b16 %v39
  %v262 = vunpack.c.l.b16 %v40
  %v263 = vunpack.c.l.b16 %v41
  %v264 = vunpack.c.l.b16 %v42
  %v265 = vunpack.c.l.b16 %v43
  %v266 = vunpack.c.l.b16 %v44
  %v267 = vunpack.c.l.b16 %v45
  %v268 = vunpack.c.l.b16 %v46
  %v269 = vunpack.c.l.b16 %v47
  %v270 = vunpack.c.l.b16 %v48
  %v271 = vunpack.c.l.b16 %v49
  %v272 = vunpack.c.l.b16 %v50
  %v273 = vunpack.c.l.b16 %v51
  %v274 = vunpack.c.l.b16 %v52
  %v275 = vunpack.c.l.b16 %v53
  %v276 = vunpack.c.l.b16 %v54
  %v277 = vunpack.c.l.b16 %v55
  %v278 = vunpack.c.l.b16 %v56
  %v279 = vunpack.c.l.b16 %v57
  %v280 = vunpack.c.l.b16 %v58
  %v281 = vunpack.c.l.b16 %v59
  %v282 = vunpack.c.l.b16 %v60
  %v283 = vunpack.c.l.b16 %v61
  %v284 = vunpack.c.l.b16 %v62
  %v285 = vunpack.c.l.b16 %v63
  %v286 = vunpack.c.l.b16 %v64
  %v287 = vunpack.c.l.b16 %v65
  %v288 = vunpack.c.l.b16 %v66
  %v289 = vunpack.c.l.b16 %v67
  %v290 = vunpack.c.l.b16 %v68
  %v291 = vunpack.c.l.b16 %v69
  %v292 = vunpack.c.l.b16 %v70
  %v293 = vunpack.c.l.b16 %v71
  %v294 = vunpack.c.l.b16 %v72
  %v295 = vunpack.c.l.b16 %v73
  %v296 = vunpack.c.l.b16 %v74
  %v297 = vunpack.c.l.b16 %v75
  %v298 = vunpack.c.l.b16 %v76
  %v299 = vunpack.c.l.b16 %v77
  %v300 = vunpack.c.l.b16 %v78
  %v301 = vunpack.c.l.b16 %v79
  %v302 = vunpack.c.l.b16 %v80
  %v303 = vunpack.c.l.b16 %v81
  %v304 = vunpack.c.l.b16 %v82
  %v305 = vunpack.c.l.b16 %v83
  %v306 = vunpack.c.l.b16 %v84
  %v307 = vunpack.c.l.b16 %v85
  %v308 = vunpack.c.l.b16 %v86
  %v309 = vunpack.c.l.b16 %v87
  %v310 = vunpack.c.l.b16 %v88
  %v311 = vunpack.c.l.b16 %v89
  %v312 = vunpack.c.l.b16 %v90
  %v313 = vunpack.c.l.b16 %v91
  %v314 = vunpack.c.l.b16 %v92
  %v315 = vunpack.c.l.b16 %v93
  %v316 = vunpack.c.l.b16 %v94
  %v317 = vunpack.c.l.b16 %v95
  %v318 = vpack.c.b16 %v255, %v254
  %v319 = vpack.c.b16 %v257, %v256
  %v320 = vpack.c.b16 %v259, %v258
  %v321 = vpack.c.b16 %v261, %v260
  %v322 = vpack.c.b16 %v263, %v262
  %v323 = vpack.c.b16 %v265, %v264
  %v324 = vpack.c.b16 %v267, %v266
  %v325 = vpack.c.b16 %v269, %v268
  %v326 = vpack.c.b16 %v271, %v270
  %v327 = vpack.c.b16 %v273, %v272
  %v328 = vpack.c.b16 %v275, %v274
  %v329 = vpack.c.b16 %v277, %v276
  %v330 = vpack.c.b16 %v279, %v278
  %v331 = vpack.c.b16 %v281, %v280
  %v332 = vpack.c.b16 %v283, %v282
  %v333 = vpack.c.b16 %v285, %v284
  %v334 = vpack.c.b16 %v287, %v286
  %v335 = vpack.c.b16 %v289, %v288
  %v336 = vpack.c.b16 %v291, %v290
  %v337 = vpack.c.b16 %v293, %v292
  %v338 = vpack.c.b16 %v295, %v294
  %v339 = vpack.c.b16 %v297, %v296
  %v340 = vpack.c.b16 %v299, %v298
  %v341 = vpack.c.b16 %v301, %v300
  %v342 = vpack.c.b16 %v303, %v302
  %v343 = vpack.c.b16 %v305, %v304
  %v344 = vpack.c.b16 %v307, %v306
  %v345 = vpack.c.b16 %v309, %v308
  %v346 = vpack.c.b16 %v311, %v310
  %v347 = vpack.c.b16 %v313, %v312
  %v348 = vpack.c.b16 %v315, %v314
  %v349 = vpack.c.b16 %v317, %v316
  %382 = vmatprep.subr.bf16.mxu0 0
  %383 = vmatpush1.bf16.msra.mxu0 %v325
  %384 = vmatprep.subr.bf16.mxu0 0
  %385 = vmatpush1.bf16.msra.mxu0 %v324
  %386 = vmatprep.subr.bf16.mxu0 0
  %387 = vmatpush1.bf16.msra.mxu0 %v323
  %388 = vmatprep.subr.bf16.mxu0 0
  %389 = vmatpush1.bf16.msra.mxu0 %v322
  %390 = vmatprep.subr.bf16.mxu0 0
  %391 = vmatpush1.bf16.msra.mxu0 %v321
  %392 = vmatprep.subr.bf16.mxu0 0
  %393 = vmatpush1.bf16.msra.mxu0 %v320
  %394 = vmatprep.subr.bf16.mxu0 0
  %395 = vmatpush1.bf16.msra.mxu0 %v319
  %396 = vmatprep.subr.bf16.mxu0 0
  %397 = vmatpush1.bf16.msra.mxu0 %v318
  %398 = vmatprep.subr.bf16.mxu0 0
  %399 = vmatpush2.bf16.msra.mxu0 %v333
  %400 = vmatprep.subr.bf16.mxu0 0
  %401 = vmatpush2.bf16.msra.mxu0 %v332
  %402 = vmatprep.subr.bf16.mxu0 0
  %403 = vmatpush2.bf16.msra.mxu0 %v331
  %404 = vmatprep.subr.bf16.mxu0 0
  %405 = vmatpush2.bf16.msra.mxu0 %v330
  %406 = vmatprep.subr.bf16.mxu0 0
  %407 = vmatpush2.bf16.msra.mxu0 %v329
  %408 = vmatprep.subr.bf16.mxu0 0
  %409 = vmatpush2.bf16.msra.mxu0 %v328
  %410 = vmatprep.subr.bf16.mxu0 0
  %411 = vmatpush2.bf16.msra.mxu0 %v327
  %412 = vmatprep.subr.bf16.mxu0 0
  %413 = vmatpush2.bf16.msra.mxu0 %v326
  %414 = vmatprep.mubr.bf16.mxu0 %v151
  %415 = vmatmul.mubr.bf16.gmra.mxu0 %v150
  %v416 = vpop.f32.mrf.mxu0
  %v417 = vadd.f32 0.0, %v416
  %v418 = vpop.f32.mrf.mxu0
  %v419 = vpop.f32.mrf.mxu0
  %v420 = vadd.f32 0.0, %v419
  %v421 = vpop.f32.mrf.mxu0
  %422 = vmatprep.mubr.bf16.mxu0 %v155
  %423 = vmatmul.mubr.bf16.gmra.mxu0 %v154
  %v424 = vpop.f32.mrf.mxu0
  %v425 = vadd.f32 0.0, %v424
  %v426 = vpop.f32.mrf.mxu0
  %v427 = vpop.f32.mrf.mxu0
  %v428 = vadd.f32 0.0, %v427
  %v429 = vpop.f32.mrf.mxu0
  %430 = vmatprep.mubr.bf16.mxu0 %v159
  %431 = vmatmul.mubr.bf16.gmra.mxu0 %v158
  %v432 = vpop.f32.mrf.mxu0
  %v433 = vadd.f32 0.0, %v432
  %v434 = vpop.f32.mrf.mxu0
  %v435 = vpop.f32.mrf.mxu0
  %v436 = vadd.f32 0.0, %v435
  %v437 = vpop.f32.mrf.mxu0
  %438 = vmatprep.mubr.bf16.mxu0 %v163
  %439 = vmatmul.mubr.bf16.gmra.mxu0 %v162
  %v440 = vpop.f32.mrf.mxu0
  %v441 = vadd.f32 0.0, %v440
  %v442 = vpop.f32.mrf.mxu0
  %v443 = vpop.f32.mrf.mxu0
  %v444 = vadd.f32 0.0, %v443
  %v445 = vpop.f32.mrf.mxu0
  %446 = vmatprep.mubr.bf16.mxu0 %v167
  %447 = vmatmul.mubr.bf16.gmra.mxu0 %v166
  %v448 = vpop.f32.mrf.mxu0
  %v449 = vadd.f32 0.0, %v448
  %v450 = vpop.f32.mrf.mxu0
  %v451 = vpop.f32.mrf.mxu0
  %v452 = vpop.f32.mrf.mxu0
  %453 = vdwg.mxu0
  %454 = vmatprep.subr.bf16.mxu0 0
  %455 = vmatpush1.bf16.msra.mxu0 %v341
  %456 = vmatprep.subr.bf16.mxu0 0
  %457 = vmatpush1.bf16.msra.mxu0 %v340
  %458 = vmatprep.subr.bf16.mxu0 0
  %459 = vmatpush1.bf16.msra.mxu0 %v339
  %460 = vmatprep.subr.bf16.mxu0 0
  %461 = vmatpush1.bf16.msra.mxu0 %v338
  %462 = vmatprep.subr.bf16.mxu0 0
  %463 = vmatpush1.bf16.msra.mxu0 %v337
  %464 = vmatprep.subr.bf16.mxu0 0
  %465 = vmatpush1.bf16.msra.mxu0 %v336
  %466 = vmatprep.subr.bf16.mxu0 0
  %467 = vmatpush1.bf16.msra.mxu0 %v335
  %468 = vmatprep.subr.bf16.mxu0 0
  %469 = vmatpush1.bf16.msra.mxu0 %v334
  %470 = vmatprep.subr.bf16.mxu0 0
  %471 = vmatpush2.bf16.msra.mxu0 %v349
  %472 = vmatprep.subr.bf16.mxu0 0
  %473 = vmatpush2.bf16.msra.mxu0 %v348
  %474 = vmatprep.subr.bf16.mxu0 0
  %475 = vmatpush2.bf16.msra.mxu0 %v347
  %476 = vmatprep.subr.bf16.mxu0 0
  %477 = vmatpush2.bf16.msra.mxu0 %v346
  %478 = vmatprep.subr.bf16.mxu0 0
  %479 = vmatpush2.bf16.msra.mxu0 %v345
  %480 = vmatprep.subr.bf16.mxu0 0
  %481 = vmatpush2.bf16.msra.mxu0 %v344
  %482 = vmatprep.subr.bf16.mxu0 0
  %483 = vmatpush2.bf16.msra.mxu0 %v343
  %484 = vmatprep.subr.bf16.mxu0 0
  %485 = vmatpush2.bf16.msra.mxu0 %v342
  %486 = vmatprep.mubr.bf16.mxu0 %v153
  %487 = vmatmul.mubr.bf16.gmra.mxu0 %v152
  %v488 = vpop.f32.mrf.mxu0
  %v489 = vadd.f32 %v417, %v488
  %v490 = vpop.f32.mrf.mxu0
  %v491 = vpop.f32.mrf.mxu0
  %v492 = vadd.f32 %v420, %v491
  %v493 = vpop.f32.mrf.mxu0
  %494 = vmatprep.mubr.bf16.mxu0 %v157
  %495 = vmatmul.mubr.bf16.gmra.mxu0 %v156
  %v496 = vpop.f32.mrf.mxu0
  %v497 = vadd.f32 %v425, %v496
  %v498 = vpop.f32.mrf.mxu0
  %v499 = vpop.f32.mrf.mxu0
  %v500 = vadd.f32 %v428, %v499
  %v501 = vpop.f32.mrf.mxu0
  %502 = vmatprep.mubr.bf16.mxu0 %v161
  %503 = vmatmul.mubr.bf16.gmra.mxu0 %v160
  %v504 = vpop.f32.mrf.mxu0
  %v505 = vadd.f32 %v433, %v504
  %v506 = vpop.f32.mrf.mxu0
  %v507 = vpop.f32.mrf.mxu0
  %v508 = vadd.f32 %v436, %v507
  %v509 = vpop.f32.mrf.mxu0
  %510 = vmatprep.mubr.bf16.mxu0 %v165
  %511 = vmatmul.mubr.bf16.gmra.mxu0 %v164
  %v512 = vpop.f32.mrf.mxu0
  %v513 = vadd.f32 %v441, %v512
  %v514 = vpop.f32.mrf.mxu0
  %v515 = vpop.f32.mrf.mxu0
  %v516 = vadd.f32 %v444, %v515
  %v517 = vpop.f32.mrf.mxu0
  %518 = vmatprep.mubr.bf16.mxu0 %v169
  %519 = vmatmul.mubr.bf16.gmra.mxu0 %v168
  %v520 = vpop.f32.mrf.mxu0
  %v521 = vadd.f32 %v449, %v520
  %v522 = vpop.f32.mrf.mxu0
  %v523 = vpop.f32.mrf.mxu0
  %v524 = vpop.f32.mrf.mxu0
  %525 = vdwg.mxu0
  %vm526 = vcmask 523264
  %527 = vst.msk [vmem:[%s2] sm:$0xff] %vm526, %v489
  %528 = vst.msk [vmem:[%s2 + $0x8] sm:$0xff] %vm526, %v492
  %529 = vst.msk [vmem:[%s2 + $0x10] sm:$0xff] %vm526, %v497
  %530 = vst.msk [vmem:[%s2 + $0x18] sm:$0xff] %vm526, %v500
  %531 = vst.msk [vmem:[%s2 + $0x20] sm:$0xff] %vm526, %v505
  %532 = vst.msk [vmem:[%s2 + $0x28] sm:$0xff] %vm526, %v508
  %533 = vst.msk [vmem:[%s2 + $0x30] sm:$0xff] %vm526, %v513
  %534 = vst.msk [vmem:[%s2 + $0x38] sm:$0xff] %vm526, %v516
  %535 = vst.msk [vmem:[%s2 + $0x40] sm:$0xff] %vm526, %v521
  %v536 = vsel %vm526, %v489, 0.0
  %v537 = vsel %vm526, %v492, 0.0
  %v538 = vadd.f32 %v536, %v537
  %v539 = vsel %vm526, %v497, 0.0
  %v540 = vadd.f32 %v538, %v539
  %v541 = vsel %vm526, %v500, 0.0
  %v542 = vadd.f32 %v540, %v541
  %v543 = vsel %vm526, %v505, 0.0
  %v544 = vadd.f32 %v542, %v543
  %v545 = vsel %vm526, %v508, 0.0
  %v546 = vadd.f32 %v544, %v545
  %v547 = vsel %vm526, %v513, 0.0
  %v548 = vadd.f32 %v546, %v547
  %v549 = vsel %vm526, %v516, 0.0
  %v550 = vadd.f32 %v548, %v549
  %v551 = vsel %vm526, %v521, 0.0
  %v552 = vadd.f32 %v550, %v551
  %v553 = vrot.slane %v552, 4
  %v554 = vadd.f32 %v552, %v553
  %v555 = vrot.slane %v554, 2
  %v556 = vadd.f32 %v554, %v555
  %v557 = vrot.slane %v556, 1
  %v558 = vadd.f32 %v556, %v557
  %v559 = vmul.f32 %v489, %v489
  %v560 = vmul.f32 %v492, %v492
  %v561 = vmul.f32 %v497, %v497
  %v562 = vmul.f32 %v500, %v500
  %v563 = vmul.f32 %v505, %v505
  %v564 = vmul.f32 %v508, %v508
  %v565 = vmul.f32 %v513, %v513
  %v566 = vmul.f32 %v516, %v516
  %v567 = vmul.f32 %v521, %v521
  %v568 = vsel %vm526, %v559, 0.0
  %v569 = vsel %vm526, %v560, 0.0
  %v570 = vadd.f32 %v568, %v569
  %v571 = vsel %vm526, %v561, 0.0
  %v572 = vadd.f32 %v570, %v571
  %v573 = vsel %vm526, %v562, 0.0
  %v574 = vadd.f32 %v572, %v573
  %v575 = vsel %vm526, %v563, 0.0
  %v576 = vadd.f32 %v574, %v575
  %v577 = vsel %vm526, %v564, 0.0
  %v578 = vadd.f32 %v576, %v577
  %v579 = vsel %vm526, %v565, 0.0
  %v580 = vadd.f32 %v578, %v579
  %v581 = vsel %vm526, %v566, 0.0
  %v582 = vadd.f32 %v580, %v581
  %v583 = vsel %vm526, %v567, 0.0
  %v584 = vadd.f32 %v582, %v583
  %v585 = vrot.slane %v584, 4
  %v586 = vadd.f32 %v584, %v585
  %v587 = vrot.slane %v586, 2
  %v588 = vadd.f32 %v586, %v587
  %v589 = vrot.slane %v588, 1
  %v590 = vadd.f32 %v588, %v589
  %vm591 = vcmask 1040384
  %v592 = vsel %vm591, %v558, %v590
  %vm593 = vcmask 517120
  %594 = vst.msk [vmem:[%s3] sm:$0x3] %vm593, %v592
  // Predicated region
  $region10: #{stage2_d_forward.23} parent=0 // pred_check
    _
  $region11: #{stage2_d_forward.23} parent=0 // pred_check_branch
    %596 = sbr.rel (0) target = $region13
  $region12: #{stage2_d_forward.23} parent=0 // pred_region
    _
  $region13: #{stage2_d_forward.23} parent=0 // pred_fallthru
    _
  // Predicated region
  $region14: #{stage2_d_forward.23} parent=0 // pred_check
    _
  $region15: #{stage2_d_forward.23} parent=0 // pred_check_branch
    %598 = sbr.rel (0) target = $region17
  $region16: #{stage2_d_forward.23} parent=0 // pred_region
    _
  $region17: #{stage2_d_forward.23} parent=0 // pred_fallthru
    _
  // Predicated region
  $region18: #{stage2_d_forward.23} parent=0 // pred_check
    _
  $region19: #{stage2_d_forward.23} parent=0 // pred_check_branch
    %600 = sbr.rel (0) target = $region21
  $region20: #{stage2_d_forward.23} parent=0 // pred_region
    _
  $region21: #{stage2_d_forward.23} parent=0 // pred_fallthru
    _
  // Predicated region
  $region22: #{stage2_d_forward.23} parent=0 // pred_check
    _
  $region23: #{stage2_d_forward.23} parent=0 // pred_check_branch
    %602 = sbr.rel (0) target = $region25
  $region24: #{stage2_d_forward.23} parent=0 // pred_region
    _
  $region25: #{stage2_d_forward.23} parent=0 // pred_fallthru
    _

// kernel: stage2_d_forward.24
$region0: #{stage2_d_forward.24}
  #allocation0 [shape = 'u32[]', space=smem, size = 0x4, offset = 0x4, fixed_abs, tag = 'smem constant byte address 0x4 - core index']
  #allocation1 [shape = 'u32[144,128]{1,0:T(1,128)}', space=vmem, size = 0x12000, scoped, tag = 'internal scratch']
  %s0 = inlined_call_operand.vmem [shape: f32[72,64], index: 0, kind: input, shape index: {}]
  %s1 = inlined_call_operand.vmem [shape: f32[1,64], index: 1, kind: input, shape index: {}]
  %s2 = inlined_call_operand.vmem [shape: f32[1,64], index: 2, kind: input, shape index: {}]
  %s3 = inlined_call_operand.vmem [shape: bf16[72,64], index: 3, kind: output, shape index: {}]
  %s4 = sld [smem:[#allocation0]]
  $region22: #{stage2_d_forward.24} parent=0
    _
  %s6 = ssub.s32 1, %s4
  %s7 = scalar_select 0, %s6, %s4
  // Predicated region
  $region2: #{stage2_d_forward.24} parent=0 // pred_check
    _
  $region3: #{stage2_d_forward.24} parent=0 // pred_check_branch
    %9 = sbr.rel (0) target = $region5
  $region4: #{stage2_d_forward.24} parent=0 // pred_region
    _
  $region5: #{stage2_d_forward.24} parent=0 // pred_fallthru
    _
  // Predicated region
  $region6: #{stage2_d_forward.24} parent=0 // pred_check
    _
  $region7: #{stage2_d_forward.24} parent=0 // pred_check_branch
    %11 = sbr.rel (0) target = $region9
  $region8: #{stage2_d_forward.24} parent=0 // pred_region
    _
  $region9: #{stage2_d_forward.24} parent=0 // pred_fallthru
    _
  // Predicated region
  $region10: #{stage2_d_forward.24} parent=0 // pred_check
    _
  $region11: #{stage2_d_forward.24} parent=0 // pred_check_branch
    %13 = sbr.rel (0) target = $region13
  $region12: #{stage2_d_forward.24} parent=0 // pred_region
    _
  $region13: #{stage2_d_forward.24} parent=0 // pred_fallthru
    _
  %v14 = vld [vmem:[%s0] sm:$0xff]
  %v15 = vld [vmem:[%s0 + $0x8] sm:$0xff]
  %v16 = vld [vmem:[%s0 + $0x10] sm:$0xff]
  %v17 = vld [vmem:[%s0 + $0x18] sm:$0xff]
  %v18 = vld [vmem:[%s0 + $0x20] sm:$0xff]
  %v19 = vld [vmem:[%s0 + $0x28] sm:$0xff]
  %v20 = vld [vmem:[%s0 + $0x30] sm:$0xff]
  %v21 = vld [vmem:[%s0 + $0x38] sm:$0xff]
  %v22 = vld [vmem:[%s0 + $0x40] sm:$0xff]
  %v23 = vld [vmem:[%s1] sm:$0x1]
  %v25 = vlaneseq
  %v26 = vshrl.u32 %v25, 7
  %v27 = vsub.s32 0, %v26
  %v28 = vrot.slane %v23, %v27
  %v30 = vmul.f32 %v14, %v28
  %v31 = vmul.f32 %v15, %v28
  %v32 = vmul.f32 %v16, %v28
  %v33 = vmul.f32 %v17, %v28
  %v34 = vmul.f32 %v18, %v28
  %v35 = vmul.f32 %v19, %v28
  %v36 = vmul.f32 %v20, %v28
  %v37 = vmul.f32 %v21, %v28
  %v38 = vmul.f32 %v22, %v28
  %v39 = vld [vmem:[%s2] sm:$0x1]
  %v41 = vlaneseq
  %v42 = vshrl.u32 %v41, 7
  %v43 = vsub.s32 0, %v42
  %v44 = vrot.slane %v39, %v43
  %v46 = vadd.f32 %v30, %v44
  %v47 = vadd.f32 %v31, %v44
  %v48 = vadd.f32 %v32, %v44
  %v49 = vadd.f32 %v33, %v44
  %v50 = vadd.f32 %v34, %v44
  %v51 = vadd.f32 %v35, %v44
  %v52 = vadd.f32 %v36, %v44
  %v53 = vadd.f32 %v37, %v44
  %v54 = vadd.f32 %v38, %v44
  %vm55 = vcmp.ge.f32.partialorder %v46, 0.0
  %vm56 = vcmp.ge.f32.partialorder %v47, 0.0
  %vm57 = vcmp.ge.f32.partialorder %v48, 0.0
  %vm58 = vcmp.ge.f32.partialorder %v49, 0.0
  %vm59 = vcmp.ge.f32.partialorder %v50, 0.0
  %vm60 = vcmp.ge.f32.partialorder %v51, 0.0
  %vm61 = vcmp.ge.f32.partialorder %v52, 0.0
  %vm62 = vcmp.ge.f32.partialorder %v53, 0.0
  %vm63 = vcmp.ge.f32.partialorder %v54, 0.0
  %v64 = vmul.f32 %v46, 0.2
  %v65 = vmul.f32 %v47, 0.2
  %v66 = vmul.f32 %v48, 0.2
  %v67 = vmul.f32 %v49, 0.2
  %v68 = vmul.f32 %v50, 0.2
  %v69 = vmul.f32 %v51, 0.2
  %v70 = vmul.f32 %v52, 0.2
  %v71 = vmul.f32 %v53, 0.2
  %v72 = vmul.f32 %v54, 0.2
  %v73 = vsel %vm55, %v46, %v64
  %v74 = vsel %vm56, %v47, %v65
  %v75 = vsel %vm57, %v48, %v66
  %v76 = vsel %vm58, %v49, %v67
  %v77 = vsel %vm59, %v50, %v68
  %v78 = vsel %vm60, %v51, %v69
  %v79 = vsel %vm61, %v52, %v70
  %v80 = vsel %vm62, %v53, %v71
  %v81 = vsel %vm63, %v54, %v72
  %v82 = vpack.c.bf16 %v74, %v73
  %v83 = vpack.c.bf16 %v76, %v75
  %v84 = vpack.c.bf16 %v78, %v77
  %v85 = vpack.c.bf16 %v80, %v79
  %v86 = vpack.c.bf16 %v81, %v81
  %v92 = vunpack.c.l.b16 %v82
  %v93 = vunpack.c.h.b16 %v82
  %v94 = vunpack.c.l.b16 %v83
  %v95 = vunpack.c.h.b16 %v83
  %v96 = vunpack.c.l.b16 %v84
  %v97 = vunpack.c.h.b16 %v84
  %v98 = vunpack.c.l.b16 %v85
  %v99 = vunpack.c.h.b16 %v85
  %v100 = vunpack.c.l.b16 %v86
  %v101 = vpack.c.b16 %v92, %v92
  %v102 = vpack.c.b16 %v93, %v93
  %v103 = vpack.c.b16 %v94, %v94
  %v104 = vpack.c.b16 %v95, %v95
  %v105 = vpack.c.b16 %v96, %v96
  %v106 = vpack.c.b16 %v97, %v97
  %v107 = vpack.c.b16 %v98, %v98
  %v108 = vpack.c.b16 %v99, %v99
  %v109 = vpack.c.b16 %v100, %v100
  %vm119 = vcmask 519168
  %120 = vst.msk [vmem:[%s3] sm:$0xf] %vm119, %v101
  %121 = vst.msk [vmem:[%s3 + $0x4] sm:$0xf] %vm119, %v102
  %122 = vst.msk [vmem:[%s3 + $0x8] sm:$0xf] %vm119, %v103
  %123 = vst.msk [vmem:[%s3 + $0xc] sm:$0xf] %vm119, %v104
  %124 = vst.msk [vmem:[%s3 + $0x10] sm:$0xf] %vm119, %v105
  %125 = vst.msk [vmem:[%s3 + $0x14] sm:$0xf] %vm119, %v106
  %126 = vst.msk [vmem:[%s3 + $0x18] sm:$0xf] %vm119, %v107
  %127 = vst.msk [vmem:[%s3 + $0x1c] sm:$0xf] %vm119, %v108
  %128 = vst.msk [vmem:[%s3 + $0x20] sm:$0xf] %vm119, %v109
  // Predicated region
  $region14: #{stage2_d_forward.24} parent=0 // pred_check
    _
  $region15: #{stage2_d_forward.24} parent=0 // pred_check_branch
    %130 = sbr.rel (0) target = $region17
  $region16: #{stage2_d_forward.24} parent=0 // pred_region
    _
  $region17: #{stage2_d_forward.24} parent=0 // pred_fallthru
    _
  // Predicated region
  $region18: #{stage2_d_forward.24} parent=0 // pred_check
    _
  $region19: #{stage2_d_forward.24} parent=0 // pred_check_branch
    %132 = sbr.rel (0) target = $region21
  $region20: #{stage2_d_forward.24} parent=0 // pred_region
    _
  $region21: #{stage2_d_forward.24} parent=0 // pred_fallthru
    _

// kernel: stage2_d_forward.26
$region0: #{stage2_d_forward.26}
  #allocation0 [shape = 'u32[]', space=smem, size = 0x4, offset = 0x4, fixed_abs, tag = 'smem constant byte address 0x4 - core index']
  #allocation1 [shape = 'u32[144,128]{1,0:T(1,128)}', space=vmem, size = 0x12000, scoped, tag = 'internal scratch']
  %s0 = inlined_call_operand.vmem [shape: f32[18,128], index: 0, kind: input, shape index: {}]
  %s1 = inlined_call_operand.vmem [shape: f32[1,128], index: 1, kind: input, shape index: {}]
  %s2 = inlined_call_operand.vmem [shape: f32[1,128], index: 2, kind: input, shape index: {}]
  %s3 = inlined_call_operand.vmem [shape: bf16[18,128], index: 3, kind: output, shape index: {}]
  %s4 = sld [smem:[#allocation0]]
  $region22: #{stage2_d_forward.26} parent=0
    _
  %s6 = ssub.s32 1, %s4
  %s7 = scalar_select 0, %s6, %s4
  // Predicated region
  $region2: #{stage2_d_forward.26} parent=0 // pred_check
    _
  $region3: #{stage2_d_forward.26} parent=0 // pred_check_branch
    %9 = sbr.rel (0) target = $region5
  $region4: #{stage2_d_forward.26} parent=0 // pred_region
    _
  $region5: #{stage2_d_forward.26} parent=0 // pred_fallthru
    _
  // Predicated region
  $region6: #{stage2_d_forward.26} parent=0 // pred_check
    _
  $region7: #{stage2_d_forward.26} parent=0 // pred_check_branch
    %11 = sbr.rel (0) target = $region9
  $region8: #{stage2_d_forward.26} parent=0 // pred_region
    _
  $region9: #{stage2_d_forward.26} parent=0 // pred_fallthru
    _
  // Predicated region
  $region10: #{stage2_d_forward.26} parent=0 // pred_check
    _
  $region11: #{stage2_d_forward.26} parent=0 // pred_check_branch
    %13 = sbr.rel (0) target = $region13
  $region12: #{stage2_d_forward.26} parent=0 // pred_region
    _
  $region13: #{stage2_d_forward.26} parent=0 // pred_fallthru
    _
  %v14 = vld [vmem:[%s0] sm:$0xff]
  %v15 = vld [vmem:[%s0 + $0x8] sm:$0xff]
  %v16 = vld [vmem:[%s0 + $0x10] sm:$0x3]
  %v17 = vld [vmem:[%s1] sm:$0x1]
  %v19 = vlaneseq
  %v20 = vshrl.u32 %v19, 7
  %v21 = vsub.s32 0, %v20
  %v22 = vrot.slane %v17, %v21
  %v24 = vmul.f32 %v14, %v22
  %v25 = vmul.f32 %v15, %v22
  %v26 = vmul.f32 %v16, %v22
  %v27 = vld [vmem:[%s2] sm:$0x1]
  %v29 = vlaneseq
  %v30 = vshrl.u32 %v29, 7
  %v31 = vsub.s32 0, %v30
  %v32 = vrot.slane %v27, %v31
  %v34 = vadd.f32 %v24, %v32
  %v35 = vadd.f32 %v25, %v32
  %v36 = vadd.f32 %v26, %v32
  %vm37 = vcmp.ge.f32.partialorder %v34, 0.0
  %vm38 = vcmp.ge.f32.partialorder %v35, 0.0
  %vm39 = vcmp.ge.f32.partialorder %v36, 0.0
  %v40 = vmul.f32 %v34, 0.2
  %v41 = vmul.f32 %v35, 0.2
  %v42 = vmul.f32 %v36, 0.2
  %v43 = vsel %vm37, %v34, %v40
  %v44 = vsel %vm38, %v35, %v41
  %v45 = vsel %vm39, %v36, %v42
  %v46 = vpack.c.bf16 %v44, %v43
  %v47 = vpack.c.bf16 %v45, %v45
  %v50 = vunpack.c.l.b16 %v46
  %v51 = vunpack.c.h.b16 %v46
  %v52 = vunpack.c.l.b16 %v47
  %v53 = vpack.c.b16 %v50, %v50
  %v54 = vpack.c.b16 %v51, %v51
  %v55 = vpack.c.b16 %v52, %v52
  %59 = vst [vmem:[%s3] sm:$0xf] %v53
  %60 = vst [vmem:[%s3 + $0x4] sm:$0xf] %v54
  %61 = vst [vmem:[%s3 + $0x8] sm:$0x1] %v55
  // Predicated region
  $region14: #{stage2_d_forward.26} parent=0 // pred_check
    _
  $region15: #{stage2_d_forward.26} parent=0 // pred_check_branch
    %63 = sbr.rel (0) target = $region17
  $region16: #{stage2_d_forward.26} parent=0 // pred_region
    _
  $region17: #{stage2_d_forward.26} parent=0 // pred_fallthru
    _
  // Predicated region
  $region18: #{stage2_d_forward.26} parent=0 // pred_check
    _
  $region19: #{stage2_d_forward.26} parent=0 // pred_check_branch
    %65 = sbr.rel (0) target = $region21
  $region20: #{stage2_d_forward.26} parent=0 // pred_region
    _
  $region21: #{stage2_d_forward.26} parent=0 // pred_fallthru
    _

// kernel: stage2_d_forward.25
$region0: #{stage2_d_forward.25}
  #allocation0 [shape = 'u32[]', space=smem, size = 0x4, offset = 0x4, fixed_abs, tag = 'smem constant byte address 0x4 - core index']
  #allocation1 [shape = 'u32[144,128]{1,0:T(1,128)}', space=vmem, size = 0x12000, scoped, tag = 'internal scratch']
  %s0 = inlined_call_operand.vmem [shape: bf16[18,1024], index: 0, kind: input, shape index: {}]
  %s1 = inlined_call_operand.vmem [shape: bf16[1024,128], index: 1, kind: input, shape index: {}]
  %s2 = inlined_call_operand.vmem [shape: f32[18,128], index: 2, kind: output, shape index: {0}]
  %s3 = inlined_call_operand.vmem [shape: f32[1,2,128], index: 3, kind: output, shape index: {1}]
  %4 = xla_tuple %s2, %s3
  %s5 = sld [smem:[#allocation0]]
  $region26: #{stage2_d_forward.25} parent=0
    _
  %s7 = ssub.s32 1, %s5
  %s8 = scalar_select 0, %s7, %s5
  // Predicated region
  $region2: #{stage2_d_forward.25} parent=0 // pred_check
    _
  $region3: #{stage2_d_forward.25} parent=0 // pred_check_branch
    %10 = sbr.rel (0) target = $region5
  $region4: #{stage2_d_forward.25} parent=0 // pred_region
    _
  $region5: #{stage2_d_forward.25} parent=0 // pred_fallthru
    _
  // Predicated region
  $region6: #{stage2_d_forward.25} parent=0 // pred_check
    _
  $region7: #{stage2_d_forward.25} parent=0 // pred_check_branch
    %12 = sbr.rel (0) target = $region9
  $region8: #{stage2_d_forward.25} parent=0 // pred_region
    _
  $region9: #{stage2_d_forward.25} parent=0 // pred_fallthru
    _
  %v14 = vld [vmem:[%s0] sm:$0xff]
  %v15 = vld [vmem:[%s0 + $0x8] sm:$0xff]
  %v16 = vld [vmem:[%s0 + $0x10] sm:$0xff]
  %v17 = vld [vmem:[%s0 + $0x18] sm:$0xff]
  %v18 = vld [vmem:[%s0 + $0x20] sm:$0xff]
  %v19 = vld [vmem:[%s0 + $0x28] sm:$0xff]
  %v20 = vld [vmem:[%s0 + $0x30] sm:$0xff]
  %v21 = vld [vmem:[%s0 + $0x38] sm:$0xff]
  %v22 = vld [vmem:[%s0 + $0x40] sm:$0x11]
  %v23 = vld [vmem:[%s0 + $0x48] sm:$0x11]
  %v24 = vld [vmem:[%s0 + $0x50] sm:$0x11]
  %v25 = vld [vmem:[%s0 + $0x58] sm:$0x11]
  %v26 = vld [vmem:[%s1] sm:$0xf]
  %v27 = vld [vmem:[%s1 + $0x4] sm:$0xf]
  %v28 = vld [vmem:[%s1 + $0x8] sm:$0xf]
  %v29 = vld [vmem:[%s1 + $0xc] sm:$0xf]
  %v30 = vld [vmem:[%s1 + $0x10] sm:$0xf]
  %v31 = vld [vmem:[%s1 + $0x14] sm:$0xf]
  %v32 = vld [vmem:[%s1 + $0x18] sm:$0xf]
  %v33 = vld [vmem:[%s1 + $0x1c] sm:$0xf]
  %v34 = vld [vmem:[%s1 + $0x20] sm:$0xf]
  %v35 = vld [vmem:[%s1 + $0x24] sm:$0xf]
  %v36 = vld [vmem:[%s1 + $0x28] sm:$0xf]
  %v37 = vld [vmem:[%s1 + $0x2c] sm:$0xf]
  %v38 = vld [vmem:[%s1 + $0x30] sm:$0xf]
  %v39 = vld [vmem:[%s1 + $0x34] sm:$0xf]
  %v40 = vld [vmem:[%s1 + $0x38] sm:$0xf]
  %v41 = vld [vmem:[%s1 + $0x3c] sm:$0xf]
  %v42 = vld [vmem:[%s1 + $0x40] sm:$0xf]
  %v43 = vld [vmem:[%s1 + $0x44] sm:$0xf]
  %v44 = vld [vmem:[%s1 + $0x48] sm:$0xf]
  %v45 = vld [vmem:[%s1 + $0x4c] sm:$0xf]
  %v46 = vld [vmem:[%s1 + $0x50] sm:$0xf]
  %v47 = vld [vmem:[%s1 + $0x54] sm:$0xf]
  %v48 = vld [vmem:[%s1 + $0x58] sm:$0xf]
  %v49 = vld [vmem:[%s1 + $0x5c] sm:$0xf]
  %v50 = vld [vmem:[%s1 + $0x60] sm:$0xf]
  %v51 = vld [vmem:[%s1 + $0x64] sm:$0xf]
  %v52 = vld [vmem:[%s1 + $0x68] sm:$0xf]
  %v53 = vld [vmem:[%s1 + $0x6c] sm:$0xf]
  %v54 = vld [vmem:[%s1 + $0x70] sm:$0xf]
  %v55 = vld [vmem:[%s1 + $0x74] sm:$0xf]
  %v56 = vld [vmem:[%s1 + $0x78] sm:$0xf]
  %v57 = vld [vmem:[%s1 + $0x7c] sm:$0xf]
  %v58 = vld [vmem:[%s1 + $0x80] sm:$0xf]
  %v59 = vld [vmem:[%s1 + $0x84] sm:$0xf]
  %v60 = vld [vmem:[%s1 + $0x88] sm:$0xf]
  %v61 = vld [vmem:[%s1 + $0x8c] sm:$0xf]
  %v62 = vld [vmem:[%s1 + $0x90] sm:$0xf]
  %v63 = vld [vmem:[%s1 + $0x94] sm:$0xf]
  %v64 = vld [vmem:[%s1 + $0x98] sm:$0xf]
  %v65 = vld [vmem:[%s1 + $0x9c] sm:$0xf]
  %v66 = vld [vmem:[%s1 + $0xa0] sm:$0xf]
  %v67 = vld [vmem:[%s1 + $0xa4] sm:$0xf]
  %v68 = vld [vmem:[%s1 + $0xa8] sm:$0xf]
  %v69 = vld [vmem:[%s1 + $0xac] sm:$0xf]
  %v70 = vld [vmem:[%s1 + $0xb0] sm:$0xf]
  %v71 = vld [vmem:[%s1 + $0xb4] sm:$0xf]
  %v72 = vld [vmem:[%s1 + $0xb8] sm:$0xf]
  %v73 = vld [vmem:[%s1 + $0xbc] sm:$0xf]
  %v74 = vld [vmem:[%s1 + $0xc0] sm:$0xf]
  %v75 = vld [vmem:[%s1 + $0xc4] sm:$0xf]
  %v76 = vld [vmem:[%s1 + $0xc8] sm:$0xf]
  %v77 = vld [vmem:[%s1 + $0xcc] sm:$0xf]
  %v78 = vld [vmem:[%s1 + $0xd0] sm:$0xf]
  %v79 = vld [vmem:[%s1 + $0xd4] sm:$0xf]
  %v80 = vld [vmem:[%s1 + $0xd8] sm:$0xf]
  %v81 = vld [vmem:[%s1 + $0xdc] sm:$0xf]
  %v82 = vld [vmem:[%s1 + $0xe0] sm:$0xf]
  %v83 = vld [vmem:[%s1 + $0xe4] sm:$0xf]
  %v84 = vld [vmem:[%s1 + $0xe8] sm:$0xf]
  %v85 = vld [vmem:[%s1 + $0xec] sm:$0xf]
  %v86 = vld [vmem:[%s1 + $0xf0] sm:$0xf]
  %v87 = vld [vmem:[%s1 + $0xf4] sm:$0xf]
  %v88 = vld [vmem:[%s1 + $0xf8] sm:$0xf]
  %v89 = vld [vmem:[%s1 + $0xfc] sm:$0xf]
  %v90 = vld [vmem:[%s1 + $0x100] sm:$0xf]
  %v91 = vld [vmem:[%s1 + $0x104] sm:$0xf]
  %v92 = vld [vmem:[%s1 + $0x108] sm:$0xf]
  %v93 = vld [vmem:[%s1 + $0x10c] sm:$0xf]
  %v94 = vld [vmem:[%s1 + $0x110] sm:$0xf]
  %v95 = vld [vmem:[%s1 + $0x114] sm:$0xf]
  %v96 = vld [vmem:[%s1 + $0x118] sm:$0xf]
  %v97 = vld [vmem:[%s1 + $0x11c] sm:$0xf]
  %v98 = vld [vmem:[%s1 + $0x120] sm:$0xf]
  %v99 = vld [vmem:[%s1 + $0x124] sm:$0xf]
  %v100 = vld [vmem:[%s1 + $0x128] sm:$0xf]
  %v101 = vld [vmem:[%s1 + $0x12c] sm:$0xf]
  %v102 = vld [vmem:[%s1 + $0x130] sm:$0xf]
  %v103 = vld [vmem:[%s1 + $0x134] sm:$0xf]
  %v104 = vld [vmem:[%s1 + $0x138] sm:$0xf]
  %v105 = vld [vmem:[%s1 + $0x13c] sm:$0xf]
  %v106 = vld [vmem:[%s1 + $0x140] sm:$0xf]
  %v107 = vld [vmem:[%s1 + $0x144] sm:$0xf]
  %v108 = vld [vmem:[%s1 + $0x148] sm:$0xf]
  %v109 = vld [vmem:[%s1 + $0x14c] sm:$0xf]
  %v110 = vld [vmem:[%s1 + $0x150] sm:$0xf]
  %v111 = vld [vmem:[%s1 + $0x154] sm:$0xf]
  %v112 = vld [vmem:[%s1 + $0x158] sm:$0xf]
  %v113 = vld [vmem:[%s1 + $0x15c] sm:$0xf]
  %v114 = vld [vmem:[%s1 + $0x160] sm:$0xf]
  %v115 = vld [vmem:[%s1 + $0x164] sm:$0xf]
  %v116 = vld [vmem:[%s1 + $0x168] sm:$0xf]
  %v117 = vld [vmem:[%s1 + $0x16c] sm:$0xf]
  %v118 = vld [vmem:[%s1 + $0x170] sm:$0xf]
  %v119 = vld [vmem:[%s1 + $0x174] sm:$0xf]
  %v120 = vld [vmem:[%s1 + $0x178] sm:$0xf]
  %v121 = vld [vmem:[%s1 + $0x17c] sm:$0xf]
  %v122 = vld [vmem:[%s1 + $0x180] sm:$0xf]
  %v123 = vld [vmem:[%s1 + $0x184] sm:$0xf]
  %v124 = vld [vmem:[%s1 + $0x188] sm:$0xf]
  %v125 = vld [vmem:[%s1 + $0x18c] sm:$0xf]
  %v126 = vld [vmem:[%s1 + $0x190] sm:$0xf]
  %v127 = vld [vmem:[%s1 + $0x194] sm:$0xf]
  %v128 = vld [vmem:[%s1 + $0x198] sm:$0xf]
  %v129 = vld [vmem:[%s1 + $0x19c] sm:$0xf]
  %v130 = vld [vmem:[%s1 + $0x1a0] sm:$0xf]
  %v131 = vld [vmem:[%s1 + $0x1a4] sm:$0xf]
  %v132 = vld [vmem:[%s1 + $0x1a8] sm:$0xf]
  %v133 = vld [vmem:[%s1 + $0x1ac] sm:$0xf]
  %v134 = vld [vmem:[%s1 + $0x1b0] sm:$0xf]
  %v135 = vld [vmem:[%s1 + $0x1b4] sm:$0xf]
  %v136 = vld [vmem:[%s1 + $0x1b8] sm:$0xf]
  %v137 = vld [vmem:[%s1 + $0x1bc] sm:$0xf]
  %v138 = vld [vmem:[%s1 + $0x1c0] sm:$0xf]
  %v139 = vld [vmem:[%s1 + $0x1c4] sm:$0xf]
  %v140 = vld [vmem:[%s1 + $0x1c8] sm:$0xf]
  %v141 = vld [vmem:[%s1 + $0x1cc] sm:$0xf]
  %v142 = vld [vmem:[%s1 + $0x1d0] sm:$0xf]
  %v143 = vld [vmem:[%s1 + $0x1d4] sm:$0xf]
  %v144 = vld [vmem:[%s1 + $0x1d8] sm:$0xf]
  %v145 = vld [vmem:[%s1 + $0x1dc] sm:$0xf]
  %v146 = vld [vmem:[%s1 + $0x1e0] sm:$0xf]
  %v147 = vld [vmem:[%s1 + $0x1e4] sm:$0xf]
  %v148 = vld [vmem:[%s1 + $0x1e8] sm:$0xf]
  %v149 = vld [vmem:[%s1 + $0x1ec] sm:$0xf]
  %v150 = vld [vmem:[%s1 + $0x1f0] sm:$0xf]
  %v151 = vld [vmem:[%s1 + $0x1f4] sm:$0xf]
  %v152 = vld [vmem:[%s1 + $0x1f8] sm:$0xf]
  %v153 = vld [vmem:[%s1 + $0x1fc] sm:$0xf]
  %v166 = vunpack.c.l.b16 %v14
  %v167 = vunpack.c.h.b16 %v14
  %v168 = vunpack.c.l.b16 %v15
  %v169 = vunpack.c.h.b16 %v15
  %v170 = vunpack.c.l.b16 %v16
  %v171 = vunpack.c.h.b16 %v16
  %v172 = vunpack.c.l.b16 %v17
  %v173 = vunpack.c.h.b16 %v17
  %v174 = vunpack.c.l.b16 %v18
  %v175 = vunpack.c.h.b16 %v18
  %v176 = vunpack.c.l.b16 %v19
  %v177 = vunpack.c.h.b16 %v19
  %v178 = vunpack.c.l.b16 %v20
  %v179 = vunpack.c.h.b16 %v20
  %v180 = vunpack.c.l.b16 %v21
  %v181 = vunpack.c.h.b16 %v21
  %v182 = vunpack.c.l.b16 %v22
  %v183 = vunpack.c.h.b16 %v22
  %v184 = vunpack.c.l.b16 %v23
  %v185 = vunpack.c.h.b16 %v23
  %v186 = vunpack.c.l.b16 %v24
  %v187 = vunpack.c.h.b16 %v24
  %v188 = vunpack.c.l.b16 %v25
  %v189 = vunpack.c.h.b16 %v25
  %v190 = vpack.c.b16 %v174, %v166
  %v191 = vpack.c.b16 %v175, %v167
  %v192 = vpack.c.b16 %v176, %v168
  %v193 = vpack.c.b16 %v177, %v169
  %v194 = vpack.c.b16 %v178, %v170
  %v195 = vpack.c.b16 %v179, %v171
  %v196 = vpack.c.b16 %v180, %v172
  %v197 = vpack.c.b16 %v181, %v173
  %v198 = vpack.c.b16 %v182, %v182
  %v199 = vpack.c.b16 %v183, %v183
  %v200 = vpack.c.b16 %v184, %v184
  %v201 = vpack.c.b16 %v185, %v185
  %v202 = vpack.c.b16 %v186, %v186
  %v203 = vpack.c.b16 %v187, %v187
  %v204 = vpack.c.b16 %v188, %v188
  %v205 = vpack.c.b16 %v189, %v189
  %v350 = vunpack.c.l.b16 %v26
  %v351 = vunpack.c.l.b16 %v27
  %v352 = vunpack.c.l.b16 %v28
  %v353 = vunpack.c.l.b16 %v29
  %v354 = vunpack.c.l.b16 %v30
  %v355 = vunpack.c.l.b16 %v31
  %v356 = vunpack.c.l.b16 %v32
  %v357 = vunpack.c.l.b16 %v33
  %v358 = vunpack.c.l.b16 %v34
  %v359 = vunpack.c.l.b16 %v35
  %v360 = vunpack.c.l.b16 %v36
  %v361 = vunpack.c.l.b16 %v37
  %v362 = vunpack.c.l.b16 %v38
  %v363 = vunpack.c.l.b16 %v39
  %v364 = vunpack.c.l.b16 %v40
  %v365 = vunpack.c.l.b16 %v41
  %v366 = vunpack.c.l.b16 %v42
  %v367 = vunpack.c.l.b16 %v43
  %v368 = vunpack.c.l.b16 %v44
  %v369 = vunpack.c.l.b16 %v45
  %v370 = vunpack.c.l.b16 %v46
  %v371 = vunpack.c.l.b16 %v47
  %v372 = vunpack.c.l.b16 %v48
  %v373 = vunpack.c.l.b16 %v49
  %v374 = vunpack.c.l.b16 %v50
  %v375 = vunpack.c.l.b16 %v51
  %v376 = vunpack.c.l.b16 %v52
  %v377 = vunpack.c.l.b16 %v53
  %v378 = vunpack.c.l.b16 %v54
  %v379 = vunpack.c.l.b16 %v55
  %v380 = vunpack.c.l.b16 %v56
  %v381 = vunpack.c.l.b16 %v57
  %v382 = vunpack.c.l.b16 %v58
  %v383 = vunpack.c.l.b16 %v59
  %v384 = vunpack.c.l.b16 %v60
  %v385 = vunpack.c.l.b16 %v61
  %v386 = vunpack.c.l.b16 %v62
  %v387 = vunpack.c.l.b16 %v63
  %v388 = vunpack.c.l.b16 %v64
  %v389 = vunpack.c.l.b16 %v65
  %v390 = vunpack.c.l.b16 %v66
  %v391 = vunpack.c.l.b16 %v67
  %v392 = vunpack.c.l.b16 %v68
  %v393 = vunpack.c.l.b16 %v69
  %v394 = vunpack.c.l.b16 %v70
  %v395 = vunpack.c.l.b16 %v71
  %v396 = vunpack.c.l.b16 %v72
  %v397 = vunpack.c.l.b16 %v73
  %v398 = vunpack.c.l.b16 %v74
  %v399 = vunpack.c.l.b16 %v75
  %v400 = vunpack.c.l.b16 %v76
  %v401 = vunpack.c.l.b16 %v77
  %v402 = vunpack.c.l.b16 %v78
  %v403 = vunpack.c.l.b16 %v79
  %v404 = vunpack.c.l.b16 %v80
  %v405 = vunpack.c.l.b16 %v81
  %v406 = vunpack.c.l.b16 %v82
  %v407 = vunpack.c.l.b16 %v83
  %v408 = vunpack.c.l.b16 %v84
  %v409 = vunpack.c.l.b16 %v85
  %v410 = vunpack.c.l.b16 %v86
  %v411 = vunpack.c.l.b16 %v87
  %v412 = vunpack.c.l.b16 %v88
  %v413 = vunpack.c.l.b16 %v89
  %v414 = vunpack.c.l.b16 %v90
  %v415 = vunpack.c.l.b16 %v91
  %v416 = vunpack.c.l.b16 %v92
  %v417 = vunpack.c.l.b16 %v93
  %v418 = vunpack.c.l.b16 %v94
  %v419 = vunpack.c.l.b16 %v95
  %v420 = vunpack.c.l.b16 %v96
  %v421 = vunpack.c.l.b16 %v97
  %v422 = vunpack.c.l.b16 %v98
  %v423 = vunpack.c.l.b16 %v99
  %v424 = vunpack.c.l.b16 %v100
  %v425 = vunpack.c.l.b16 %v101
  %v426 = vunpack.c.l.b16 %v102
  %v427 = vunpack.c.l.b16 %v103
  %v428 = vunpack.c.l.b16 %v104
  %v429 = vunpack.c.l.b16 %v105
  %v430 = vunpack.c.l.b16 %v106
  %v431 = vunpack.c.l.b16 %v107
  %v432 = vunpack.c.l.b16 %v108
  %v433 = vunpack.c.l.b16 %v109
  %v434 = vunpack.c.l.b16 %v110
  %v435 = vunpack.c.l.b16 %v111
  %v436 = vunpack.c.l.b16 %v112
  %v437 = vunpack.c.l.b16 %v113
  %v438 = vunpack.c.l.b16 %v114
  %v439 = vunpack.c.l.b16 %v115
  %v440 = vunpack.c.l.b16 %v116
  %v441 = vunpack.c.l.b16 %v117
  %v442 = vunpack.c.l.b16 %v118
  %v443 = vunpack.c.l.b16 %v119
  %v444 = vunpack.c.l.b16 %v120
  %v445 = vunpack.c.l.b16 %v121
  %v446 = vunpack.c.l.b16 %v122
  %v447 = vunpack.c.l.b16 %v123
  %v448 = vunpack.c.l.b16 %v124
  %v449 = vunpack.c.l.b16 %v125
  %v450 = vunpack.c.l.b16 %v126
  %v451 = vunpack.c.l.b16 %v127
  %v452 = vunpack.c.l.b16 %v128
  %v453 = vunpack.c.l.b16 %v129
  %v454 = vunpack.c.l.b16 %v130
  %v455 = vunpack.c.l.b16 %v131
  %v456 = vunpack.c.l.b16 %v132
  %v457 = vunpack.c.l.b16 %v133
  %v458 = vunpack.c.l.b16 %v134
  %v459 = vunpack.c.l.b16 %v135
  %v460 = vunpack.c.l.b16 %v136
  %v461 = vunpack.c.l.b16 %v137
  %v462 = vunpack.c.l.b16 %v138
  %v463 = vunpack.c.l.b16 %v139
  %v464 = vunpack.c.l.b16 %v140
  %v465 = vunpack.c.l.b16 %v141
  %v466 = vunpack.c.l.b16 %v142
  %v467 = vunpack.c.l.b16 %v143
  %v468 = vunpack.c.l.b16 %v144
  %v469 = vunpack.c.l.b16 %v145
  %v470 = vunpack.c.l.b16 %v146
  %v471 = vunpack.c.l.b16 %v147
  %v472 = vunpack.c.l.b16 %v148
  %v473 = vunpack.c.l.b16 %v149
  %v474 = vunpack.c.l.b16 %v150
  %v475 = vunpack.c.l.b16 %v151
  %v476 = vunpack.c.l.b16 %v152
  %v477 = vunpack.c.l.b16 %v153
  %v478 = vpack.c.b16 %v351, %v350
  %v479 = vpack.c.b16 %v353, %v352
  %v480 = vpack.c.b16 %v355, %v354
  %v481 = vpack.c.b16 %v357, %v356
  %v482 = vpack.c.b16 %v359, %v358
  %v483 = vpack.c.b16 %v361, %v360
  %v484 = vpack.c.b16 %v363, %v362
  %v485 = vpack.c.b16 %v365, %v364
  %v486 = vpack.c.b16 %v367, %v366
  %v487 = vpack.c.b16 %v369, %v368
  %v488 = vpack.c.b16 %v371, %v370
  %v489 = vpack.c.b16 %v373, %v372
  %v490 = vpack.c.b16 %v375, %v374
  %v491 = vpack.c.b16 %v377, %v376
  %v492 = vpack.c.b16 %v379, %v378
  %v493 = vpack.c.b16 %v381, %v380
  %v494 = vpack.c.b16 %v383, %v382
  %v495 = vpack.c.b16 %v385, %v384
  %v496 = vpack.c.b16 %v387, %v386
  %v497 = vpack.c.b16 %v389, %v388
  %v498 = vpack.c.b16 %v391, %v390
  %v499 = vpack.c.b16 %v393, %v392
  %v500 = vpack.c.b16 %v395, %v394
  %v501 = vpack.c.b16 %v397, %v396
  %v502 = vpack.c.b16 %v399, %v398
  %v503 = vpack.c.b16 %v401, %v400
  %v504 = vpack.c.b16 %v403, %v402
  %v505 = vpack.c.b16 %v405, %v404
  %v506 = vpack.c.b16 %v407, %v406
  %v507 = vpack.c.b16 %v409, %v408
  %v508 = vpack.c.b16 %v411, %v410
  %v509 = vpack.c.b16 %v413, %v412
  %v510 = vpack.c.b16 %v415, %v414
  %v511 = vpack.c.b16 %v417, %v416
  %v512 = vpack.c.b16 %v419, %v418
  %v513 = vpack.c.b16 %v421, %v420
  %v514 = vpack.c.b16 %v423, %v422
  %v515 = vpack.c.b16 %v425, %v424
  %v516 = vpack.c.b16 %v427, %v426
  %v517 = vpack.c.b16 %v429, %v428
  %v518 = vpack.c.b16 %v431, %v430
  %v519 = vpack.c.b16 %v433, %v432
  %v520 = vpack.c.b16 %v435, %v434
  %v521 = vpack.c.b16 %v437, %v436
  %v522 = vpack.c.b16 %v439, %v438
  %v523 = vpack.c.b16 %v441, %v440
  %v524 = vpack.c.b16 %v443, %v442
  %v525 = vpack.c.b16 %v445, %v444
  %v526 = vpack.c.b16 %v447, %v446
  %v527 = vpack.c.b16 %v449, %v448
  %v528 = vpack.c.b16 %v451, %v450
  %v529 = vpack.c.b16 %v453, %v452
  %v530 = vpack.c.b16 %v455, %v454
  %v531 = vpack.c.b16 %v457, %v456
  %v532 = vpack.c.b16 %v459, %v458
  %v533 = vpack.c.b16 %v461, %v460
  %v534 = vpack.c.b16 %v463, %v462
  %v535 = vpack.c.b16 %v465, %v464
  %v536 = vpack.c.b16 %v467, %v466
  %v537 = vpack.c.b16 %v469, %v468
  %v538 = vpack.c.b16 %v471, %v470
  %v539 = vpack.c.b16 %v473, %v472
  %v540 = vpack.c.b16 %v475, %v474
  %v541 = vpack.c.b16 %v477, %v476
  %606 = vmatprep.subr.bf16.mxu0 0
  %607 = vmatpush1.bf16.msra.mxu0 %v485
  %608 = vmatprep.subr.bf16.mxu0 0
  %609 = vmatpush1.bf16.msra.mxu0 %v484
  %610 = vmatprep.subr.bf16.mxu0 0
  %611 = vmatpush1.bf16.msra.mxu0 %v483
  %612 = vmatprep.subr.bf16.mxu0 0
  %613 = vmatpush1.bf16.msra.mxu0 %v482
  %614 = vmatprep.subr.bf16.mxu0 0
  %615 = vmatpush1.bf16.msra.mxu0 %v481
  %616 = vmatprep.subr.bf16.mxu0 0
  %617 = vmatpush1.bf16.msra.mxu0 %v480
  %618 = vmatprep.subr.bf16.mxu0 0
  %619 = vmatpush1.bf16.msra.mxu0 %v479
  %620 = vmatprep.subr.bf16.mxu0 0
  %621 = vmatpush1.bf16.msra.mxu0 %v478
  %622 = vmatprep.subr.bf16.mxu0 0
  %623 = vmatpush2.bf16.msra.mxu0 %v493
  %624 = vmatprep.subr.bf16.mxu0 0
  %625 = vmatpush2.bf16.msra.mxu0 %v492
  %626 = vmatprep.subr.bf16.mxu0 0
  %627 = vmatpush2.bf16.msra.mxu0 %v491
  %628 = vmatprep.subr.bf16.mxu0 0
  %629 = vmatpush2.bf16.msra.mxu0 %v490
  %630 = vmatprep.subr.bf16.mxu0 0
  %631 = vmatpush2.bf16.msra.mxu0 %v489
  %632 = vmatprep.subr.bf16.mxu0 0
  %633 = vmatpush2.bf16.msra.mxu0 %v488
  %634 = vmatprep.subr.bf16.mxu0 0
  %635 = vmatpush2.bf16.msra.mxu0 %v487
  %636 = vmatprep.subr.bf16.mxu0 0
  %637 = vmatpush2.bf16.msra.mxu0 %v486
  %638 = vmatprep.mubr.bf16.mxu0 %v191
  %639 = vmatmul.mubr.bf16.gmra.mxu0 %v190
  %v640 = vpop.f32.mrf.mxu0
  %v641 = vadd.f32 0.0, %v640
  %v642 = vpop.f32.mrf.mxu0
  %v643 = vpop.f32.mrf.mxu0
  %v644 = vadd.f32 0.0, %v643
  %v645 = vpop.f32.mrf.mxu0
  %646 = vmatprep.mubr.bf16.mxu0 %v199
  %647 = vmatmul.mubr.bf16.gmra.mxu0 %v198
  %v648 = vpop.f32.mrf.mxu0
  %v649 = vadd.f32 0.0, %v648
  %v650 = vpop.f32.mrf.mxu0
  %v651 = vpop.f32.mrf.mxu0
  %v652 = vpop.f32.mrf.mxu0
  %653 = vdwg.mxu0
  %654 = vmatprep.subr.bf16.mxu0 0
  %655 = vmatpush1.bf16.msra.mxu0 %v501
  %656 = vmatprep.subr.bf16.mxu0 0
  %657 = vmatpush1.bf16.msra.mxu0 %v500
  %658 = vmatprep.subr.bf16.mxu0 0
  %659 = vmatpush1.bf16.msra.mxu0 %v499
  %660 = vmatprep.subr.bf16.mxu0 0
  %661 = vmatpush1.bf16.msra.mxu0 %v498
  %662 = vmatprep.subr.bf16.mxu0 0
  %663 = vmatpush1.bf16.msra.mxu0 %v497
  %664 = vmatprep.subr.bf16.mxu0 0
  %665 = vmatpush1.bf16.msra.mxu0 %v496
  %666 = vmatprep.subr.bf16.mxu0 0
  %667 = vmatpush1.bf16.msra.mxu0 %v495
  %668 = vmatprep.subr.bf16.mxu0 0
  %669 = vmatpush1.bf16.msra.mxu0 %v494
  %670 = vmatprep.subr.bf16.mxu0 0
  %671 = vmatpush2.bf16.msra.mxu0 %v509
  %672 = vmatprep.subr.bf16.mxu0 0
  %673 = vmatpush2.bf16.msra.mxu0 %v508
  %674 = vmatprep.subr.bf16.mxu0 0
  %675 = vmatpush2.bf16.msra.mxu0 %v507
  %676 = vmatprep.subr.bf16.mxu0 0
  %677 = vmatpush2.bf16.msra.mxu0 %v506
  %678 = vmatprep.subr.bf16.mxu0 0
  %679 = vmatpush2.bf16.msra.mxu0 %v505
  %680 = vmatprep.subr.bf16.mxu0 0
  %681 = vmatpush2.bf16.msra.mxu0 %v504
  %682 = vmatprep.subr.bf16.mxu0 0
  %683 = vmatpush2.bf16.msra.mxu0 %v503
  %684 = vmatprep.subr.bf16.mxu0 0
  %685 = vmatpush2.bf16.msra.mxu0 %v502
  %686 = vmatprep.mubr.bf16.mxu0 %v193
  %687 = vmatmul.mubr.bf16.gmra.mxu0 %v192
  %v688 = vpop.f32.mrf.mxu0
  %v689 = vadd.f32 %v641, %v688
  %v690 = vpop.f32.mrf.mxu0
  %v691 = vpop.f32.mrf.mxu0
  %v692 = vadd.f32 %v644, %v691
  %v693 = vpop.f32.mrf.mxu0
  %694 = vmatprep.mubr.bf16.mxu0 %v201
  %695 = vmatmul.mubr.bf16.gmra.mxu0 %v200
  %v696 = vpop.f32.mrf.mxu0
  %v697 = vadd.f32 %v649, %v696
  %v698 = vpop.f32.mrf.mxu0
  %v699 = vpop.f32.mrf.mxu0
  %v700 = vpop.f32.mrf.mxu0
  %701 = vdwg.mxu0
  %702 = vmatprep.subr.bf16.mxu0 0
  %703 = vmatpush1.bf16.msra.mxu0 %v517
  %704 = vmatprep.subr.bf16.mxu0 0
  %705 = vmatpush1.bf16.msra.mxu0 %v516
  %706 = vmatprep.subr.bf16.mxu0 0
  %707 = vmatpush1.bf16.msra.mxu0 %v515
  %708 = vmatprep.subr.bf16.mxu0 0
  %709 = vmatpush1.bf16.msra.mxu0 %v514
  %710 = vmatprep.subr.bf16.mxu0 0
  %711 = vmatpush1.bf16.msra.mxu0 %v513
  %712 = vmatprep.subr.bf16.mxu0 0
  %713 = vmatpush1.bf16.msra.mxu0 %v512
  %714 = vmatprep.subr.bf16.mxu0 0
  %715 = vmatpush1.bf16.msra.mxu0 %v511
  %716 = vmatprep.subr.bf16.mxu0 0
  %717 = vmatpush1.bf16.msra.mxu0 %v510
  %718 = vmatprep.subr.bf16.mxu0 0
  %719 = vmatpush2.bf16.msra.mxu0 %v525
  %720 = vmatprep.subr.bf16.mxu0 0
  %721 = vmatpush2.bf16.msra.mxu0 %v524
  %722 = vmatprep.subr.bf16.mxu0 0
  %723 = vmatpush2.bf16.msra.mxu0 %v523
  %724 = vmatprep.subr.bf16.mxu0 0
  %725 = vmatpush2.bf16.msra.mxu0 %v522
  %726 = vmatprep.subr.bf16.mxu0 0
  %727 = vmatpush2.bf16.msra.mxu0 %v521
  %728 = vmatprep.subr.bf16.mxu0 0
  %729 = vmatpush2.bf16.msra.mxu0 %v520
  %730 = vmatprep.subr.bf16.mxu0 0
  %731 = vmatpush2.bf16.msra.mxu0 %v519
  %732 = vmatprep.subr.bf16.mxu0 0
  %733 = vmatpush2.bf16.msra.mxu0 %v518
  %734 = vmatprep.mubr.bf16.mxu0 %v195
  %735 = vmatmul.mubr.bf16.gmra.mxu0 %v194
  %v736 = vpop.f32.mrf.mxu0
  %v737 = vadd.f32 %v689, %v736
  %v738 = vpop.f32.mrf.mxu0
  %v739 = vpop.f32.mrf.mxu0
  %v740 = vadd.f32 %v692, %v739
  %v741 = vpop.f32.mrf.mxu0
  %742 = vmatprep.mubr.bf16.mxu0 %v203
  %743 = vmatmul.mubr.bf16.gmra.mxu0 %v202
  %v744 = vpop.f32.mrf.mxu0
  %v745 = vadd.f32 %v697, %v744
  %v746 = vpop.f32.mrf.mxu0
  %v747 = vpop.f32.mrf.mxu0
  %v748 = vpop.f32.mrf.mxu0
  %749 = vdwg.mxu0
  %750 = vmatprep.subr.bf16.mxu0 0
  %751 = vmatpush1.bf16.msra.mxu0 %v533
  %752 = vmatprep.subr.bf16.mxu0 0
  %753 = vmatpush1.bf16.msra.mxu0 %v532
  %754 = vmatprep.subr.bf16.mxu0 0
  %755 = vmatpush1.bf16.msra.mxu0 %v531
  %756 = vmatprep.subr.bf16.mxu0 0
  %757 = vmatpush1.bf16.msra.mxu0 %v530
  %758 = vmatprep.subr.bf16.mxu0 0
  %759 = vmatpush1.bf16.msra.mxu0 %v529
  %760 = vmatprep.subr.bf16.mxu0 0
  %761 = vmatpush1.bf16.msra.mxu0 %v528
  %762 = vmatprep.subr.bf16.mxu0 0
  %763 = vmatpush1.bf16.msra.mxu0 %v527
  %764 = vmatprep.subr.bf16.mxu0 0
  %765 = vmatpush1.bf16.msra.mxu0 %v526
  %766 = vmatprep.subr.bf16.mxu0 0
  %767 = vmatpush2.bf16.msra.mxu0 %v541
  %768 = vmatprep.subr.bf16.mxu0 0
  %769 = vmatpush2.bf16.msra.mxu0 %v540
  %770 = vmatprep.subr.bf16.mxu0 0
  %771 = vmatpush2.bf16.msra.mxu0 %v539
  %772 = vmatprep.subr.bf16.mxu0 0
  %773 = vmatpush2.bf16.msra.mxu0 %v538
  %774 = vmatprep.subr.bf16.mxu0 0
  %775 = vmatpush2.bf16.msra.mxu0 %v537
  %776 = vmatprep.subr.bf16.mxu0 0
  %777 = vmatpush2.bf16.msra.mxu0 %v536
  %778 = vmatprep.subr.bf16.mxu0 0
  %779 = vmatpush2.bf16.msra.mxu0 %v535
  %780 = vmatprep.subr.bf16.mxu0 0
  %781 = vmatpush2.bf16.msra.mxu0 %v534
  %782 = vmatprep.mubr.bf16.mxu0 %v197
  %783 = vmatmul.mubr.bf16.gmra.mxu0 %v196
  %v784 = vpop.f32.mrf.mxu0
  %v785 = vadd.f32 %v737, %v784
  %v786 = vpop.f32.mrf.mxu0
  %v787 = vpop.f32.mrf.mxu0
  %v788 = vadd.f32 %v740, %v787
  %v789 = vpop.f32.mrf.mxu0
  %790 = vmatprep.mubr.bf16.mxu0 %v205
  %791 = vmatmul.mubr.bf16.gmra.mxu0 %v204
  %v792 = vpop.f32.mrf.mxu0
  %v793 = vadd.f32 %v745, %v792
  %v794 = vpop.f32.mrf.mxu0
  %v795 = vpop.f32.mrf.mxu0
  %v796 = vpop.f32.mrf.mxu0
  %797 = vdwg.mxu0
  %798 = vst [vmem:[%s2] sm:$0xff] %v785
  %799 = vst [vmem:[%s2 + $0x8] sm:$0xff] %v788
  %800 = vst [vmem:[%s2 + $0x10] sm:$0x3] %v793
  %v801 = vadd.f32 %v785, %v788
  %vm802 = vcmask 1041408
  %v803 = vsel %vm802, %v793, 0.0
  %v804 = vadd.f32 %v801, %v803
  %v805 = vrot.slane %v804, 4
  %v806 = vadd.f32 %v804, %v805
  %v807 = vrot.slane %v806, 2
  %v808 = vadd.f32 %v806, %v807
  %v809 = vrot.slane %v808, 1
  %v810 = vadd.f32 %v808, %v809
  %v811 = vmul.f32 %v785, %v785
  %v812 = vmul.f32 %v788, %v788
  %v813 = vmul.f32 %v793, %v793
  %v814 = vadd.f32 %v811, %v812
  %v815 = vsel %vm802, %v813, 0.0
  %v816 = vadd.f32 %v814, %v815
  %v817 = vrot.slane %v816, 4
  %v818 = vadd.f32 %v816, %v817
  %v819 = vrot.slane %v818, 2
  %v820 = vadd.f32 %v818, %v819
  %v821 = vrot.slane %v820, 1
  %v822 = vadd.f32 %v820, %v821
  %vm823 = vcmask 1040384
  %v824 = vsel %vm823, %v810, %v822
  %825 = vst [vmem:[%s3] sm:$0x3] %v824
  // Predicated region
  $region10: #{stage2_d_forward.25} parent=0 // pred_check
    _
  $region11: #{stage2_d_forward.25} parent=0 // pred_check_branch
    %827 = sbr.rel (0) target = $region13
  $region12: #{stage2_d_forward.25} parent=0 // pred_region
    _
  $region13: #{stage2_d_forward.25} parent=0 // pred_fallthru
    _
  // Predicated region
  $region14: #{stage2_d_forward.25} parent=0 // pred_check
    _
  $region15: #{stage2_d_forward.25} parent=0 // pred_check_branch
    %829 = sbr.rel (0) target = $region17
  $region16: #{stage2_d_forward.25} parent=0 // pred_region
    _
  $region17: #{stage2_d_forward.25} parent=0 // pred_fallthru
    _
  // Predicated region
  $region18: #{stage2_d_forward.25} parent=0 // pred_check
    _
  $region19: #{stage2_d_forward.25} parent=0 // pred_check_branch
    %831 = sbr.rel (0) target = $region21
  $region20: #{stage2_d_forward.25} parent=0 // pred_region
    _
  $region21: #{stage2_d_forward.25} parent=0 // pred_fallthru
    _
  // Predicated region
  $region22: #{stage2_d_forward.25} parent=0 // pred_check
    _
  $region23: #{stage2_d_forward.25} parent=0 // pred_check_branch
    %833 = sbr.rel (0) target = $region25
  $region24: #{stage2_d_forward.25} parent=0 // pred_region
    _
  $region25: #{stage2_d_forward.25} parent=0 // pred_fallthru
    _

// kernel: stage2_d_forward.28
$region0: #{stage2_d_forward.28}
  #allocation0 [shape = 'u32[]', space=smem, size = 0x4, offset = 0x4, fixed_abs, tag = 'smem constant byte address 0x4 - core index']
  #allocation1 [shape = 'u32[144,128]{1,0:T(1,128)}', space=vmem, size = 0x12000, scoped, tag = 'internal scratch']
  %s0 = inlined_call_operand.vmem [shape: f32[18,64], index: 0, kind: input, shape index: {}]
  %s1 = inlined_call_operand.vmem [shape: f32[1,64], index: 1, kind: input, shape index: {}]
  %s2 = inlined_call_operand.vmem [shape: f32[1,64], index: 2, kind: input, shape index: {}]
  %s3 = inlined_call_operand.vmem [shape: bf16[18,64], index: 3, kind: output, shape index: {}]
  %s4 = sld [smem:[#allocation0]]
  $region22: #{stage2_d_forward.28} parent=0
    _
  %s6 = ssub.s32 1, %s4
  %s7 = scalar_select 0, %s6, %s4
  // Predicated region
  $region2: #{stage2_d_forward.28} parent=0 // pred_check
    _
  $region3: #{stage2_d_forward.28} parent=0 // pred_check_branch
    %9 = sbr.rel (0) target = $region5
  $region4: #{stage2_d_forward.28} parent=0 // pred_region
    _
  $region5: #{stage2_d_forward.28} parent=0 // pred_fallthru
    _
  // Predicated region
  $region6: #{stage2_d_forward.28} parent=0 // pred_check
    _
  $region7: #{stage2_d_forward.28} parent=0 // pred_check_branch
    %11 = sbr.rel (0) target = $region9
  $region8: #{stage2_d_forward.28} parent=0 // pred_region
    _
  $region9: #{stage2_d_forward.28} parent=0 // pred_fallthru
    _
  // Predicated region
  $region10: #{stage2_d_forward.28} parent=0 // pred_check
    _
  $region11: #{stage2_d_forward.28} parent=0 // pred_check_branch
    %13 = sbr.rel (0) target = $region13
  $region12: #{stage2_d_forward.28} parent=0 // pred_region
    _
  $region13: #{stage2_d_forward.28} parent=0 // pred_fallthru
    _
  %v14 = vld [vmem:[%s0] sm:$0xff]
  %v15 = vld [vmem:[%s0 + $0x8] sm:$0xff]
  %v16 = vld [vmem:[%s0 + $0x10] sm:$0x3]
  %v17 = vld [vmem:[%s1] sm:$0x1]
  %v19 = vlaneseq
  %v20 = vshrl.u32 %v19, 7
  %v21 = vsub.s32 0, %v20
  %v22 = vrot.slane %v17, %v21
  %v24 = vmul.f32 %v14, %v22
  %v25 = vmul.f32 %v15, %v22
  %v26 = vmul.f32 %v16, %v22
  %v27 = vld [vmem:[%s2] sm:$0x1]
  %v29 = vlaneseq
  %v30 = vshrl.u32 %v29, 7
  %v31 = vsub.s32 0, %v30
  %v32 = vrot.slane %v27, %v31
  %v34 = vadd.f32 %v24, %v32
  %v35 = vadd.f32 %v25, %v32
  %v36 = vadd.f32 %v26, %v32
  %vm37 = vcmp.ge.f32.partialorder %v34, 0.0
  %vm38 = vcmp.ge.f32.partialorder %v35, 0.0
  %vm39 = vcmp.ge.f32.partialorder %v36, 0.0
  %v40 = vmul.f32 %v34, 0.2
  %v41 = vmul.f32 %v35, 0.2
  %v42 = vmul.f32 %v36, 0.2
  %v43 = vsel %vm37, %v34, %v40
  %v44 = vsel %vm38, %v35, %v41
  %v45 = vsel %vm39, %v36, %v42
  %v46 = vpack.c.bf16 %v44, %v43
  %v47 = vpack.c.bf16 %v45, %v45
  %v50 = vunpack.c.l.b16 %v46
  %v51 = vunpack.c.h.b16 %v46
  %v52 = vunpack.c.l.b16 %v47
  %v53 = vpack.c.b16 %v50, %v50
  %v54 = vpack.c.b16 %v51, %v51
  %v55 = vpack.c.b16 %v52, %v52
  %vm59 = vcmask 519168
  %60 = vst.msk [vmem:[%s3] sm:$0xf] %vm59, %v53
  %61 = vst.msk [vmem:[%s3 + $0x4] sm:$0xf] %vm59, %v54
  %vm62 = vcmask 516096
  %63 = vst.msk [vmem:[%s3 + $0x8] sm:$0x1] %vm62, %v55
  // Predicated region
  $region14: #{stage2_d_forward.28} parent=0 // pred_check
    _
  $region15: #{stage2_d_forward.28} parent=0 // pred_check_branch
    %65 = sbr.rel (0) target = $region17
  $region16: #{stage2_d_forward.28} parent=0 // pred_region
    _
  $region17: #{stage2_d_forward.28} parent=0 // pred_fallthru
    _
  // Predicated region
  $region18: #{stage2_d_forward.28} parent=0 // pred_check
    _
  $region19: #{stage2_d_forward.28} parent=0 // pred_check_branch
    %67 = sbr.rel (0) target = $region21
  $region20: #{stage2_d_forward.28} parent=0 // pred_region
    _
  $region21: #{stage2_d_forward.28} parent=0 // pred_fallthru
    _

// kernel: stage2_d_forward.27
$region0: #{stage2_d_forward.27}
  #allocation0 [shape = 'u32[]', space=smem, size = 0x4, offset = 0x4, fixed_abs, tag = 'smem constant byte address 0x4 - core index']
  #allocation1 [shape = 'u32[144,128]{1,0:T(1,128)}', space=vmem, size = 0x12000, scoped, tag = 'internal scratch']
  %s0 = inlined_call_operand.vmem [shape: bf16[18,1152], index: 0, kind: input, shape index: {}]
  %s1 = inlined_call_operand.vmem [shape: bf16[1152,128], index: 1, kind: input, shape index: {}]
  %s2 = inlined_call_operand.vmem [shape: f32[18,64], index: 2, kind: output, shape index: {0}]
  %s3 = inlined_call_operand.vmem [shape: f32[1,2,64], index: 3, kind: output, shape index: {1}]
  %4 = xla_tuple %s2, %s3
  %s5 = sld [smem:[#allocation0]]
  $region26: #{stage2_d_forward.27} parent=0
    _
  %s7 = ssub.s32 1, %s5
  %s8 = scalar_select 0, %s7, %s5
  // Predicated region
  $region2: #{stage2_d_forward.27} parent=0 // pred_check
    _
  $region3: #{stage2_d_forward.27} parent=0 // pred_check_branch
    %10 = sbr.rel (0) target = $region5
  $region4: #{stage2_d_forward.27} parent=0 // pred_region
    _
  $region5: #{stage2_d_forward.27} parent=0 // pred_fallthru
    _
  // Predicated region
  $region6: #{stage2_d_forward.27} parent=0 // pred_check
    _
  $region7: #{stage2_d_forward.27} parent=0 // pred_check_branch
    %12 = sbr.rel (0) target = $region9
  $region8: #{stage2_d_forward.27} parent=0 // pred_region
    _
  $region9: #{stage2_d_forward.27} parent=0 // pred_fallthru
    _
  %v14 = vld [vmem:[%s0] sm:$0xff]
  %v15 = vld [vmem:[%s0 + $0x8] sm:$0xff]
  %v16 = vld [vmem:[%s0 + $0x10] sm:$0xff]
  %v17 = vld [vmem:[%s0 + $0x18] sm:$0xff]
  %v18 = vld [vmem:[%s0 + $0x20] sm:$0xf]
  %v19 = vld [vmem:[%s0 + $0x24] sm:$0xff]
  %v20 = vld [vmem:[%s0 + $0x2c] sm:$0xff]
  %v21 = vld [vmem:[%s0 + $0x34] sm:$0xff]
  %v22 = vld [vmem:[%s0 + $0x3c] sm:$0xff]
  %v23 = vld [vmem:[%s0 + $0x44] sm:$0xf]
  %v24 = vld [vmem:[%s0 + $0x48] sm:$0x11]
  %v25 = vld [vmem:[%s0 + $0x50] sm:$0x11]
  %v26 = vld [vmem:[%s0 + $0x58] sm:$0x11]
  %v27 = vld [vmem:[%s0 + $0x60] sm:$0x11]
  %v28 = vld [vmem:[%s0 + $0x68] sm:$0x1]
  %v29 = vld [vmem:[%s1] sm:$0xf]
  %v30 = vld [vmem:[%s1 + $0x4] sm:$0xf]
  %v31 = vld [vmem:[%s1 + $0x8] sm:$0xf]
  %v32 = vld [vmem:[%s1 + $0xc] sm:$0xf]
  %v33 = vld [vmem:[%s1 + $0x10] sm:$0xf]
  %v34 = vld [vmem:[%s1 + $0x14] sm:$0xf]
  %v35 = vld [vmem:[%s1 + $0x18] sm:$0xf]
  %v36 = vld [vmem:[%s1 + $0x1c] sm:$0xf]
  %v37 = vld [vmem:[%s1 + $0x20] sm:$0xf]
  %v38 = vld [vmem:[%s1 + $0x24] sm:$0xf]
  %v39 = vld [vmem:[%s1 + $0x28] sm:$0xf]
  %v40 = vld [vmem:[%s1 + $0x2c] sm:$0xf]
  %v41 = vld [vmem:[%s1 + $0x30] sm:$0xf]
  %v42 = vld [vmem:[%s1 + $0x34] sm:$0xf]
  %v43 = vld [vmem:[%s1 + $0x38] sm:$0xf]
  %v44 = vld [vmem:[%s1 + $0x3c] sm:$0xf]
  %v45 = vld [vmem:[%s1 + $0x40] sm:$0xf]
  %v46 = vld [vmem:[%s1 + $0x44] sm:$0xf]
  %v47 = vld [vmem:[%s1 + $0x48] sm:$0xf]
  %v48 = vld [vmem:[%s1 + $0x4c] sm:$0xf]
  %v49 = vld [vmem:[%s1 + $0x50] sm:$0xf]
  %v50 = vld [vmem:[%s1 + $0x54] sm:$0xf]
  %v51 = vld [vmem:[%s1 + $0x58] sm:$0xf]
  %v52 = vld [vmem:[%s1 + $0x5c] sm:$0xf]
  %v53 = vld [vmem:[%s1 + $0x60] sm:$0xf]
  %v54 = vld [vmem:[%s1 + $0x64] sm:$0xf]
  %v55 = vld [vmem:[%s1 + $0x68] sm:$0xf]
  %v56 = vld [vmem:[%s1 + $0x6c] sm:$0xf]
  %v57 = vld [vmem:[%s1 + $0x70] sm:$0xf]
  %v58 = vld [vmem:[%s1 + $0x74] sm:$0xf]
  %v59 = vld [vmem:[%s1 + $0x78] sm:$0xf]
  %v60 = vld [vmem:[%s1 + $0x7c] sm:$0xf]
  %v61 = vld [vmem:[%s1 + $0x80] sm:$0xf]
  %v62 = vld [vmem:[%s1 + $0x84] sm:$0xf]
  %v63 = vld [vmem:[%s1 + $0x88] sm:$0xf]
  %v64 = vld [vmem:[%s1 + $0x8c] sm:$0xf]
  %v65 = vld [vmem:[%s1 + $0x90] sm:$0xf]
  %v66 = vld [vmem:[%s1 + $0x94] sm:$0xf]
  %v67 = vld [vmem:[%s1 + $0x98] sm:$0xf]
  %v68 = vld [vmem:[%s1 + $0x9c] sm:$0xf]
  %v69 = vld [vmem:[%s1 + $0xa0] sm:$0xf]
  %v70 = vld [vmem:[%s1 + $0xa4] sm:$0xf]
  %v71 = vld [vmem:[%s1 + $0xa8] sm:$0xf]
  %v72 = vld [vmem:[%s1 + $0xac] sm:$0xf]
  %v73 = vld [vmem:[%s1 + $0xb0] sm:$0xf]
  %v74 = vld [vmem:[%s1 + $0xb4] sm:$0xf]
  %v75 = vld [vmem:[%s1 + $0xb8] sm:$0xf]
  %v76 = vld [vmem:[%s1 + $0xbc] sm:$0xf]
  %v77 = vld [vmem:[%s1 + $0xc0] sm:$0xf]
  %v78 = vld [vmem:[%s1 + $0xc4] sm:$0xf]
  %v79 = vld [vmem:[%s1 + $0xc8] sm:$0xf]
  %v80 = vld [vmem:[%s1 + $0xcc] sm:$0xf]
  %v81 = vld [vmem:[%s1 + $0xd0] sm:$0xf]
  %v82 = vld [vmem:[%s1 + $0xd4] sm:$0xf]
  %v83 = vld [vmem:[%s1 + $0xd8] sm:$0xf]
  %v84 = vld [vmem:[%s1 + $0xdc] sm:$0xf]
  %v85 = vld [vmem:[%s1 + $0xe0] sm:$0xf]
  %v86 = vld [vmem:[%s1 + $0xe4] sm:$0xf]
  %v87 = vld [vmem:[%s1 + $0xe8] sm:$0xf]
  %v88 = vld [vmem:[%s1 + $0xec] sm:$0xf]
  %v89 = vld [vmem:[%s1 + $0xf0] sm:$0xf]
  %v90 = vld [vmem:[%s1 + $0xf4] sm:$0xf]
  %v91 = vld [vmem:[%s1 + $0xf8] sm:$0xf]
  %v92 = vld [vmem:[%s1 + $0xfc] sm:$0xf]
  %v93 = vld [vmem:[%s1 + $0x100] sm:$0xf]
  %v94 = vld [vmem:[%s1 + $0x104] sm:$0xf]
  %v95 = vld [vmem:[%s1 + $0x108] sm:$0xf]
  %v96 = vld [vmem:[%s1 + $0x10c] sm:$0xf]
  %v97 = vld [vmem:[%s1 + $0x110] sm:$0xf]
  %v98 = vld [vmem:[%s1 + $0x114] sm:$0xf]
  %v99 = vld [vmem:[%s1 + $0x118] sm:$0xf]
  %v100 = vld [vmem:[%s1 + $0x11c] sm:$0xf]
  %v101 = vld [vmem:[%s1 + $0x120] sm:$0xf]
  %v102 = vld [vmem:[%s1 + $0x124] sm:$0xf]
  %v103 = vld [vmem:[%s1 + $0x128] sm:$0xf]
  %v104 = vld [vmem:[%s1 + $0x12c] sm:$0xf]
  %v105 = vld [vmem:[%s1 + $0x130] sm:$0xf]
  %v106 = vld [vmem:[%s1 + $0x134] sm:$0xf]
  %v107 = vld [vmem:[%s1 + $0x138] sm:$0xf]
  %v108 = vld [vmem:[%s1 + $0x13c] sm:$0xf]
  %v109 = vld [vmem:[%s1 + $0x140] sm:$0xf]
  %v110 = vld [vmem:[%s1 + $0x144] sm:$0xf]
  %v111 = vld [vmem:[%s1 + $0x148] sm:$0xf]
  %v112 = vld [vmem:[%s1 + $0x14c] sm:$0xf]
  %v113 = vld [vmem:[%s1 + $0x150] sm:$0xf]
  %v114 = vld [vmem:[%s1 + $0x154] sm:$0xf]
  %v115 = vld [vmem:[%s1 + $0x158] sm:$0xf]
  %v116 = vld [vmem:[%s1 + $0x15c] sm:$0xf]
  %v117 = vld [vmem:[%s1 + $0x160] sm:$0xf]
  %v118 = vld [vmem:[%s1 + $0x164] sm:$0xf]
  %v119 = vld [vmem:[%s1 + $0x168] sm:$0xf]
  %v120 = vld [vmem:[%s1 + $0x16c] sm:$0xf]
  %v121 = vld [vmem:[%s1 + $0x170] sm:$0xf]
  %v122 = vld [vmem:[%s1 + $0x174] sm:$0xf]
  %v123 = vld [vmem:[%s1 + $0x178] sm:$0xf]
  %v124 = vld [vmem:[%s1 + $0x17c] sm:$0xf]
  %v125 = vld [vmem:[%s1 + $0x180] sm:$0xf]
  %v126 = vld [vmem:[%s1 + $0x184] sm:$0xf]
  %v127 = vld [vmem:[%s1 + $0x188] sm:$0xf]
  %v128 = vld [vmem:[%s1 + $0x18c] sm:$0xf]
  %v129 = vld [vmem:[%s1 + $0x190] sm:$0xf]
  %v130 = vld [vmem:[%s1 + $0x194] sm:$0xf]
  %v131 = vld [vmem:[%s1 + $0x198] sm:$0xf]
  %v132 = vld [vmem:[%s1 + $0x19c] sm:$0xf]
  %v133 = vld [vmem:[%s1 + $0x1a0] sm:$0xf]
  %v134 = vld [vmem:[%s1 + $0x1a4] sm:$0xf]
  %v135 = vld [vmem:[%s1 + $0x1a8] sm:$0xf]
  %v136 = vld [vmem:[%s1 + $0x1ac] sm:$0xf]
  %v137 = vld [vmem:[%s1 + $0x1b0] sm:$0xf]
  %v138 = vld [vmem:[%s1 + $0x1b4] sm:$0xf]
  %v139 = vld [vmem:[%s1 + $0x1b8] sm:$0xf]
  %v140 = vld [vmem:[%s1 + $0x1bc] sm:$0xf]
  %v141 = vld [vmem:[%s1 + $0x1c0] sm:$0xf]
  %v142 = vld [vmem:[%s1 + $0x1c4] sm:$0xf]
  %v143 = vld [vmem:[%s1 + $0x1c8] sm:$0xf]
  %v144 = vld [vmem:[%s1 + $0x1cc] sm:$0xf]
  %v145 = vld [vmem:[%s1 + $0x1d0] sm:$0xf]
  %v146 = vld [vmem:[%s1 + $0x1d4] sm:$0xf]
  %v147 = vld [vmem:[%s1 + $0x1d8] sm:$0xf]
  %v148 = vld [vmem:[%s1 + $0x1dc] sm:$0xf]
  %v149 = vld [vmem:[%s1 + $0x1e0] sm:$0xf]
  %v150 = vld [vmem:[%s1 + $0x1e4] sm:$0xf]
  %v151 = vld [vmem:[%s1 + $0x1e8] sm:$0xf]
  %v152 = vld [vmem:[%s1 + $0x1ec] sm:$0xf]
  %v153 = vld [vmem:[%s1 + $0x1f0] sm:$0xf]
  %v154 = vld [vmem:[%s1 + $0x1f4] sm:$0xf]
  %v155 = vld [vmem:[%s1 + $0x1f8] sm:$0xf]
  %v156 = vld [vmem:[%s1 + $0x1fc] sm:$0xf]
  %v157 = vld [vmem:[%s1 + $0x200] sm:$0xf]
  %v158 = vld [vmem:[%s1 + $0x204] sm:$0xf]
  %v159 = vld [vmem:[%s1 + $0x208] sm:$0xf]
  %v160 = vld [vmem:[%s1 + $0x20c] sm:$0xf]
  %v161 = vld [vmem:[%s1 + $0x210] sm:$0xf]
  %v162 = vld [vmem:[%s1 + $0x214] sm:$0xf]
  %v163 = vld [vmem:[%s1 + $0x218] sm:$0xf]
  %v164 = vld [vmem:[%s1 + $0x21c] sm:$0xf]
  %v165 = vld [vmem:[%s1 + $0x220] sm:$0xf]
  %v166 = vld [vmem:[%s1 + $0x224] sm:$0xf]
  %v167 = vld [vmem:[%s1 + $0x228] sm:$0xf]
  %v168 = vld [vmem:[%s1 + $0x22c] sm:$0xf]
  %v169 = vld [vmem:[%s1 + $0x230] sm:$0xf]
  %v170 = vld [vmem:[%s1 + $0x234] sm:$0xf]
  %v171 = vld [vmem:[%s1 + $0x238] sm:$0xf]
  %v172 = vld [vmem:[%s1 + $0x23c] sm:$0xf]
  %v188 = vunpack.c.l.b16 %v14
  %v189 = vunpack.c.h.b16 %v14
  %v190 = vunpack.c.l.b16 %v15
  %v191 = vunpack.c.h.b16 %v15
  %v192 = vunpack.c.l.b16 %v16
  %v193 = vunpack.c.h.b16 %v16
  %v194 = vunpack.c.l.b16 %v17
  %v195 = vunpack.c.h.b16 %v17
  %v196 = vunpack.c.l.b16 %v18
  %v197 = vunpack.c.l.b16 %v19
  %v198 = vunpack.c.h.b16 %v19
  %v199 = vunpack.c.l.b16 %v20
  %v200 = vunpack.c.h.b16 %v20
  %v201 = vunpack.c.l.b16 %v21
  %v202 = vunpack.c.h.b16 %v21
  %v203 = vunpack.c.l.b16 %v22
  %v204 = vunpack.c.h.b16 %v22
  %v205 = vunpack.c.l.b16 %v23
  %v206 = vunpack.c.l.b16 %v24
  %v207 = vunpack.c.h.b16 %v24
  %v208 = vunpack.c.l.b16 %v25
  %v209 = vunpack.c.h.b16 %v25
  %v210 = vunpack.c.l.b16 %v26
  %v211 = vunpack.c.h.b16 %v26
  %v212 = vunpack.c.l.b16 %v27
  %v213 = vunpack.c.h.b16 %v27
  %v214 = vunpack.c.l.b16 %v28
  %v215 = vpack.c.b16 %v197, %v188
  %v216 = vpack.c.b16 %v198, %v189
  %v217 = vpack.c.b16 %v199, %v190
  %v218 = vpack.c.b16 %v200, %v191
  %v219 = vpack.c.b16 %v201, %v192
  %v220 = vpack.c.b16 %v202, %v193
  %v221 = vpack.c.b16 %v203, %v194
  %v222 = vpack.c.b16 %v204, %v195
  %v223 = vpack.c.b16 %v205, %v196
  %v224 = vpack.c.b16 %v206, %v206
  %v225 = vpack.c.b16 %v207, %v207
  %v226 = vpack.c.b16 %v208, %v208
  %v227 = vpack.c.b16 %v209, %v209
  %v228 = vpack.c.b16 %v210, %v210
  %v229 = vpack.c.b16 %v211, %v211
  %v230 = vpack.c.b16 %v212, %v212
  %v231 = vpack.c.b16 %v213, %v213
  %v232 = vpack.c.b16 %v214, %v214
  %v395 = vunpack.c.l.b16 %v29
  %v396 = vunpack.c.l.b16 %v30
  %v397 = vunpack.c.l.b16 %v31
  %v398 = vunpack.c.l.b16 %v32
  %v399 = vunpack.c.l.b16 %v33
  %v400 = vunpack.c.l.b16 %v34
  %v401 = vunpack.c.l.b16 %v35
  %v402 = vunpack.c.l.b16 %v36
  %v403 = vunpack.c.l.b16 %v37
  %v404 = vunpack.c.l.b16 %v38
  %v405 = vunpack.c.l.b16 %v39
  %v406 = vunpack.c.l.b16 %v40
  %v407 = vunpack.c.l.b16 %v41
  %v408 = vunpack.c.l.b16 %v42
  %v409 = vunpack.c.l.b16 %v43
  %v410 = vunpack.c.l.b16 %v44
  %v411 = vunpack.c.l.b16 %v45
  %v412 = vunpack.c.l.b16 %v46
  %v413 = vunpack.c.l.b16 %v47
  %v414 = vunpack.c.l.b16 %v48
  %v415 = vunpack.c.l.b16 %v49
  %v416 = vunpack.c.l.b16 %v50
  %v417 = vunpack.c.l.b16 %v51
  %v418 = vunpack.c.l.b16 %v52
  %v419 = vunpack.c.l.b16 %v53
  %v420 = vunpack.c.l.b16 %v54
  %v421 = vunpack.c.l.b16 %v55
  %v422 = vunpack.c.l.b16 %v56
  %v423 = vunpack.c.l.b16 %v57
  %v424 = vunpack.c.l.b16 %v58
  %v425 = vunpack.c.l.b16 %v59
  %v426 = vunpack.c.l.b16 %v60
  %v427 = vunpack.c.l.b16 %v61
  %v428 = vunpack.c.l.b16 %v62
  %v429 = vunpack.c.l.b16 %v63
  %v430 = vunpack.c.l.b16 %v64
  %v431 = vunpack.c.l.b16 %v65
  %v432 = vunpack.c.l.b16 %v66
  %v433 = vunpack.c.l.b16 %v67
  %v434 = vunpack.c.l.b16 %v68
  %v435 = vunpack.c.l.b16 %v69
  %v436 = vunpack.c.l.b16 %v70
  %v437 = vunpack.c.l.b16 %v71
  %v438 = vunpack.c.l.b16 %v72
  %v439 = vunpack.c.l.b16 %v73
  %v440 = vunpack.c.l.b16 %v74
  %v441 = vunpack.c.l.b16 %v75
  %v442 = vunpack.c.l.b16 %v76
  %v443 = vunpack.c.l.b16 %v77
  %v444 = vunpack.c.l.b16 %v78
  %v445 = vunpack.c.l.b16 %v79
  %v446 = vunpack.c.l.b16 %v80
  %v447 = vunpack.c.l.b16 %v81
  %v448 = vunpack.c.l.b16 %v82
  %v449 = vunpack.c.l.b16 %v83
  %v450 = vunpack.c.l.b16 %v84
  %v451 = vunpack.c.l.b16 %v85
  %v452 = vunpack.c.l.b16 %v86
  %v453 = vunpack.c.l.b16 %v87
  %v454 = vunpack.c.l.b16 %v88
  %v455 = vunpack.c.l.b16 %v89
  %v456 = vunpack.c.l.b16 %v90
  %v457 = vunpack.c.l.b16 %v91
  %v458 = vunpack.c.l.b16 %v92
  %v459 = vunpack.c.l.b16 %v93
  %v460 = vunpack.c.l.b16 %v94
  %v461 = vunpack.c.l.b16 %v95
  %v462 = vunpack.c.l.b16 %v96
  %v463 = vunpack.c.l.b16 %v97
  %v464 = vunpack.c.l.b16 %v98
  %v465 = vunpack.c.l.b16 %v99
  %v466 = vunpack.c.l.b16 %v100
  %v467 = vunpack.c.l.b16 %v101
  %v468 = vunpack.c.l.b16 %v102
  %v469 = vunpack.c.l.b16 %v103
  %v470 = vunpack.c.l.b16 %v104
  %v471 = vunpack.c.l.b16 %v105
  %v472 = vunpack.c.l.b16 %v106
  %v473 = vunpack.c.l.b16 %v107
  %v474 = vunpack.c.l.b16 %v108
  %v475 = vunpack.c.l.b16 %v109
  %v476 = vunpack.c.l.b16 %v110
  %v477 = vunpack.c.l.b16 %v111
  %v478 = vunpack.c.l.b16 %v112
  %v479 = vunpack.c.l.b16 %v113
  %v480 = vunpack.c.l.b16 %v114
  %v481 = vunpack.c.l.b16 %v115
  %v482 = vunpack.c.l.b16 %v116
  %v483 = vunpack.c.l.b16 %v117
  %v484 = vunpack.c.l.b16 %v118
  %v485 = vunpack.c.l.b16 %v119
  %v486 = vunpack.c.l.b16 %v120
  %v487 = vunpack.c.l.b16 %v121
  %v488 = vunpack.c.l.b16 %v122
  %v489 = vunpack.c.l.b16 %v123
  %v490 = vunpack.c.l.b16 %v124
  %v491 = vunpack.c.l.b16 %v125
  %v492 = vunpack.c.l.b16 %v126
  %v493 = vunpack.c.l.b16 %v127
  %v494 = vunpack.c.l.b16 %v128
  %v495 = vunpack.c.l.b16 %v129
  %v496 = vunpack.c.l.b16 %v130
  %v497 = vunpack.c.l.b16 %v131
  %v498 = vunpack.c.l.b16 %v132
  %v499 = vunpack.c.l.b16 %v133
  %v500 = vunpack.c.l.b16 %v134
  %v501 = vunpack.c.l.b16 %v135
  %v502 = vunpack.c.l.b16 %v136
  %v503 = vunpack.c.l.b16 %v137
  %v504 = vunpack.c.l.b16 %v138
  %v505 = vunpack.c.l.b16 %v139
  %v506 = vunpack.c.l.b16 %v140
  %v507 = vunpack.c.l.b16 %v141
  %v508 = vunpack.c.l.b16 %v142
  %v509 = vunpack.c.l.b16 %v143
  %v510 = vunpack.c.l.b16 %v144
  %v511 = vunpack.c.l.b16 %v145
  %v512 = vunpack.c.l.b16 %v146
  %v513 = vunpack.c.l.b16 %v147
  %v514 = vunpack.c.l.b16 %v148
  %v515 = vunpack.c.l.b16 %v149
  %v516 = vunpack.c.l.b16 %v150
  %v517 = vunpack.c.l.b16 %v151
  %v518 = vunpack.c.l.b16 %v152
  %v519 = vunpack.c.l.b16 %v153
  %v520 = vunpack.c.l.b16 %v154
  %v521 = vunpack.c.l.b16 %v155
  %v522 = vunpack.c.l.b16 %v156
  %v523 = vunpack.c.l.b16 %v157
  %v524 = vunpack.c.l.b16 %v158
  %v525 = vunpack.c.l.b16 %v159
  %v526 = vunpack.c.l.b16 %v160
  %v527 = vunpack.c.l.b16 %v161
  %v528 = vunpack.c.l.b16 %v162
  %v529 = vunpack.c.l.b16 %v163
  %v530 = vunpack.c.l.b16 %v164
  %v531 = vunpack.c.l.b16 %v165
  %v532 = vunpack.c.l.b16 %v166
  %v533 = vunpack.c.l.b16 %v167
  %v534 = vunpack.c.l.b16 %v168
  %v535 = vunpack.c.l.b16 %v169
  %v536 = vunpack.c.l.b16 %v170
  %v537 = vunpack.c.l.b16 %v171
  %v538 = vunpack.c.l.b16 %v172
  %v539 = vpack.c.b16 %v396, %v395
  %v540 = vpack.c.b16 %v398, %v397
  %v541 = vpack.c.b16 %v400, %v399
  %v542 = vpack.c.b16 %v402, %v401
  %v543 = vpack.c.b16 %v404, %v403
  %v544 = vpack.c.b16 %v406, %v405
  %v545 = vpack.c.b16 %v408, %v407
  %v546 = vpack.c.b16 %v410, %v409
  %v547 = vpack.c.b16 %v412, %v411
  %v548 = vpack.c.b16 %v414, %v413
  %v549 = vpack.c.b16 %v416, %v415
  %v550 = vpack.c.b16 %v418, %v417
  %v551 = vpack.c.b16 %v420, %v419
  %v552 = vpack.c.b16 %v422, %v421
  %v553 = vpack.c.b16 %v424, %v423
  %v554 = vpack.c.b16 %v426, %v425
  %v555 = vpack.c.b16 %v428, %v427
  %v556 = vpack.c.b16 %v430, %v429
  %v557 = vpack.c.b16 %v432, %v431
  %v558 = vpack.c.b16 %v434, %v433
  %v559 = vpack.c.b16 %v436, %v435
  %v560 = vpack.c.b16 %v438, %v437
  %v561 = vpack.c.b16 %v440, %v439
  %v562 = vpack.c.b16 %v442, %v441
  %v563 = vpack.c.b16 %v444, %v443
  %v564 = vpack.c.b16 %v446, %v445
  %v565 = vpack.c.b16 %v448, %v447
  %v566 = vpack.c.b16 %v450, %v449
  %v567 = vpack.c.b16 %v452, %v451
  %v568 = vpack.c.b16 %v454, %v453
  %v569 = vpack.c.b16 %v456, %v455
  %v570 = vpack.c.b16 %v458, %v457
  %v571 = vpack.c.b16 %v460, %v459
  %v572 = vpack.c.b16 %v462, %v461
  %v573 = vpack.c.b16 %v464, %v463
  %v574 = vpack.c.b16 %v466, %v465
  %v575 = vpack.c.b16 %v468, %v467
  %v576 = vpack.c.b16 %v470, %v469
  %v577 = vpack.c.b16 %v472, %v471
  %v578 = vpack.c.b16 %v474, %v473
  %v579 = vpack.c.b16 %v476, %v475
  %v580 = vpack.c.b16 %v478, %v477
  %v581 = vpack.c.b16 %v480, %v479
  %v582 = vpack.c.b16 %v482, %v481
  %v583 = vpack.c.b16 %v484, %v483
  %v584 = vpack.c.b16 %v486, %v485
  %v585 = vpack.c.b16 %v488, %v487
  %v586 = vpack.c.b16 %v490, %v489
  %v587 = vpack.c.b16 %v492, %v491
  %v588 = vpack.c.b16 %v494, %v493
  %v589 = vpack.c.b16 %v496, %v495
  %v590 = vpack.c.b16 %v498, %v497
  %v591 = vpack.c.b16 %v500, %v499
  %v592 = vpack.c.b16 %v502, %v501
  %v593 = vpack.c.b16 %v504, %v503
  %v594 = vpack.c.b16 %v506, %v505
  %v595 = vpack.c.b16 %v508, %v507
  %v596 = vpack.c.b16 %v510, %v509
  %v597 = vpack.c.b16 %v512, %v511
  %v598 = vpack.c.b16 %v514, %v513
  %v599 = vpack.c.b16 %v516, %v515
  %v600 = vpack.c.b16 %v518, %v517
  %v601 = vpack.c.b16 %v520, %v519
  %v602 = vpack.c.b16 %v522, %v521
  %v603 = vpack.c.b16 %v524, %v523
  %v604 = vpack.c.b16 %v526, %v525
  %v605 = vpack.c.b16 %v528, %v527
  %v606 = vpack.c.b16 %v530, %v529
  %v607 = vpack.c.b16 %v532, %v531
  %v608 = vpack.c.b16 %v534, %v533
  %v609 = vpack.c.b16 %v536, %v535
  %v610 = vpack.c.b16 %v538, %v537
  %683 = vmatprep.subr.bf16.mxu0 0
  %684 = vmatpush1.bf16.msra.mxu0 %v546
  %685 = vmatprep.subr.bf16.mxu0 0
  %686 = vmatpush1.bf16.msra.mxu0 %v545
  %687 = vmatprep.subr.bf16.mxu0 0
  %688 = vmatpush1.bf16.msra.mxu0 %v544
  %689 = vmatprep.subr.bf16.mxu0 0
  %690 = vmatpush1.bf16.msra.mxu0 %v543
  %691 = vmatprep.subr.bf16.mxu0 0
  %692 = vmatpush1.bf16.msra.mxu0 %v542
  %693 = vmatprep.subr.bf16.mxu0 0
  %694 = vmatpush1.bf16.msra.mxu0 %v541
  %695 = vmatprep.subr.bf16.mxu0 0
  %696 = vmatpush1.bf16.msra.mxu0 %v540
  %697 = vmatprep.subr.bf16.mxu0 0
  %698 = vmatpush1.bf16.msra.mxu0 %v539
  %699 = vmatprep.subr.bf16.mxu0 0
  %700 = vmatpush2.bf16.msra.mxu0 %v554
  %701 = vmatprep.subr.bf16.mxu0 0
  %702 = vmatpush2.bf16.msra.mxu0 %v553
  %703 = vmatprep.subr.bf16.mxu0 0
  %704 = vmatpush2.bf16.msra.mxu0 %v552
  %705 = vmatprep.subr.bf16.mxu0 0
  %706 = vmatpush2.bf16.msra.mxu0 %v551
  %707 = vmatprep.subr.bf16.mxu0 0
  %708 = vmatpush2.bf16.msra.mxu0 %v550
  %709 = vmatprep.subr.bf16.mxu0 0
  %710 = vmatpush2.bf16.msra.mxu0 %v549
  %711 = vmatprep.subr.bf16.mxu0 0
  %712 = vmatpush2.bf16.msra.mxu0 %v548
  %713 = vmatprep.subr.bf16.mxu0 0
  %714 = vmatpush2.bf16.msra.mxu0 %v547
  %715 = vmatprep.mubr.bf16.mxu0 %v216
  %716 = vmatmul.mubr.bf16.gmra.mxu0 %v215
  %v717 = vpop.f32.mrf.mxu0
  %v718 = vadd.f32 0.0, %v717
  %v719 = vpop.f32.mrf.mxu0
  %v720 = vpop.f32.mrf.mxu0
  %v721 = vadd.f32 0.0, %v720
  %v722 = vpop.f32.mrf.mxu0
  %723 = vmatprep.mubr.bf16.mxu0 %v225
  %724 = vmatmul.mubr.bf16.gmra.mxu0 %v224
  %v725 = vpop.f32.mrf.mxu0
  %v726 = vadd.f32 0.0, %v725
  %v727 = vpop.f32.mrf.mxu0
  %v728 = vpop.f32.mrf.mxu0
  %v729 = vpop.f32.mrf.mxu0
  %730 = vdwg.mxu0
  %731 = vmatprep.subr.bf16.mxu0 0
  %732 = vmatpush1.bf16.msra.mxu0 %v562
  %733 = vmatprep.subr.bf16.mxu0 0
  %734 = vmatpush1.bf16.msra.mxu0 %v561
  %735 = vmatprep.subr.bf16.mxu0 0
  %736 = vmatpush1.bf16.msra.mxu0 %v560
  %737 = vmatprep.subr.bf16.mxu0 0
  %738 = vmatpush1.bf16.msra.mxu0 %v559
  %739 = vmatprep.subr.bf16.mxu0 0
  %740 = vmatpush1.bf16.msra.mxu0 %v558
  %741 = vmatprep.subr.bf16.mxu0 0
  %742 = vmatpush1.bf16.msra.mxu0 %v557
  %743 = vmatprep.subr.bf16.mxu0 0
  %744 = vmatpush1.bf16.msra.mxu0 %v556
  %745 = vmatprep.subr.bf16.mxu0 0
  %746 = vmatpush1.bf16.msra.mxu0 %v555
  %747 = vmatprep.subr.bf16.mxu0 0
  %748 = vmatpush2.bf16.msra.mxu0 %v570
  %749 = vmatprep.subr.bf16.mxu0 0
  %750 = vmatpush2.bf16.msra.mxu0 %v569
  %751 = vmatprep.subr.bf16.mxu0 0
  %752 = vmatpush2.bf16.msra.mxu0 %v568
  %753 = vmatprep.subr.bf16.mxu0 0
  %754 = vmatpush2.bf16.msra.mxu0 %v567
  %755 = vmatprep.subr.bf16.mxu0 0
  %756 = vmatpush2.bf16.msra.mxu0 %v566
  %757 = vmatprep.subr.bf16.mxu0 0
  %758 = vmatpush2.bf16.msra.mxu0 %v565
  %759 = vmatprep.subr.bf16.mxu0 0
  %760 = vmatpush2.bf16.msra.mxu0 %v564
  %761 = vmatprep.subr.bf16.mxu0 0
  %762 = vmatpush2.bf16.msra.mxu0 %v563
  %763 = vmatprep.mubr.bf16.mxu0 %v218
  %764 = vmatmul.mubr.bf16.gmra.mxu0 %v217
  %v765 = vpop.f32.mrf.mxu0
  %v766 = vadd.f32 %v718, %v765
  %v767 = vpop.f32.mrf.mxu0
  %v768 = vpop.f32.mrf.mxu0
  %v769 = vadd.f32 %v721, %v768
  %v770 = vpop.f32.mrf.mxu0
  %771 = vmatprep.mubr.bf16.mxu0 %v227
  %772 = vmatmul.mubr.bf16.gmra.mxu0 %v226
  %v773 = vpop.f32.mrf.mxu0
  %v774 = vadd.f32 %v726, %v773
  %v775 = vpop.f32.mrf.mxu0
  %v776 = vpop.f32.mrf.mxu0
  %v777 = vpop.f32.mrf.mxu0
  %778 = vdwg.mxu0
  %779 = vmatprep.subr.bf16.mxu0 0
  %780 = vmatpush1.bf16.msra.mxu0 %v578
  %781 = vmatprep.subr.bf16.mxu0 0
  %782 = vmatpush1.bf16.msra.mxu0 %v577
  %783 = vmatprep.subr.bf16.mxu0 0
  %784 = vmatpush1.bf16.msra.mxu0 %v576
  %785 = vmatprep.subr.bf16.mxu0 0
  %786 = vmatpush1.bf16.msra.mxu0 %v575
  %787 = vmatprep.subr.bf16.mxu0 0
  %788 = vmatpush1.bf16.msra.mxu0 %v574
  %789 = vmatprep.subr.bf16.mxu0 0
  %790 = vmatpush1.bf16.msra.mxu0 %v573
  %791 = vmatprep.subr.bf16.mxu0 0
  %792 = vmatpush1.bf16.msra.mxu0 %v572
  %793 = vmatprep.subr.bf16.mxu0 0
  %794 = vmatpush1.bf16.msra.mxu0 %v571
  %795 = vmatprep.subr.bf16.mxu0 0
  %796 = vmatpush2.bf16.msra.mxu0 %v586
  %797 = vmatprep.subr.bf16.mxu0 0
  %798 = vmatpush2.bf16.msra.mxu0 %v585
  %799 = vmatprep.subr.bf16.mxu0 0
  %800 = vmatpush2.bf16.msra.mxu0 %v584
  %801 = vmatprep.subr.bf16.mxu0 0
  %802 = vmatpush2.bf16.msra.mxu0 %v583
  %803 = vmatprep.subr.bf16.mxu0 0
  %804 = vmatpush2.bf16.msra.mxu0 %v582
  %805 = vmatprep.subr.bf16.mxu0 0
  %806 = vmatpush2.bf16.msra.mxu0 %v581
  %807 = vmatprep.subr.bf16.mxu0 0
  %808 = vmatpush2.bf16.msra.mxu0 %v580
  %809 = vmatprep.subr.bf16.mxu0 0
  %810 = vmatpush2.bf16.msra.mxu0 %v579
  %811 = vmatprep.mubr.bf16.mxu0 %v220
  %812 = vmatmul.mubr.bf16.gmra.mxu0 %v219
  %v813 = vpop.f32.mrf.mxu0
  %v814 = vadd.f32 %v766, %v813
  %v815 = vpop.f32.mrf.mxu0
  %v816 = vpop.f32.mrf.mxu0
  %v817 = vadd.f32 %v769, %v816
  %v818 = vpop.f32.mrf.mxu0
  %819 = vmatprep.mubr.bf16.mxu0 %v229
  %820 = vmatmul.mubr.bf16.gmra.mxu0 %v228
  %v821 = vpop.f32.mrf.mxu0
  %v822 = vadd.f32 %v774, %v821
  %v823 = vpop.f32.mrf.mxu0
  %v824 = vpop.f32.mrf.mxu0
  %v825 = vpop.f32.mrf.mxu0
  %826 = vdwg.mxu0
  %827 = vmatprep.subr.bf16.mxu0 0
  %828 = vmatpush1.bf16.msra.mxu0 %v594
  %829 = vmatprep.subr.bf16.mxu0 0
  %830 = vmatpush1.bf16.msra.mxu0 %v593
  %831 = vmatprep.subr.bf16.mxu0 0
  %832 = vmatpush1.bf16.msra.mxu0 %v592
  %833 = vmatprep.subr.bf16.mxu0 0
  %834 = vmatpush1.bf16.msra.mxu0 %v591
  %835 = vmatprep.subr.bf16.mxu0 0
  %836 = vmatpush1.bf16.msra.mxu0 %v590
  %837 = vmatprep.subr.bf16.mxu0 0
  %838 = vmatpush1.bf16.msra.mxu0 %v589
  %839 = vmatprep.subr.bf16.mxu0 0
  %840 = vmatpush1.bf16.msra.mxu0 %v588
  %841 = vmatprep.subr.bf16.mxu0 0
  %842 = vmatpush1.bf16.msra.mxu0 %v587
  %843 = vmatprep.subr.bf16.mxu0 0
  %844 = vmatpush2.bf16.msra.mxu0 %v602
  %845 = vmatprep.subr.bf16.mxu0 0
  %846 = vmatpush2.bf16.msra.mxu0 %v601
  %847 = vmatprep.subr.bf16.mxu0 0
  %848 = vmatpush2.bf16.msra.mxu0 %v600
  %849 = vmatprep.subr.bf16.mxu0 0
  %850 = vmatpush2.bf16.msra.mxu0 %v599
  %851 = vmatprep.subr.bf16.mxu0 0
  %852 = vmatpush2.bf16.msra.mxu0 %v598
  %853 = vmatprep.subr.bf16.mxu0 0
  %854 = vmatpush2.bf16.msra.mxu0 %v597
  %855 = vmatprep.subr.bf16.mxu0 0
  %856 = vmatpush2.bf16.msra.mxu0 %v596
  %857 = vmatprep.subr.bf16.mxu0 0
  %858 = vmatpush2.bf16.msra.mxu0 %v595
  %859 = vmatprep.mubr.bf16.mxu0 %v222
  %860 = vmatmul.mubr.bf16.gmra.mxu0 %v221
  %v861 = vpop.f32.mrf.mxu0
  %v862 = vadd.f32 %v814, %v861
  %v863 = vpop.f32.mrf.mxu0
  %v864 = vpop.f32.mrf.mxu0
  %v865 = vadd.f32 %v817, %v864
  %v866 = vpop.f32.mrf.mxu0
  %867 = vmatprep.mubr.bf16.mxu0 %v231
  %868 = vmatmul.mubr.bf16.gmra.mxu0 %v230
  %v869 = vpop.f32.mrf.mxu0
  %v870 = vadd.f32 %v822, %v869
  %v871 = vpop.f32.mrf.mxu0
  %v872 = vpop.f32.mrf.mxu0
  %v873 = vpop.f32.mrf.mxu0
  %874 = vdwg.mxu0
  %875 = vmatprep.subr.bf16.mxu0 0
  %876 = vmatpush1.bf16.msra.mxu0 %v610
  %877 = vmatprep.subr.bf16.mxu0 0
  %878 = vmatpush1.bf16.msra.mxu0 %v609
  %879 = vmatprep.subr.bf16.mxu0 0
  %880 = vmatpush1.bf16.msra.mxu0 %v608
  %881 = vmatprep.subr.bf16.mxu0 0
  %882 = vmatpush1.bf16.msra.mxu0 %v607
  %883 = vmatprep.subr.bf16.mxu0 0
  %884 = vmatpush1.bf16.msra.mxu0 %v606
  %885 = vmatprep.subr.bf16.mxu0 0
  %886 = vmatpush1.bf16.msra.mxu0 %v605
  %887 = vmatprep.subr.bf16.mxu0 0
  %888 = vmatpush1.bf16.msra.mxu0 %v604
  %889 = vmatprep.subr.bf16.mxu0 0
  %890 = vmatpush1.bf16.msra.mxu0 %v603
  %891 = vmatprep.subr.bf16.mxu0 0
  %892 = vmatpush2.bf16.msra.mxu0 0
  %893 = vmatprep.subr.bf16.mxu0 0
  %894 = vmatpush2.bf16.msra.mxu0 0
  %895 = vmatprep.subr.bf16.mxu0 0
  %896 = vmatpush2.bf16.msra.mxu0 0
  %897 = vmatprep.subr.bf16.mxu0 0
  %898 = vmatpush2.bf16.msra.mxu0 0
  %899 = vmatprep.subr.bf16.mxu0 0
  %900 = vmatpush2.bf16.msra.mxu0 0
  %901 = vmatprep.subr.bf16.mxu0 0
  %902 = vmatpush2.bf16.msra.mxu0 0
  %903 = vmatprep.subr.bf16.mxu0 0
  %904 = vmatpush2.bf16.msra.mxu0 0
  %905 = vmatprep.subr.bf16.mxu0 0
  %906 = vmatpush2.bf16.msra.mxu0 0
  %907 = vmatprep.mubr.bf16.mxu0 0
  %908 = vmatmul.mubr.bf16.gmra.mxu0 %v223
  %v909 = vpop.f32.mrf.mxu0
  %v910 = vadd.f32 %v862, %v909
  %v911 = vpop.f32.mrf.mxu0
  %v912 = vpop.f32.mrf.mxu0
  %v913 = vadd.f32 %v865, %v912
  %v914 = vpop.f32.mrf.mxu0
  %915 = vmatprep.mubr.bf16.mxu0 0
  %916 = vmatmul.mubr.bf16.gmra.mxu0 %v232
  %v917 = vpop.f32.mrf.mxu0
  %v918 = vadd.f32 %v870, %v917
  %v919 = vpop.f32.mrf.mxu0
  %v920 = vpop.f32.mrf.mxu0
  %v921 = vpop.f32.mrf.mxu0
  %922 = vdwg.mxu0
  %vm923 = vcmask 523264
  %924 = vst.msk [vmem:[%s2] sm:$0xff] %vm923, %v910
  %925 = vst.msk [vmem:[%s2 + $0x8] sm:$0xff] %vm923, %v913
  %vm926 = vcmask 517120
  %927 = vst.msk [vmem:[%s2 + $0x10] sm:$0x3] %vm926, %v918
  %v928 = vsel %vm923, %v910, 0.0
  %v929 = vsel %vm923, %v913, 0.0
  %v930 = vadd.f32 %v928, %v929
  %v931 = vsel %vm926, %v918, 0.0
  %v932 = vadd.f32 %v930, %v931
  %v933 = vrot.slane %v932, 4
  %v934 = vadd.f32 %v932, %v933
  %v935 = vrot.slane %v934, 2
  %v936 = vadd.f32 %v934, %v935
  %v937 = vrot.slane %v936, 1
  %v938 = vadd.f32 %v936, %v937
  %v939 = vmul.f32 %v910, %v910
  %v940 = vmul.f32 %v913, %v913
  %v941 = vmul.f32 %v918, %v918
  %v942 = vsel %vm923, %v939, 0.0
  %v943 = vsel %vm923, %v940, 0.0
  %v944 = vadd.f32 %v942, %v943
  %v945 = vsel %vm926, %v941, 0.0
  %v946 = vadd.f32 %v944, %v945
  %v947 = vrot.slane %v946, 4
  %v948 = vadd.f32 %v946, %v947
  %v949 = vrot.slane %v948, 2
  %v950 = vadd.f32 %v948, %v949
  %v951 = vrot.slane %v950, 1
  %v952 = vadd.f32 %v950, %v951
  %vm953 = vcmask 1040384
  %v954 = vsel %vm953, %v938, %v952
  %955 = vst.msk [vmem:[%s3] sm:$0x3] %vm926, %v954
  // Predicated region
  $region10: #{stage2_d_forward.27} parent=0 // pred_check
    _
  $region11: #{stage2_d_forward.27} parent=0 // pred_check_branch
    %957 = sbr.rel (0) target = $region13
  $region12: #{stage2_d_forward.27} parent=0 // pred_region
    _
  $region13: #{stage2_d_forward.27} parent=0 // pred_fallthru
    _
  // Predicated region
  $region14: #{stage2_d_forward.27} parent=0 // pred_check
    _
  $region15: #{stage2_d_forward.27} parent=0 // pred_check_branch
    %959 = sbr.rel (0) target = $region17
  $region16: #{stage2_d_forward.27} parent=0 // pred_region
    _
  $region17: #{stage2_d_forward.27} parent=0 // pred_fallthru
    _
  // Predicated region
  $region18: #{stage2_d_forward.27} parent=0 // pred_check
    _
  $region19: #{stage2_d_forward.27} parent=0 // pred_check_branch
    %961 = sbr.rel (0) target = $region21
  $region20: #{stage2_d_forward.27} parent=0 // pred_region
    _
  $region21: #{stage2_d_forward.27} parent=0 // pred_fallthru
    _
  // Predicated region
  $region22: #{stage2_d_forward.27} parent=0 // pred_check
    _
  $region23: #{stage2_d_forward.27} parent=0 // pred_check_branch
    %963 = sbr.rel (0) target = $region25
  $region24: #{stage2_d_forward.27} parent=0 // pred_region
    _
  $region25: #{stage2_d_forward.27} parent=0 // pred_fallthru
    _

// kernel: stage2_d_forward.29
$region0: #{stage2_d_forward.29}
  #allocation0 [shape = 'u32[]', space=smem, size = 0x4, offset = 0x4, fixed_abs, tag = 'smem constant byte address 0x4 - core index']
  #allocation1 [shape = 'u32[144,128]{1,0:T(1,128)}', space=vmem, size = 0x12000, scoped, tag = 'internal scratch']
  %s0 = inlined_call_operand.vmem [shape: bf16[18,576], index: 0, kind: input, shape index: {}]
  %s1 = inlined_call_operand.vmem [shape: bf16[576,128], index: 1, kind: input, shape index: {}]
  %s2 = inlined_call_operand.vmem [shape: f32[18,32], index: 2, kind: output, shape index: {0}]
  %s3 = inlined_call_operand.vmem [shape: f32[1,2,32], index: 3, kind: output, shape index: {1}]
  %4 = xla_tuple %s2, %s3
  %s5 = sld [smem:[#allocation0]]
  $region26: #{stage2_d_forward.29} parent=0
    _
  %s7 = ssub.s32 1, %s5
  %s8 = scalar_select 0, %s7, %s5
  // Predicated region
  $region2: #{stage2_d_forward.29} parent=0 // pred_check
    _
  $region3: #{stage2_d_forward.29} parent=0 // pred_check_branch
    %10 = sbr.rel (0) target = $region5
  $region4: #{stage2_d_forward.29} parent=0 // pred_region
    _
  $region5: #{stage2_d_forward.29} parent=0 // pred_fallthru
    _
  // Predicated region
  $region6: #{stage2_d_forward.29} parent=0 // pred_check
    _
  $region7: #{stage2_d_forward.29} parent=0 // pred_check_branch
    %12 = sbr.rel (0) target = $region9
  $region8: #{stage2_d_forward.29} parent=0 // pred_region
    _
  $region9: #{stage2_d_forward.29} parent=0 // pred_fallthru
    _
  %v14 = vld [vmem:[%s0] sm:$0xff]
  %v15 = vld [vmem:[%s0 + $0x8] sm:$0xff]
  %v16 = vld [vmem:[%s0 + $0x10] sm:$0xf]
  %v17 = vld [vmem:[%s0 + $0x14] sm:$0xff]
  %v18 = vld [vmem:[%s0 + $0x1c] sm:$0xff]
  %v19 = vld [vmem:[%s0 + $0x24] sm:$0xf]
  %v20 = vld [vmem:[%s0 + $0x28] sm:$0x11]
  %v21 = vld [vmem:[%s0 + $0x30] sm:$0x11]
  %v22 = vld [vmem:[%s0 + $0x38] sm:$0x1]
  %v23 = vld [vmem:[%s1] sm:$0xf]
  %v24 = vld [vmem:[%s1 + $0x4] sm:$0xf]
  %v25 = vld [vmem:[%s1 + $0x8] sm:$0xf]
  %v26 = vld [vmem:[%s1 + $0xc] sm:$0xf]
  %v27 = vld [vmem:[%s1 + $0x10] sm:$0xf]
  %v28 = vld [vmem:[%s1 + $0x14] sm:$0xf]
  %v29 = vld [vmem:[%s1 + $0x18] sm:$0xf]
  %v30 = vld [vmem:[%s1 + $0x1c] sm:$0xf]
  %v31 = vld [vmem:[%s1 + $0x20] sm:$0xf]
  %v32 = vld [vmem:[%s1 + $0x24] sm:$0xf]
  %v33 = vld [vmem:[%s1 + $0x28] sm:$0xf]
  %v34 = vld [vmem:[%s1 + $0x2c] sm:$0xf]
  %v35 = vld [vmem:[%s1 + $0x30] sm:$0xf]
  %v36 = vld [vmem:[%s1 + $0x34] sm:$0xf]
  %v37 = vld [vmem:[%s1 + $0x38] sm:$0xf]
  %v38 = vld [vmem:[%s1 + $0x3c] sm:$0xf]
  %v39 = vld [vmem:[%s1 + $0x40] sm:$0xf]
  %v40 = vld [vmem:[%s1 + $0x44] sm:$0xf]
  %v41 = vld [vmem:[%s1 + $0x48] sm:$0xf]
  %v42 = vld [vmem:[%s1 + $0x4c] sm:$0xf]
  %v43 = vld [vmem:[%s1 + $0x50] sm:$0xf]
  %v44 = vld [vmem:[%s1 + $0x54] sm:$0xf]
  %v45 = vld [vmem:[%s1 + $0x58] sm:$0xf]
  %v46 = vld [vmem:[%s1 + $0x5c] sm:$0xf]
  %v47 = vld [vmem:[%s1 + $0x60] sm:$0xf]
  %v48 = vld [vmem:[%s1 + $0x64] sm:$0xf]
  %v49 = vld [vmem:[%s1 + $0x68] sm:$0xf]
  %v50 = vld [vmem:[%s1 + $0x6c] sm:$0xf]
  %v51 = vld [vmem:[%s1 + $0x70] sm:$0xf]
  %v52 = vld [vmem:[%s1 + $0x74] sm:$0xf]
  %v53 = vld [vmem:[%s1 + $0x78] sm:$0xf]
  %v54 = vld [vmem:[%s1 + $0x7c] sm:$0xf]
  %v55 = vld [vmem:[%s1 + $0x80] sm:$0xf]
  %v56 = vld [vmem:[%s1 + $0x84] sm:$0xf]
  %v57 = vld [vmem:[%s1 + $0x88] sm:$0xf]
  %v58 = vld [vmem:[%s1 + $0x8c] sm:$0xf]
  %v59 = vld [vmem:[%s1 + $0x90] sm:$0xf]
  %v60 = vld [vmem:[%s1 + $0x94] sm:$0xf]
  %v61 = vld [vmem:[%s1 + $0x98] sm:$0xf]
  %v62 = vld [vmem:[%s1 + $0x9c] sm:$0xf]
  %v63 = vld [vmem:[%s1 + $0xa0] sm:$0xf]
  %v64 = vld [vmem:[%s1 + $0xa4] sm:$0xf]
  %v65 = vld [vmem:[%s1 + $0xa8] sm:$0xf]
  %v66 = vld [vmem:[%s1 + $0xac] sm:$0xf]
  %v67 = vld [vmem:[%s1 + $0xb0] sm:$0xf]
  %v68 = vld [vmem:[%s1 + $0xb4] sm:$0xf]
  %v69 = vld [vmem:[%s1 + $0xb8] sm:$0xf]
  %v70 = vld [vmem:[%s1 + $0xbc] sm:$0xf]
  %v71 = vld [vmem:[%s1 + $0xc0] sm:$0xf]
  %v72 = vld [vmem:[%s1 + $0xc4] sm:$0xf]
  %v73 = vld [vmem:[%s1 + $0xc8] sm:$0xf]
  %v74 = vld [vmem:[%s1 + $0xcc] sm:$0xf]
  %v75 = vld [vmem:[%s1 + $0xd0] sm:$0xf]
  %v76 = vld [vmem:[%s1 + $0xd4] sm:$0xf]
  %v77 = vld [vmem:[%s1 + $0xd8] sm:$0xf]
  %v78 = vld [vmem:[%s1 + $0xdc] sm:$0xf]
  %v79 = vld [vmem:[%s1 + $0xe0] sm:$0xf]
  %v80 = vld [vmem:[%s1 + $0xe4] sm:$0xf]
  %v81 = vld [vmem:[%s1 + $0xe8] sm:$0xf]
  %v82 = vld [vmem:[%s1 + $0xec] sm:$0xf]
  %v83 = vld [vmem:[%s1 + $0xf0] sm:$0xf]
  %v84 = vld [vmem:[%s1 + $0xf4] sm:$0xf]
  %v85 = vld [vmem:[%s1 + $0xf8] sm:$0xf]
  %v86 = vld [vmem:[%s1 + $0xfc] sm:$0xf]
  %v87 = vld [vmem:[%s1 + $0x100] sm:$0xf]
  %v88 = vld [vmem:[%s1 + $0x104] sm:$0xf]
  %v89 = vld [vmem:[%s1 + $0x108] sm:$0xf]
  %v90 = vld [vmem:[%s1 + $0x10c] sm:$0xf]
  %v91 = vld [vmem:[%s1 + $0x110] sm:$0xf]
  %v92 = vld [vmem:[%s1 + $0x114] sm:$0xf]
  %v93 = vld [vmem:[%s1 + $0x118] sm:$0xf]
  %v94 = vld [vmem:[%s1 + $0x11c] sm:$0xf]
  %v104 = vunpack.c.l.b16 %v14
  %v105 = vunpack.c.h.b16 %v14
  %v106 = vunpack.c.l.b16 %v15
  %v107 = vunpack.c.h.b16 %v15
  %v108 = vunpack.c.l.b16 %v16
  %v109 = vunpack.c.l.b16 %v17
  %v110 = vunpack.c.h.b16 %v17
  %v111 = vunpack.c.l.b16 %v18
  %v112 = vunpack.c.h.b16 %v18
  %v113 = vunpack.c.l.b16 %v19
  %v114 = vunpack.c.l.b16 %v20
  %v115 = vunpack.c.h.b16 %v20
  %v116 = vunpack.c.l.b16 %v21
  %v117 = vunpack.c.h.b16 %v21
  %v118 = vunpack.c.l.b16 %v22
  %v119 = vpack.c.b16 %v109, %v104
  %v120 = vpack.c.b16 %v110, %v105
  %v121 = vpack.c.b16 %v111, %v106
  %v122 = vpack.c.b16 %v112, %v107
  %v123 = vpack.c.b16 %v113, %v108
  %v124 = vpack.c.b16 %v114, %v114
  %v125 = vpack.c.b16 %v115, %v115
  %v126 = vpack.c.b16 %v116, %v116
  %v127 = vpack.c.b16 %v117, %v117
  %v128 = vpack.c.b16 %v118, %v118
  %v209 = vunpack.c.l.b16 %v23
  %v210 = vunpack.c.l.b16 %v24
  %v211 = vunpack.c.l.b16 %v25
  %v212 = vunpack.c.l.b16 %v26
  %v213 = vunpack.c.l.b16 %v27
  %v214 = vunpack.c.l.b16 %v28
  %v215 = vunpack.c.l.b16 %v29
  %v216 = vunpack.c.l.b16 %v30
  %v217 = vunpack.c.l.b16 %v31
  %v218 = vunpack.c.l.b16 %v32
  %v219 = vunpack.c.l.b16 %v33
  %v220 = vunpack.c.l.b16 %v34
  %v221 = vunpack.c.l.b16 %v35
  %v222 = vunpack.c.l.b16 %v36
  %v223 = vunpack.c.l.b16 %v37
  %v224 = vunpack.c.l.b16 %v38
  %v225 = vunpack.c.l.b16 %v39
  %v226 = vunpack.c.l.b16 %v40
  %v227 = vunpack.c.l.b16 %v41
  %v228 = vunpack.c.l.b16 %v42
  %v229 = vunpack.c.l.b16 %v43
  %v230 = vunpack.c.l.b16 %v44
  %v231 = vunpack.c.l.b16 %v45
  %v232 = vunpack.c.l.b16 %v46
  %v233 = vunpack.c.l.b16 %v47
  %v234 = vunpack.c.l.b16 %v48
  %v235 = vunpack.c.l.b16 %v49
  %v236 = vunpack.c.l.b16 %v50
  %v237 = vunpack.c.l.b16 %v51
  %v238 = vunpack.c.l.b16 %v52
  %v239 = vunpack.c.l.b16 %v53
  %v240 = vunpack.c.l.b16 %v54
  %v241 = vunpack.c.l.b16 %v55
  %v242 = vunpack.c.l.b16 %v56
  %v243 = vunpack.c.l.b16 %v57
  %v244 = vunpack.c.l.b16 %v58
  %v245 = vunpack.c.l.b16 %v59
  %v246 = vunpack.c.l.b16 %v60
  %v247 = vunpack.c.l.b16 %v61
  %v248 = vunpack.c.l.b16 %v62
  %v249 = vunpack.c.l.b16 %v63
  %v250 = vunpack.c.l.b16 %v64
  %v251 = vunpack.c.l.b16 %v65
  %v252 = vunpack.c.l.b16 %v66
  %v253 = vunpack.c.l.b16 %v67
  %v254 = vunpack.c.l.b16 %v68
  %v255 = vunpack.c.l.b16 %v69
  %v256 = vunpack.c.l.b16 %v70
  %v257 = vunpack.c.l.b16 %v71
  %v258 = vunpack.c.l.b16 %v72
  %v259 = vunpack.c.l.b16 %v73
  %v260 = vunpack.c.l.b16 %v74
  %v261 = vunpack.c.l.b16 %v75
  %v262 = vunpack.c.l.b16 %v76
  %v263 = vunpack.c.l.b16 %v77
  %v264 = vunpack.c.l.b16 %v78
  %v265 = vunpack.c.l.b16 %v79
  %v266 = vunpack.c.l.b16 %v80
  %v267 = vunpack.c.l.b16 %v81
  %v268 = vunpack.c.l.b16 %v82
  %v269 = vunpack.c.l.b16 %v83
  %v270 = vunpack.c.l.b16 %v84
  %v271 = vunpack.c.l.b16 %v85
  %v272 = vunpack.c.l.b16 %v86
  %v273 = vunpack.c.l.b16 %v87
  %v274 = vunpack.c.l.b16 %v88
  %v275 = vunpack.c.l.b16 %v89
  %v276 = vunpack.c.l.b16 %v90
  %v277 = vunpack.c.l.b16 %v91
  %v278 = vunpack.c.l.b16 %v92
  %v279 = vunpack.c.l.b16 %v93
  %v280 = vunpack.c.l.b16 %v94
  %v281 = vpack.c.b16 %v210, %v209
  %v282 = vpack.c.b16 %v212, %v211
  %v283 = vpack.c.b16 %v214, %v213
  %v284 = vpack.c.b16 %v216, %v215
  %v285 = vpack.c.b16 %v218, %v217
  %v286 = vpack.c.b16 %v220, %v219
  %v287 = vpack.c.b16 %v222, %v221
  %v288 = vpack.c.b16 %v224, %v223
  %v289 = vpack.c.b16 %v226, %v225
  %v290 = vpack.c.b16 %v228, %v227
  %v291 = vpack.c.b16 %v230, %v229
  %v292 = vpack.c.b16 %v232, %v231
  %v293 = vpack.c.b16 %v234, %v233
  %v294 = vpack.c.b16 %v236, %v235
  %v295 = vpack.c.b16 %v238, %v237
  %v296 = vpack.c.b16 %v240, %v239
  %v297 = vpack.c.b16 %v242, %v241
  %v298 = vpack.c.b16 %v244, %v243
  %v299 = vpack.c.b16 %v246, %v245
  %v300 = vpack.c.b16 %v248, %v247
  %v301 = vpack.c.b16 %v250, %v249
  %v302 = vpack.c.b16 %v252, %v251
  %v303 = vpack.c.b16 %v254, %v253
  %v304 = vpack.c.b16 %v256, %v255
  %v305 = vpack.c.b16 %v258, %v257
  %v306 = vpack.c.b16 %v260, %v259
  %v307 = vpack.c.b16 %v262, %v261
  %v308 = vpack.c.b16 %v264, %v263
  %v309 = vpack.c.b16 %v266, %v265
  %v310 = vpack.c.b16 %v268, %v267
  %v311 = vpack.c.b16 %v270, %v269
  %v312 = vpack.c.b16 %v272, %v271
  %v313 = vpack.c.b16 %v274, %v273
  %v314 = vpack.c.b16 %v276, %v275
  %v315 = vpack.c.b16 %v278, %v277
  %v316 = vpack.c.b16 %v280, %v279
  %vm353 = vcmask 523264
  %v355 = vsel %vm353, %v123, 0
  %v358 = vsel %vm353, %v128, 0
  %360 = vmatprep.subr.bf16.mxu0 0
  %361 = vmatpush1.bf16.msra.mxu0 %v288
  %362 = vmatprep.subr.bf16.mxu0 0
  %363 = vmatpush1.bf16.msra.mxu0 %v287
  %364 = vmatprep.subr.bf16.mxu0 0
  %365 = vmatpush1.bf16.msra.mxu0 %v286
  %366 = vmatprep.subr.bf16.mxu0 0
  %367 = vmatpush1.bf16.msra.mxu0 %v285
  %368 = vmatprep.subr.bf16.mxu0 0
  %369 = vmatpush1.bf16.msra.mxu0 %v284
  %370 = vmatprep.subr.bf16.mxu0 0
  %371 = vmatpush1.bf16.msra.mxu0 %v283
  %372 = vmatprep.subr.bf16.mxu0 0
  %373 = vmatpush1.bf16.msra.mxu0 %v282
  %374 = vmatprep.subr.bf16.mxu0 0
  %375 = vmatpush1.bf16.msra.mxu0 %v281
  %376 = vmatprep.subr.bf16.mxu0 0
  %377 = vmatpush2.bf16.msra.mxu0 %v296
  %378 = vmatprep.subr.bf16.mxu0 0
  %379 = vmatpush2.bf16.msra.mxu0 %v295
  %380 = vmatprep.subr.bf16.mxu0 0
  %381 = vmatpush2.bf16.msra.mxu0 %v294
  %382 = vmatprep.subr.bf16.mxu0 0
  %383 = vmatpush2.bf16.msra.mxu0 %v293
  %384 = vmatprep.subr.bf16.mxu0 0
  %385 = vmatpush2.bf16.msra.mxu0 %v292
  %386 = vmatprep.subr.bf16.mxu0 0
  %387 = vmatpush2.bf16.msra.mxu0 %v291
  %388 = vmatprep.subr.bf16.mxu0 0
  %389 = vmatpush2.bf16.msra.mxu0 %v290
  %390 = vmatprep.subr.bf16.mxu0 0
  %391 = vmatpush2.bf16.msra.mxu0 %v289
  %392 = vmatprep.mubr.bf16.mxu0 %v120
  %393 = vmatmul.mubr.bf16.gmra.mxu0 %v119
  %v394 = vpop.f32.mrf.mxu0
  %v395 = vadd.f32 0.0, %v394
  %v396 = vpop.f32.mrf.mxu0
  %v397 = vpop.f32.mrf.mxu0
  %v398 = vadd.f32 0.0, %v397
  %v399 = vpop.f32.mrf.mxu0
  %400 = vmatprep.mubr.bf16.mxu0 %v125
  %401 = vmatmul.mubr.bf16.gmra.mxu0 %v124
  %v402 = vpop.f32.mrf.mxu0
  %v403 = vadd.f32 0.0, %v402
  %v404 = vpop.f32.mrf.mxu0
  %v405 = vpop.f32.mrf.mxu0
  %v406 = vpop.f32.mrf.mxu0
  %407 = vdwg.mxu0
  %408 = vmatprep.subr.bf16.mxu0 0
  %409 = vmatpush1.bf16.msra.mxu0 %v304
  %410 = vmatprep.subr.bf16.mxu0 0
  %411 = vmatpush1.bf16.msra.mxu0 %v303
  %412 = vmatprep.subr.bf16.mxu0 0
  %413 = vmatpush1.bf16.msra.mxu0 %v302
  %414 = vmatprep.subr.bf16.mxu0 0
  %415 = vmatpush1.bf16.msra.mxu0 %v301
  %416 = vmatprep.subr.bf16.mxu0 0
  %417 = vmatpush1.bf16.msra.mxu0 %v300
  %418 = vmatprep.subr.bf16.mxu0 0
  %419 = vmatpush1.bf16.msra.mxu0 %v299
  %420 = vmatprep.subr.bf16.mxu0 0
  %421 = vmatpush1.bf16.msra.mxu0 %v298
  %422 = vmatprep.subr.bf16.mxu0 0
  %423 = vmatpush1.bf16.msra.mxu0 %v297
  %424 = vmatprep.subr.bf16.mxu0 0
  %425 = vmatpush2.bf16.msra.mxu0 %v312
  %426 = vmatprep.subr.bf16.mxu0 0
  %427 = vmatpush2.bf16.msra.mxu0 %v311
  %428 = vmatprep.subr.bf16.mxu0 0
  %429 = vmatpush2.bf16.msra.mxu0 %v310
  %430 = vmatprep.subr.bf16.mxu0 0
  %431 = vmatpush2.bf16.msra.mxu0 %v309
  %432 = vmatprep.subr.bf16.mxu0 0
  %433 = vmatpush2.bf16.msra.mxu0 %v308
  %434 = vmatprep.subr.bf16.mxu0 0
  %435 = vmatpush2.bf16.msra.mxu0 %v307
  %436 = vmatprep.subr.bf16.mxu0 0
  %437 = vmatpush2.bf16.msra.mxu0 %v306
  %438 = vmatprep.subr.bf16.mxu0 0
  %439 = vmatpush2.bf16.msra.mxu0 %v305
  %440 = vmatprep.mubr.bf16.mxu0 %v122
  %441 = vmatmul.mubr.bf16.gmra.mxu0 %v121
  %v442 = vpop.f32.mrf.mxu0
  %v443 = vadd.f32 %v395, %v442
  %v444 = vpop.f32.mrf.mxu0
  %v445 = vpop.f32.mrf.mxu0
  %v446 = vadd.f32 %v398, %v445
  %v447 = vpop.f32.mrf.mxu0
  %448 = vmatprep.mubr.bf16.mxu0 %v127
  %449 = vmatmul.mubr.bf16.gmra.mxu0 %v126
  %v450 = vpop.f32.mrf.mxu0
  %v451 = vadd.f32 %v403, %v450
  %v452 = vpop.f32.mrf.mxu0
  %v453 = vpop.f32.mrf.mxu0
  %v454 = vpop.f32.mrf.mxu0
  %455 = vdwg.mxu0
  %456 = vmatprep.subr.bf16.mxu0 0
  %457 = vmatpush1.bf16.msra.mxu0 0
  %458 = vmatprep.subr.bf16.mxu0 0
  %459 = vmatpush1.bf16.msra.mxu0 0
  %460 = vmatprep.subr.bf16.mxu0 0
  %461 = vmatpush1.bf16.msra.mxu0 0
  %462 = vmatprep.subr.bf16.mxu0 0
  %463 = vmatpush1.bf16.msra.mxu0 0
  %464 = vmatprep.subr.bf16.mxu0 0
  %465 = vmatpush1.bf16.msra.mxu0 %v316
  %466 = vmatprep.subr.bf16.mxu0 0
  %467 = vmatpush1.bf16.msra.mxu0 %v315
  %468 = vmatprep.subr.bf16.mxu0 0
  %469 = vmatpush1.bf16.msra.mxu0 %v314
  %470 = vmatprep.subr.bf16.mxu0 0
  %471 = vmatpush1.bf16.msra.mxu0 %v313
  %472 = vmatprep.subr.bf16.mxu0 0
  %473 = vmatpush2.bf16.msra.mxu0 0
  %474 = vmatprep.subr.bf16.mxu0 0
  %475 = vmatpush2.bf16.msra.mxu0 0
  %476 = vmatprep.subr.bf16.mxu0 0
  %477 = vmatpush2.bf16.msra.mxu0 0
  %478 = vmatprep.subr.bf16.mxu0 0
  %479 = vmatpush2.bf16.msra.mxu0 0
  %480 = vmatprep.subr.bf16.mxu0 0
  %481 = vmatpush2.bf16.msra.mxu0 0
  %482 = vmatprep.subr.bf16.mxu0 0
  %483 = vmatpush2.bf16.msra.mxu0 0
  %484 = vmatprep.subr.bf16.mxu0 0
  %485 = vmatpush2.bf16.msra.mxu0 0
  %486 = vmatprep.subr.bf16.mxu0 0
  %487 = vmatpush2.bf16.msra.mxu0 0
  %488 = vmatprep.mubr.bf16.mxu0 0
  %489 = vmatmul.mubr.bf16.gmra.mxu0 %v355
  %v490 = vpop.f32.mrf.mxu0
  %v491 = vadd.f32 %v443, %v490
  %v492 = vpop.f32.mrf.mxu0
  %v493 = vpop.f32.mrf.mxu0
  %v494 = vadd.f32 %v446, %v493
  %v495 = vpop.f32.mrf.mxu0
  %496 = vmatprep.mubr.bf16.mxu0 0
  %497 = vmatmul.mubr.bf16.gmra.mxu0 %v358
  %v498 = vpop.f32.mrf.mxu0
  %v499 = vadd.f32 %v451, %v498
  %v500 = vpop.f32.mrf.mxu0
  %v501 = vpop.f32.mrf.mxu0
  %v502 = vpop.f32.mrf.mxu0
  %503 = vdwg.mxu0
  %vm504 = vcmask 261120
  %505 = vst.msk [vmem:[%s2] sm:$0xff] %vm504, %v491
  %506 = vst.msk [vmem:[%s2 + $0x8] sm:$0xff] %vm504, %v494
  %vm507 = vcmask 254976
  %508 = vst.msk [vmem:[%s2 + $0x10] sm:$0x3] %vm507, %v499
  %v509 = vsel %vm504, %v491, 0.0
  %v510 = vsel %vm504, %v494, 0.0
  %v511 = vadd.f32 %v509, %v510
  %v512 = vsel %vm507, %v499, 0.0
  %v513 = vadd.f32 %v511, %v512
  %v514 = vrot.slane %v513, 4
  %v515 = vadd.f32 %v513, %v514
  %v516 = vrot.slane %v515, 2
  %v517 = vadd.f32 %v515, %v516
  %v518 = vrot.slane %v517, 1
  %v519 = vadd.f32 %v517, %v518
  %v520 = vmul.f32 %v491, %v491
  %v521 = vmul.f32 %v494, %v494
  %v522 = vmul.f32 %v499, %v499
  %v523 = vsel %vm504, %v520, 0.0
  %v524 = vsel %vm504, %v521, 0.0
  %v525 = vadd.f32 %v523, %v524
  %v526 = vsel %vm507, %v522, 0.0
  %v527 = vadd.f32 %v525, %v526
  %v528 = vrot.slane %v527, 4
  %v529 = vadd.f32 %v527, %v528
  %v530 = vrot.slane %v529, 2
  %v531 = vadd.f32 %v529, %v530
  %v532 = vrot.slane %v531, 1
  %v533 = vadd.f32 %v531, %v532
  %vm534 = vcmask 1040384
  %v535 = vsel %vm534, %v519, %v533
  %536 = vst.msk [vmem:[%s3] sm:$0x3] %vm507, %v535
  // Predicated region
  $region10: #{stage2_d_forward.29} parent=0 // pred_check
    _
  $region11: #{stage2_d_forward.29} parent=0 // pred_check_branch
    %538 = sbr.rel (0) target = $region13
  $region12: #{stage2_d_forward.29} parent=0 // pred_region
    _
  $region13: #{stage2_d_forward.29} parent=0 // pred_fallthru
    _
  // Predicated region
  $region14: #{stage2_d_forward.29} parent=0 // pred_check
    _
  $region15: #{stage2_d_forward.29} parent=0 // pred_check_branch
    %540 = sbr.rel (0) target = $region17
  $region16: #{stage2_d_forward.29} parent=0 // pred_region
    _
  $region17: #{stage2_d_forward.29} parent=0 // pred_fallthru
    _
  // Predicated region
  $region18: #{stage2_d_forward.29} parent=0 // pred_check
    _
  $region19: #{stage2_d_forward.29} parent=0 // pred_check_branch
    %542 = sbr.rel (0) target = $region21
  $region20: #{stage2_d_forward.29} parent=0 // pred_region
    _
  $region21: #{stage2_d_forward.29} parent=0 // pred_fallthru
    _
  // Predicated region
  $region22: #{stage2_d_forward.29} parent=0 // pred_check
    _
  $region23: #{stage2_d_forward.29} parent=0 // pred_check_branch
    %544 = sbr.rel (0) target = $region25
  $region24: #{stage2_d_forward.29} parent=0 // pred_region
    _
  $region25: #{stage2_d_forward.29} parent=0 // pred_fallthru
    _

// kernel: stage2_d_forward.30
$region0: #{stage2_d_forward.30}
  #allocation0 [shape = 'u32[]', space=smem, size = 0x4, offset = 0x4, fixed_abs, tag = 'smem constant byte address 0x4 - core index']
  #allocation1 [shape = 'u32[144,128]{1,0:T(1,128)}', space=vmem, size = 0x12000, scoped, tag = 'internal scratch']
  %s0 = inlined_call_operand.vmem [shape: f32[18,32], index: 0, kind: input, shape index: {}]
  %s1 = inlined_call_operand.vmem [shape: f32[1,32], index: 1, kind: input, shape index: {}]
  %s2 = inlined_call_operand.vmem [shape: f32[1,32], index: 2, kind: input, shape index: {}]
  %s3 = inlined_call_operand.vmem [shape: f32[18,32], index: 3, kind: output, shape index: {0}]
  %s4 = inlined_call_operand.vmem [shape: f32[1,2,32], index: 4, kind: output, shape index: {1}]
  %5 = xla_tuple %s3, %s4
  %s6 = sld [smem:[#allocation0]]
  $region30: #{stage2_d_forward.30} parent=0
    _
  %s8 = ssub.s32 1, %s6
  %s9 = scalar_select 0, %s8, %s6
  // Predicated region
  $region2: #{stage2_d_forward.30} parent=0 // pred_check
    _
  $region3: #{stage2_d_forward.30} parent=0 // pred_check_branch
    %11 = sbr.rel (0) target = $region5
  $region4: #{stage2_d_forward.30} parent=0 // pred_region
    _
  $region5: #{stage2_d_forward.30} parent=0 // pred_fallthru
    _
  // Predicated region
  $region6: #{stage2_d_forward.30} parent=0 // pred_check
    _
  $region7: #{stage2_d_forward.30} parent=0 // pred_check_branch
    %13 = sbr.rel (0) target = $region9
  $region8: #{stage2_d_forward.30} parent=0 // pred_region
    _
  $region9: #{stage2_d_forward.30} parent=0 // pred_fallthru
    _
  // Predicated region
  $region10: #{stage2_d_forward.30} parent=0 // pred_check
    _
  $region11: #{stage2_d_forward.30} parent=0 // pred_check_branch
    %15 = sbr.rel (0) target = $region13
  $region12: #{stage2_d_forward.30} parent=0 // pred_region
    _
  $region13: #{stage2_d_forward.30} parent=0 // pred_fallthru
    _
  %v16 = vld [vmem:[%s0] sm:$0xff]
  %v17 = vld [vmem:[%s0 + $0x8] sm:$0xff]
  %v18 = vld [vmem:[%s0 + $0x10] sm:$0x3]
  %v19 = vld [vmem:[%s1] sm:$0x1]
  %v21 = vlaneseq
  %v22 = vshrl.u32 %v21, 7
  %v23 = vsub.s32 0, %v22
  %v24 = vrot.slane %v19, %v23
  %v26 = vmul.f32 %v16, %v24
  %v27 = vmul.f32 %v17, %v24
  %v28 = vmul.f32 %v18, %v24
  %v29 = vld [vmem:[%s2] sm:$0x1]
  %v31 = vlaneseq
  %v32 = vshrl.u32 %v31, 7
  %v33 = vsub.s32 0, %v32
  %v34 = vrot.slane %v29, %v33
  %v36 = vadd.f32 %v26, %v34
  %v37 = vadd.f32 %v27, %v34
  %v38 = vadd.f32 %v28, %v34
  %vm39 = vcmp.ge.f32.partialorder %v36, 0.0
  %vm40 = vcmp.ge.f32.partialorder %v37, 0.0
  %vm41 = vcmp.ge.f32.partialorder %v38, 0.0
  %v42 = vmul.f32 %v36, 0.2
  %v43 = vmul.f32 %v37, 0.2
  %v44 = vmul.f32 %v38, 0.2
  %v45 = vsel %vm39, %v36, %v42
  %v46 = vsel %vm40, %v37, %v43
  %v47 = vsel %vm41, %v38, %v44
  %vm48 = vcmask 261120
  %49 = vst.msk [vmem:[%s3] sm:$0xff] %vm48, %v45
  %50 = vst.msk [vmem:[%s3 + $0x8] sm:$0xff] %vm48, %v46
  %vm51 = vcmask 254976
  %52 = vst.msk [vmem:[%s3 + $0x10] sm:$0x3] %vm51, %v47
  %v53 = vsel %vm48, %v45, 0.0
  %v54 = vsel %vm48, %v46, 0.0
  %v55 = vadd.f32 %v53, %v54
  %v56 = vsel %vm51, %v47, 0.0
  %v57 = vadd.f32 %v55, %v56
  %v58 = vrot.slane %v57, 4
  %v59 = vadd.f32 %v57, %v58
  %v60 = vrot.slane %v59, 2
  %v61 = vadd.f32 %v59, %v60
  %v62 = vrot.slane %v61, 1
  %v63 = vadd.f32 %v61, %v62
  %v64 = vmul.f32 %v45, %v45
  %v65 = vmul.f32 %v46, %v46
  %v66 = vmul.f32 %v47, %v47
  %v67 = vsel %vm48, %v64, 0.0
  %v68 = vsel %vm48, %v65, 0.0
  %v69 = vadd.f32 %v67, %v68
  %v70 = vsel %vm51, %v66, 0.0
  %v71 = vadd.f32 %v69, %v70
  %v72 = vrot.slane %v71, 4
  %v73 = vadd.f32 %v71, %v72
  %v74 = vrot.slane %v73, 2
  %v75 = vadd.f32 %v73, %v74
  %v76 = vrot.slane %v75, 1
  %v77 = vadd.f32 %v75, %v76
  %vm78 = vcmask 1040384
  %v79 = vsel %vm78, %v63, %v77
  %80 = vst.msk [vmem:[%s4] sm:$0x3] %vm51, %v79
  // Predicated region
  $region14: #{stage2_d_forward.30} parent=0 // pred_check
    _
  $region15: #{stage2_d_forward.30} parent=0 // pred_check_branch
    %82 = sbr.rel (0) target = $region17
  $region16: #{stage2_d_forward.30} parent=0 // pred_region
    _
  $region17: #{stage2_d_forward.30} parent=0 // pred_fallthru
    _
  // Predicated region
  $region18: #{stage2_d_forward.30} parent=0 // pred_check
    _
  $region19: #{stage2_d_forward.30} parent=0 // pred_check_branch
    %84 = sbr.rel (0) target = $region21
  $region20: #{stage2_d_forward.30} parent=0 // pred_region
    _
  $region21: #{stage2_d_forward.30} parent=0 // pred_fallthru
    _
  // Predicated region
  $region22: #{stage2_d_forward.30} parent=0 // pred_check
    _
  $region23: #{stage2_d_forward.30} parent=0 // pred_check_branch
    %86 = sbr.rel (0) target = $region25
  $region24: #{stage2_d_forward.30} parent=0 // pred_region
    _
  $region25: #{stage2_d_forward.30} parent=0 // pred_fallthru
    _
  // Predicated region
  $region26: #{stage2_d_forward.30} parent=0 // pred_check
    _
  $region27: #{stage2_d_forward.30} parent=0 // pred_check_branch
    %88 = sbr.rel (0) target = $region29
  $region28: #{stage2_d_forward.30} parent=0 // pred_region
    _
  $region29: #{stage2_d_forward.30} parent=0 // pred_fallthru
    _

// kernel: stage2_d_forward.31
$region0: #{stage2_d_forward.31}
  #allocation0 [shape = 'u32[]', space=smem, size = 0x4, offset = 0x4, fixed_abs, tag = 'smem constant byte address 0x4 - core index']
  #allocation1 [shape = 'u32[144,128]{1,0:T(1,128)}', space=vmem, size = 0x12000, scoped, tag = 'internal scratch']
  %s0 = inlined_call_operand.vmem [shape: f32[2,288], index: 0, kind: input, shape index: {}]
  %s1 = inlined_call_operand.vmem [shape: f32[1,288], index: 1, kind: input, shape index: {}]
  %s2 = inlined_call_operand.vmem [shape: f32[1,288], index: 2, kind: input, shape index: {}]
  %s3 = inlined_call_operand.vmem [shape: bf16[288,128], index: 3, kind: input, shape index: {}]
  %s4 = inlined_call_operand.vmem [shape: f32[1,128], index: 4, kind: input, shape index: {}]
  %s5 = inlined_call_operand.vmem [shape: f32[2,128], index: 5, kind: output, shape index: {}]
  %s6 = sld [smem:[#allocation0]]
  $region30: #{stage2_d_forward.31} parent=0
    _
  %s8 = ssub.s32 1, %s6
  %s9 = scalar_select 0, %s8, %s6
  // Predicated region
  $region2: #{stage2_d_forward.31} parent=0 // pred_check
    _
  $region3: #{stage2_d_forward.31} parent=0 // pred_check_branch
    %11 = sbr.rel (0) target = $region5
  $region4: #{stage2_d_forward.31} parent=0 // pred_region
    _
  $region5: #{stage2_d_forward.31} parent=0 // pred_fallthru
    _
  // Predicated region
  $region6: #{stage2_d_forward.31} parent=0 // pred_check
    _
  $region7: #{stage2_d_forward.31} parent=0 // pred_check_branch
    %13 = sbr.rel (0) target = $region9
  $region8: #{stage2_d_forward.31} parent=0 // pred_region
    _
  $region9: #{stage2_d_forward.31} parent=0 // pred_fallthru
    _
  // Predicated region
  $region10: #{stage2_d_forward.31} parent=0 // pred_check
    _
  $region11: #{stage2_d_forward.31} parent=0 // pred_check_branch
    %15 = sbr.rel (0) target = $region13
  $region12: #{stage2_d_forward.31} parent=0 // pred_region
    _
  $region13: #{stage2_d_forward.31} parent=0 // pred_fallthru
    _
  // Predicated region
  $region14: #{stage2_d_forward.31} parent=0 // pred_check
    _
  $region15: #{stage2_d_forward.31} parent=0 // pred_check_branch
    %17 = sbr.rel (0) target = $region17
  $region16: #{stage2_d_forward.31} parent=0 // pred_region
    _
  $region17: #{stage2_d_forward.31} parent=0 // pred_fallthru
    _
  // Predicated region
  $region18: #{stage2_d_forward.31} parent=0 // pred_check
    _
  $region19: #{stage2_d_forward.31} parent=0 // pred_check_branch
    %19 = sbr.rel (0) target = $region21
  $region20: #{stage2_d_forward.31} parent=0 // pred_region
    _
  $region21: #{stage2_d_forward.31} parent=0 // pred_fallthru
    _
  %v21 = vld [vmem:[%s0] sm:$0x3f]
  %v22 = vld [vmem:[%s1] sm:$0x7]
  %v24 = vlaneseq
  %v25 = vshrl.u32 %v24, 7
  %v26 = vsub.s32 0, %v25
  %v27 = vrot.slane %v22, %v26
  %v28 = vlaneseq
  %v29 = vshrl.u32 %v28, 7
  %v30 = vsub.s32 1, %v29
  %v31 = vrot.slane %v22, %v30
  %v32 = vlaneseq
  %v33 = vshrl.u32 %v32, 7
  %v34 = vsub.s32 2, %v33
  %v35 = vrot.slane %v22, %v34
  %v36 = vcombine.low %v27, %v31
  %v38 = vunpack.c.l.s4 1983009808
  %v39 = vunpack.c.0.s8 %v38
  %v40 = vlaneseq
  %v41 = vshrl.u32 %v40, 7
  %v42 = vsub.s32 %v39, %v41
  %v43 = vrot.slane %v36, %v42
  %v45 = vunpack.c.l.s4 1983009808
  %v46 = vunpack.c.0.s8 %v45
  %v47 = vlaneseq
  %v48 = vshrl.u32 %v47, 7
  %v49 = vsub.s32 %v46, %v48
  %v50 = vrot.slane %v35, %v49
  %v51 = vcombine.low %v43, %v50
  %v53 = vmul.f32 %v21, %v51
  %v54 = vld [vmem:[%s2] sm:$0x7]
  %v56 = vlaneseq
  %v57 = vshrl.u32 %v56, 7
  %v58 = vsub.s32 0, %v57
  %v59 = vrot.slane %v54, %v58
  %v60 = vlaneseq
  %v61 = vshrl.u32 %v60, 7
  %v62 = vsub.s32 1, %v61
  %v63 = vrot.slane %v54, %v62
  %v64 = vlaneseq
  %v65 = vshrl.u32 %v64, 7
  %v66 = vsub.s32 2, %v65
  %v67 = vrot.slane %v54, %v66
  %v68 = vcombine.low %v59, %v63
  %v70 = vunpack.c.l.s4 1983009808
  %v71 = vunpack.c.0.s8 %v70
  %v72 = vlaneseq
  %v73 = vshrl.u32 %v72, 7
  %v74 = vsub.s32 %v71, %v73
  %v75 = vrot.slane %v68, %v74
  %v77 = vunpack.c.l.s4 1983009808
  %v78 = vunpack.c.0.s8 %v77
  %v79 = vlaneseq
  %v80 = vshrl.u32 %v79, 7
  %v81 = vsub.s32 %v78, %v80
  %v82 = vrot.slane %v67, %v81
  %v83 = vcombine.low %v75, %v82
  %v85 = vadd.f32 %v53, %v83
  %vm86 = vcmp.ge.f32.partialorder %v85, 0.0
  %v87 = vmul.f32 %v85, 0.2
  %v88 = vsel %vm86, %v85, %v87
  %v90 = vcombine.high %v88, %v88
  %v92 = vunpack.c.l.s4 1983009808
  %v93 = vunpack.c.0.s8 %v92
  %v94 = vlaneseq
  %v95 = vshrl.u32 %v94, 7
  %v96 = vsub.s32 %v93, %v95
  %v97 = vrot.slane %v88, %v96
  %v99 = vunpack.c.l.s4 1983009808
  %v100 = vunpack.c.0.s8 %v99
  %v101 = vlaneseq
  %v102 = vshrl.u32 %v101, 7
  %v103 = vsub.s32 %v100, %v102
  %v104 = vrot.slane %v90, %v103
  %v105 = vcombine.high %v97, %v97
  %v109 = vpack.c.bf16 %v97, %v97
  %v110 = vpack.c.bf16 %v105, %v105
  %v111 = vpack.c.bf16 %v104, %v104
  %v112 = vld [vmem:[%s3] sm:$0xf]
  %v113 = vld [vmem:[%s3 + $0x4] sm:$0xf]
  %v114 = vld [vmem:[%s3 + $0x8] sm:$0xf]
  %v115 = vld [vmem:[%s3 + $0xc] sm:$0xf]
  %v116 = vld [vmem:[%s3 + $0x10] sm:$0xf]
  %v117 = vld [vmem:[%s3 + $0x14] sm:$0xf]
  %v118 = vld [vmem:[%s3 + $0x18] sm:$0xf]
  %v119 = vld [vmem:[%s3 + $0x1c] sm:$0xf]
  %v120 = vld [vmem:[%s3 + $0x20] sm:$0xf]
  %v121 = vld [vmem:[%s3 + $0x24] sm:$0xf]
  %v122 = vld [vmem:[%s3 + $0x28] sm:$0xf]
  %v123 = vld [vmem:[%s3 + $0x2c] sm:$0xf]
  %v124 = vld [vmem:[%s3 + $0x30] sm:$0xf]
  %v125 = vld [vmem:[%s3 + $0x34] sm:$0xf]
  %v126 = vld [vmem:[%s3 + $0x38] sm:$0xf]
  %v127 = vld [vmem:[%s3 + $0x3c] sm:$0xf]
  %v128 = vld [vmem:[%s3 + $0x40] sm:$0xf]
  %v129 = vld [vmem:[%s3 + $0x44] sm:$0xf]
  %v130 = vld [vmem:[%s3 + $0x48] sm:$0xf]
  %v131 = vld [vmem:[%s3 + $0x4c] sm:$0xf]
  %v132 = vld [vmem:[%s3 + $0x50] sm:$0xf]
  %v133 = vld [vmem:[%s3 + $0x54] sm:$0xf]
  %v134 = vld [vmem:[%s3 + $0x58] sm:$0xf]
  %v135 = vld [vmem:[%s3 + $0x5c] sm:$0xf]
  %v136 = vld [vmem:[%s3 + $0x60] sm:$0xf]
  %v137 = vld [vmem:[%s3 + $0x64] sm:$0xf]
  %v138 = vld [vmem:[%s3 + $0x68] sm:$0xf]
  %v139 = vld [vmem:[%s3 + $0x6c] sm:$0xf]
  %v140 = vld [vmem:[%s3 + $0x70] sm:$0xf]
  %v141 = vld [vmem:[%s3 + $0x74] sm:$0xf]
  %v142 = vld [vmem:[%s3 + $0x78] sm:$0xf]
  %v143 = vld [vmem:[%s3 + $0x7c] sm:$0xf]
  %v144 = vld [vmem:[%s3 + $0x80] sm:$0xf]
  %v145 = vld [vmem:[%s3 + $0x84] sm:$0xf]
  %v146 = vld [vmem:[%s3 + $0x88] sm:$0xf]
  %v147 = vld [vmem:[%s3 + $0x8c] sm:$0xf]
  %v148 = vld [vmem:[%s4] sm:$0x1]
  %v150 = vlaneseq
  %v151 = vshrl.u32 %v150, 7
  %v152 = vsub.s32 0, %v151
  %v153 = vrot.slane %v148, %v152
  %v191 = vunpack.c.l.b16 %v112
  %v192 = vunpack.c.l.b16 %v113
  %v193 = vunpack.c.l.b16 %v114
  %v194 = vunpack.c.l.b16 %v115
  %v195 = vunpack.c.l.b16 %v116
  %v196 = vunpack.c.l.b16 %v117
  %v197 = vunpack.c.l.b16 %v118
  %v198 = vunpack.c.l.b16 %v119
  %v199 = vunpack.c.l.b16 %v120
  %v200 = vunpack.c.l.b16 %v121
  %v201 = vunpack.c.l.b16 %v122
  %v202 = vunpack.c.l.b16 %v123
  %v203 = vunpack.c.l.b16 %v124
  %v204 = vunpack.c.l.b16 %v125
  %v205 = vunpack.c.l.b16 %v126
  %v206 = vunpack.c.l.b16 %v127
  %v207 = vunpack.c.l.b16 %v128
  %v208 = vunpack.c.l.b16 %v129
  %v209 = vunpack.c.l.b16 %v130
  %v210 = vunpack.c.l.b16 %v131
  %v211 = vunpack.c.l.b16 %v132
  %v212 = vunpack.c.l.b16 %v133
  %v213 = vunpack.c.l.b16 %v134
  %v214 = vunpack.c.l.b16 %v135
  %v215 = vunpack.c.l.b16 %v136
  %v216 = vunpack.c.l.b16 %v137
  %v217 = vunpack.c.l.b16 %v138
  %v218 = vunpack.c.l.b16 %v139
  %v219 = vunpack.c.l.b16 %v140
  %v220 = vunpack.c.l.b16 %v141
  %v221 = vunpack.c.l.b16 %v142
  %v222 = vunpack.c.l.b16 %v143
  %v223 = vunpack.c.l.b16 %v144
  %v224 = vunpack.c.l.b16 %v145
  %v225 = vunpack.c.l.b16 %v146
  %v226 = vunpack.c.l.b16 %v147
  %v227 = vpack.c.b16 %v192, %v191
  %v228 = vpack.c.b16 %v194, %v193
  %v229 = vpack.c.b16 %v196, %v195
  %v230 = vpack.c.b16 %v198, %v197
  %v231 = vpack.c.b16 %v200, %v199
  %v232 = vpack.c.b16 %v202, %v201
  %v233 = vpack.c.b16 %v204, %v203
  %v234 = vpack.c.b16 %v206, %v205
  %v235 = vpack.c.b16 %v208, %v207
  %v236 = vpack.c.b16 %v210, %v209
  %v237 = vpack.c.b16 %v212, %v211
  %v238 = vpack.c.b16 %v214, %v213
  %v239 = vpack.c.b16 %v216, %v215
  %v240 = vpack.c.b16 %v218, %v217
  %v241 = vpack.c.b16 %v220, %v219
  %v242 = vpack.c.b16 %v222, %v221
  %v243 = vpack.c.b16 %v224, %v223
  %v244 = vpack.c.b16 %v226, %v225
  %vm263 = vcmask 261120
  %v265 = vsel %vm263, %v111, 0
  %267 = vmatprep.subr.bf16.mxu0 0
  %268 = vmatpush1.bf16.msra.mxu0 %v234
  %269 = vmatprep.subr.bf16.mxu0 0
  %270 = vmatpush1.bf16.msra.mxu0 %v233
  %271 = vmatprep.subr.bf16.mxu0 0
  %272 = vmatpush1.bf16.msra.mxu0 %v232
  %273 = vmatprep.subr.bf16.mxu0 0
  %274 = vmatpush1.bf16.msra.mxu0 %v231
  %275 = vmatprep.subr.bf16.mxu0 0
  %276 = vmatpush1.bf16.msra.mxu0 %v230
  %277 = vmatprep.subr.bf16.mxu0 0
  %278 = vmatpush1.bf16.msra.mxu0 %v229
  %279 = vmatprep.subr.bf16.mxu0 0
  %280 = vmatpush1.bf16.msra.mxu0 %v228
  %281 = vmatprep.subr.bf16.mxu0 0
  %282 = vmatpush1.bf16.msra.mxu0 %v227
  %283 = vmatprep.subr.bf16.mxu0 0
  %284 = vmatpush2.bf16.msra.mxu0 %v242
  %285 = vmatprep.subr.bf16.mxu0 0
  %286 = vmatpush2.bf16.msra.mxu0 %v241
  %287 = vmatprep.subr.bf16.mxu0 0
  %288 = vmatpush2.bf16.msra.mxu0 %v240
  %289 = vmatprep.subr.bf16.mxu0 0
  %290 = vmatpush2.bf16.msra.mxu0 %v239
  %291 = vmatprep.subr.bf16.mxu0 0
  %292 = vmatpush2.bf16.msra.mxu0 %v238
  %293 = vmatprep.subr.bf16.mxu0 0
  %294 = vmatpush2.bf16.msra.mxu0 %v237
  %295 = vmatprep.subr.bf16.mxu0 0
  %296 = vmatpush2.bf16.msra.mxu0 %v236
  %297 = vmatprep.subr.bf16.mxu0 0
  %298 = vmatpush2.bf16.msra.mxu0 %v235
  %299 = vmatprep.mubr.bf16.mxu0 %v110
  %300 = vmatmul.mubr.bf16.gmra.mxu0 %v109
  %v301 = vpop.f32.mrf.mxu0
  %v302 = vadd.f32 %v153, %v301
  %v303 = vpop.f32.mrf.mxu0
  %v304 = vpop.f32.mrf.mxu0
  %v305 = vpop.f32.mrf.mxu0
  %306 = vdwg.mxu0
  %307 = vmatprep.subr.bf16.mxu0 0
  %308 = vmatpush1.bf16.msra.mxu0 0
  %309 = vmatprep.subr.bf16.mxu0 0
  %310 = vmatpush1.bf16.msra.mxu0 0
  %311 = vmatprep.subr.bf16.mxu0 0
  %312 = vmatpush1.bf16.msra.mxu0 0
  %313 = vmatprep.subr.bf16.mxu0 0
  %314 = vmatpush1.bf16.msra.mxu0 0
  %315 = vmatprep.subr.bf16.mxu0 0
  %316 = vmatpush1.bf16.msra.mxu0 0
  %317 = vmatprep.subr.bf16.mxu0 0
  %318 = vmatpush1.bf16.msra.mxu0 0
  %319 = vmatprep.subr.bf16.mxu0 0
  %320 = vmatpush1.bf16.msra.mxu0 %v244
  %321 = vmatprep.subr.bf16.mxu0 0
  %322 = vmatpush1.bf16.msra.mxu0 %v243
  %323 = vmatprep.subr.bf16.mxu0 0
  %324 = vmatpush2.bf16.msra.mxu0 0
  %325 = vmatprep.subr.bf16.mxu0 0
  %326 = vmatpush2.bf16.msra.mxu0 0
  %327 = vmatprep.subr.bf16.mxu0 0
  %328 = vmatpush2.bf16.msra.mxu0 0
  %329 = vmatprep.subr.bf16.mxu0 0
  %330 = vmatpush2.bf16.msra.mxu0 0
  %331 = vmatprep.subr.bf16.mxu0 0
  %332 = vmatpush2.bf16.msra.mxu0 0
  %333 = vmatprep.subr.bf16.mxu0 0
  %334 = vmatpush2.bf16.msra.mxu0 0
  %335 = vmatprep.subr.bf16.mxu0 0
  %336 = vmatpush2.bf16.msra.mxu0 0
  %337 = vmatprep.subr.bf16.mxu0 0
  %338 = vmatpush2.bf16.msra.mxu0 0
  %339 = vmatprep.mubr.bf16.mxu0 0
  %340 = vmatmul.mubr.bf16.gmra.mxu0 %v265
  %v341 = vpop.f32.mrf.mxu0
  %v342 = vadd.f32 %v302, %v341
  %v343 = vpop.f32.mrf.mxu0
  %v344 = vpop.f32.mrf.mxu0
  %v345 = vpop.f32.mrf.mxu0
  %346 = vdwg.mxu0
  %v347 = vsub.f32 0.0, %v342
  %v348 = vmul.f32 %v347, 1.442695
  %v349 = vpow.pop %v348
  %v350 = vadd.f32 %v349, 1.0
  %v351 = vrcp.pop %v350
  %v352 = vmul.f32 1.0, %v351
  %353 = vst [vmem:[%s5] sm:$0x3] %v352
  // Predicated region
  $region22: #{stage2_d_forward.31} parent=0 // pred_check
    _
  $region23: #{stage2_d_forward.31} parent=0 // pred_check_branch
    %355 = sbr.rel (0) target = $region25
  $region24: #{stage2_d_forward.31} parent=0 // pred_region
    _
  $region25: #{stage2_d_forward.31} parent=0 // pred_fallthru
    _
  // Predicated region
  $region26: #{stage2_d_forward.31} parent=0 // pred_check
    _
  $region27: #{stage2_d_forward.31} parent=0 // pred_check_branch
    %357 = sbr.rel (0) target = $region29
  $region28: #{stage2_d_forward.31} parent=0 // pred_region
    _
  $region29: #{stage2_d_forward.31} parent=0 // pred_fallthru
    _

</llo_original>
